<compile_context>
chip_gen: v7x
topology: tpu7x:2x2x1
jax: 0.10.0
libtpu: 0.0.40
codegen_flags: <defaults>
</compile_context>

<pallas_src>
import functools

import jax
import jax.numpy as jnp
from jax import lax
from jax.experimental import pallas as pl
from jax.experimental.pallas import tpu as pltpu

EPS = 1e-5
NEG_INF = -1e30

_BLOCK_WEIGHT_NAMES = (
    'ln1_g', 'ln1_b',
    'sa_wq', 'sa_bq', 'sa_wk', 'sa_bk', 'sa_wv', 'sa_bv', 'sa_wo', 'sa_bo',
    'ln2_g', 'ln2_b',
    'ca_wq', 'ca_bq', 'ca_wk', 'ca_bk', 'ca_wv', 'ca_bv', 'ca_wo', 'ca_bo',
    'ln3_g', 'ln3_b',
    'ff_w1', 'ff_b1', 'ff_w2', 'ff_b2',
)


def _round_up(x, m):
    return ((x + m - 1) // m) * m


def _nbytes(a):
    return int(a.size) * a.dtype.itemsize


# ----------------------------- in-kernel helpers -----------------------------

def _layernorm(x, g, b):
    # single-pass statistics: E[x] and E[x^2] together, var = E[x^2] - E[x]^2
    mu = jnp.mean(x, axis=-1, keepdims=True)
    m2 = jnp.mean(x * x, axis=-1, keepdims=True)
    var = m2 - mu * mu
    return (x - mu) * lax.rsqrt(var + EPS) * g + b


def _mha(xq, xkv, B, Tq, Tk,
         wq_ref, bq_ref, wk_ref, bk_ref, wv_ref, bv_ref, wo_ref, bo_ref,
         mask, n_heads):
    """Multi-head attention with head-split weights.

    xq: (B*Tq, E) f32 queries; xkv: (B*Tk, E) f32 keys/values.
    wq/wk/wv refs: (H, E, hd) bf16 (qk scale pre-folded into wq);
    bq/bk/bv refs: (H, 1, hd) f32; wo ref: (H, hd, E) bf16; bo ref: (1, E) f32.
    mask: (B, Tq, Tk) additive f32 mask or None.
    No activation lane-slicing and no concat: per-head outputs are projected
    with (hd, E) weight slabs and accumulated.
    """
    E = xq.shape[-1]
    xq_b = xq.astype(jnp.bfloat16)
    xkv_b = xkv.astype(jnp.bfloat16)
    out = jnp.zeros((B * Tq, E), jnp.float32)
    for h in range(n_heads):
        q = jnp.dot(xq_b, wq_ref[h], preferred_element_type=jnp.float32) + bq_ref[h]
        k = jnp.dot(xkv_b, wk_ref[h], preferred_element_type=jnp.float32) + bk_ref[h]
        v = jnp.dot(xkv_b, wv_ref[h], preferred_element_type=jnp.float32) + bv_ref[h]
        hd = q.shape[-1]
        s = jnp.einsum('bqd,bkd->bqk',
                       q.reshape(B, Tq, hd).astype(jnp.bfloat16),
                       k.reshape(B, Tk, hd).astype(jnp.bfloat16),
                       preferred_element_type=jnp.float32)          # (B,Tq,Tk)
        if mask is not None:
            s = s + mask
        s = s - jnp.max(s, axis=-1, keepdims=True)
        p = jnp.exp(s)
        p = p * pl.reciprocal(jnp.sum(p, axis=-1, keepdims=True), approx=True)
        o = jnp.einsum('bqk,bkd->bqd',
                       p.astype(jnp.bfloat16),
                       v.reshape(B, Tk, hd).astype(jnp.bfloat16),
                       preferred_element_type=jnp.float32)          # (B,Tq,hd)
        out = out + jnp.dot(o.reshape(B * Tq, hd).astype(jnp.bfloat16),
                            wo_ref[h], preferred_element_type=jnp.float32)
    return out + bo_ref[...]


# ------------------------- kernel 1: decoder blocks -------------------------

def decoder_blocks_kernel(x_ref, enc_ref, kpm_ref, *refs, n_heads, causal_cross):
    nblk = len(_BLOCK_WEIGHT_NAMES)
    w = dict(zip(_BLOCK_WEIGHT_NAMES, refs[:nblk]))   # current layer's weights
    lnf_g_ref, lnf_b_ref, out_ref, x_acc = refs[nblk:]

    l = pl.program_id(0)
    n_layers = pl.num_programs(0)

    @pl.when(l == 0)
    def _init():
        x_acc[...] = x_ref[...]          # activation resident in VMEM scratch

    B, T = kpm_ref.shape
    S = enc_ref.shape[0] // B

    # additive attention masks built on-chip (few VPU ops, no HBM traffic)
    row = lax.broadcasted_iota(jnp.int32, (T, T), 0)
    col = lax.broadcasted_iota(jnp.int32, (T, T), 1)
    causal = jnp.where(row >= col, 0.0, NEG_INF)                    # (T, T)
    kpm = jnp.where(kpm_ref[...] > 0.5, 0.0, NEG_INF)               # (B, T)
    smask = causal[None, :, :] + kpm[:, None, :]                    # (B, T, T)
    cmask = smask if causal_cross else None                         # ref semantics

    x = x_acc[...]
    enc = enc_ref[...]

    # self-attention (pre-LN) + residual
    xn = _layernorm(x, w['ln1_g'][...], w['ln1_b'][...])
    x = x + _mha(xn, xn, B, T, T,
                 w['sa_wq'], w['sa_bq'], w['sa_wk'], w['sa_bk'],
                 w['sa_wv'], w['sa_bv'], w['sa_wo'], w['sa_bo'],
                 smask, n_heads)

    # cross-attention (pre-LN) + residual
    xn = _layernorm(x, w['ln2_g'][...], w['ln2_b'][...])
    x = x + _mha(xn, enc, B, T, S,
                 w['ca_wq'], w['ca_bq'], w['ca_wk'], w['ca_bk'],
                 w['ca_wv'], w['ca_bv'], w['ca_wo'], w['ca_bo'],
                 cmask, n_heads)

    # feed-forward (pre-LN) + residual (dropout = identity in eval)
    xn = _layernorm(x, w['ln3_g'][...], w['ln3_b'][...])
    h = jnp.dot(xn.astype(jnp.bfloat16), w['ff_w1'][...],
                preferred_element_type=jnp.float32) + w['ff_b1'][...]
    h = jnp.maximum(h, 0.0)
    x = x + jnp.dot(h.astype(jnp.bfloat16), w['ff_w2'][...],
                    preferred_element_type=jnp.float32) + w['ff_b2'][...]

    x_acc[...] = x

    @pl.when(l == n_layers - 1)
    def _finalize():
        out_ref[...] = _layernorm(x, lnf_g_ref[...], lnf_b_ref[...])


# --------------------------- kernel 2: tied lm_head ---------------------------

def lm_head_kernel(xn_ref, lmw_ref, out_ref):
    out_ref[...] = jnp.dot(xn_ref[...].astype(jnp.bfloat16), lmw_ref[...],
                           preferred_element_type=jnp.float32)


# ------------------------------- glue / wrappers -------------------------------

def pack_params(params):
    """One-time prep: transpose weights to (in,out), split attention weights
    per head, fold the qk scale into wq/bq, cast matmul weights to bf16, stack
    per-layer weights along a leading layer axis, and pad the tied lm_head to a
    lane-dense multiple of the vocab tile."""
    blocks = params['blocks']
    L = len(blocks)
    H = params['n_heads']
    V, E = params['tok_emb'].shape
    hd = E // H
    scale = 1.0 / (hd ** 0.5)

    def heads_out(w_io):   # (E_in, E_out) -> (H, E_in, hd), split output cols
        return jnp.stack([w_io[:, h * hd:(h + 1) * hd] for h in range(H)])

    def heads_bias(b):     # (1, E_out) -> (H, 1, hd)
        return jnp.stack([b[:, h * hd:(h + 1) * hd] for h in range(H)])

    def heads_in(w_io):    # (E_in, E_out) -> (H, hd, E_out), split input rows
        return jnp.stack([w_io[h * hd:(h + 1) * hd, :] for h in range(H)])

    def per_block(name, blk):
        if name in ('sa_wq', 'ca_wq'):
            return heads_out(blk[name].T * scale).astype(jnp.bfloat16)
        if name in ('sa_bq', 'ca_bq'):
            return heads_bias(blk[name] * scale)
        if name in ('sa_wk', 'sa_wv', 'ca_wk', 'ca_wv'):
            return heads_out(blk[name].T).astype(jnp.bfloat16)
        if name in ('sa_bk', 'sa_bv', 'ca_bk', 'ca_bv'):
            return heads_bias(blk[name])
        if name in ('sa_wo', 'ca_wo'):
            return heads_in(blk[name].T).astype(jnp.bfloat16)
        if name in ('ff_w1', 'ff_w2'):
            return blk[name].T.astype(jnp.bfloat16)
        return blk[name]   # LayerNorm params, bo, ff biases stay f32

    stacked = {name: jnp.stack([per_block(name, blocks[l]) for l in range(L)])
               for name in _BLOCK_WEIGHT_NAMES}

    # tied lm_head, padded to a lane-dense multiple of the vocab tile
    TV = min(512, _round_up(V, 128))
    Vp = _round_up(V, TV)
    lm_w = jnp.zeros((E, Vp), jnp.bfloat16).at[:, :V].set(
        params['tok_emb'].T.astype(jnp.bfloat16))

    return {
        'tok_emb': params['tok_emb'],
        'pos_emb': params['pos_emb'],
        'ln_g': params['ln_g'],
        'ln_b': params['ln_b'],
        'lm_w': lm_w,
        'vocab_size': V,
        'vocab_pad': Vp,
        'vocab_tile': TV,
        'block_size': params['block_size'],
        'n_heads': H,
        'n_blocks': L,
        'stacked': stacked,
    }


def semantic_decoder_forward(packed, idx, encoder_output, attention_mask=None):
    B, T = idx.shape
    E = packed['tok_emb'].shape[1]
    S = encoder_output.shape[1]
    V, Vp, TV = packed['vocab_size'], packed['vocab_pad'], packed['vocab_tile']
    L, H = packed['n_blocks'], packed['n_heads']

    if attention_mask is None:
        attention_mask = jnp.ones((B, T), jnp.int32)

    # token + position embedding (glue; see TODO on fusing the gather)
    x = packed['tok_emb'][idx] + packed['pos_emb'][:T][None, :, :]
    x_flat = x.reshape(B * T, E).astype(jnp.float32)
    enc_flat = encoder_output.reshape(B * S, E).astype(jnp.float32)
    kpm = attention_mask.astype(jnp.float32)

    causal_cross = (S == packed['block_size'])   # static trace-time branch
    if causal_cross:
        # Same constraint the PyTorch reference has (tril is block_size^2).
        assert T == S == packed['block_size'], (T, S, packed['block_size'])

    stacked = packed['stacked']
    weight_args = [stacked[n] for n in _BLOCK_WEIGHT_NAMES]

    def layer_spec(arr):   # stream layer l's slice; auto double-buffered
        nd = arr.ndim
        return pl.BlockSpec((None,) + arr.shape[1:],
                            lambda l: (l,) + (0,) * (nd - 1))

    def const_spec(arr):   # constant block: fetched once, resident across layers
        nd = arr.ndim
        return pl.BlockSpec(arr.shape, lambda l: (0,) * nd)

    in_specs = ([const_spec(x_flat), const_spec(enc_flat), const_spec(kpm)]
                + [layer_spec(a) for a in weight_args]
                + [const_spec(packed['ln_g']), const_spec(packed['ln_b'])])

    per_layer_w_bytes = sum(_nbytes(a) // L for a in weight_args)
    resident_bytes = (_nbytes(x_flat) + _nbytes(enc_flat) + _nbytes(kpm)
                      + _nbytes(packed['ln_g']) + _nbytes(packed['ln_b'])
                      + 2 * B * T * E * 4)           # out block + scratch
    vmem1 = int(2 * (per_layer_w_bytes + resident_bytes) + (4 << 20))

    blocks_kernel = functools.partial(
        decoder_blocks_kernel, n_heads=H, causal_cross=causal_cross)

    xn = pl.pallas_call(
        blocks_kernel,
        out_shape=jax.ShapeDtypeStruct((B * T, E), jnp.float32),
        grid=(L,),
        in_specs=in_specs,
        out_specs=pl.BlockSpec((B * T, E), lambda l: (0, 0)),
        scratch_shapes=[pltpu.VMEM((B * T, E), jnp.float32)],
        compiler_params=pltpu.CompilerParams(
            dimension_semantics=("arbitrary",), vmem_limit_bytes=vmem1),
    )(x_flat, enc_flat, kpm, *weight_args, packed['ln_g'], packed['ln_b'])

    # tied lm_head: vocab-tiled, lane-dense, 'parallel' axis (2nd TC on v7x)
    n_vt = Vp // TV
    vmem2 = int(2 * (B * T * E * 4 + E * TV * 2 + B * T * TV * 4) + (2 << 20))
    logits_p = pl.pallas_call(
        lm_head_kernel,
        out_shape=jax.ShapeDtypeStruct((B * T, Vp), jnp.float32),
        grid=(n_vt,),
        in_specs=[pl.BlockSpec((B * T, E), lambda j: (0, 0)),
                  pl.BlockSpec((E, TV), lambda j: (0, j))],
        out_specs=pl.BlockSpec((B * T, TV), lambda j: (0, j)),
        compiler_params=pltpu.CompilerParams(
            dimension_semantics=("parallel",), vmem_limit_bytes=vmem2),
    )(xn, packed['lm_w'])

    return logits_p.reshape(B, T, Vp)[:, :, :V]


# --------------------------- deterministic param init ---------------------------

def init_params(key, vocab_size, n_blocks, n_heads, n_embeddings, block_size):
    E = n_embeddings
    keys = jax.random.split(key, 2 + n_blocks)

    def w(k, shape):
        return jax.random.normal(k, shape, jnp.float32) * 0.02

    params = {
        'tok_emb': w(keys[0], (vocab_size, E)),
        'pos_emb': w(keys[1], (block_size, E)),
        'ln_g': jnp.ones((1, E), jnp.float32),
        'ln_b': jnp.zeros((1, E), jnp.float32),
        'block_size': block_size,
        'n_heads': n_heads,
        'blocks': [],
    }
    for i in range(n_blocks):
        bk = jax.random.split(keys[2 + i], 10)
        blk = {
            'ln1_g': jnp.ones((1, E), jnp.float32), 'ln1_b': jnp.zeros((1, E), jnp.float32),
            'sa_wq': w(bk[0], (E, E)), 'sa_bq': jnp.zeros((1, E), jnp.float32),
            'sa_wk': w(bk[1], (E, E)), 'sa_bk': jnp.zeros((1, E), jnp.float32),
            'sa_wv': w(bk[2], (E, E)), 'sa_bv': jnp.zeros((1, E), jnp.float32),
            'sa_wo': w(bk[3], (E, E)), 'sa_bo': jnp.zeros((1, E), jnp.float32),
            'ln2_g': jnp.ones((1, E), jnp.float32), 'ln2_b': jnp.zeros((1, E), jnp.float32),
            'ca_wq': w(bk[4], (E, E)), 'ca_bq': jnp.zeros((1, E), jnp.float32),
            'ca_wk': w(bk[5], (E, E)), 'ca_bk': jnp.zeros((1, E), jnp.float32),
            'ca_wv': w(bk[6], (E, E)), 'ca_bv': jnp.zeros((1, E), jnp.float32),
            'ca_wo': w(bk[7], (E, E)), 'ca_bo': jnp.zeros((1, E), jnp.float32),
            'ln3_g': jnp.ones((1, E), jnp.float32), 'ln3_b': jnp.zeros((1, E), jnp.float32),
            'ff_w1': w(bk[8], (4 * E, E)), 'ff_b1': jnp.zeros((1, 4 * E), jnp.float32),
            'ff_w2': w(bk[9], (E, 4 * E)), 'ff_b2': jnp.zeros((1, E), jnp.float32),
        }
        params['blocks'].append(blk)
    return params


# ------------------------------------ main ------------------------------------

if __name__ == "__main__":
    VOCAB = 64
    N_BLOCKS = 2
    N_HEADS = 4
    E = 32
    BLOCK_SIZE = 8   # decoder sequence length T
    B = 2
    S = 8            # encoder length == block_size -> causal cross-attn branch

    key = jax.random.PRNGKey(0)
    k_params, k_idx, k_enc = jax.random.split(key, 3)

    raw_params = init_params(k_params, VOCAB, N_BLOCKS, N_HEADS, E, BLOCK_SIZE)
    packed = pack_params(raw_params)

    idx = jax.random.randint(k_idx, (B, BLOCK_SIZE), 0, VOCAB, dtype=jnp.int32)
    encoder_output = jax.random.normal(k_enc, (B, S, E), jnp.float32)
    attention_mask = jnp.ones((B, BLOCK_SIZE), jnp.int32)

    logits = semantic_decoder_forward(packed, idx, encoder_output, attention_mask)
    logits = jax.block_until_ready(logits)

    assert logits.shape == (B, BLOCK_SIZE, VOCAB), logits.shape
    assert bool(jnp.all(jnp.isfinite(logits)))
    print("KERNEL_OK")
</pallas_src>

<mosaic_0001>
module attributes {stable_mosaic.version = 11 : i64} {
  func.func @decoder_blocks_kernel(%arg0: i32, %arg1: memref<16x32xf32, #tpu.memory_space<vmem>>, %arg2: memref<16x32xf32, #tpu.memory_space<vmem>>, %arg3: memref<2x8xf32, #tpu.memory_space<vmem>>, %arg4: memref<1x1x32xf32, #tpu.memory_space<vmem>>, %arg5: memref<1x1x32xf32, #tpu.memory_space<vmem>>, %arg6: memref<1x4x32x8xbf16, #tpu.memory_space<vmem>>, %arg7: memref<1x4x1x8xf32, #tpu.memory_space<vmem>>, %arg8: memref<1x4x32x8xbf16, #tpu.memory_space<vmem>>, %arg9: memref<1x4x1x8xf32, #tpu.memory_space<vmem>>, %arg10: memref<1x4x32x8xbf16, #tpu.memory_space<vmem>>, %arg11: memref<1x4x1x8xf32, #tpu.memory_space<vmem>>, %arg12: memref<1x4x8x32xbf16, #tpu.memory_space<vmem>>, %arg13: memref<1x1x32xf32, #tpu.memory_space<vmem>>, %arg14: memref<1x1x32xf32, #tpu.memory_space<vmem>>, %arg15: memref<1x1x32xf32, #tpu.memory_space<vmem>>, %arg16: memref<1x4x32x8xbf16, #tpu.memory_space<vmem>>, %arg17: memref<1x4x1x8xf32, #tpu.memory_space<vmem>>, %arg18: memref<1x4x32x8xbf16, #tpu.memory_space<vmem>>, %arg19: memref<1x4x1x8xf32, #tpu.memory_space<vmem>>, %arg20: memref<1x4x32x8xbf16, #tpu.memory_space<vmem>>, %arg21: memref<1x4x1x8xf32, #tpu.memory_space<vmem>>, %arg22: memref<1x4x8x32xbf16, #tpu.memory_space<vmem>>, %arg23: memref<1x1x32xf32, #tpu.memory_space<vmem>>, %arg24: memref<1x1x32xf32, #tpu.memory_space<vmem>>, %arg25: memref<1x1x32xf32, #tpu.memory_space<vmem>>, %arg26: memref<1x32x128xbf16, #tpu.memory_space<vmem>>, %arg27: memref<1x1x128xf32, #tpu.memory_space<vmem>>, %arg28: memref<1x128x32xbf16, #tpu.memory_space<vmem>>, %arg29: memref<1x1x32xf32, #tpu.memory_space<vmem>>, %arg30: memref<1x32xf32, #tpu.memory_space<vmem>>, %arg31: memref<1x32xf32, #tpu.memory_space<vmem>>, %arg32: memref<16x32xf32, #tpu.memory_space<vmem>>, %arg33: memref<16x32xf32, #tpu.memory_space<vmem>>) attributes {dimension_semantics = [#tpu.dimension_semantics<arbitrary>], iteration_bounds = array<i64: 2>, scalar_prefetch = 0 : i64, scratch_operands = 1 : i64, tpu.core_type = #tpu.core_type<tc>, window_params = [{pipeline_mode = #tpu.pipeline_mode<synchronous>, transform_indices = @transform_0, window_bounds = array<i64: 16, 32>}, {pipeline_mode = #tpu.pipeline_mode<synchronous>, transform_indices = @transform_1, window_bounds = array<i64: 16, 32>}, {pipeline_mode = #tpu.pipeline_mode<synchronous>, transform_indices = @transform_2, window_bounds = array<i64: 2, 8>}, {transform_indices = @transform_3, window_bounds = array<i64: 1, 1, 32>}, {transform_indices = @transform_4, window_bounds = array<i64: 1, 1, 32>}, {transform_indices = @transform_5, window_bounds = array<i64: 1, 4, 32, 8>}, {transform_indices = @transform_6, window_bounds = array<i64: 1, 4, 1, 8>}, {transform_indices = @transform_7, window_bounds = array<i64: 1, 4, 32, 8>}, {transform_indices = @transform_8, window_bounds = array<i64: 1, 4, 1, 8>}, {transform_indices = @transform_9, window_bounds = array<i64: 1, 4, 32, 8>}, {transform_indices = @transform_10, window_bounds = array<i64: 1, 4, 1, 8>}, {transform_indices = @transform_11, window_bounds = array<i64: 1, 4, 8, 32>}, {transform_indices = @transform_12, window_bounds = array<i64: 1, 1, 32>}, {transform_indices = @transform_13, window_bounds = array<i64: 1, 1, 32>}, {transform_indices = @transform_14, window_bounds = array<i64: 1, 1, 32>}, {transform_indices = @transform_15, window_bounds = array<i64: 1, 4, 32, 8>}, {transform_indices = @transform_16, window_bounds = array<i64: 1, 4, 1, 8>}, {transform_indices = @transform_17, window_bounds = array<i64: 1, 4, 32, 8>}, {transform_indices = @transform_18, window_bounds = array<i64: 1, 4, 1, 8>}, {transform_indices = @transform_19, window_bounds = array<i64: 1, 4, 32, 8>}, {transform_indices = @transform_20, window_bounds = array<i64: 1, 4, 1, 8>}, {transform_indices = @transform_21, window_bounds = array<i64: 1, 4, 8, 32>}, {transform_indices = @transform_22, window_bounds = array<i64: 1, 1, 32>}, {transform_indices = @transform_23, window_bounds = array<i64: 1, 1, 32>}, {transform_indices = @transform_24, window_bounds = array<i64: 1, 1, 32>}, {transform_indices = @transform_25, window_bounds = array<i64: 1, 32, 128>}, {transform_indices = @transform_26, window_bounds = array<i64: 1, 1, 128>}, {transform_indices = @transform_27, window_bounds = array<i64: 1, 128, 32>}, {transform_indices = @transform_28, window_bounds = array<i64: 1, 1, 32>}, {pipeline_mode = #tpu.pipeline_mode<synchronous>, transform_indices = @transform_29, window_bounds = array<i64: 1, 32>}, {pipeline_mode = #tpu.pipeline_mode<synchronous>, transform_indices = @transform_30, window_bounds = array<i64: 1, 32>}, {pipeline_mode = #tpu.pipeline_mode<synchronous>, transform_indices = @transform_31, window_bounds = array<i64: 16, 32>}]} {
    %c0_i32 = arith.constant 0 : i32
    %0 = arith.cmpi eq, %arg0, %c0_i32 : i32
    %1 = arith.extui %0 : i1 to i32
    %c0_i32_0 = arith.constant 0 : i32
    %2 = arith.cmpi ne, %1, %c0_i32_0 : i32
    scf.if %2 {
      %c0_354 = arith.constant 0 : index
      %c0_355 = arith.constant 0 : index
      %515 = vector.load %arg1[%c0_354, %c0_355] : memref<16x32xf32, #tpu.memory_space<vmem>>, vector<16x32xf32>
      %c0_356 = arith.constant 0 : index
      %c0_357 = arith.constant 0 : index
      %516 = vector.load %arg33[%c0_356, %c0_357] : memref<16x32xf32, #tpu.memory_space<vmem>>, vector<16x32xf32>
      tpu.vector_store %arg33[%c0_356, %c0_357], %515 {strides = array<i32>} : memref<16x32xf32, #tpu.memory_space<vmem>>, vector<16x32xf32>,
    } else {
    }
    %3 = tpu.iota {dimensions = array<i32: 0>} : vector<8x8xi32>
    %4 = tpu.iota {dimensions = array<i32: 1>} : vector<8x8xi32>
    %5 = arith.cmpi sge, %3, %4 : vector<8x8xi32>
    %cst = arith.constant 0.000000e+00 : f32
    %cst_1 = arith.constant -1.000000e+30 : f32
    %6 = vector.broadcast %cst : f32 to vector<8x8xf32>
    %7 = vector.broadcast %cst_1 : f32 to vector<8x8xf32>
    %8 = arith.select %5, %6, %7 : vector<8x8xi1>, vector<8x8xf32>
    %c0 = arith.constant 0 : index
    %c0_2 = arith.constant 0 : index
    %9 = vector.load %arg3[%c0, %c0_2] : memref<2x8xf32, #tpu.memory_space<vmem>>, vector<2x8xf32>
    %cst_3 = arith.constant 5.000000e-01 : f32
    %10 = vector.broadcast %cst_3 : f32 to vector<2x8xf32>
    %11 = arith.cmpf ogt, %9, %10 : vector<2x8xf32>
    %cst_4 = arith.constant 0.000000e+00 : f32
    %cst_5 = arith.constant -1.000000e+30 : f32
    %12 = vector.broadcast %cst_4 : f32 to vector<2x8xf32>
    %13 = vector.broadcast %cst_5 : f32 to vector<2x8xf32>
    %14 = arith.select %11, %12, %13 : vector<2x8xi1>, vector<2x8xf32>
    %15 = vector.shape_cast %8 : vector<8x8xf32> to vector<1x8x8xf32>
    %16 = vector.shape_cast %14 : vector<2x8xf32> to vector<2x1x8xf32>
    %17 = vector.broadcast %15 : vector<1x8x8xf32> to vector<2x8x8xf32>
    %18 = vector.broadcast %16 : vector<2x1x8xf32> to vector<2x8x8xf32>
    %19 = arith.addf %17, %18 : vector<2x8x8xf32>
    %c0_6 = arith.constant 0 : index
    %c0_7 = arith.constant 0 : index
    %20 = vector.load %arg33[%c0_6, %c0_7] : memref<16x32xf32, #tpu.memory_space<vmem>>, vector<16x32xf32>
    %c0_8 = arith.constant 0 : index
    %c0_9 = arith.constant 0 : index
    %21 = vector.load %arg2[%c0_8, %c0_9] : memref<16x32xf32, #tpu.memory_space<vmem>>, vector<16x32xf32>
    %c0_10 = arith.constant 0 : index
    %c0_11 = arith.constant 0 : index
    %c0_12 = arith.constant 0 : index
    %22 = vector.load %arg4[%c0_10, %c0_11, %c0_12] : memref<1x1x32xf32, #tpu.memory_space<vmem>>, vector<1x1x32xf32>
    %23 = vector.shape_cast %22 : vector<1x1x32xf32> to vector<1x32xf32>
    %c0_13 = arith.constant 0 : index
    %c0_14 = arith.constant 0 : index
    %c0_15 = arith.constant 0 : index
    %24 = vector.load %arg5[%c0_13, %c0_14, %c0_15] : memref<1x1x32xf32, #tpu.memory_space<vmem>>, vector<1x1x32xf32>
    %25 = vector.shape_cast %24 : vector<1x1x32xf32> to vector<1x32xf32>
    %cst_16 = arith.constant dense<0.000000e+00> : vector<16xf32>
    %26 = vector.multi_reduction <add>, %20, %cst_16 [1] : vector<16x32xf32> to vector<16xf32>
    %27 = vector.shape_cast %26 : vector<16xf32> to vector<16x1xf32>
    %cst_17 = arith.constant 3.200000e+01 : f32
    %28 = vector.broadcast %cst_17 : f32 to vector<16x1xf32>
    %29 = arith.divf %27, %28 : vector<16x1xf32>
    %30 = arith.mulf %20, %20 : vector<16x32xf32>
    %cst_18 = arith.constant dense<0.000000e+00> : vector<16xf32>
    %31 = vector.multi_reduction <add>, %30, %cst_18 [1] : vector<16x32xf32> to vector<16xf32>
    %32 = vector.shape_cast %31 : vector<16xf32> to vector<16x1xf32>
    %cst_19 = arith.constant 3.200000e+01 : f32
    %33 = vector.broadcast %cst_19 : f32 to vector<16x1xf32>
    %34 = arith.divf %32, %33 : vector<16x1xf32>
    %35 = arith.mulf %29, %29 : vector<16x1xf32>
    %36 = arith.subf %34, %35 : vector<16x1xf32>
    %37 = vector.broadcast %29 : vector<16x1xf32> to vector<16x32xf32>
    %38 = arith.subf %20, %37 : vector<16x32xf32>
    %cst_20 = arith.constant 9.99999974E-6 : f32
    %39 = vector.broadcast %cst_20 : f32 to vector<16x1xf32>
    %40 = arith.addf %36, %39 : vector<16x1xf32>
    %41 = math.rsqrt %40 : vector<16x1xf32>
    %42 = vector.broadcast %41 : vector<16x1xf32> to vector<16x32xf32>
    %43 = arith.mulf %38, %42 : vector<16x32xf32>
    %44 = vector.broadcast %23 : vector<1x32xf32> to vector<16x32xf32>
    %45 = arith.mulf %43, %44 : vector<16x32xf32>
    %46 = vector.broadcast %25 : vector<1x32xf32> to vector<16x32xf32>
    %47 = arith.addf %45, %46 : vector<16x32xf32>
    %48 = arith.truncf %47 : vector<16x32xf32> to vector<16x32xbf16>
    %49 = arith.truncf %47 : vector<16x32xf32> to vector<16x32xbf16>
    %cst_21 = arith.constant 0.000000e+00 : f32
    %50 = vector.broadcast %cst_21 : f32 to vector<16x32xf32>
    %c0_22 = arith.constant 0 : index
    %c0_23 = arith.constant 0 : index
    %c0_24 = arith.constant 0 : index
    %c0_25 = arith.constant 0 : index
    %51 = vector.load %arg6[%c0_22, %c0_23, %c0_24, %c0_25] : memref<1x4x32x8xbf16, #tpu.memory_space<vmem>>, vector<1x1x32x8xbf16>
    %52 = vector.shape_cast %51 : vector<1x1x32x8xbf16> to vector<32x8xbf16>
    %cst_26 = arith.constant dense<0.000000e+00> : vector<16x8xf32>
    %53 = tpu.matmul %48, %52, %cst_26 {dimension_numbers = #tpu.dot_dimension_numbers<[1], [0], [0], [1], [0, 0, 1, 1], [], []>} : vector<16x32xbf16>, vector<32x8xbf16>, vector<16x8xf32> -> vector<16x8xf32>
    %c0_27 = arith.constant 0 : index
    %c0_28 = arith.constant 0 : index
    %c0_29 = arith.constant 0 : index
    %c0_30 = arith.constant 0 : index
    %54 = vector.load %arg7[%c0_27, %c0_28, %c0_29, %c0_30] : memref<1x4x1x8xf32, #tpu.memory_space<vmem>>, vector<1x1x1x8xf32>
    %55 = vector.shape_cast %54 : vector<1x1x1x8xf32> to vector<1x8xf32>
    %56 = vector.broadcast %55 : vector<1x8xf32> to vector<16x8xf32>
    %57 = arith.addf %53, %56 : vector<16x8xf32>
    %c0_31 = arith.constant 0 : index
    %c0_32 = arith.constant 0 : index
    %c0_33 = arith.constant 0 : index
    %c0_34 = arith.constant 0 : index
    %58 = vector.load %arg8[%c0_31, %c0_32, %c0_33, %c0_34] : memref<1x4x32x8xbf16, #tpu.memory_space<vmem>>, vector<1x1x32x8xbf16>
    %59 = vector.shape_cast %58 : vector<1x1x32x8xbf16> to vector<32x8xbf16>
    %cst_35 = arith.constant dense<0.000000e+00> : vector<16x8xf32>
    %60 = tpu.matmul %49, %59, %cst_35 {dimension_numbers = #tpu.dot_dimension_numbers<[1], [0], [0], [1], [0, 0, 1, 1], [], []>} : vector<16x32xbf16>, vector<32x8xbf16>, vector<16x8xf32> -> vector<16x8xf32>
    %c0_36 = arith.constant 0 : index
    %c0_37 = arith.constant 0 : index
    %c0_38 = arith.constant 0 : index
    %c0_39 = arith.constant 0 : index
    %61 = vector.load %arg9[%c0_36, %c0_37, %c0_38, %c0_39] : memref<1x4x1x8xf32, #tpu.memory_space<vmem>>, vector<1x1x1x8xf32>
    %62 = vector.shape_cast %61 : vector<1x1x1x8xf32> to vector<1x8xf32>
    %63 = vector.broadcast %62 : vector<1x8xf32> to vector<16x8xf32>
    %64 = arith.addf %60, %63 : vector<16x8xf32>
    %c0_40 = arith.constant 0 : index
    %c0_41 = arith.constant 0 : index
    %c0_42 = arith.constant 0 : index
    %c0_43 = arith.constant 0 : index
    %65 = vector.load %arg10[%c0_40, %c0_41, %c0_42, %c0_43] : memref<1x4x32x8xbf16, #tpu.memory_space<vmem>>, vector<1x1x32x8xbf16>
    %66 = vector.shape_cast %65 : vector<1x1x32x8xbf16> to vector<32x8xbf16>
    %cst_44 = arith.constant dense<0.000000e+00> : vector<16x8xf32>
    %67 = tpu.matmul %49, %66, %cst_44 {dimension_numbers = #tpu.dot_dimension_numbers<[1], [0], [0], [1], [0, 0, 1, 1], [], []>} : vector<16x32xbf16>, vector<32x8xbf16>, vector<16x8xf32> -> vector<16x8xf32>
    %c0_45 = arith.constant 0 : index
    %c0_46 = arith.constant 0 : index
    %c0_47 = arith.constant 0 : index
    %c0_48 = arith.constant 0 : index
    %68 = vector.load %arg11[%c0_45, %c0_46, %c0_47, %c0_48] : memref<1x4x1x8xf32, #tpu.memory_space<vmem>>, vector<1x1x1x8xf32>
    %69 = vector.shape_cast %68 : vector<1x1x1x8xf32> to vector<1x8xf32>
    %70 = vector.broadcast %69 : vector<1x8xf32> to vector<16x8xf32>
    %71 = arith.addf %67, %70 : vector<16x8xf32>
    %72 = vector.shape_cast %57 : vector<16x8xf32> to vector<2x8x8xf32>
    %73 = arith.truncf %72 : vector<2x8x8xf32> to vector<2x8x8xbf16>
    %74 = vector.shape_cast %64 : vector<16x8xf32> to vector<2x8x8xf32>
    %75 = arith.truncf %74 : vector<2x8x8xf32> to vector<2x8x8xbf16>
    "tpu.trace_start"() <{level = 10 : i32, message = "bqd,bkd->bqk"}> : () -> ()
    %cst_49 = arith.constant dense<0.000000e+00> : vector<2x8x8xf32>
    %76 = tpu.matmul %73, %75, %cst_49 {dimension_numbers = #tpu.dot_dimension_numbers<[2], [2], [1], [1], [0, 0, 0, 1, 1, 1], [0], [0]>} : vector<2x8x8xbf16>, vector<2x8x8xbf16>, vector<2x8x8xf32> -> vector<2x8x8xf32>
    "tpu.trace_stop"() : () -> ()
    %77 = arith.addf %76, %19 : vector<2x8x8xf32>
    %cst_50 = arith.constant dense<0xFF800000> : vector<2x8xf32>
    %78 = vector.multi_reduction <maximumf>, %77, %cst_50 [2] : vector<2x8x8xf32> to vector<2x8xf32>
    %79 = vector.shape_cast %78 : vector<2x8xf32> to vector<2x8x1xf32>
    %80 = vector.broadcast %79 : vector<2x8x1xf32> to vector<2x8x8xf32>
    %81 = arith.subf %77, %80 : vector<2x8x8xf32>
    %82 = math.exp %81 : vector<2x8x8xf32>
    %cst_51 = arith.constant dense<0.000000e+00> : vector<2x8xf32>
    %83 = vector.multi_reduction <add>, %82, %cst_51 [2] : vector<2x8x8xf32> to vector<2x8xf32>
    %84 = vector.shape_cast %83 : vector<2x8xf32> to vector<2x8x1xf32>
    %85 = tpu.reciprocal %84 {approx = true} : vector<2x8x1xf32> -> vector<2x8x1xf32>
    %86 = vector.broadcast %85 : vector<2x8x1xf32> to vector<2x8x8xf32>
    %87 = arith.mulf %82, %86 : vector<2x8x8xf32>
    %88 = arith.truncf %87 : vector<2x8x8xf32> to vector<2x8x8xbf16>
    %89 = vector.shape_cast %71 : vector<16x8xf32> to vector<2x8x8xf32>
    %90 = arith.truncf %89 : vector<2x8x8xf32> to vector<2x8x8xbf16>
    "tpu.trace_start"() <{level = 10 : i32, message = "bqk,bkd->bqd"}> : () -> ()
    %cst_52 = arith.constant dense<0.000000e+00> : vector<2x8x8xf32>
    %91 = tpu.matmul %88, %90, %cst_52 {dimension_numbers = #tpu.dot_dimension_numbers<[2], [1], [1], [2], [0, 0, 0, 1, 1, 2], [0], [0]>} : vector<2x8x8xbf16>, vector<2x8x8xbf16>, vector<2x8x8xf32> -> vector<2x8x8xf32>
    "tpu.trace_stop"() : () -> ()
    %92 = vector.shape_cast %91 : vector<2x8x8xf32> to vector<16x8xf32>
    %93 = arith.truncf %92 : vector<16x8xf32> to vector<16x8xbf16>
    %c0_53 = arith.constant 0 : index
    %c0_54 = arith.constant 0 : index
    %c0_55 = arith.constant 0 : index
    %c0_56 = arith.constant 0 : index
    %94 = vector.load %arg12[%c0_53, %c0_54, %c0_55, %c0_56] : memref<1x4x8x32xbf16, #tpu.memory_space<vmem>>, vector<1x1x8x32xbf16>
    %95 = vector.shape_cast %94 : vector<1x1x8x32xbf16> to vector<8x32xbf16>
    %cst_57 = arith.constant dense<0.000000e+00> : vector<16x32xf32>
    %96 = tpu.matmul %93, %95, %cst_57 {dimension_numbers = #tpu.dot_dimension_numbers<[1], [0], [0], [1], [0, 0, 1, 1], [], []>} : vector<16x8xbf16>, vector<8x32xbf16>, vector<16x32xf32> -> vector<16x32xf32>
    %97 = arith.addf %50, %96 : vector<16x32xf32>
    %c0_58 = arith.constant 0 : index
    %c1 = arith.constant 1 : index
    %c0_59 = arith.constant 0 : index
    %c0_60 = arith.constant 0 : index
    %98 = vector.load %arg6[%c0_58, %c1, %c0_59, %c0_60] : memref<1x4x32x8xbf16, #tpu.memory_space<vmem>>, vector<1x1x32x8xbf16>
    %99 = vector.shape_cast %98 : vector<1x1x32x8xbf16> to vector<32x8xbf16>
    %cst_61 = arith.constant dense<0.000000e+00> : vector<16x8xf32>
    %100 = tpu.matmul %48, %99, %cst_61 {dimension_numbers = #tpu.dot_dimension_numbers<[1], [0], [0], [1], [0, 0, 1, 1], [], []>} : vector<16x32xbf16>, vector<32x8xbf16>, vector<16x8xf32> -> vector<16x8xf32>
    %c0_62 = arith.constant 0 : index
    %c1_63 = arith.constant 1 : index
    %c0_64 = arith.constant 0 : index
    %c0_65 = arith.constant 0 : index
    %101 = vector.load %arg7[%c0_62, %c1_63, %c0_64, %c0_65] : memref<1x4x1x8xf32, #tpu.memory_space<vmem>>, vector<1x1x1x8xf32>
    %102 = vector.shape_cast %101 : vector<1x1x1x8xf32> to vector<1x8xf32>
    %103 = vector.broadcast %102 : vector<1x8xf32> to vector<16x8xf32>
    %104 = arith.addf %100, %103 : vector<16x8xf32>
    %c0_66 = arith.constant 0 : index
    %c1_67 = arith.constant 1 : index
    %c0_68 = arith.constant 0 : index
    %c0_69 = arith.constant 0 : index
    %105 = vector.load %arg8[%c0_66, %c1_67, %c0_68, %c0_69] : memref<1x4x32x8xbf16, #tpu.memory_space<vmem>>, vector<1x1x32x8xbf16>
    %106 = vector.shape_cast %105 : vector<1x1x32x8xbf16> to vector<32x8xbf16>
    %cst_70 = arith.constant dense<0.000000e+00> : vector<16x8xf32>
    %107 = tpu.matmul %49, %106, %cst_70 {dimension_numbers = #tpu.dot_dimension_numbers<[1], [0], [0], [1], [0, 0, 1, 1], [], []>} : vector<16x32xbf16>, vector<32x8xbf16>, vector<16x8xf32> -> vector<16x8xf32>
    %c0_71 = arith.constant 0 : index
    %c1_72 = arith.constant 1 : index
    %c0_73 = arith.constant 0 : index
    %c0_74 = arith.constant 0 : index
    %108 = vector.load %arg9[%c0_71, %c1_72, %c0_73, %c0_74] : memref<1x4x1x8xf32, #tpu.memory_space<vmem>>, vector<1x1x1x8xf32>
    %109 = vector.shape_cast %108 : vector<1x1x1x8xf32> to vector<1x8xf32>
    %110 = vector.broadcast %109 : vector<1x8xf32> to vector<16x8xf32>
    %111 = arith.addf %107, %110 : vector<16x8xf32>
    %c0_75 = arith.constant 0 : index
    %c1_76 = arith.constant 1 : index
    %c0_77 = arith.constant 0 : index
    %c0_78 = arith.constant 0 : index
    %112 = vector.load %arg10[%c0_75, %c1_76, %c0_77, %c0_78] : memref<1x4x32x8xbf16, #tpu.memory_space<vmem>>, vector<1x1x32x8xbf16>
    %113 = vector.shape_cast %112 : vector<1x1x32x8xbf16> to vector<32x8xbf16>
    %cst_79 = arith.constant dense<0.000000e+00> : vector<16x8xf32>
    %114 = tpu.matmul %49, %113, %cst_79 {dimension_numbers = #tpu.dot_dimension_numbers<[1], [0], [0], [1], [0, 0, 1, 1], [], []>} : vector<16x32xbf16>, vector<32x8xbf16>, vector<16x8xf32> -> vector<16x8xf32>
    %c0_80 = arith.constant 0 : index
    %c1_81 = arith.constant 1 : index
    %c0_82 = arith.constant 0 : index
    %c0_83 = arith.constant 0 : index
    %115 = vector.load %arg11[%c0_80, %c1_81, %c0_82, %c0_83] : memref<1x4x1x8xf32, #tpu.memory_space<vmem>>, vector<1x1x1x8xf32>
    %116 = vector.shape_cast %115 : vector<1x1x1x8xf32> to vector<1x8xf32>
    %117 = vector.broadcast %116 : vector<1x8xf32> to vector<16x8xf32>
    %118 = arith.addf %114, %117 : vector<16x8xf32>
    %119 = vector.shape_cast %104 : vector<16x8xf32> to vector<2x8x8xf32>
    %120 = arith.truncf %119 : vector<2x8x8xf32> to vector<2x8x8xbf16>
    %121 = vector.shape_cast %111 : vector<16x8xf32> to vector<2x8x8xf32>
    %122 = arith.truncf %121 : vector<2x8x8xf32> to vector<2x8x8xbf16>
    "tpu.trace_start"() <{level = 10 : i32, message = "bqd,bkd->bqk"}> : () -> ()
    %cst_84 = arith.constant dense<0.000000e+00> : vector<2x8x8xf32>
    %123 = tpu.matmul %120, %122, %cst_84 {dimension_numbers = #tpu.dot_dimension_numbers<[2], [2], [1], [1], [0, 0, 0, 1, 1, 1], [0], [0]>} : vector<2x8x8xbf16>, vector<2x8x8xbf16>, vector<2x8x8xf32> -> vector<2x8x8xf32>
    "tpu.trace_stop"() : () -> ()
    %124 = arith.addf %123, %19 : vector<2x8x8xf32>
    %cst_85 = arith.constant dense<0xFF800000> : vector<2x8xf32>
    %125 = vector.multi_reduction <maximumf>, %124, %cst_85 [2] : vector<2x8x8xf32> to vector<2x8xf32>
    %126 = vector.shape_cast %125 : vector<2x8xf32> to vector<2x8x1xf32>
    %127 = vector.broadcast %126 : vector<2x8x1xf32> to vector<2x8x8xf32>
    %128 = arith.subf %124, %127 : vector<2x8x8xf32>
    %129 = math.exp %128 : vector<2x8x8xf32>
    %cst_86 = arith.constant dense<0.000000e+00> : vector<2x8xf32>
    %130 = vector.multi_reduction <add>, %129, %cst_86 [2] : vector<2x8x8xf32> to vector<2x8xf32>
    %131 = vector.shape_cast %130 : vector<2x8xf32> to vector<2x8x1xf32>
    %132 = tpu.reciprocal %131 {approx = true} : vector<2x8x1xf32> -> vector<2x8x1xf32>
    %133 = vector.broadcast %132 : vector<2x8x1xf32> to vector<2x8x8xf32>
    %134 = arith.mulf %129, %133 : vector<2x8x8xf32>
    %135 = arith.truncf %134 : vector<2x8x8xf32> to vector<2x8x8xbf16>
    %136 = vector.shape_cast %118 : vector<16x8xf32> to vector<2x8x8xf32>
    %137 = arith.truncf %136 : vector<2x8x8xf32> to vector<2x8x8xbf16>
    "tpu.trace_start"() <{level = 10 : i32, message = "bqk,bkd->bqd"}> : () -> ()
    %cst_87 = arith.constant dense<0.000000e+00> : vector<2x8x8xf32>
    %138 = tpu.matmul %135, %137, %cst_87 {dimension_numbers = #tpu.dot_dimension_numbers<[2], [1], [1], [2], [0, 0, 0, 1, 1, 2], [0], [0]>} : vector<2x8x8xbf16>, vector<2x8x8xbf16>, vector<2x8x8xf32> -> vector<2x8x8xf32>
    "tpu.trace_stop"() : () -> ()
    %139 = vector.shape_cast %138 : vector<2x8x8xf32> to vector<16x8xf32>
    %140 = arith.truncf %139 : vector<16x8xf32> to vector<16x8xbf16>
    %c0_88 = arith.constant 0 : index
    %c1_89 = arith.constant 1 : index
    %c0_90 = arith.constant 0 : index
    %c0_91 = arith.constant 0 : index
    %141 = vector.load %arg12[%c0_88, %c1_89, %c0_90, %c0_91] : memref<1x4x8x32xbf16, #tpu.memory_space<vmem>>, vector<1x1x8x32xbf16>
    %142 = vector.shape_cast %141 : vector<1x1x8x32xbf16> to vector<8x32xbf16>
    %cst_92 = arith.constant dense<0.000000e+00> : vector<16x32xf32>
    %143 = tpu.matmul %140, %142, %cst_92 {dimension_numbers = #tpu.dot_dimension_numbers<[1], [0], [0], [1], [0, 0, 1, 1], [], []>} : vector<16x8xbf16>, vector<8x32xbf16>, vector<16x32xf32> -> vector<16x32xf32>
    %144 = arith.addf %97, %143 : vector<16x32xf32>
    %c0_93 = arith.constant 0 : index
    %c2 = arith.constant 2 : index
    %c0_94 = arith.constant 0 : index
    %c0_95 = arith.constant 0 : index
    %145 = vector.load %arg6[%c0_93, %c2, %c0_94, %c0_95] : memref<1x4x32x8xbf16, #tpu.memory_space<vmem>>, vector<1x1x32x8xbf16>
    %146 = vector.shape_cast %145 : vector<1x1x32x8xbf16> to vector<32x8xbf16>
    %cst_96 = arith.constant dense<0.000000e+00> : vector<16x8xf32>
    %147 = tpu.matmul %48, %146, %cst_96 {dimension_numbers = #tpu.dot_dimension_numbers<[1], [0], [0], [1], [0, 0, 1, 1], [], []>} : vector<16x32xbf16>, vector<32x8xbf16>, vector<16x8xf32> -> vector<16x8xf32>
    %c0_97 = arith.constant 0 : index
    %c2_98 = arith.constant 2 : index
    %c0_99 = arith.constant 0 : index
    %c0_100 = arith.constant 0 : index
    %148 = vector.load %arg7[%c0_97, %c2_98, %c0_99, %c0_100] : memref<1x4x1x8xf32, #tpu.memory_space<vmem>>, vector<1x1x1x8xf32>
    %149 = vector.shape_cast %148 : vector<1x1x1x8xf32> to vector<1x8xf32>
    %150 = vector.broadcast %149 : vector<1x8xf32> to vector<16x8xf32>
    %151 = arith.addf %147, %150 : vector<16x8xf32>
    %c0_101 = arith.constant 0 : index
    %c2_102 = arith.constant 2 : index
    %c0_103 = arith.constant 0 : index
    %c0_104 = arith.constant 0 : index
    %152 = vector.load %arg8[%c0_101, %c2_102, %c0_103, %c0_104] : memref<1x4x32x8xbf16, #tpu.memory_space<vmem>>, vector<1x1x32x8xbf16>
    %153 = vector.shape_cast %152 : vector<1x1x32x8xbf16> to vector<32x8xbf16>
    %cst_105 = arith.constant dense<0.000000e+00> : vector<16x8xf32>
    %154 = tpu.matmul %49, %153, %cst_105 {dimension_numbers = #tpu.dot_dimension_numbers<[1], [0], [0], [1], [0, 0, 1, 1], [], []>} : vector<16x32xbf16>, vector<32x8xbf16>, vector<16x8xf32> -> vector<16x8xf32>
    %c0_106 = arith.constant 0 : index
    %c2_107 = arith.constant 2 : index
    %c0_108 = arith.constant 0 : index
    %c0_109 = arith.constant 0 : index
    %155 = vector.load %arg9[%c0_106, %c2_107, %c0_108, %c0_109] : memref<1x4x1x8xf32, #tpu.memory_space<vmem>>, vector<1x1x1x8xf32>
    %156 = vector.shape_cast %155 : vector<1x1x1x8xf32> to vector<1x8xf32>
    %157 = vector.broadcast %156 : vector<1x8xf32> to vector<16x8xf32>
    %158 = arith.addf %154, %157 : vector<16x8xf32>
    %c0_110 = arith.constant 0 : index
    %c2_111 = arith.constant 2 : index
    %c0_112 = arith.constant 0 : index
    %c0_113 = arith.constant 0 : index
    %159 = vector.load %arg10[%c0_110, %c2_111, %c0_112, %c0_113] : memref<1x4x32x8xbf16, #tpu.memory_space<vmem>>, vector<1x1x32x8xbf16>
    %160 = vector.shape_cast %159 : vector<1x1x32x8xbf16> to vector<32x8xbf16>
    %cst_114 = arith.constant dense<0.000000e+00> : vector<16x8xf32>
    %161 = tpu.matmul %49, %160, %cst_114 {dimension_numbers = #tpu.dot_dimension_numbers<[1], [0], [0], [1], [0, 0, 1, 1], [], []>} : vector<16x32xbf16>, vector<32x8xbf16>, vector<16x8xf32> -> vector<16x8xf32>
    %c0_115 = arith.constant 0 : index
    %c2_116 = arith.constant 2 : index
    %c0_117 = arith.constant 0 : index
    %c0_118 = arith.constant 0 : index
    %162 = vector.load %arg11[%c0_115, %c2_116, %c0_117, %c0_118] : memref<1x4x1x8xf32, #tpu.memory_space<vmem>>, vector<1x1x1x8xf32>
    %163 = vector.shape_cast %162 : vector<1x1x1x8xf32> to vector<1x8xf32>
    %164 = vector.broadcast %163 : vector<1x8xf32> to vector<16x8xf32>
    %165 = arith.addf %161, %164 : vector<16x8xf32>
    %166 = vector.shape_cast %151 : vector<16x8xf32> to vector<2x8x8xf32>
    %167 = arith.truncf %166 : vector<2x8x8xf32> to vector<2x8x8xbf16>
    %168 = vector.shape_cast %158 : vector<16x8xf32> to vector<2x8x8xf32>
    %169 = arith.truncf %168 : vector<2x8x8xf32> to vector<2x8x8xbf16>
    "tpu.trace_start"() <{level = 10 : i32, message = "bqd,bkd->bqk"}> : () -> ()
    %cst_119 = arith.constant dense<0.000000e+00> : vector<2x8x8xf32>
    %170 = tpu.matmul %167, %169, %cst_119 {dimension_numbers = #tpu.dot_dimension_numbers<[2], [2], [1], [1], [0, 0, 0, 1, 1, 1], [0], [0]>} : vector<2x8x8xbf16>, vector<2x8x8xbf16>, vector<2x8x8xf32> -> vector<2x8x8xf32>
    "tpu.trace_stop"() : () -> ()
    %171 = arith.addf %170, %19 : vector<2x8x8xf32>
    %cst_120 = arith.constant dense<0xFF800000> : vector<2x8xf32>
    %172 = vector.multi_reduction <maximumf>, %171, %cst_120 [2] : vector<2x8x8xf32> to vector<2x8xf32>
    %173 = vector.shape_cast %172 : vector<2x8xf32> to vector<2x8x1xf32>
    %174 = vector.broadcast %173 : vector<2x8x1xf32> to vector<2x8x8xf32>
    %175 = arith.subf %171, %174 : vector<2x8x8xf32>
    %176 = math.exp %175 : vector<2x8x8xf32>
    %cst_121 = arith.constant dense<0.000000e+00> : vector<2x8xf32>
    %177 = vector.multi_reduction <add>, %176, %cst_121 [2] : vector<2x8x8xf32> to vector<2x8xf32>
    %178 = vector.shape_cast %177 : vector<2x8xf32> to vector<2x8x1xf32>
    %179 = tpu.reciprocal %178 {approx = true} : vector<2x8x1xf32> -> vector<2x8x1xf32>
    %180 = vector.broadcast %179 : vector<2x8x1xf32> to vector<2x8x8xf32>
    %181 = arith.mulf %176, %180 : vector<2x8x8xf32>
    %182 = arith.truncf %181 : vector<2x8x8xf32> to vector<2x8x8xbf16>
    %183 = vector.shape_cast %165 : vector<16x8xf32> to vector<2x8x8xf32>
    %184 = arith.truncf %183 : vector<2x8x8xf32> to vector<2x8x8xbf16>
    "tpu.trace_start"() <{level = 10 : i32, message = "bqk,bkd->bqd"}> : () -> ()
    %cst_122 = arith.constant dense<0.000000e+00> : vector<2x8x8xf32>
    %185 = tpu.matmul %182, %184, %cst_122 {dimension_numbers = #tpu.dot_dimension_numbers<[2], [1], [1], [2], [0, 0, 0, 1, 1, 2], [0], [0]>} : vector<2x8x8xbf16>, vector<2x8x8xbf16>, vector<2x8x8xf32> -> vector<2x8x8xf32>
    "tpu.trace_stop"() : () -> ()
    %186 = vector.shape_cast %185 : vector<2x8x8xf32> to vector<16x8xf32>
    %187 = arith.truncf %186 : vector<16x8xf32> to vector<16x8xbf16>
    %c0_123 = arith.constant 0 : index
    %c2_124 = arith.constant 2 : index
    %c0_125 = arith.constant 0 : index
    %c0_126 = arith.constant 0 : index
    %188 = vector.load %arg12[%c0_123, %c2_124, %c0_125, %c0_126] : memref<1x4x8x32xbf16, #tpu.memory_space<vmem>>, vector<1x1x8x32xbf16>
    %189 = vector.shape_cast %188 : vector<1x1x8x32xbf16> to vector<8x32xbf16>
    %cst_127 = arith.constant dense<0.000000e+00> : vector<16x32xf32>
    %190 = tpu.matmul %187, %189, %cst_127 {dimension_numbers = #tpu.dot_dimension_numbers<[1], [0], [0], [1], [0, 0, 1, 1], [], []>} : vector<16x8xbf16>, vector<8x32xbf16>, vector<16x32xf32> -> vector<16x32xf32>
    %191 = arith.addf %144, %190 : vector<16x32xf32>
    %c0_128 = arith.constant 0 : index
    %c3 = arith.constant 3 : index
    %c0_129 = arith.constant 0 : index
    %c0_130 = arith.constant 0 : index
    %192 = vector.load %arg6[%c0_128, %c3, %c0_129, %c0_130] : memref<1x4x32x8xbf16, #tpu.memory_space<vmem>>, vector<1x1x32x8xbf16>
    %193 = vector.shape_cast %192 : vector<1x1x32x8xbf16> to vector<32x8xbf16>
    %cst_131 = arith.constant dense<0.000000e+00> : vector<16x8xf32>
    %194 = tpu.matmul %48, %193, %cst_131 {dimension_numbers = #tpu.dot_dimension_numbers<[1], [0], [0], [1], [0, 0, 1, 1], [], []>} : vector<16x32xbf16>, vector<32x8xbf16>, vector<16x8xf32> -> vector<16x8xf32>
    %c0_132 = arith.constant 0 : index
    %c3_133 = arith.constant 3 : index
    %c0_134 = arith.constant 0 : index
    %c0_135 = arith.constant 0 : index
    %195 = vector.load %arg7[%c0_132, %c3_133, %c0_134, %c0_135] : memref<1x4x1x8xf32, #tpu.memory_space<vmem>>, vector<1x1x1x8xf32>
    %196 = vector.shape_cast %195 : vector<1x1x1x8xf32> to vector<1x8xf32>
    %197 = vector.broadcast %196 : vector<1x8xf32> to vector<16x8xf32>
    %198 = arith.addf %194, %197 : vector<16x8xf32>
    %c0_136 = arith.constant 0 : index
    %c3_137 = arith.constant 3 : index
    %c0_138 = arith.constant 0 : index
    %c0_139 = arith.constant 0 : index
    %199 = vector.load %arg8[%c0_136, %c3_137, %c0_138, %c0_139] : memref<1x4x32x8xbf16, #tpu.memory_space<vmem>>, vector<1x1x32x8xbf16>
    %200 = vector.shape_cast %199 : vector<1x1x32x8xbf16> to vector<32x8xbf16>
    %cst_140 = arith.constant dense<0.000000e+00> : vector<16x8xf32>
    %201 = tpu.matmul %49, %200, %cst_140 {dimension_numbers = #tpu.dot_dimension_numbers<[1], [0], [0], [1], [0, 0, 1, 1], [], []>} : vector<16x32xbf16>, vector<32x8xbf16>, vector<16x8xf32> -> vector<16x8xf32>
    %c0_141 = arith.constant 0 : index
    %c3_142 = arith.constant 3 : index
    %c0_143 = arith.constant 0 : index
    %c0_144 = arith.constant 0 : index
    %202 = vector.load %arg9[%c0_141, %c3_142, %c0_143, %c0_144] : memref<1x4x1x8xf32, #tpu.memory_space<vmem>>, vector<1x1x1x8xf32>
    %203 = vector.shape_cast %202 : vector<1x1x1x8xf32> to vector<1x8xf32>
    %204 = vector.broadcast %203 : vector<1x8xf32> to vector<16x8xf32>
    %205 = arith.addf %201, %204 : vector<16x8xf32>
    %c0_145 = arith.constant 0 : index
    %c3_146 = arith.constant 3 : index
    %c0_147 = arith.constant 0 : index
    %c0_148 = arith.constant 0 : index
    %206 = vector.load %arg10[%c0_145, %c3_146, %c0_147, %c0_148] : memref<1x4x32x8xbf16, #tpu.memory_space<vmem>>, vector<1x1x32x8xbf16>
    %207 = vector.shape_cast %206 : vector<1x1x32x8xbf16> to vector<32x8xbf16>
    %cst_149 = arith.constant dense<0.000000e+00> : vector<16x8xf32>
    %208 = tpu.matmul %49, %207, %cst_149 {dimension_numbers = #tpu.dot_dimension_numbers<[1], [0], [0], [1], [0, 0, 1, 1], [], []>} : vector<16x32xbf16>, vector<32x8xbf16>, vector<16x8xf32> -> vector<16x8xf32>
    %c0_150 = arith.constant 0 : index
    %c3_151 = arith.constant 3 : index
    %c0_152 = arith.constant 0 : index
    %c0_153 = arith.constant 0 : index
    %209 = vector.load %arg11[%c0_150, %c3_151, %c0_152, %c0_153] : memref<1x4x1x8xf32, #tpu.memory_space<vmem>>, vector<1x1x1x8xf32>
    %210 = vector.shape_cast %209 : vector<1x1x1x8xf32> to vector<1x8xf32>
    %211 = vector.broadcast %210 : vector<1x8xf32> to vector<16x8xf32>
    %212 = arith.addf %208, %211 : vector<16x8xf32>
    %213 = vector.shape_cast %198 : vector<16x8xf32> to vector<2x8x8xf32>
    %214 = arith.truncf %213 : vector<2x8x8xf32> to vector<2x8x8xbf16>
    %215 = vector.shape_cast %205 : vector<16x8xf32> to vector<2x8x8xf32>
    %216 = arith.truncf %215 : vector<2x8x8xf32> to vector<2x8x8xbf16>
    "tpu.trace_start"() <{level = 10 : i32, message = "bqd,bkd->bqk"}> : () -> ()
    %cst_154 = arith.constant dense<0.000000e+00> : vector<2x8x8xf32>
    %217 = tpu.matmul %214, %216, %cst_154 {dimension_numbers = #tpu.dot_dimension_numbers<[2], [2], [1], [1], [0, 0, 0, 1, 1, 1], [0], [0]>} : vector<2x8x8xbf16>, vector<2x8x8xbf16>, vector<2x8x8xf32> -> vector<2x8x8xf32>
    "tpu.trace_stop"() : () -> ()
    %218 = arith.addf %217, %19 : vector<2x8x8xf32>
    %cst_155 = arith.constant dense<0xFF800000> : vector<2x8xf32>
    %219 = vector.multi_reduction <maximumf>, %218, %cst_155 [2] : vector<2x8x8xf32> to vector<2x8xf32>
    %220 = vector.shape_cast %219 : vector<2x8xf32> to vector<2x8x1xf32>
    %221 = vector.broadcast %220 : vector<2x8x1xf32> to vector<2x8x8xf32>
    %222 = arith.subf %218, %221 : vector<2x8x8xf32>
    %223 = math.exp %222 : vector<2x8x8xf32>
    %cst_156 = arith.constant dense<0.000000e+00> : vector<2x8xf32>
    %224 = vector.multi_reduction <add>, %223, %cst_156 [2] : vector<2x8x8xf32> to vector<2x8xf32>
    %225 = vector.shape_cast %224 : vector<2x8xf32> to vector<2x8x1xf32>
    %226 = tpu.reciprocal %225 {approx = true} : vector<2x8x1xf32> -> vector<2x8x1xf32>
    %227 = vector.broadcast %226 : vector<2x8x1xf32> to vector<2x8x8xf32>
    %228 = arith.mulf %223, %227 : vector<2x8x8xf32>
    %229 = arith.truncf %228 : vector<2x8x8xf32> to vector<2x8x8xbf16>
    %230 = vector.shape_cast %212 : vector<16x8xf32> to vector<2x8x8xf32>
    %231 = arith.truncf %230 : vector<2x8x8xf32> to vector<2x8x8xbf16>
    "tpu.trace_start"() <{level = 10 : i32, message = "bqk,bkd->bqd"}> : () -> ()
    %cst_157 = arith.constant dense<0.000000e+00> : vector<2x8x8xf32>
    %232 = tpu.matmul %229, %231, %cst_157 {dimension_numbers = #tpu.dot_dimension_numbers<[2], [1], [1], [2], [0, 0, 0, 1, 1, 2], [0], [0]>} : vector<2x8x8xbf16>, vector<2x8x8xbf16>, vector<2x8x8xf32> -> vector<2x8x8xf32>
    "tpu.trace_stop"() : () -> ()
    %233 = vector.shape_cast %232 : vector<2x8x8xf32> to vector<16x8xf32>
    %234 = arith.truncf %233 : vector<16x8xf32> to vector<16x8xbf16>
    %c0_158 = arith.constant 0 : index
    %c3_159 = arith.constant 3 : index
    %c0_160 = arith.constant 0 : index
    %c0_161 = arith.constant 0 : index
    %235 = vector.load %arg12[%c0_158, %c3_159, %c0_160, %c0_161] : memref<1x4x8x32xbf16, #tpu.memory_space<vmem>>, vector<1x1x8x32xbf16>
    %236 = vector.shape_cast %235 : vector<1x1x8x32xbf16> to vector<8x32xbf16>
    %cst_162 = arith.constant dense<0.000000e+00> : vector<16x32xf32>
    %237 = tpu.matmul %234, %236, %cst_162 {dimension_numbers = #tpu.dot_dimension_numbers<[1], [0], [0], [1], [0, 0, 1, 1], [], []>} : vector<16x8xbf16>, vector<8x32xbf16>, vector<16x32xf32> -> vector<16x32xf32>
    %238 = arith.addf %191, %237 : vector<16x32xf32>
    %c0_163 = arith.constant 0 : index
    %c0_164 = arith.constant 0 : index
    %c0_165 = arith.constant 0 : index
    %239 = vector.load %arg13[%c0_163, %c0_164, %c0_165] : memref<1x1x32xf32, #tpu.memory_space<vmem>>, vector<1x1x32xf32>
    %240 = vector.shape_cast %239 : vector<1x1x32xf32> to vector<1x32xf32>
    %241 = vector.broadcast %240 : vector<1x32xf32> to vector<16x32xf32>
    %242 = arith.addf %238, %241 : vector<16x32xf32>
    %243 = arith.addf %20, %242 : vector<16x32xf32>
    %c0_166 = arith.constant 0 : index
    %c0_167 = arith.constant 0 : index
    %c0_168 = arith.constant 0 : index
    %244 = vector.load %arg14[%c0_166, %c0_167, %c0_168] : memref<1x1x32xf32, #tpu.memory_space<vmem>>, vector<1x1x32xf32>
    %245 = vector.shape_cast %244 : vector<1x1x32xf32> to vector<1x32xf32>
    %c0_169 = arith.constant 0 : index
    %c0_170 = arith.constant 0 : index
    %c0_171 = arith.constant 0 : index
    %246 = vector.load %arg15[%c0_169, %c0_170, %c0_171] : memref<1x1x32xf32, #tpu.memory_space<vmem>>, vector<1x1x32xf32>
    %247 = vector.shape_cast %246 : vector<1x1x32xf32> to vector<1x32xf32>
    %cst_172 = arith.constant dense<0.000000e+00> : vector<16xf32>
    %248 = vector.multi_reduction <add>, %243, %cst_172 [1] : vector<16x32xf32> to vector<16xf32>
    %249 = vector.shape_cast %248 : vector<16xf32> to vector<16x1xf32>
    %cst_173 = arith.constant 3.200000e+01 : f32
    %250 = vector.broadcast %cst_173 : f32 to vector<16x1xf32>
    %251 = arith.divf %249, %250 : vector<16x1xf32>
    %252 = arith.mulf %243, %243 : vector<16x32xf32>
    %cst_174 = arith.constant dense<0.000000e+00> : vector<16xf32>
    %253 = vector.multi_reduction <add>, %252, %cst_174 [1] : vector<16x32xf32> to vector<16xf32>
    %254 = vector.shape_cast %253 : vector<16xf32> to vector<16x1xf32>
    %cst_175 = arith.constant 3.200000e+01 : f32
    %255 = vector.broadcast %cst_175 : f32 to vector<16x1xf32>
    %256 = arith.divf %254, %255 : vector<16x1xf32>
    %257 = arith.mulf %251, %251 : vector<16x1xf32>
    %258 = arith.subf %256, %257 : vector<16x1xf32>
    %259 = vector.broadcast %251 : vector<16x1xf32> to vector<16x32xf32>
    %260 = arith.subf %243, %259 : vector<16x32xf32>
    %cst_176 = arith.constant 9.99999974E-6 : f32
    %261 = vector.broadcast %cst_176 : f32 to vector<16x1xf32>
    %262 = arith.addf %258, %261 : vector<16x1xf32>
    %263 = math.rsqrt %262 : vector<16x1xf32>
    %264 = vector.broadcast %263 : vector<16x1xf32> to vector<16x32xf32>
    %265 = arith.mulf %260, %264 : vector<16x32xf32>
    %266 = vector.broadcast %245 : vector<1x32xf32> to vector<16x32xf32>
    %267 = arith.mulf %265, %266 : vector<16x32xf32>
    %268 = vector.broadcast %247 : vector<1x32xf32> to vector<16x32xf32>
    %269 = arith.addf %267, %268 : vector<16x32xf32>
    %270 = arith.truncf %269 : vector<16x32xf32> to vector<16x32xbf16>
    %271 = arith.truncf %21 : vector<16x32xf32> to vector<16x32xbf16>
    %cst_177 = arith.constant 0.000000e+00 : f32
    %272 = vector.broadcast %cst_177 : f32 to vector<16x32xf32>
    %c0_178 = arith.constant 0 : index
    %c0_179 = arith.constant 0 : index
    %c0_180 = arith.constant 0 : index
    %c0_181 = arith.constant 0 : index
    %273 = vector.load %arg16[%c0_178, %c0_179, %c0_180, %c0_181] : memref<1x4x32x8xbf16, #tpu.memory_space<vmem>>, vector<1x1x32x8xbf16>
    %274 = vector.shape_cast %273 : vector<1x1x32x8xbf16> to vector<32x8xbf16>
    %cst_182 = arith.constant dense<0.000000e+00> : vector<16x8xf32>
    %275 = tpu.matmul %270, %274, %cst_182 {dimension_numbers = #tpu.dot_dimension_numbers<[1], [0], [0], [1], [0, 0, 1, 1], [], []>} : vector<16x32xbf16>, vector<32x8xbf16>, vector<16x8xf32> -> vector<16x8xf32>
    %c0_183 = arith.constant 0 : index
    %c0_184 = arith.constant 0 : index
    %c0_185 = arith.constant 0 : index
    %c0_186 = arith.constant 0 : index
    %276 = vector.load %arg17[%c0_183, %c0_184, %c0_185, %c0_186] : memref<1x4x1x8xf32, #tpu.memory_space<vmem>>, vector<1x1x1x8xf32>
    %277 = vector.shape_cast %276 : vector<1x1x1x8xf32> to vector<1x8xf32>
    %278 = vector.broadcast %277 : vector<1x8xf32> to vector<16x8xf32>
    %279 = arith.addf %275, %278 : vector<16x8xf32>
    %c0_187 = arith.constant 0 : index
    %c0_188 = arith.constant 0 : index
    %c0_189 = arith.constant 0 : index
    %c0_190 = arith.constant 0 : index
    %280 = vector.load %arg18[%c0_187, %c0_188, %c0_189, %c0_190] : memref<1x4x32x8xbf16, #tpu.memory_space<vmem>>, vector<1x1x32x8xbf16>
    %281 = vector.shape_cast %280 : vector<1x1x32x8xbf16> to vector<32x8xbf16>
    %cst_191 = arith.constant dense<0.000000e+00> : vector<16x8xf32>
    %282 = tpu.matmul %271, %281, %cst_191 {dimension_numbers = #tpu.dot_dimension_numbers<[1], [0], [0], [1], [0, 0, 1, 1], [], []>} : vector<16x32xbf16>, vector<32x8xbf16>, vector<16x8xf32> -> vector<16x8xf32>
    %c0_192 = arith.constant 0 : index
    %c0_193 = arith.constant 0 : index
    %c0_194 = arith.constant 0 : index
    %c0_195 = arith.constant 0 : index
    %283 = vector.load %arg19[%c0_192, %c0_193, %c0_194, %c0_195] : memref<1x4x1x8xf32, #tpu.memory_space<vmem>>, vector<1x1x1x8xf32>
    %284 = vector.shape_cast %283 : vector<1x1x1x8xf32> to vector<1x8xf32>
    %285 = vector.broadcast %284 : vector<1x8xf32> to vector<16x8xf32>
    %286 = arith.addf %282, %285 : vector<16x8xf32>
    %c0_196 = arith.constant 0 : index
    %c0_197 = arith.constant 0 : index
    %c0_198 = arith.constant 0 : index
    %c0_199 = arith.constant 0 : index
    %287 = vector.load %arg20[%c0_196, %c0_197, %c0_198, %c0_199] : memref<1x4x32x8xbf16, #tpu.memory_space<vmem>>, vector<1x1x32x8xbf16>
    %288 = vector.shape_cast %287 : vector<1x1x32x8xbf16> to vector<32x8xbf16>
    %cst_200 = arith.constant dense<0.000000e+00> : vector<16x8xf32>
    %289 = tpu.matmul %271, %288, %cst_200 {dimension_numbers = #tpu.dot_dimension_numbers<[1], [0], [0], [1], [0, 0, 1, 1], [], []>} : vector<16x32xbf16>, vector<32x8xbf16>, vector<16x8xf32> -> vector<16x8xf32>
    %c0_201 = arith.constant 0 : index
    %c0_202 = arith.constant 0 : index
    %c0_203 = arith.constant 0 : index
    %c0_204 = arith.constant 0 : index
    %290 = vector.load %arg21[%c0_201, %c0_202, %c0_203, %c0_204] : memref<1x4x1x8xf32, #tpu.memory_space<vmem>>, vector<1x1x1x8xf32>
    %291 = vector.shape_cast %290 : vector<1x1x1x8xf32> to vector<1x8xf32>
    %292 = vector.broadcast %291 : vector<1x8xf32> to vector<16x8xf32>
    %293 = arith.addf %289, %292 : vector<16x8xf32>
    %294 = vector.shape_cast %279 : vector<16x8xf32> to vector<2x8x8xf32>
    %295 = arith.truncf %294 : vector<2x8x8xf32> to vector<2x8x8xbf16>
    %296 = vector.shape_cast %286 : vector<16x8xf32> to vector<2x8x8xf32>
    %297 = arith.truncf %296 : vector<2x8x8xf32> to vector<2x8x8xbf16>
    "tpu.trace_start"() <{level = 10 : i32, message = "bqd,bkd->bqk"}> : () -> ()
    %cst_205 = arith.constant dense<0.000000e+00> : vector<2x8x8xf32>
    %298 = tpu.matmul %295, %297, %cst_205 {dimension_numbers = #tpu.dot_dimension_numbers<[2], [2], [1], [1], [0, 0, 0, 1, 1, 1], [0], [0]>} : vector<2x8x8xbf16>, vector<2x8x8xbf16>, vector<2x8x8xf32> -> vector<2x8x8xf32>
    "tpu.trace_stop"() : () -> ()
    %299 = arith.addf %298, %19 : vector<2x8x8xf32>
    %cst_206 = arith.constant dense<0xFF800000> : vector<2x8xf32>
    %300 = vector.multi_reduction <maximumf>, %299, %cst_206 [2] : vector<2x8x8xf32> to vector<2x8xf32>
    %301 = vector.shape_cast %300 : vector<2x8xf32> to vector<2x8x1xf32>
    %302 = vector.broadcast %301 : vector<2x8x1xf32> to vector<2x8x8xf32>
    %303 = arith.subf %299, %302 : vector<2x8x8xf32>
    %304 = math.exp %303 : vector<2x8x8xf32>
    %cst_207 = arith.constant dense<0.000000e+00> : vector<2x8xf32>
    %305 = vector.multi_reduction <add>, %304, %cst_207 [2] : vector<2x8x8xf32> to vector<2x8xf32>
    %306 = vector.shape_cast %305 : vector<2x8xf32> to vector<2x8x1xf32>
    %307 = tpu.reciprocal %306 {approx = true} : vector<2x8x1xf32> -> vector<2x8x1xf32>
    %308 = vector.broadcast %307 : vector<2x8x1xf32> to vector<2x8x8xf32>
    %309 = arith.mulf %304, %308 : vector<2x8x8xf32>
    %310 = arith.truncf %309 : vector<2x8x8xf32> to vector<2x8x8xbf16>
    %311 = vector.shape_cast %293 : vector<16x8xf32> to vector<2x8x8xf32>
    %312 = arith.truncf %311 : vector<2x8x8xf32> to vector<2x8x8xbf16>
    "tpu.trace_start"() <{level = 10 : i32, message = "bqk,bkd->bqd"}> : () -> ()
    %cst_208 = arith.constant dense<0.000000e+00> : vector<2x8x8xf32>
    %313 = tpu.matmul %310, %312, %cst_208 {dimension_numbers = #tpu.dot_dimension_numbers<[2], [1], [1], [2], [0, 0, 0, 1, 1, 2], [0], [0]>} : vector<2x8x8xbf16>, vector<2x8x8xbf16>, vector<2x8x8xf32> -> vector<2x8x8xf32>
    "tpu.trace_stop"() : () -> ()
    %314 = vector.shape_cast %313 : vector<2x8x8xf32> to vector<16x8xf32>
    %315 = arith.truncf %314 : vector<16x8xf32> to vector<16x8xbf16>
    %c0_209 = arith.constant 0 : index
    %c0_210 = arith.constant 0 : index
    %c0_211 = arith.constant 0 : index
    %c0_212 = arith.constant 0 : index
    %316 = vector.load %arg22[%c0_209, %c0_210, %c0_211, %c0_212] : memref<1x4x8x32xbf16, #tpu.memory_space<vmem>>, vector<1x1x8x32xbf16>
    %317 = vector.shape_cast %316 : vector<1x1x8x32xbf16> to vector<8x32xbf16>
    %cst_213 = arith.constant dense<0.000000e+00> : vector<16x32xf32>
    %318 = tpu.matmul %315, %317, %cst_213 {dimension_numbers = #tpu.dot_dimension_numbers<[1], [0], [0], [1], [0, 0, 1, 1], [], []>} : vector<16x8xbf16>, vector<8x32xbf16>, vector<16x32xf32> -> vector<16x32xf32>
    %319 = arith.addf %272, %318 : vector<16x32xf32>
    %c0_214 = arith.constant 0 : index
    %c1_215 = arith.constant 1 : index
    %c0_216 = arith.constant 0 : index
    %c0_217 = arith.constant 0 : index
    %320 = vector.load %arg16[%c0_214, %c1_215, %c0_216, %c0_217] : memref<1x4x32x8xbf16, #tpu.memory_space<vmem>>, vector<1x1x32x8xbf16>
    %321 = vector.shape_cast %320 : vector<1x1x32x8xbf16> to vector<32x8xbf16>
    %cst_218 = arith.constant dense<0.000000e+00> : vector<16x8xf32>
    %322 = tpu.matmul %270, %321, %cst_218 {dimension_numbers = #tpu.dot_dimension_numbers<[1], [0], [0], [1], [0, 0, 1, 1], [], []>} : vector<16x32xbf16>, vector<32x8xbf16>, vector<16x8xf32> -> vector<16x8xf32>
    %c0_219 = arith.constant 0 : index
    %c1_220 = arith.constant 1 : index
    %c0_221 = arith.constant 0 : index
    %c0_222 = arith.constant 0 : index
    %323 = vector.load %arg17[%c0_219, %c1_220, %c0_221, %c0_222] : memref<1x4x1x8xf32, #tpu.memory_space<vmem>>, vector<1x1x1x8xf32>
    %324 = vector.shape_cast %323 : vector<1x1x1x8xf32> to vector<1x8xf32>
    %325 = vector.broadcast %324 : vector<1x8xf32> to vector<16x8xf32>
    %326 = arith.addf %322, %325 : vector<16x8xf32>
    %c0_223 = arith.constant 0 : index
    %c1_224 = arith.constant 1 : index
    %c0_225 = arith.constant 0 : index
    %c0_226 = arith.constant 0 : index
    %327 = vector.load %arg18[%c0_223, %c1_224, %c0_225, %c0_226] : memref<1x4x32x8xbf16, #tpu.memory_space<vmem>>, vector<1x1x32x8xbf16>
    %328 = vector.shape_cast %327 : vector<1x1x32x8xbf16> to vector<32x8xbf16>
    %cst_227 = arith.constant dense<0.000000e+00> : vector<16x8xf32>
    %329 = tpu.matmul %271, %328, %cst_227 {dimension_numbers = #tpu.dot_dimension_numbers<[1], [0], [0], [1], [0, 0, 1, 1], [], []>} : vector<16x32xbf16>, vector<32x8xbf16>, vector<16x8xf32> -> vector<16x8xf32>
    %c0_228 = arith.constant 0 : index
    %c1_229 = arith.constant 1 : index
    %c0_230 = arith.constant 0 : index
    %c0_231 = arith.constant 0 : index
    %330 = vector.load %arg19[%c0_228, %c1_229, %c0_230, %c0_231] : memref<1x4x1x8xf32, #tpu.memory_space<vmem>>, vector<1x1x1x8xf32>
    %331 = vector.shape_cast %330 : vector<1x1x1x8xf32> to vector<1x8xf32>
    %332 = vector.broadcast %331 : vector<1x8xf32> to vector<16x8xf32>
    %333 = arith.addf %329, %332 : vector<16x8xf32>
    %c0_232 = arith.constant 0 : index
    %c1_233 = arith.constant 1 : index
    %c0_234 = arith.constant 0 : index
    %c0_235 = arith.constant 0 : index
    %334 = vector.load %arg20[%c0_232, %c1_233, %c0_234, %c0_235] : memref<1x4x32x8xbf16, #tpu.memory_space<vmem>>, vector<1x1x32x8xbf16>
    %335 = vector.shape_cast %334 : vector<1x1x32x8xbf16> to vector<32x8xbf16>
    %cst_236 = arith.constant dense<0.000000e+00> : vector<16x8xf32>
    %336 = tpu.matmul %271, %335, %cst_236 {dimension_numbers = #tpu.dot_dimension_numbers<[1], [0], [0], [1], [0, 0, 1, 1], [], []>} : vector<16x32xbf16>, vector<32x8xbf16>, vector<16x8xf32> -> vector<16x8xf32>
    %c0_237 = arith.constant 0 : index
    %c1_238 = arith.constant 1 : index
    %c0_239 = arith.constant 0 : index
    %c0_240 = arith.constant 0 : index
    %337 = vector.load %arg21[%c0_237, %c1_238, %c0_239, %c0_240] : memref<1x4x1x8xf32, #tpu.memory_space<vmem>>, vector<1x1x1x8xf32>
    %338 = vector.shape_cast %337 : vector<1x1x1x8xf32> to vector<1x8xf32>
    %339 = vector.broadcast %338 : vector<1x8xf32> to vector<16x8xf32>
    %340 = arith.addf %336, %339 : vector<16x8xf32>
    %341 = vector.shape_cast %326 : vector<16x8xf32> to vector<2x8x8xf32>
    %342 = arith.truncf %341 : vector<2x8x8xf32> to vector<2x8x8xbf16>
    %343 = vector.shape_cast %333 : vector<16x8xf32> to vector<2x8x8xf32>
    %344 = arith.truncf %343 : vector<2x8x8xf32> to vector<2x8x8xbf16>
    "tpu.trace_start"() <{level = 10 : i32, message = "bqd,bkd->bqk"}> : () -> ()
    %cst_241 = arith.constant dense<0.000000e+00> : vector<2x8x8xf32>
    %345 = tpu.matmul %342, %344, %cst_241 {dimension_numbers = #tpu.dot_dimension_numbers<[2], [2], [1], [1], [0, 0, 0, 1, 1, 1], [0], [0]>} : vector<2x8x8xbf16>, vector<2x8x8xbf16>, vector<2x8x8xf32> -> vector<2x8x8xf32>
    "tpu.trace_stop"() : () -> ()
    %346 = arith.addf %345, %19 : vector<2x8x8xf32>
    %cst_242 = arith.constant dense<0xFF800000> : vector<2x8xf32>
    %347 = vector.multi_reduction <maximumf>, %346, %cst_242 [2] : vector<2x8x8xf32> to vector<2x8xf32>
    %348 = vector.shape_cast %347 : vector<2x8xf32> to vector<2x8x1xf32>
    %349 = vector.broadcast %348 : vector<2x8x1xf32> to vector<2x8x8xf32>
    %350 = arith.subf %346, %349 : vector<2x8x8xf32>
    %351 = math.exp %350 : vector<2x8x8xf32>
    %cst_243 = arith.constant dense<0.000000e+00> : vector<2x8xf32>
    %352 = vector.multi_reduction <add>, %351, %cst_243 [2] : vector<2x8x8xf32> to vector<2x8xf32>
    %353 = vector.shape_cast %352 : vector<2x8xf32> to vector<2x8x1xf32>
    %354 = tpu.reciprocal %353 {approx = true} : vector<2x8x1xf32> -> vector<2x8x1xf32>
    %355 = vector.broadcast %354 : vector<2x8x1xf32> to vector<2x8x8xf32>
    %356 = arith.mulf %351, %355 : vector<2x8x8xf32>
    %357 = arith.truncf %356 : vector<2x8x8xf32> to vector<2x8x8xbf16>
    %358 = vector.shape_cast %340 : vector<16x8xf32> to vector<2x8x8xf32>
    %359 = arith.truncf %358 : vector<2x8x8xf32> to vector<2x8x8xbf16>
    "tpu.trace_start"() <{level = 10 : i32, message = "bqk,bkd->bqd"}> : () -> ()
    %cst_244 = arith.constant dense<0.000000e+00> : vector<2x8x8xf32>
    %360 = tpu.matmul %357, %359, %cst_244 {dimension_numbers = #tpu.dot_dimension_numbers<[2], [1], [1], [2], [0, 0, 0, 1, 1, 2], [0], [0]>} : vector<2x8x8xbf16>, vector<2x8x8xbf16>, vector<2x8x8xf32> -> vector<2x8x8xf32>
    "tpu.trace_stop"() : () -> ()
    %361 = vector.shape_cast %360 : vector<2x8x8xf32> to vector<16x8xf32>
    %362 = arith.truncf %361 : vector<16x8xf32> to vector<16x8xbf16>
    %c0_245 = arith.constant 0 : index
    %c1_246 = arith.constant 1 : index
    %c0_247 = arith.constant 0 : index
    %c0_248 = arith.constant 0 : index
    %363 = vector.load %arg22[%c0_245, %c1_246, %c0_247, %c0_248] : memref<1x4x8x32xbf16, #tpu.memory_space<vmem>>, vector<1x1x8x32xbf16>
    %364 = vector.shape_cast %363 : vector<1x1x8x32xbf16> to vector<8x32xbf16>
    %cst_249 = arith.constant dense<0.000000e+00> : vector<16x32xf32>
    %365 = tpu.matmul %362, %364, %cst_249 {dimension_numbers = #tpu.dot_dimension_numbers<[1], [0], [0], [1], [0, 0, 1, 1], [], []>} : vector<16x8xbf16>, vector<8x32xbf16>, vector<16x32xf32> -> vector<16x32xf32>
    %366 = arith.addf %319, %365 : vector<16x32xf32>
    %c0_250 = arith.constant 0 : index
    %c2_251 = arith.constant 2 : index
    %c0_252 = arith.constant 0 : index
    %c0_253 = arith.constant 0 : index
    %367 = vector.load %arg16[%c0_250, %c2_251, %c0_252, %c0_253] : memref<1x4x32x8xbf16, #tpu.memory_space<vmem>>, vector<1x1x32x8xbf16>
    %368 = vector.shape_cast %367 : vector<1x1x32x8xbf16> to vector<32x8xbf16>
    %cst_254 = arith.constant dense<0.000000e+00> : vector<16x8xf32>
    %369 = tpu.matmul %270, %368, %cst_254 {dimension_numbers = #tpu.dot_dimension_numbers<[1], [0], [0], [1], [0, 0, 1, 1], [], []>} : vector<16x32xbf16>, vector<32x8xbf16>, vector<16x8xf32> -> vector<16x8xf32>
    %c0_255 = arith.constant 0 : index
    %c2_256 = arith.constant 2 : index
    %c0_257 = arith.constant 0 : index
    %c0_258 = arith.constant 0 : index
    %370 = vector.load %arg17[%c0_255, %c2_256, %c0_257, %c0_258] : memref<1x4x1x8xf32, #tpu.memory_space<vmem>>, vector<1x1x1x8xf32>
    %371 = vector.shape_cast %370 : vector<1x1x1x8xf32> to vector<1x8xf32>
    %372 = vector.broadcast %371 : vector<1x8xf32> to vector<16x8xf32>
    %373 = arith.addf %369, %372 : vector<16x8xf32>
    %c0_259 = arith.constant 0 : index
    %c2_260 = arith.constant 2 : index
    %c0_261 = arith.constant 0 : index
    %c0_262 = arith.constant 0 : index
    %374 = vector.load %arg18[%c0_259, %c2_260, %c0_261, %c0_262] : memref<1x4x32x8xbf16, #tpu.memory_space<vmem>>, vector<1x1x32x8xbf16>
    %375 = vector.shape_cast %374 : vector<1x1x32x8xbf16> to vector<32x8xbf16>
    %cst_263 = arith.constant dense<0.000000e+00> : vector<16x8xf32>
    %376 = tpu.matmul %271, %375, %cst_263 {dimension_numbers = #tpu.dot_dimension_numbers<[1], [0], [0], [1], [0, 0, 1, 1], [], []>} : vector<16x32xbf16>, vector<32x8xbf16>, vector<16x8xf32> -> vector<16x8xf32>
    %c0_264 = arith.constant 0 : index
    %c2_265 = arith.constant 2 : index
    %c0_266 = arith.constant 0 : index
    %c0_267 = arith.constant 0 : index
    %377 = vector.load %arg19[%c0_264, %c2_265, %c0_266, %c0_267] : memref<1x4x1x8xf32, #tpu.memory_space<vmem>>, vector<1x1x1x8xf32>
    %378 = vector.shape_cast %377 : vector<1x1x1x8xf32> to vector<1x8xf32>
    %379 = vector.broadcast %378 : vector<1x8xf32> to vector<16x8xf32>
    %380 = arith.addf %376, %379 : vector<16x8xf32>
    %c0_268 = arith.constant 0 : index
    %c2_269 = arith.constant 2 : index
    %c0_270 = arith.constant 0 : index
    %c0_271 = arith.constant 0 : index
    %381 = vector.load %arg20[%c0_268, %c2_269, %c0_270, %c0_271] : memref<1x4x32x8xbf16, #tpu.memory_space<vmem>>, vector<1x1x32x8xbf16>
    %382 = vector.shape_cast %381 : vector<1x1x32x8xbf16> to vector<32x8xbf16>
    %cst_272 = arith.constant dense<0.000000e+00> : vector<16x8xf32>
    %383 = tpu.matmul %271, %382, %cst_272 {dimension_numbers = #tpu.dot_dimension_numbers<[1], [0], [0], [1], [0, 0, 1, 1], [], []>} : vector<16x32xbf16>, vector<32x8xbf16>, vector<16x8xf32> -> vector<16x8xf32>
    %c0_273 = arith.constant 0 : index
    %c2_274 = arith.constant 2 : index
    %c0_275 = arith.constant 0 : index
    %c0_276 = arith.constant 0 : index
    %384 = vector.load %arg21[%c0_273, %c2_274, %c0_275, %c0_276] : memref<1x4x1x8xf32, #tpu.memory_space<vmem>>, vector<1x1x1x8xf32>
    %385 = vector.shape_cast %384 : vector<1x1x1x8xf32> to vector<1x8xf32>
    %386 = vector.broadcast %385 : vector<1x8xf32> to vector<16x8xf32>
    %387 = arith.addf %383, %386 : vector<16x8xf32>
    %388 = vector.shape_cast %373 : vector<16x8xf32> to vector<2x8x8xf32>
    %389 = arith.truncf %388 : vector<2x8x8xf32> to vector<2x8x8xbf16>
    %390 = vector.shape_cast %380 : vector<16x8xf32> to vector<2x8x8xf32>
    %391 = arith.truncf %390 : vector<2x8x8xf32> to vector<2x8x8xbf16>
    "tpu.trace_start"() <{level = 10 : i32, message = "bqd,bkd->bqk"}> : () -> ()
    %cst_277 = arith.constant dense<0.000000e+00> : vector<2x8x8xf32>
    %392 = tpu.matmul %389, %391, %cst_277 {dimension_numbers = #tpu.dot_dimension_numbers<[2], [2], [1], [1], [0, 0, 0, 1, 1, 1], [0], [0]>} : vector<2x8x8xbf16>, vector<2x8x8xbf16>, vector<2x8x8xf32> -> vector<2x8x8xf32>
    "tpu.trace_stop"() : () -> ()
    %393 = arith.addf %392, %19 : vector<2x8x8xf32>
    %cst_278 = arith.constant dense<0xFF800000> : vector<2x8xf32>
    %394 = vector.multi_reduction <maximumf>, %393, %cst_278 [2] : vector<2x8x8xf32> to vector<2x8xf32>
    %395 = vector.shape_cast %394 : vector<2x8xf32> to vector<2x8x1xf32>
    %396 = vector.broadcast %395 : vector<2x8x1xf32> to vector<2x8x8xf32>
    %397 = arith.subf %393, %396 : vector<2x8x8xf32>
    %398 = math.exp %397 : vector<2x8x8xf32>
    %cst_279 = arith.constant dense<0.000000e+00> : vector<2x8xf32>
    %399 = vector.multi_reduction <add>, %398, %cst_279 [2] : vector<2x8x8xf32> to vector<2x8xf32>
    %400 = vector.shape_cast %399 : vector<2x8xf32> to vector<2x8x1xf32>
    %401 = tpu.reciprocal %400 {approx = true} : vector<2x8x1xf32> -> vector<2x8x1xf32>
    %402 = vector.broadcast %401 : vector<2x8x1xf32> to vector<2x8x8xf32>
    %403 = arith.mulf %398, %402 : vector<2x8x8xf32>
    %404 = arith.truncf %403 : vector<2x8x8xf32> to vector<2x8x8xbf16>
    %405 = vector.shape_cast %387 : vector<16x8xf32> to vector<2x8x8xf32>
    %406 = arith.truncf %405 : vector<2x8x8xf32> to vector<2x8x8xbf16>
    "tpu.trace_start"() <{level = 10 : i32, message = "bqk,bkd->bqd"}> : () -> ()
    %cst_280 = arith.constant dense<0.000000e+00> : vector<2x8x8xf32>
    %407 = tpu.matmul %404, %406, %cst_280 {dimension_numbers = #tpu.dot_dimension_numbers<[2], [1], [1], [2], [0, 0, 0, 1, 1, 2], [0], [0]>} : vector<2x8x8xbf16>, vector<2x8x8xbf16>, vector<2x8x8xf32> -> vector<2x8x8xf32>
    "tpu.trace_stop"() : () -> ()
    %408 = vector.shape_cast %407 : vector<2x8x8xf32> to vector<16x8xf32>
    %409 = arith.truncf %408 : vector<16x8xf32> to vector<16x8xbf16>
    %c0_281 = arith.constant 0 : index
    %c2_282 = arith.constant 2 : index
    %c0_283 = arith.constant 0 : index
    %c0_284 = arith.constant 0 : index
    %410 = vector.load %arg22[%c0_281, %c2_282, %c0_283, %c0_284] : memref<1x4x8x32xbf16, #tpu.memory_space<vmem>>, vector<1x1x8x32xbf16>
    %411 = vector.shape_cast %410 : vector<1x1x8x32xbf16> to vector<8x32xbf16>
    %cst_285 = arith.constant dense<0.000000e+00> : vector<16x32xf32>
    %412 = tpu.matmul %409, %411, %cst_285 {dimension_numbers = #tpu.dot_dimension_numbers<[1], [0], [0], [1], [0, 0, 1, 1], [], []>} : vector<16x8xbf16>, vector<8x32xbf16>, vector<16x32xf32> -> vector<16x32xf32>
    %413 = arith.addf %366, %412 : vector<16x32xf32>
    %c0_286 = arith.constant 0 : index
    %c3_287 = arith.constant 3 : index
    %c0_288 = arith.constant 0 : index
    %c0_289 = arith.constant 0 : index
    %414 = vector.load %arg16[%c0_286, %c3_287, %c0_288, %c0_289] : memref<1x4x32x8xbf16, #tpu.memory_space<vmem>>, vector<1x1x32x8xbf16>
    %415 = vector.shape_cast %414 : vector<1x1x32x8xbf16> to vector<32x8xbf16>
    %cst_290 = arith.constant dense<0.000000e+00> : vector<16x8xf32>
    %416 = tpu.matmul %270, %415, %cst_290 {dimension_numbers = #tpu.dot_dimension_numbers<[1], [0], [0], [1], [0, 0, 1, 1], [], []>} : vector<16x32xbf16>, vector<32x8xbf16>, vector<16x8xf32> -> vector<16x8xf32>
    %c0_291 = arith.constant 0 : index
    %c3_292 = arith.constant 3 : index
    %c0_293 = arith.constant 0 : index
    %c0_294 = arith.constant 0 : index
    %417 = vector.load %arg17[%c0_291, %c3_292, %c0_293, %c0_294] : memref<1x4x1x8xf32, #tpu.memory_space<vmem>>, vector<1x1x1x8xf32>
    %418 = vector.shape_cast %417 : vector<1x1x1x8xf32> to vector<1x8xf32>
    %419 = vector.broadcast %418 : vector<1x8xf32> to vector<16x8xf32>
    %420 = arith.addf %416, %419 : vector<16x8xf32>
    %c0_295 = arith.constant 0 : index
    %c3_296 = arith.constant 3 : index
    %c0_297 = arith.constant 0 : index
    %c0_298 = arith.constant 0 : index
    %421 = vector.load %arg18[%c0_295, %c3_296, %c0_297, %c0_298] : memref<1x4x32x8xbf16, #tpu.memory_space<vmem>>, vector<1x1x32x8xbf16>
    %422 = vector.shape_cast %421 : vector<1x1x32x8xbf16> to vector<32x8xbf16>
    %cst_299 = arith.constant dense<0.000000e+00> : vector<16x8xf32>
    %423 = tpu.matmul %271, %422, %cst_299 {dimension_numbers = #tpu.dot_dimension_numbers<[1], [0], [0], [1], [0, 0, 1, 1], [], []>} : vector<16x32xbf16>, vector<32x8xbf16>, vector<16x8xf32> -> vector<16x8xf32>
    %c0_300 = arith.constant 0 : index
    %c3_301 = arith.constant 3 : index
    %c0_302 = arith.constant 0 : index
    %c0_303 = arith.constant 0 : index
    %424 = vector.load %arg19[%c0_300, %c3_301, %c0_302, %c0_303] : memref<1x4x1x8xf32, #tpu.memory_space<vmem>>, vector<1x1x1x8xf32>
    %425 = vector.shape_cast %424 : vector<1x1x1x8xf32> to vector<1x8xf32>
    %426 = vector.broadcast %425 : vector<1x8xf32> to vector<16x8xf32>
    %427 = arith.addf %423, %426 : vector<16x8xf32>
    %c0_304 = arith.constant 0 : index
    %c3_305 = arith.constant 3 : index
    %c0_306 = arith.constant 0 : index
    %c0_307 = arith.constant 0 : index
    %428 = vector.load %arg20[%c0_304, %c3_305, %c0_306, %c0_307] : memref<1x4x32x8xbf16, #tpu.memory_space<vmem>>, vector<1x1x32x8xbf16>
    %429 = vector.shape_cast %428 : vector<1x1x32x8xbf16> to vector<32x8xbf16>
    %cst_308 = arith.constant dense<0.000000e+00> : vector<16x8xf32>
    %430 = tpu.matmul %271, %429, %cst_308 {dimension_numbers = #tpu.dot_dimension_numbers<[1], [0], [0], [1], [0, 0, 1, 1], [], []>} : vector<16x32xbf16>, vector<32x8xbf16>, vector<16x8xf32> -> vector<16x8xf32>
    %c0_309 = arith.constant 0 : index
    %c3_310 = arith.constant 3 : index
    %c0_311 = arith.constant 0 : index
    %c0_312 = arith.constant 0 : index
    %431 = vector.load %arg21[%c0_309, %c3_310, %c0_311, %c0_312] : memref<1x4x1x8xf32, #tpu.memory_space<vmem>>, vector<1x1x1x8xf32>
    %432 = vector.shape_cast %431 : vector<1x1x1x8xf32> to vector<1x8xf32>
    %433 = vector.broadcast %432 : vector<1x8xf32> to vector<16x8xf32>
    %434 = arith.addf %430, %433 : vector<16x8xf32>
    %435 = vector.shape_cast %420 : vector<16x8xf32> to vector<2x8x8xf32>
    %436 = arith.truncf %435 : vector<2x8x8xf32> to vector<2x8x8xbf16>
    %437 = vector.shape_cast %427 : vector<16x8xf32> to vector<2x8x8xf32>
    %438 = arith.truncf %437 : vector<2x8x8xf32> to vector<2x8x8xbf16>
    "tpu.trace_start"() <{level = 10 : i32, message = "bqd,bkd->bqk"}> : () -> ()
    %cst_313 = arith.constant dense<0.000000e+00> : vector<2x8x8xf32>
    %439 = tpu.matmul %436, %438, %cst_313 {dimension_numbers = #tpu.dot_dimension_numbers<[2], [2], [1], [1], [0, 0, 0, 1, 1, 1], [0], [0]>} : vector<2x8x8xbf16>, vector<2x8x8xbf16>, vector<2x8x8xf32> -> vector<2x8x8xf32>
    "tpu.trace_stop"() : () -> ()
    %440 = arith.addf %439, %19 : vector<2x8x8xf32>
    %cst_314 = arith.constant dense<0xFF800000> : vector<2x8xf32>
    %441 = vector.multi_reduction <maximumf>, %440, %cst_314 [2] : vector<2x8x8xf32> to vector<2x8xf32>
    %442 = vector.shape_cast %441 : vector<2x8xf32> to vector<2x8x1xf32>
    %443 = vector.broadcast %442 : vector<2x8x1xf32> to vector<2x8x8xf32>
    %444 = arith.subf %440, %443 : vector<2x8x8xf32>
    %445 = math.exp %444 : vector<2x8x8xf32>
    %cst_315 = arith.constant dense<0.000000e+00> : vector<2x8xf32>
    %446 = vector.multi_reduction <add>, %445, %cst_315 [2] : vector<2x8x8xf32> to vector<2x8xf32>
    %447 = vector.shape_cast %446 : vector<2x8xf32> to vector<2x8x1xf32>
    %448 = tpu.reciprocal %447 {approx = true} : vector<2x8x1xf32> -> vector<2x8x1xf32>
    %449 = vector.broadcast %448 : vector<2x8x1xf32> to vector<2x8x8xf32>
    %450 = arith.mulf %445, %449 : vector<2x8x8xf32>
    %451 = arith.truncf %450 : vector<2x8x8xf32> to vector<2x8x8xbf16>
    %452 = vector.shape_cast %434 : vector<16x8xf32> to vector<2x8x8xf32>
    %453 = arith.truncf %452 : vector<2x8x8xf32> to vector<2x8x8xbf16>
    "tpu.trace_start"() <{level = 10 : i32, message = "bqk,bkd->bqd"}> : () -> ()
    %cst_316 = arith.constant dense<0.000000e+00> : vector<2x8x8xf32>
    %454 = tpu.matmul %451, %453, %cst_316 {dimension_numbers = #tpu.dot_dimension_numbers<[2], [1], [1], [2], [0, 0, 0, 1, 1, 2], [0], [0]>} : vector<2x8x8xbf16>, vector<2x8x8xbf16>, vector<2x8x8xf32> -> vector<2x8x8xf32>
    "tpu.trace_stop"() : () -> ()
    %455 = vector.shape_cast %454 : vector<2x8x8xf32> to vector<16x8xf32>
    %456 = arith.truncf %455 : vector<16x8xf32> to vector<16x8xbf16>
    %c0_317 = arith.constant 0 : index
    %c3_318 = arith.constant 3 : index
    %c0_319 = arith.constant 0 : index
    %c0_320 = arith.constant 0 : index
    %457 = vector.load %arg22[%c0_317, %c3_318, %c0_319, %c0_320] : memref<1x4x8x32xbf16, #tpu.memory_space<vmem>>, vector<1x1x8x32xbf16>
    %458 = vector.shape_cast %457 : vector<1x1x8x32xbf16> to vector<8x32xbf16>
    %cst_321 = arith.constant dense<0.000000e+00> : vector<16x32xf32>
    %459 = tpu.matmul %456, %458, %cst_321 {dimension_numbers = #tpu.dot_dimension_numbers<[1], [0], [0], [1], [0, 0, 1, 1], [], []>} : vector<16x8xbf16>, vector<8x32xbf16>, vector<16x32xf32> -> vector<16x32xf32>
    %460 = arith.addf %413, %459 : vector<16x32xf32>
    %c0_322 = arith.constant 0 : index
    %c0_323 = arith.constant 0 : index
    %c0_324 = arith.constant 0 : index
    %461 = vector.load %arg23[%c0_322, %c0_323, %c0_324] : memref<1x1x32xf32, #tpu.memory_space<vmem>>, vector<1x1x32xf32>
    %462 = vector.shape_cast %461 : vector<1x1x32xf32> to vector<1x32xf32>
    %463 = vector.broadcast %462 : vector<1x32xf32> to vector<16x32xf32>
    %464 = arith.addf %460, %463 : vector<16x32xf32>
    %465 = arith.addf %243, %464 : vector<16x32xf32>
    %c0_325 = arith.constant 0 : index
    %c0_326 = arith.constant 0 : index
    %c0_327 = arith.constant 0 : index
    %466 = vector.load %arg24[%c0_325, %c0_326, %c0_327] : memref<1x1x32xf32, #tpu.memory_space<vmem>>, vector<1x1x32xf32>
    %467 = vector.shape_cast %466 : vector<1x1x32xf32> to vector<1x32xf32>
    %c0_328 = arith.constant 0 : index
    %c0_329 = arith.constant 0 : index
    %c0_330 = arith.constant 0 : index
    %468 = vector.load %arg25[%c0_328, %c0_329, %c0_330] : memref<1x1x32xf32, #tpu.memory_space<vmem>>, vector<1x1x32xf32>
    %469 = vector.shape_cast %468 : vector<1x1x32xf32> to vector<1x32xf32>
    %cst_331 = arith.constant dense<0.000000e+00> : vector<16xf32>
    %470 = vector.multi_reduction <add>, %465, %cst_331 [1] : vector<16x32xf32> to vector<16xf32>
    %471 = vector.shape_cast %470 : vector<16xf32> to vector<16x1xf32>
    %cst_332 = arith.constant 3.200000e+01 : f32
    %472 = vector.broadcast %cst_332 : f32 to vector<16x1xf32>
    %473 = arith.divf %471, %472 : vector<16x1xf32>
    %474 = arith.mulf %465, %465 : vector<16x32xf32>
    %cst_333 = arith.constant dense<0.000000e+00> : vector<16xf32>
    %475 = vector.multi_reduction <add>, %474, %cst_333 [1] : vector<16x32xf32> to vector<16xf32>
    %476 = vector.shape_cast %475 : vector<16xf32> to vector<16x1xf32>
    %cst_334 = arith.constant 3.200000e+01 : f32
    %477 = vector.broadcast %cst_334 : f32 to vector<16x1xf32>
    %478 = arith.divf %476, %477 : vector<16x1xf32>
    %479 = arith.mulf %473, %473 : vector<16x1xf32>
    %480 = arith.subf %478, %479 : vector<16x1xf32>
    %481 = vector.broadcast %473 : vector<16x1xf32> to vector<16x32xf32>
    %482 = arith.subf %465, %481 : vector<16x32xf32>
    %cst_335 = arith.constant 9.99999974E-6 : f32
    %483 = vector.broadcast %cst_335 : f32 to vector<16x1xf32>
    %484 = arith.addf %480, %483 : vector<16x1xf32>
    %485 = math.rsqrt %484 : vector<16x1xf32>
    %486 = vector.broadcast %485 : vector<16x1xf32> to vector<16x32xf32>
    %487 = arith.mulf %482, %486 : vector<16x32xf32>
    %488 = vector.broadcast %467 : vector<1x32xf32> to vector<16x32xf32>
    %489 = arith.mulf %487, %488 : vector<16x32xf32>
    %490 = vector.broadcast %469 : vector<1x32xf32> to vector<16x32xf32>
    %491 = arith.addf %489, %490 : vector<16x32xf32>
    %492 = arith.truncf %491 : vector<16x32xf32> to vector<16x32xbf16>
    %c0_336 = arith.constant 0 : index
    %c0_337 = arith.constant 0 : index
    %c0_338 = arith.constant 0 : index
    %493 = vector.load %arg26[%c0_336, %c0_337, %c0_338] : memref<1x32x128xbf16, #tpu.memory_space<vmem>>, vector<1x32x128xbf16>
    %494 = vector.shape_cast %493 : vector<1x32x128xbf16> to vector<32x128xbf16>
    %cst_339 = arith.constant dense<0.000000e+00> : vector<16x128xf32>
    %495 = tpu.matmul %492, %494, %cst_339 {dimension_numbers = #tpu.dot_dimension_numbers<[1], [0], [0], [1], [0, 0, 1, 1], [], []>} : vector<16x32xbf16>, vector<32x128xbf16>, vector<16x128xf32> -> vector<16x128xf32>
    %c0_340 = arith.constant 0 : index
    %c0_341 = arith.constant 0 : index
    %c0_342 = arith.constant 0 : index
    %496 = vector.load %arg27[%c0_340, %c0_341, %c0_342] : memref<1x1x128xf32, #tpu.memory_space<vmem>>, vector<1x1x128xf32>
    %497 = vector.shape_cast %496 : vector<1x1x128xf32> to vector<1x128xf32>
    %498 = vector.broadcast %497 : vector<1x128xf32> to vector<16x128xf32>
    %499 = arith.addf %495, %498 : vector<16x128xf32>
    %cst_343 = arith.constant 0.000000e+00 : f32
    %500 = vector.broadcast %cst_343 : f32 to vector<16x128xf32>
    %501 = arith.maximumf %499, %500 : vector<16x128xf32>
    %502 = arith.truncf %501 : vector<16x128xf32> to vector<16x128xbf16>
    %c0_344 = arith.constant 0 : index
    %c0_345 = arith.constant 0 : index
    %c0_346 = arith.constant 0 : index
    %503 = vector.load %arg28[%c0_344, %c0_345, %c0_346] : memref<1x128x32xbf16, #tpu.memory_space<vmem>>, vector<1x128x32xbf16>
    %504 = vector.shape_cast %503 : vector<1x128x32xbf16> to vector<128x32xbf16>
    %cst_347 = arith.constant dense<0.000000e+00> : vector<16x32xf32>
    %505 = tpu.matmul %502, %504, %cst_347 {dimension_numbers = #tpu.dot_dimension_numbers<[1], [0], [0], [1], [0, 0, 1, 1], [], []>} : vector<16x128xbf16>, vector<128x32xbf16>, vector<16x32xf32> -> vector<16x32xf32>
    %506 = arith.addf %465, %505 : vector<16x32xf32>
    %c0_348 = arith.constant 0 : index
    %c0_349 = arith.constant 0 : index
    %c0_350 = arith.constant 0 : index
    %507 = vector.load %arg29[%c0_348, %c0_349, %c0_350] : memref<1x1x32xf32, #tpu.memory_space<vmem>>, vector<1x1x32xf32>
    %508 = vector.shape_cast %507 : vector<1x1x32xf32> to vector<1x32xf32>
    %509 = vector.broadcast %508 : vector<1x32xf32> to vector<16x32xf32>
    %510 = arith.addf %506, %509 : vector<16x32xf32>
    %c0_351 = arith.constant 0 : index
    %c0_352 = arith.constant 0 : index
    %511 = vector.load %arg33[%c0_351, %c0_352] : memref<16x32xf32, #tpu.memory_space<vmem>>, vector<16x32xf32>
    tpu.vector_store %arg33[%c0_351, %c0_352], %510 {strides = array<i32>} : memref<16x32xf32, #tpu.memory_space<vmem>>, vector<16x32xf32>,
    %c1_i32 = arith.constant 1 : i32
    %512 = arith.cmpi eq, %arg0, %c1_i32 : i32
    %513 = arith.extui %512 : i1 to i32
    %c0_i32_353 = arith.constant 0 : i32
    %514 = arith.cmpi ne, %513, %c0_i32_353 : i32
    scf.if %514 {
      %c0_354 = arith.constant 0 : index
      %c0_355 = arith.constant 0 : index
      %515 = vector.load %arg30[%c0_354, %c0_355] : memref<1x32xf32, #tpu.memory_space<vmem>>, vector<1x32xf32>
      %c0_356 = arith.constant 0 : index
      %c0_357 = arith.constant 0 : index
      %516 = vector.load %arg31[%c0_356, %c0_357] : memref<1x32xf32, #tpu.memory_space<vmem>>, vector<1x32xf32>
      %cst_358 = arith.constant dense<0.000000e+00> : vector<16xf32>
      %517 = vector.multi_reduction <add>, %510, %cst_358 [1] : vector<16x32xf32> to vector<16xf32>
      %518 = vector.shape_cast %517 : vector<16xf32> to vector<16x1xf32>
      %cst_359 = arith.constant 3.200000e+01 : f32
      %519 = vector.broadcast %cst_359 : f32 to vector<16x1xf32>
      %520 = arith.divf %518, %519 : vector<16x1xf32>
      %521 = arith.mulf %510, %510 : vector<16x32xf32>
      %cst_360 = arith.constant dense<0.000000e+00> : vector<16xf32>
      %522 = vector.multi_reduction <add>, %521, %cst_360 [1] : vector<16x32xf32> to vector<16xf32>
      %523 = vector.shape_cast %522 : vector<16xf32> to vector<16x1xf32>
      %cst_361 = arith.constant 3.200000e+01 : f32
      %524 = vector.broadcast %cst_361 : f32 to vector<16x1xf32>
      %525 = arith.divf %523, %524 : vector<16x1xf32>
      %526 = arith.mulf %520, %520 : vector<16x1xf32>
      %527 = arith.subf %525, %526 : vector<16x1xf32>
      %528 = vector.broadcast %520 : vector<16x1xf32> to vector<16x32xf32>
      %529 = arith.subf %510, %528 : vector<16x32xf32>
      %cst_362 = arith.constant 9.99999974E-6 : f32
      %530 = vector.broadcast %cst_362 : f32 to vector<16x1xf32>
      %531 = arith.addf %527, %530 : vector<16x1xf32>
      %532 = math.rsqrt %531 : vector<16x1xf32>
      %533 = vector.broadcast %532 : vector<16x1xf32> to vector<16x32xf32>
      %534 = arith.mulf %529, %533 : vector<16x32xf32>
      %535 = vector.broadcast %515 : vector<1x32xf32> to vector<16x32xf32>
      %536 = arith.mulf %534, %535 : vector<16x32xf32>
      %537 = vector.broadcast %516 : vector<1x32xf32> to vector<16x32xf32>
      %538 = arith.addf %536, %537 : vector<16x32xf32>
      %c0_363 = arith.constant 0 : index
      %c0_364 = arith.constant 0 : index
      %539 = vector.load %arg32[%c0_363, %c0_364] : memref<16x32xf32, #tpu.memory_space<vmem>>, vector<16x32xf32>
      tpu.vector_store %arg32[%c0_363, %c0_364], %538 {strides = array<i32>} : memref<16x32xf32, #tpu.memory_space<vmem>>, vector<16x32xf32>,
    } else {
    }
    return
  }
  func.func @transform_0(%arg0: i32) -> (i32, i32) {
    %c0_i32 = arith.constant 0 : i32
    %c0_i32_0 = arith.constant 0 : i32
    %c0_i32_1 = arith.constant 0 : i32
    return %c0_i32, %c0_i32_0 : i32, i32
  }
  func.func @transform_1(%arg0: i32) -> (i32, i32) {
    %c0_i32 = arith.constant 0 : i32
    %c0_i32_0 = arith.constant 0 : i32
    %c0_i32_1 = arith.constant 0 : i32
    return %c0_i32, %c0_i32_0 : i32, i32
  }
  func.func @transform_2(%arg0: i32) -> (i32, i32) {
    %c0_i32 = arith.constant 0 : i32
    %c0_i32_0 = arith.constant 0 : i32
    %c0_i32_1 = arith.constant 0 : i32
    return %c0_i32, %c0_i32_0 : i32, i32
  }
  func.func @transform_3(%arg0: i32) -> (i32, i32, i32) {
    %c0_i32 = arith.constant 0 : i32
    %c0_i32_0 = arith.constant 0 : i32
    %c0_i32_1 = arith.constant 0 : i32
    return %arg0, %c0_i32, %c0_i32_0 : i32, i32, i32
  }
  func.func @transform_4(%arg0: i32) -> (i32, i32, i32) {
    %c0_i32 = arith.constant 0 : i32
    %c0_i32_0 = arith.constant 0 : i32
    %c0_i32_1 = arith.constant 0 : i32
    return %arg0, %c0_i32, %c0_i32_0 : i32, i32, i32
  }
  func.func @transform_5(%arg0: i32) -> (i32, i32, i32, i32) {
    %c0_i32 = arith.constant 0 : i32
    %c0_i32_0 = arith.constant 0 : i32
    %c0_i32_1 = arith.constant 0 : i32
    %c0_i32_2 = arith.constant 0 : i32
    return %arg0, %c0_i32, %c0_i32_0, %c0_i32_1 : i32, i32, i32, i32
  }
  func.func @transform_6(%arg0: i32) -> (i32, i32, i32, i32) {
    %c0_i32 = arith.constant 0 : i32
    %c0_i32_0 = arith.constant 0 : i32
    %c0_i32_1 = arith.constant 0 : i32
    %c0_i32_2 = arith.constant 0 : i32
    return %arg0, %c0_i32, %c0_i32_0, %c0_i32_1 : i32, i32, i32, i32
  }
  func.func @transform_7(%arg0: i32) -> (i32, i32, i32, i32) {
    %c0_i32 = arith.constant 0 : i32
    %c0_i32_0 = arith.constant 0 : i32
    %c0_i32_1 = arith.constant 0 : i32
    %c0_i32_2 = arith.constant 0 : i32
    return %arg0, %c0_i32, %c0_i32_0, %c0_i32_1 : i32, i32, i32, i32
  }
  func.func @transform_8(%arg0: i32) -> (i32, i32, i32, i32) {
    %c0_i32 = arith.constant 0 : i32
    %c0_i32_0 = arith.constant 0 : i32
    %c0_i32_1 = arith.constant 0 : i32
    %c0_i32_2 = arith.constant 0 : i32
    return %arg0, %c0_i32, %c0_i32_0, %c0_i32_1 : i32, i32, i32, i32
  }
  func.func @transform_9(%arg0: i32) -> (i32, i32, i32, i32) {
    %c0_i32 = arith.constant 0 : i32
    %c0_i32_0 = arith.constant 0 : i32
    %c0_i32_1 = arith.constant 0 : i32
    %c0_i32_2 = arith.constant 0 : i32
    return %arg0, %c0_i32, %c0_i32_0, %c0_i32_1 : i32, i32, i32, i32
  }
  func.func @transform_10(%arg0: i32) -> (i32, i32, i32, i32) {
    %c0_i32 = arith.constant 0 : i32
    %c0_i32_0 = arith.constant 0 : i32
    %c0_i32_1 = arith.constant 0 : i32
    %c0_i32_2 = arith.constant 0 : i32
    return %arg0, %c0_i32, %c0_i32_0, %c0_i32_1 : i32, i32, i32, i32
  }
  func.func @transform_11(%arg0: i32) -> (i32, i32, i32, i32) {
    %c0_i32 = arith.constant 0 : i32
    %c0_i32_0 = arith.constant 0 : i32
    %c0_i32_1 = arith.constant 0 : i32
    %c0_i32_2 = arith.constant 0 : i32
    return %arg0, %c0_i32, %c0_i32_0, %c0_i32_1 : i32, i32, i32, i32
  }
  func.func @transform_12(%arg0: i32) -> (i32, i32, i32) {
    %c0_i32 = arith.constant 0 : i32
    %c0_i32_0 = arith.constant 0 : i32
    %c0_i32_1 = arith.constant 0 : i32
    return %arg0, %c0_i32, %c0_i32_0 : i32, i32, i32
  }
  func.func @transform_13(%arg0: i32) -> (i32, i32, i32) {
    %c0_i32 = arith.constant 0 : i32
    %c0_i32_0 = arith.constant 0 : i32
    %c0_i32_1 = arith.constant 0 : i32
    return %arg0, %c0_i32, %c0_i32_0 : i32, i32, i32
  }
  func.func @transform_14(%arg0: i32) -> (i32, i32, i32) {
    %c0_i32 = arith.constant 0 : i32
    %c0_i32_0 = arith.constant 0 : i32
    %c0_i32_1 = arith.constant 0 : i32
    return %arg0, %c0_i32, %c0_i32_0 : i32, i32, i32
  }
  func.func @transform_15(%arg0: i32) -> (i32, i32, i32, i32) {
    %c0_i32 = arith.constant 0 : i32
    %c0_i32_0 = arith.constant 0 : i32
    %c0_i32_1 = arith.constant 0 : i32
    %c0_i32_2 = arith.constant 0 : i32
    return %arg0, %c0_i32, %c0_i32_0, %c0_i32_1 : i32, i32, i32, i32
  }
  func.func @transform_16(%arg0: i32) -> (i32, i32, i32, i32) {
    %c0_i32 = arith.constant 0 : i32
    %c0_i32_0 = arith.constant 0 : i32
    %c0_i32_1 = arith.constant 0 : i32
    %c0_i32_2 = arith.constant 0 : i32
    return %arg0, %c0_i32, %c0_i32_0, %c0_i32_1 : i32, i32, i32, i32
  }
  func.func @transform_17(%arg0: i32) -> (i32, i32, i32, i32) {
    %c0_i32 = arith.constant 0 : i32
    %c0_i32_0 = arith.constant 0 : i32
    %c0_i32_1 = arith.constant 0 : i32
    %c0_i32_2 = arith.constant 0 : i32
    return %arg0, %c0_i32, %c0_i32_0, %c0_i32_1 : i32, i32, i32, i32
  }
  func.func @transform_18(%arg0: i32) -> (i32, i32, i32, i32) {
    %c0_i32 = arith.constant 0 : i32
    %c0_i32_0 = arith.constant 0 : i32
    %c0_i32_1 = arith.constant 0 : i32
    %c0_i32_2 = arith.constant 0 : i32
    return %arg0, %c0_i32, %c0_i32_0, %c0_i32_1 : i32, i32, i32, i32
  }
  func.func @transform_19(%arg0: i32) -> (i32, i32, i32, i32) {
    %c0_i32 = arith.constant 0 : i32
    %c0_i32_0 = arith.constant 0 : i32
    %c0_i32_1 = arith.constant 0 : i32
    %c0_i32_2 = arith.constant 0 : i32
    return %arg0, %c0_i32, %c0_i32_0, %c0_i32_1 : i32, i32, i32, i32
  }
  func.func @transform_20(%arg0: i32) -> (i32, i32, i32, i32) {
    %c0_i32 = arith.constant 0 : i32
    %c0_i32_0 = arith.constant 0 : i32
    %c0_i32_1 = arith.constant 0 : i32
    %c0_i32_2 = arith.constant 0 : i32
    return %arg0, %c0_i32, %c0_i32_0, %c0_i32_1 : i32, i32, i32, i32
  }
  func.func @transform_21(%arg0: i32) -> (i32, i32, i32, i32) {
    %c0_i32 = arith.constant 0 : i32
    %c0_i32_0 = arith.constant 0 : i32
    %c0_i32_1 = arith.constant 0 : i32
    %c0_i32_2 = arith.constant 0 : i32
    return %arg0, %c0_i32, %c0_i32_0, %c0_i32_1 : i32, i32, i32, i32
  }
  func.func @transform_22(%arg0: i32) -> (i32, i32, i32) {
    %c0_i32 = arith.constant 0 : i32
    %c0_i32_0 = arith.constant 0 : i32
    %c0_i32_1 = arith.constant 0 : i32
    return %arg0, %c0_i32, %c0_i32_0 : i32, i32, i32
  }
  func.func @transform_23(%arg0: i32) -> (i32, i32, i32) {
    %c0_i32 = arith.constant 0 : i32
    %c0_i32_0 = arith.constant 0 : i32
    %c0_i32_1 = arith.constant 0 : i32
    return %arg0, %c0_i32, %c0_i32_0 : i32, i32, i32
  }
  func.func @transform_24(%arg0: i32) -> (i32, i32, i32) {
    %c0_i32 = arith.constant 0 : i32
    %c0_i32_0 = arith.constant 0 : i32
    %c0_i32_1 = arith.constant 0 : i32
    return %arg0, %c0_i32, %c0_i32_0 : i32, i32, i32
  }
  func.func @transform_25(%arg0: i32) -> (i32, i32, i32) {
    %c0_i32 = arith.constant 0 : i32
    %c0_i32_0 = arith.constant 0 : i32
    %c0_i32_1 = arith.constant 0 : i32
    return %arg0, %c0_i32, %c0_i32_0 : i32, i32, i32
  }
  func.func @transform_26(%arg0: i32) -> (i32, i32, i32) {
    %c0_i32 = arith.constant 0 : i32
    %c0_i32_0 = arith.constant 0 : i32
    %c0_i32_1 = arith.constant 0 : i32
    return %arg0, %c0_i32, %c0_i32_0 : i32, i32, i32
  }
  func.func @transform_27(%arg0: i32) -> (i32, i32, i32) {
    %c0_i32 = arith.constant 0 : i32
    %c0_i32_0 = arith.constant 0 : i32
    %c0_i32_1 = arith.constant 0 : i32
    return %arg0, %c0_i32, %c0_i32_0 : i32, i32, i32
  }
  func.func @transform_28(%arg0: i32) -> (i32, i32, i32) {
    %c0_i32 = arith.constant 0 : i32
    %c0_i32_0 = arith.constant 0 : i32
    %c0_i32_1 = arith.constant 0 : i32
    return %arg0, %c0_i32, %c0_i32_0 : i32, i32, i32
  }
  func.func @transform_29(%arg0: i32) -> (i32, i32) {
    %c0_i32 = arith.constant 0 : i32
    %c0_i32_0 = arith.constant 0 : i32
    %c0_i32_1 = arith.constant 0 : i32
    return %c0_i32, %c0_i32_0 : i32, i32
  }
  func.func @transform_30(%arg0: i32) -> (i32, i32) {
    %c0_i32 = arith.constant 0 : i32
    %c0_i32_0 = arith.constant 0 : i32
    %c0_i32_1 = arith.constant 0 : i32
    return %c0_i32, %c0_i32_0 : i32, i32
  }
  func.func @transform_31(%arg0: i32) -> (i32, i32) {
    %c0_i32 = arith.constant 0 : i32
    %c0_i32_0 = arith.constant 0 : i32
    %c0_i32_1 = arith.constant 0 : i32
    return %c0_i32, %c0_i32_0 : i32, i32
  }
}

</mosaic_0001>

<llo_original>
// kernel: tpu_custom_call.1
$region0: #{tpu_custom_call.1}
  #allocation0 [shape = 'u32[]', space=smem, size = 0x4, offset = 0x4, fixed_abs, tag = 'smem constant byte address 0x4 - core index']
  #allocation1 [shape = 'u32[144,128]{1,0:T(1,128)}', space=vmem, size = 0x12000, scoped, tag = 'internal scratch']
  #allocation2 [shape = 'f32[16,32]{1,0:T(8,128)}', space=vmem, size = 0x2000, scoped, tag = 'scratch operand']
  %s0 = inlined_call_operand.smem [shape: u32[32], index: -1, kind: input, shape index: {}]
  %s1 = sld [smem:[%s0]]
  %s2 = scalar_lea.smem %s0, 1
  %s3 = sld [smem:[%s2]]
  %s4 = scalar_lea.smem %s0, 2
  %s5 = sld [smem:[%s4]]
  %s6 = scalar_lea.smem %s0, 3
  %s7 = sld [smem:[%s6]]
  %s8 = scalar_lea.smem %s0, 4
  %s9 = sld [smem:[%s8]]
  %s10 = scalar_lea.smem %s0, 5
  %s11 = sld [smem:[%s10]]
  %s12 = scalar_lea.smem %s0, 6
  %s13 = sld [smem:[%s12]]
  %s14 = scalar_lea.smem %s0, 7
  %s15 = sld [smem:[%s14]]
  %s16 = scalar_lea.smem %s0, 8
  %s17 = sld [smem:[%s16]]
  %s18 = scalar_lea.smem %s0, 9
  %s19 = sld [smem:[%s18]]
  %s20 = scalar_lea.smem %s0, 10
  %s21 = sld [smem:[%s20]]
  %s22 = scalar_lea.smem %s0, 11
  %s23 = sld [smem:[%s22]]
  %s24 = scalar_lea.smem %s0, 12
  %s25 = sld [smem:[%s24]]
  %s26 = scalar_lea.smem %s0, 13
  %s27 = sld [smem:[%s26]]
  %s28 = scalar_lea.smem %s0, 14
  %s29 = sld [smem:[%s28]]
  %s30 = scalar_lea.smem %s0, 15
  %s31 = sld [smem:[%s30]]
  %s32 = scalar_lea.smem %s0, 16
  %s33 = sld [smem:[%s32]]
  %s34 = scalar_lea.smem %s0, 17
  %s35 = sld [smem:[%s34]]
  %s36 = scalar_lea.smem %s0, 18
  %s37 = sld [smem:[%s36]]
  %s38 = scalar_lea.smem %s0, 19
  %s39 = sld [smem:[%s38]]
  %s40 = scalar_lea.smem %s0, 20
  %s41 = sld [smem:[%s40]]
  %s42 = scalar_lea.smem %s0, 21
  %s43 = sld [smem:[%s42]]
  %s44 = scalar_lea.smem %s0, 22
  %s45 = sld [smem:[%s44]]
  %s46 = scalar_lea.smem %s0, 23
  %s47 = sld [smem:[%s46]]
  %s48 = scalar_lea.smem %s0, 24
  %s49 = sld [smem:[%s48]]
  %s50 = scalar_lea.smem %s0, 25
  %s51 = sld [smem:[%s50]]
  %s52 = scalar_lea.smem %s0, 26
  %s53 = sld [smem:[%s52]]
  %s54 = scalar_lea.smem %s0, 27
  %s55 = sld [smem:[%s54]]
  %s56 = scalar_lea.smem %s0, 28
  %s57 = sld [smem:[%s56]]
  %s58 = scalar_lea.smem %s0, 29
  %s59 = sld [smem:[%s58]]
  %s60 = scalar_lea.smem %s0, 30
  %s61 = sld [smem:[%s60]]
  %s62 = scalar_lea.smem %s0, 31
  %s63 = sld [smem:[%s62]]
  %s64 = sld [smem:[#allocation0]]
  $region165: #{tpu_custom_call.1} parent=0
    _
  %s66 = ssub.s32 1, %s64
  %s67 = scalar_select 0, %s66, %s64
  $region1: #{tpu_custom_call.1} parent=0
    #allocation3 [shape = 'u8[8192]{0}', space=vmem, size = 0x2000, scoped, tag = 'output window, operand 0, single buffered']
    #allocation4 [shape = 's32[2]{0}', space=sflag, size = 0x8, scoped, tag = 'scoped memory for tpu_custom_call.1']
    %68 = vsyncpa [#allocation4], 0
    loop: start=0, step=1, limit=4
    $region2: #{tpu_custom_call.1} parent=1 // loop_pre_header
      _
    $region3: #{tpu_custom_call.1} parent=1 // loop_header
      %s70 = sphi 0, %s74
      %p71 = scmp.ge.s32.totalorder %s70, 4
      %s78 = sphi 0, %s78
      %s80 = sphi 0, %s78
      %s81 = sphi 0, %s80
      %s95 = sphi 0, %s81
      %s99 = sphi 0, %s99
      %s101 = sphi 0, %s99
      %s102 = sphi 0, %s101
      %s116 = sphi 0, %s102
      %s120 = sphi 0, %s120
      %s122 = sphi 0, %s120
      %s123 = sphi 0, %s122
      %s137 = sphi 0, %s123
      %s143 = sphi 0, %s145
      %s146 = sphi 0, %s143
      %s147 = sphi 0, %s146
      %s163 = sphi 0, %s147
      %s169 = sphi 0, %s171
      %s172 = sphi 0, %s169
      %s173 = sphi 0, %s172
      %s189 = sphi 0, %s173
      %s195 = sphi 0, %s197
      %s198 = sphi 0, %s195
      %s199 = sphi 0, %s198
      %s215 = sphi 0, %s199
      %s221 = sphi 0, %s223
      %s224 = sphi 0, %s221
      %s225 = sphi 0, %s224
      %s241 = sphi 0, %s225
      %s247 = sphi 0, %s249
      %s250 = sphi 0, %s247
      %s251 = sphi 0, %s250
      %s267 = sphi 0, %s251
      %s273 = sphi 0, %s275
      %s276 = sphi 0, %s273
      %s277 = sphi 0, %s276
      %s293 = sphi 0, %s277
      %s299 = sphi 0, %s301
      %s302 = sphi 0, %s299
      %s303 = sphi 0, %s302
      %s319 = sphi 0, %s303
      %s325 = sphi 0, %s327
      %s328 = sphi 0, %s325
      %s329 = sphi 0, %s328
      %s345 = sphi 0, %s329
      %s351 = sphi 0, %s353
      %s354 = sphi 0, %s351
      %s355 = sphi 0, %s354
      %s371 = sphi 0, %s355
      %s377 = sphi 0, %s379
      %s380 = sphi 0, %s377
      %s381 = sphi 0, %s380
      %s397 = sphi 0, %s381
      %s403 = sphi 0, %s405
      %s406 = sphi 0, %s403
      %s407 = sphi 0, %s406
      %s423 = sphi 0, %s407
      %s429 = sphi 0, %s431
      %s432 = sphi 0, %s429
      %s433 = sphi 0, %s432
      %s449 = sphi 0, %s433
      %s455 = sphi 0, %s457
      %s458 = sphi 0, %s455
      %s459 = sphi 0, %s458
      %s475 = sphi 0, %s459
      %s481 = sphi 0, %s483
      %s484 = sphi 0, %s481
      %s485 = sphi 0, %s484
      %s501 = sphi 0, %s485
      %s507 = sphi 0, %s509
      %s510 = sphi 0, %s507
      %s511 = sphi 0, %s510
      %s527 = sphi 0, %s511
      %s533 = sphi 0, %s535
      %s536 = sphi 0, %s533
      %s537 = sphi 0, %s536
      %s553 = sphi 0, %s537
      %s559 = sphi 0, %s561
      %s562 = sphi 0, %s559
      %s563 = sphi 0, %s562
      %s579 = sphi 0, %s563
      %s585 = sphi 0, %s587
      %s588 = sphi 0, %s585
      %s589 = sphi 0, %s588
      %s605 = sphi 0, %s589
      %s611 = sphi 0, %s613
      %s614 = sphi 0, %s611
      %s615 = sphi 0, %s614
      %s631 = sphi 0, %s615
      %s637 = sphi 0, %s639
      %s640 = sphi 0, %s637
      %s641 = sphi 0, %s640
      %s657 = sphi 0, %s641
      %s663 = sphi 0, %s665
      %s666 = sphi 0, %s663
      %s667 = sphi 0, %s666
      %s683 = sphi 0, %s667
      %s689 = sphi 0, %s691
      %s692 = sphi 0, %s689
      %s693 = sphi 0, %s692
      %s709 = sphi 0, %s693
      %s715 = sphi 0, %s717
      %s718 = sphi 0, %s715
      %s719 = sphi 0, %s718
      %s735 = sphi 0, %s719
      %s741 = sphi 0, %s743
      %s744 = sphi 0, %s741
      %s745 = sphi 0, %s744
      %s761 = sphi 0, %s745
      %s767 = sphi 0, %s769
      %s770 = sphi 0, %s767
      %s771 = sphi 0, %s770
      %s787 = sphi 0, %s771
      %s793 = sphi 0, %s795
      %s796 = sphi 0, %s793
      %s797 = sphi 0, %s796
      %s813 = sphi 0, %s797
      %s817 = sphi 0, %s817
      %s819 = sphi 0, %s817
      %s820 = sphi 0, %s819
      %s834 = sphi 0, %s820
      %s838 = sphi 0, %s838
      %s840 = sphi 0, %s838
      %s841 = sphi 0, %s840
      %s855 = sphi 0, %s841
      %s859 = sphi 0, %s859
      %s861 = sphi 0, %s859
      %s862 = sphi 0, %s861
      %s876 = sphi 0, %s862
    $region4: #{tpu_custom_call.1} parent=1 // loop_header_branch
      %73 = sbr.rel (%p71) target = $region8
    $region5: #{tpu_custom_call.1} parent=1 // loop_body
      %s75 = ssub.s32 %s70, 1
      %s76 = ssub.s32 %s70, 2
      %s77 = sadd.s32 %s70, 1
      %s79 = sadd.s32 %s78, 1
      %p82 = scmp.eq.s32.totalorder %s70, 1
      %p83 = scmp.ne.s32.totalorder %s78, %s80
      %p84 = scmp.eq.s32.totalorder %s70, 0
      %p85 = por %p83, %p84
      %p86 = scmp.ne.s32.totalorder %s78, %s80
      %p87 = scmp.eq.s32.totalorder %s75, 1
      %p88 = por %p86, %p87
      %p89 = scmp.ne.s32.totalorder %s80, %s81
      %p90 = scmp.eq.s32.totalorder %s75, 0
      %p91 = por %p89, %p90
      %p92 = scmp.ne.s32.totalorder %s80, %s81
      %p93 = scmp.eq.s32.totalorder %s76, 1
      %p94 = por %p92, %p93
      %p96 = scmp.ne.s32.totalorder %s81, %s95
      %p97 = scmp.eq.s32.totalorder %s76, 0
      %p98 = por %p96, %p97
      %s100 = sadd.s32 %s99, 1
      %p103 = scmp.eq.s32.totalorder %s70, 1
      %p104 = scmp.ne.s32.totalorder %s99, %s101
      %p105 = scmp.eq.s32.totalorder %s70, 0
      %p106 = por %p104, %p105
      %p107 = scmp.ne.s32.totalorder %s99, %s101
      %p108 = scmp.eq.s32.totalorder %s75, 1
      %p109 = por %p107, %p108
      %p110 = scmp.ne.s32.totalorder %s101, %s102
      %p111 = scmp.eq.s32.totalorder %s75, 0
      %p112 = por %p110, %p111
      %p113 = scmp.ne.s32.totalorder %s101, %s102
      %p114 = scmp.eq.s32.totalorder %s76, 1
      %p115 = por %p113, %p114
      %p117 = scmp.ne.s32.totalorder %s102, %s116
      %p118 = scmp.eq.s32.totalorder %s76, 0
      %p119 = por %p117, %p118
      %s121 = sadd.s32 %s120, 1
      %p124 = scmp.eq.s32.totalorder %s70, 1
      %p125 = scmp.ne.s32.totalorder %s120, %s122
      %p126 = scmp.eq.s32.totalorder %s70, 0
      %p127 = por %p125, %p126
      %p128 = scmp.ne.s32.totalorder %s120, %s122
      %p129 = scmp.eq.s32.totalorder %s75, 1
      %p130 = por %p128, %p129
      %p131 = scmp.ne.s32.totalorder %s122, %s123
      %p132 = scmp.eq.s32.totalorder %s75, 0
      %p133 = por %p131, %p132
      %p134 = scmp.ne.s32.totalorder %s122, %s123
      %p135 = scmp.eq.s32.totalorder %s76, 1
      %p136 = por %p134, %p135
      %p138 = scmp.ne.s32.totalorder %s123, %s137
      %p139 = scmp.eq.s32.totalorder %s76, 0
      %p140 = por %p138, %p139
      %s141 = ssub.s32 %s70, %s77
      %p142 = scmp.eq.s32.totalorder %s141, 0
      %s144 = sadd.s32 %s143, 1
      %s145 = scalar_select %p142, %s143, %s144
      %p148 = pneg %p142
      %p149 = scmp.eq.s32.totalorder %s70, 1
      %p150 = por %p148, %p149
      %p151 = scmp.ne.s32.totalorder %s143, %s146
      %p152 = scmp.eq.s32.totalorder %s70, 0
      %p153 = por %p151, %p152
      %p154 = scmp.ne.s32.totalorder %s143, %s146
      %p155 = scmp.eq.s32.totalorder %s75, 1
      %p156 = por %p154, %p155
      %p157 = scmp.ne.s32.totalorder %s146, %s147
      %p158 = scmp.eq.s32.totalorder %s75, 0
      %p159 = por %p157, %p158
      %p160 = scmp.ne.s32.totalorder %s146, %s147
      %p161 = scmp.eq.s32.totalorder %s76, 1
      %p162 = por %p160, %p161
      %p164 = scmp.ne.s32.totalorder %s147, %s163
      %p165 = scmp.eq.s32.totalorder %s76, 0
      %p166 = por %p164, %p165
      %s167 = ssub.s32 %s70, %s77
      %p168 = scmp.eq.s32.totalorder %s167, 0
      %s170 = sadd.s32 %s169, 1
      %s171 = scalar_select %p168, %s169, %s170
      %p174 = pneg %p168
      %p175 = scmp.eq.s32.totalorder %s70, 1
      %p176 = por %p174, %p175
      %p177 = scmp.ne.s32.totalorder %s169, %s172
      %p178 = scmp.eq.s32.totalorder %s70, 0
      %p179 = por %p177, %p178
      %p180 = scmp.ne.s32.totalorder %s169, %s172
      %p181 = scmp.eq.s32.totalorder %s75, 1
      %p182 = por %p180, %p181
      %p183 = scmp.ne.s32.totalorder %s172, %s173
      %p184 = scmp.eq.s32.totalorder %s75, 0
      %p185 = por %p183, %p184
      %p186 = scmp.ne.s32.totalorder %s172, %s173
      %p187 = scmp.eq.s32.totalorder %s76, 1
      %p188 = por %p186, %p187
      %p190 = scmp.ne.s32.totalorder %s173, %s189
      %p191 = scmp.eq.s32.totalorder %s76, 0
      %p192 = por %p190, %p191
      %s193 = ssub.s32 %s70, %s77
      %p194 = scmp.eq.s32.totalorder %s193, 0
      %s196 = sadd.s32 %s195, 1
      %s197 = scalar_select %p194, %s195, %s196
      %p200 = pneg %p194
      %p201 = scmp.eq.s32.totalorder %s70, 1
      %p202 = por %p200, %p201
      %p203 = scmp.ne.s32.totalorder %s195, %s198
      %p204 = scmp.eq.s32.totalorder %s70, 0
      %p205 = por %p203, %p204
      %p206 = scmp.ne.s32.totalorder %s195, %s198
      %p207 = scmp.eq.s32.totalorder %s75, 1
      %p208 = por %p206, %p207
      %p209 = scmp.ne.s32.totalorder %s198, %s199
      %p210 = scmp.eq.s32.totalorder %s75, 0
      %p211 = por %p209, %p210
      %p212 = scmp.ne.s32.totalorder %s198, %s199
      %p213 = scmp.eq.s32.totalorder %s76, 1
      %p214 = por %p212, %p213
      %p216 = scmp.ne.s32.totalorder %s199, %s215
      %p217 = scmp.eq.s32.totalorder %s76, 0
      %p218 = por %p216, %p217
      %s219 = ssub.s32 %s70, %s77
      %p220 = scmp.eq.s32.totalorder %s219, 0
      %s222 = sadd.s32 %s221, 1
      %s223 = scalar_select %p220, %s221, %s222
      %p226 = pneg %p220
      %p227 = scmp.eq.s32.totalorder %s70, 1
      %p228 = por %p226, %p227
      %p229 = scmp.ne.s32.totalorder %s221, %s224
      %p230 = scmp.eq.s32.totalorder %s70, 0
      %p231 = por %p229, %p230
      %p232 = scmp.ne.s32.totalorder %s221, %s224
      %p233 = scmp.eq.s32.totalorder %s75, 1
      %p234 = por %p232, %p233
      %p235 = scmp.ne.s32.totalorder %s224, %s225
      %p236 = scmp.eq.s32.totalorder %s75, 0
      %p237 = por %p235, %p236
      %p238 = scmp.ne.s32.totalorder %s224, %s225
      %p239 = scmp.eq.s32.totalorder %s76, 1
      %p240 = por %p238, %p239
      %p242 = scmp.ne.s32.totalorder %s225, %s241
      %p243 = scmp.eq.s32.totalorder %s76, 0
      %p244 = por %p242, %p243
      %s245 = ssub.s32 %s70, %s77
      %p246 = scmp.eq.s32.totalorder %s245, 0
      %s248 = sadd.s32 %s247, 1
      %s249 = scalar_select %p246, %s247, %s248
      %p252 = pneg %p246
      %p253 = scmp.eq.s32.totalorder %s70, 1
      %p254 = por %p252, %p253
      %p255 = scmp.ne.s32.totalorder %s247, %s250
      %p256 = scmp.eq.s32.totalorder %s70, 0
      %p257 = por %p255, %p256
      %p258 = scmp.ne.s32.totalorder %s247, %s250
      %p259 = scmp.eq.s32.totalorder %s75, 1
      %p260 = por %p258, %p259
      %p261 = scmp.ne.s32.totalorder %s250, %s251
      %p262 = scmp.eq.s32.totalorder %s75, 0
      %p263 = por %p261, %p262
      %p264 = scmp.ne.s32.totalorder %s250, %s251
      %p265 = scmp.eq.s32.totalorder %s76, 1
      %p266 = por %p264, %p265
      %p268 = scmp.ne.s32.totalorder %s251, %s267
      %p269 = scmp.eq.s32.totalorder %s76, 0
      %p270 = por %p268, %p269
      %s271 = ssub.s32 %s70, %s77
      %p272 = scmp.eq.s32.totalorder %s271, 0
      %s274 = sadd.s32 %s273, 1
      %s275 = scalar_select %p272, %s273, %s274
      %p278 = pneg %p272
      %p279 = scmp.eq.s32.totalorder %s70, 1
      %p280 = por %p278, %p279
      %p281 = scmp.ne.s32.totalorder %s273, %s276
      %p282 = scmp.eq.s32.totalorder %s70, 0
      %p283 = por %p281, %p282
      %p284 = scmp.ne.s32.totalorder %s273, %s276
      %p285 = scmp.eq.s32.totalorder %s75, 1
      %p286 = por %p284, %p285
      %p287 = scmp.ne.s32.totalorder %s276, %s277
      %p288 = scmp.eq.s32.totalorder %s75, 0
      %p289 = por %p287, %p288
      %p290 = scmp.ne.s32.totalorder %s276, %s277
      %p291 = scmp.eq.s32.totalorder %s76, 1
      %p292 = por %p290, %p291
      %p294 = scmp.ne.s32.totalorder %s277, %s293
      %p295 = scmp.eq.s32.totalorder %s76, 0
      %p296 = por %p294, %p295
      %s297 = ssub.s32 %s70, %s77
      %p298 = scmp.eq.s32.totalorder %s297, 0
      %s300 = sadd.s32 %s299, 1
      %s301 = scalar_select %p298, %s299, %s300
      %p304 = pneg %p298
      %p305 = scmp.eq.s32.totalorder %s70, 1
      %p306 = por %p304, %p305
      %p307 = scmp.ne.s32.totalorder %s299, %s302
      %p308 = scmp.eq.s32.totalorder %s70, 0
      %p309 = por %p307, %p308
      %p310 = scmp.ne.s32.totalorder %s299, %s302
      %p311 = scmp.eq.s32.totalorder %s75, 1
      %p312 = por %p310, %p311
      %p313 = scmp.ne.s32.totalorder %s302, %s303
      %p314 = scmp.eq.s32.totalorder %s75, 0
      %p315 = por %p313, %p314
      %p316 = scmp.ne.s32.totalorder %s302, %s303
      %p317 = scmp.eq.s32.totalorder %s76, 1
      %p318 = por %p316, %p317
      %p320 = scmp.ne.s32.totalorder %s303, %s319
      %p321 = scmp.eq.s32.totalorder %s76, 0
      %p322 = por %p320, %p321
      %s323 = ssub.s32 %s70, %s77
      %p324 = scmp.eq.s32.totalorder %s323, 0
      %s326 = sadd.s32 %s325, 1
      %s327 = scalar_select %p324, %s325, %s326
      %p330 = pneg %p324
      %p331 = scmp.eq.s32.totalorder %s70, 1
      %p332 = por %p330, %p331
      %p333 = scmp.ne.s32.totalorder %s325, %s328
      %p334 = scmp.eq.s32.totalorder %s70, 0
      %p335 = por %p333, %p334
      %p336 = scmp.ne.s32.totalorder %s325, %s328
      %p337 = scmp.eq.s32.totalorder %s75, 1
      %p338 = por %p336, %p337
      %p339 = scmp.ne.s32.totalorder %s328, %s329
      %p340 = scmp.eq.s32.totalorder %s75, 0
      %p341 = por %p339, %p340
      %p342 = scmp.ne.s32.totalorder %s328, %s329
      %p343 = scmp.eq.s32.totalorder %s76, 1
      %p344 = por %p342, %p343
      %p346 = scmp.ne.s32.totalorder %s329, %s345
      %p347 = scmp.eq.s32.totalorder %s76, 0
      %p348 = por %p346, %p347
      %s349 = ssub.s32 %s70, %s77
      %p350 = scmp.eq.s32.totalorder %s349, 0
      %s352 = sadd.s32 %s351, 1
      %s353 = scalar_select %p350, %s351, %s352
      %p356 = pneg %p350
      %p357 = scmp.eq.s32.totalorder %s70, 1
      %p358 = por %p356, %p357
      %p359 = scmp.ne.s32.totalorder %s351, %s354
      %p360 = scmp.eq.s32.totalorder %s70, 0
      %p361 = por %p359, %p360
      %p362 = scmp.ne.s32.totalorder %s351, %s354
      %p363 = scmp.eq.s32.totalorder %s75, 1
      %p364 = por %p362, %p363
      %p365 = scmp.ne.s32.totalorder %s354, %s355
      %p366 = scmp.eq.s32.totalorder %s75, 0
      %p367 = por %p365, %p366
      %p368 = scmp.ne.s32.totalorder %s354, %s355
      %p369 = scmp.eq.s32.totalorder %s76, 1
      %p370 = por %p368, %p369
      %p372 = scmp.ne.s32.totalorder %s355, %s371
      %p373 = scmp.eq.s32.totalorder %s76, 0
      %p374 = por %p372, %p373
      %s375 = ssub.s32 %s70, %s77
      %p376 = scmp.eq.s32.totalorder %s375, 0
      %s378 = sadd.s32 %s377, 1
      %s379 = scalar_select %p376, %s377, %s378
      %p382 = pneg %p376
      %p383 = scmp.eq.s32.totalorder %s70, 1
      %p384 = por %p382, %p383
      %p385 = scmp.ne.s32.totalorder %s377, %s380
      %p386 = scmp.eq.s32.totalorder %s70, 0
      %p387 = por %p385, %p386
      %p388 = scmp.ne.s32.totalorder %s377, %s380
      %p389 = scmp.eq.s32.totalorder %s75, 1
      %p390 = por %p388, %p389
      %p391 = scmp.ne.s32.totalorder %s380, %s381
      %p392 = scmp.eq.s32.totalorder %s75, 0
      %p393 = por %p391, %p392
      %p394 = scmp.ne.s32.totalorder %s380, %s381
      %p395 = scmp.eq.s32.totalorder %s76, 1
      %p396 = por %p394, %p395
      %p398 = scmp.ne.s32.totalorder %s381, %s397
      %p399 = scmp.eq.s32.totalorder %s76, 0
      %p400 = por %p398, %p399
      %s401 = ssub.s32 %s70, %s77
      %p402 = scmp.eq.s32.totalorder %s401, 0
      %s404 = sadd.s32 %s403, 1
      %s405 = scalar_select %p402, %s403, %s404
      %p408 = pneg %p402
      %p409 = scmp.eq.s32.totalorder %s70, 1
      %p410 = por %p408, %p409
      %p411 = scmp.ne.s32.totalorder %s403, %s406
      %p412 = scmp.eq.s32.totalorder %s70, 0
      %p413 = por %p411, %p412
      %p414 = scmp.ne.s32.totalorder %s403, %s406
      %p415 = scmp.eq.s32.totalorder %s75, 1
      %p416 = por %p414, %p415
      %p417 = scmp.ne.s32.totalorder %s406, %s407
      %p418 = scmp.eq.s32.totalorder %s75, 0
      %p419 = por %p417, %p418
      %p420 = scmp.ne.s32.totalorder %s406, %s407
      %p421 = scmp.eq.s32.totalorder %s76, 1
      %p422 = por %p420, %p421
      %p424 = scmp.ne.s32.totalorder %s407, %s423
      %p425 = scmp.eq.s32.totalorder %s76, 0
      %p426 = por %p424, %p425
      %s427 = ssub.s32 %s70, %s77
      %p428 = scmp.eq.s32.totalorder %s427, 0
      %s430 = sadd.s32 %s429, 1
      %s431 = scalar_select %p428, %s429, %s430
      %p434 = pneg %p428
      %p435 = scmp.eq.s32.totalorder %s70, 1
      %p436 = por %p434, %p435
      %p437 = scmp.ne.s32.totalorder %s429, %s432
      %p438 = scmp.eq.s32.totalorder %s70, 0
      %p439 = por %p437, %p438
      %p440 = scmp.ne.s32.totalorder %s429, %s432
      %p441 = scmp.eq.s32.totalorder %s75, 1
      %p442 = por %p440, %p441
      %p443 = scmp.ne.s32.totalorder %s432, %s433
      %p444 = scmp.eq.s32.totalorder %s75, 0
      %p445 = por %p443, %p444
      %p446 = scmp.ne.s32.totalorder %s432, %s433
      %p447 = scmp.eq.s32.totalorder %s76, 1
      %p448 = por %p446, %p447
      %p450 = scmp.ne.s32.totalorder %s433, %s449
      %p451 = scmp.eq.s32.totalorder %s76, 0
      %p452 = por %p450, %p451
      %s453 = ssub.s32 %s70, %s77
      %p454 = scmp.eq.s32.totalorder %s453, 0
      %s456 = sadd.s32 %s455, 1
      %s457 = scalar_select %p454, %s455, %s456
      %p460 = pneg %p454
      %p461 = scmp.eq.s32.totalorder %s70, 1
      %p462 = por %p460, %p461
      %p463 = scmp.ne.s32.totalorder %s455, %s458
      %p464 = scmp.eq.s32.totalorder %s70, 0
      %p465 = por %p463, %p464
      %p466 = scmp.ne.s32.totalorder %s455, %s458
      %p467 = scmp.eq.s32.totalorder %s75, 1
      %p468 = por %p466, %p467
      %p469 = scmp.ne.s32.totalorder %s458, %s459
      %p470 = scmp.eq.s32.totalorder %s75, 0
      %p471 = por %p469, %p470
      %p472 = scmp.ne.s32.totalorder %s458, %s459
      %p473 = scmp.eq.s32.totalorder %s76, 1
      %p474 = por %p472, %p473
      %p476 = scmp.ne.s32.totalorder %s459, %s475
      %p477 = scmp.eq.s32.totalorder %s76, 0
      %p478 = por %p476, %p477
      %s479 = ssub.s32 %s70, %s77
      %p480 = scmp.eq.s32.totalorder %s479, 0
      %s482 = sadd.s32 %s481, 1
      %s483 = scalar_select %p480, %s481, %s482
      %p486 = pneg %p480
      %p487 = scmp.eq.s32.totalorder %s70, 1
      %p488 = por %p486, %p487
      %p489 = scmp.ne.s32.totalorder %s481, %s484
      %p490 = scmp.eq.s32.totalorder %s70, 0
      %p491 = por %p489, %p490
      %p492 = scmp.ne.s32.totalorder %s481, %s484
      %p493 = scmp.eq.s32.totalorder %s75, 1
      %p494 = por %p492, %p493
      %p495 = scmp.ne.s32.totalorder %s484, %s485
      %p496 = scmp.eq.s32.totalorder %s75, 0
      %p497 = por %p495, %p496
      %p498 = scmp.ne.s32.totalorder %s484, %s485
      %p499 = scmp.eq.s32.totalorder %s76, 1
      %p500 = por %p498, %p499
      %p502 = scmp.ne.s32.totalorder %s485, %s501
      %p503 = scmp.eq.s32.totalorder %s76, 0
      %p504 = por %p502, %p503
      %s505 = ssub.s32 %s70, %s77
      %p506 = scmp.eq.s32.totalorder %s505, 0
      %s508 = sadd.s32 %s507, 1
      %s509 = scalar_select %p506, %s507, %s508
      %p512 = pneg %p506
      %p513 = scmp.eq.s32.totalorder %s70, 1
      %p514 = por %p512, %p513
      %p515 = scmp.ne.s32.totalorder %s507, %s510
      %p516 = scmp.eq.s32.totalorder %s70, 0
      %p517 = por %p515, %p516
      %p518 = scmp.ne.s32.totalorder %s507, %s510
      %p519 = scmp.eq.s32.totalorder %s75, 1
      %p520 = por %p518, %p519
      %p521 = scmp.ne.s32.totalorder %s510, %s511
      %p522 = scmp.eq.s32.totalorder %s75, 0
      %p523 = por %p521, %p522
      %p524 = scmp.ne.s32.totalorder %s510, %s511
      %p525 = scmp.eq.s32.totalorder %s76, 1
      %p526 = por %p524, %p525
      %p528 = scmp.ne.s32.totalorder %s511, %s527
      %p529 = scmp.eq.s32.totalorder %s76, 0
      %p530 = por %p528, %p529
      %s531 = ssub.s32 %s70, %s77
      %p532 = scmp.eq.s32.totalorder %s531, 0
      %s534 = sadd.s32 %s533, 1
      %s535 = scalar_select %p532, %s533, %s534
      %p538 = pneg %p532
      %p539 = scmp.eq.s32.totalorder %s70, 1
      %p540 = por %p538, %p539
      %p541 = scmp.ne.s32.totalorder %s533, %s536
      %p542 = scmp.eq.s32.totalorder %s70, 0
      %p543 = por %p541, %p542
      %p544 = scmp.ne.s32.totalorder %s533, %s536
      %p545 = scmp.eq.s32.totalorder %s75, 1
      %p546 = por %p544, %p545
      %p547 = scmp.ne.s32.totalorder %s536, %s537
      %p548 = scmp.eq.s32.totalorder %s75, 0
      %p549 = por %p547, %p548
      %p550 = scmp.ne.s32.totalorder %s536, %s537
      %p551 = scmp.eq.s32.totalorder %s76, 1
      %p552 = por %p550, %p551
      %p554 = scmp.ne.s32.totalorder %s537, %s553
      %p555 = scmp.eq.s32.totalorder %s76, 0
      %p556 = por %p554, %p555
      %s557 = ssub.s32 %s70, %s77
      %p558 = scmp.eq.s32.totalorder %s557, 0
      %s560 = sadd.s32 %s559, 1
      %s561 = scalar_select %p558, %s559, %s560
      %p564 = pneg %p558
      %p565 = scmp.eq.s32.totalorder %s70, 1
      %p566 = por %p564, %p565
      %p567 = scmp.ne.s32.totalorder %s559, %s562
      %p568 = scmp.eq.s32.totalorder %s70, 0
      %p569 = por %p567, %p568
      %p570 = scmp.ne.s32.totalorder %s559, %s562
      %p571 = scmp.eq.s32.totalorder %s75, 1
      %p572 = por %p570, %p571
      %p573 = scmp.ne.s32.totalorder %s562, %s563
      %p574 = scmp.eq.s32.totalorder %s75, 0
      %p575 = por %p573, %p574
      %p576 = scmp.ne.s32.totalorder %s562, %s563
      %p577 = scmp.eq.s32.totalorder %s76, 1
      %p578 = por %p576, %p577
      %p580 = scmp.ne.s32.totalorder %s563, %s579
      %p581 = scmp.eq.s32.totalorder %s76, 0
      %p582 = por %p580, %p581
      %s583 = ssub.s32 %s70, %s77
      %p584 = scmp.eq.s32.totalorder %s583, 0
      %s586 = sadd.s32 %s585, 1
      %s587 = scalar_select %p584, %s585, %s586
      %p590 = pneg %p584
      %p591 = scmp.eq.s32.totalorder %s70, 1
      %p592 = por %p590, %p591
      %p593 = scmp.ne.s32.totalorder %s585, %s588
      %p594 = scmp.eq.s32.totalorder %s70, 0
      %p595 = por %p593, %p594
      %p596 = scmp.ne.s32.totalorder %s585, %s588
      %p597 = scmp.eq.s32.totalorder %s75, 1
      %p598 = por %p596, %p597
      %p599 = scmp.ne.s32.totalorder %s588, %s589
      %p600 = scmp.eq.s32.totalorder %s75, 0
      %p601 = por %p599, %p600
      %p602 = scmp.ne.s32.totalorder %s588, %s589
      %p603 = scmp.eq.s32.totalorder %s76, 1
      %p604 = por %p602, %p603
      %p606 = scmp.ne.s32.totalorder %s589, %s605
      %p607 = scmp.eq.s32.totalorder %s76, 0
      %p608 = por %p606, %p607
      %s609 = ssub.s32 %s70, %s77
      %p610 = scmp.eq.s32.totalorder %s609, 0
      %s612 = sadd.s32 %s611, 1
      %s613 = scalar_select %p610, %s611, %s612
      %p616 = pneg %p610
      %p617 = scmp.eq.s32.totalorder %s70, 1
      %p618 = por %p616, %p617
      %p619 = scmp.ne.s32.totalorder %s611, %s614
      %p620 = scmp.eq.s32.totalorder %s70, 0
      %p621 = por %p619, %p620
      %p622 = scmp.ne.s32.totalorder %s611, %s614
      %p623 = scmp.eq.s32.totalorder %s75, 1
      %p624 = por %p622, %p623
      %p625 = scmp.ne.s32.totalorder %s614, %s615
      %p626 = scmp.eq.s32.totalorder %s75, 0
      %p627 = por %p625, %p626
      %p628 = scmp.ne.s32.totalorder %s614, %s615
      %p629 = scmp.eq.s32.totalorder %s76, 1
      %p630 = por %p628, %p629
      %p632 = scmp.ne.s32.totalorder %s615, %s631
      %p633 = scmp.eq.s32.totalorder %s76, 0
      %p634 = por %p632, %p633
      %s635 = ssub.s32 %s70, %s77
      %p636 = scmp.eq.s32.totalorder %s635, 0
      %s638 = sadd.s32 %s637, 1
      %s639 = scalar_select %p636, %s637, %s638
      %p642 = pneg %p636
      %p643 = scmp.eq.s32.totalorder %s70, 1
      %p644 = por %p642, %p643
      %p645 = scmp.ne.s32.totalorder %s637, %s640
      %p646 = scmp.eq.s32.totalorder %s70, 0
      %p647 = por %p645, %p646
      %p648 = scmp.ne.s32.totalorder %s637, %s640
      %p649 = scmp.eq.s32.totalorder %s75, 1
      %p650 = por %p648, %p649
      %p651 = scmp.ne.s32.totalorder %s640, %s641
      %p652 = scmp.eq.s32.totalorder %s75, 0
      %p653 = por %p651, %p652
      %p654 = scmp.ne.s32.totalorder %s640, %s641
      %p655 = scmp.eq.s32.totalorder %s76, 1
      %p656 = por %p654, %p655
      %p658 = scmp.ne.s32.totalorder %s641, %s657
      %p659 = scmp.eq.s32.totalorder %s76, 0
      %p660 = por %p658, %p659
      %s661 = ssub.s32 %s70, %s77
      %p662 = scmp.eq.s32.totalorder %s661, 0
      %s664 = sadd.s32 %s663, 1
      %s665 = scalar_select %p662, %s663, %s664
      %p668 = pneg %p662
      %p669 = scmp.eq.s32.totalorder %s70, 1
      %p670 = por %p668, %p669
      %p671 = scmp.ne.s32.totalorder %s663, %s666
      %p672 = scmp.eq.s32.totalorder %s70, 0
      %p673 = por %p671, %p672
      %p674 = scmp.ne.s32.totalorder %s663, %s666
      %p675 = scmp.eq.s32.totalorder %s75, 1
      %p676 = por %p674, %p675
      %p677 = scmp.ne.s32.totalorder %s666, %s667
      %p678 = scmp.eq.s32.totalorder %s75, 0
      %p679 = por %p677, %p678
      %p680 = scmp.ne.s32.totalorder %s666, %s667
      %p681 = scmp.eq.s32.totalorder %s76, 1
      %p682 = por %p680, %p681
      %p684 = scmp.ne.s32.totalorder %s667, %s683
      %p685 = scmp.eq.s32.totalorder %s76, 0
      %p686 = por %p684, %p685
      %s687 = ssub.s32 %s70, %s77
      %p688 = scmp.eq.s32.totalorder %s687, 0
      %s690 = sadd.s32 %s689, 1
      %s691 = scalar_select %p688, %s689, %s690
      %p694 = pneg %p688
      %p695 = scmp.eq.s32.totalorder %s70, 1
      %p696 = por %p694, %p695
      %p697 = scmp.ne.s32.totalorder %s689, %s692
      %p698 = scmp.eq.s32.totalorder %s70, 0
      %p699 = por %p697, %p698
      %p700 = scmp.ne.s32.totalorder %s689, %s692
      %p701 = scmp.eq.s32.totalorder %s75, 1
      %p702 = por %p700, %p701
      %p703 = scmp.ne.s32.totalorder %s692, %s693
      %p704 = scmp.eq.s32.totalorder %s75, 0
      %p705 = por %p703, %p704
      %p706 = scmp.ne.s32.totalorder %s692, %s693
      %p707 = scmp.eq.s32.totalorder %s76, 1
      %p708 = por %p706, %p707
      %p710 = scmp.ne.s32.totalorder %s693, %s709
      %p711 = scmp.eq.s32.totalorder %s76, 0
      %p712 = por %p710, %p711
      %s713 = ssub.s32 %s70, %s77
      %p714 = scmp.eq.s32.totalorder %s713, 0
      %s716 = sadd.s32 %s715, 1
      %s717 = scalar_select %p714, %s715, %s716
      %p720 = pneg %p714
      %p721 = scmp.eq.s32.totalorder %s70, 1
      %p722 = por %p720, %p721
      %p723 = scmp.ne.s32.totalorder %s715, %s718
      %p724 = scmp.eq.s32.totalorder %s70, 0
      %p725 = por %p723, %p724
      %p726 = scmp.ne.s32.totalorder %s715, %s718
      %p727 = scmp.eq.s32.totalorder %s75, 1
      %p728 = por %p726, %p727
      %p729 = scmp.ne.s32.totalorder %s718, %s719
      %p730 = scmp.eq.s32.totalorder %s75, 0
      %p731 = por %p729, %p730
      %p732 = scmp.ne.s32.totalorder %s718, %s719
      %p733 = scmp.eq.s32.totalorder %s76, 1
      %p734 = por %p732, %p733
      %p736 = scmp.ne.s32.totalorder %s719, %s735
      %p737 = scmp.eq.s32.totalorder %s76, 0
      %p738 = por %p736, %p737
      %s739 = ssub.s32 %s70, %s77
      %p740 = scmp.eq.s32.totalorder %s739, 0
      %s742 = sadd.s32 %s741, 1
      %s743 = scalar_select %p740, %s741, %s742
      %p746 = pneg %p740
      %p747 = scmp.eq.s32.totalorder %s70, 1
      %p748 = por %p746, %p747
      %p749 = scmp.ne.s32.totalorder %s741, %s744
      %p750 = scmp.eq.s32.totalorder %s70, 0
      %p751 = por %p749, %p750
      %p752 = scmp.ne.s32.totalorder %s741, %s744
      %p753 = scmp.eq.s32.totalorder %s75, 1
      %p754 = por %p752, %p753
      %p755 = scmp.ne.s32.totalorder %s744, %s745
      %p756 = scmp.eq.s32.totalorder %s75, 0
      %p757 = por %p755, %p756
      %p758 = scmp.ne.s32.totalorder %s744, %s745
      %p759 = scmp.eq.s32.totalorder %s76, 1
      %p760 = por %p758, %p759
      %p762 = scmp.ne.s32.totalorder %s745, %s761
      %p763 = scmp.eq.s32.totalorder %s76, 0
      %p764 = por %p762, %p763
      %s765 = ssub.s32 %s70, %s77
      %p766 = scmp.eq.s32.totalorder %s765, 0
      %s768 = sadd.s32 %s767, 1
      %s769 = scalar_select %p766, %s767, %s768
      %p772 = pneg %p766
      %p773 = scmp.eq.s32.totalorder %s70, 1
      %p774 = por %p772, %p773
      %p775 = scmp.ne.s32.totalorder %s767, %s770
      %p776 = scmp.eq.s32.totalorder %s70, 0
      %p777 = por %p775, %p776
      %p778 = scmp.ne.s32.totalorder %s767, %s770
      %p779 = scmp.eq.s32.totalorder %s75, 1
      %p780 = por %p778, %p779
      %p781 = scmp.ne.s32.totalorder %s770, %s771
      %p782 = scmp.eq.s32.totalorder %s75, 0
      %p783 = por %p781, %p782
      %p784 = scmp.ne.s32.totalorder %s770, %s771
      %p785 = scmp.eq.s32.totalorder %s76, 1
      %p786 = por %p784, %p785
      %p788 = scmp.ne.s32.totalorder %s771, %s787
      %p789 = scmp.eq.s32.totalorder %s76, 0
      %p790 = por %p788, %p789
      %s791 = ssub.s32 %s70, %s77
      %p792 = scmp.eq.s32.totalorder %s791, 0
      %s794 = sadd.s32 %s793, 1
      %s795 = scalar_select %p792, %s793, %s794
      %p798 = pneg %p792
      %p799 = scmp.eq.s32.totalorder %s70, 1
      %p800 = por %p798, %p799
      %p801 = scmp.ne.s32.totalorder %s793, %s796
      %p802 = scmp.eq.s32.totalorder %s70, 0
      %p803 = por %p801, %p802
      %p804 = scmp.ne.s32.totalorder %s793, %s796
      %p805 = scmp.eq.s32.totalorder %s75, 1
      %p806 = por %p804, %p805
      %p807 = scmp.ne.s32.totalorder %s796, %s797
      %p808 = scmp.eq.s32.totalorder %s75, 0
      %p809 = por %p807, %p808
      %p810 = scmp.ne.s32.totalorder %s796, %s797
      %p811 = scmp.eq.s32.totalorder %s76, 1
      %p812 = por %p810, %p811
      %p814 = scmp.ne.s32.totalorder %s797, %s813
      %p815 = scmp.eq.s32.totalorder %s76, 0
      %p816 = por %p814, %p815
      %s818 = sadd.s32 %s817, 1
      %p821 = scmp.eq.s32.totalorder %s70, 1
      %p822 = scmp.ne.s32.totalorder %s817, %s819
      %p823 = scmp.eq.s32.totalorder %s70, 0
      %p824 = por %p822, %p823
      %p825 = scmp.ne.s32.totalorder %s817, %s819
      %p826 = scmp.eq.s32.totalorder %s75, 1
      %p827 = por %p825, %p826
      %p828 = scmp.ne.s32.totalorder %s819, %s820
      %p829 = scmp.eq.s32.totalorder %s75, 0
      %p830 = por %p828, %p829
      %p831 = scmp.ne.s32.totalorder %s819, %s820
      %p832 = scmp.eq.s32.totalorder %s76, 1
      %p833 = por %p831, %p832
      %p835 = scmp.ne.s32.totalorder %s820, %s834
      %p836 = scmp.eq.s32.totalorder %s76, 0
      %p837 = por %p835, %p836
      %s839 = sadd.s32 %s838, 1
      %p842 = scmp.eq.s32.totalorder %s70, 1
      %p843 = scmp.ne.s32.totalorder %s838, %s840
      %p844 = scmp.eq.s32.totalorder %s70, 0
      %p845 = por %p843, %p844
      %p846 = scmp.ne.s32.totalorder %s838, %s840
      %p847 = scmp.eq.s32.totalorder %s75, 1
      %p848 = por %p846, %p847
      %p849 = scmp.ne.s32.totalorder %s840, %s841
      %p850 = scmp.eq.s32.totalorder %s75, 0
      %p851 = por %p849, %p850
      %p852 = scmp.ne.s32.totalorder %s840, %s841
      %p853 = scmp.eq.s32.totalorder %s76, 1
      %p854 = por %p852, %p853
      %p856 = scmp.ne.s32.totalorder %s841, %s855
      %p857 = scmp.eq.s32.totalorder %s76, 0
      %p858 = por %p856, %p857
      %s860 = sadd.s32 %s859, 1
      %p863 = scmp.eq.s32.totalorder %s70, 1
      %p864 = scmp.ne.s32.totalorder %s859, %s861
      %p865 = scmp.eq.s32.totalorder %s70, 0
      %p866 = por %p864, %p865
      %p867 = scmp.ne.s32.totalorder %s859, %s861
      %p868 = scmp.eq.s32.totalorder %s75, 1
      %p869 = por %p867, %p868
      %p870 = scmp.ne.s32.totalorder %s861, %s862
      %p871 = scmp.eq.s32.totalorder %s75, 0
      %p872 = por %p870, %p871
      %p873 = scmp.ne.s32.totalorder %s861, %s862
      %p874 = scmp.eq.s32.totalorder %s76, 1
      %p875 = por %p873, %p874
      %p877 = scmp.ne.s32.totalorder %s862, %s876
      %p878 = scmp.eq.s32.totalorder %s76, 0
      %p879 = por %p877, %p878
      %p880 = scmp.le.s32.totalorder 1, %s70
      %p881 = scmp.lt.s32.totalorder %s70, 3
      %p882 = pnand %p880, %p881
      %p883 = pneg %p882
      // Predicated region
      $region9: #{tpu_custom_call.1} parent=5 // pred_check
        _
      $region10: #{tpu_custom_call.1} parent=5 // pred_check_branch
        %885 = sbr.rel (%p882) target = $region12
      $region11: #{tpu_custom_call.1} parent=5 // pred_region
        %s886 = ssub.s32 %s70, 1
        // Predicated region
        $region13: #{tpu_custom_call.1} parent=11 // pred_check
          %p887 = pneg %p91
        $region14: #{tpu_custom_call.1} parent=11 // pred_check_branch
          %889 = sbr.rel (%p887) target = $region16
        $region15: #{tpu_custom_call.1} parent=11 // pred_region
          _
        $region16: #{tpu_custom_call.1} parent=11 // pred_fallthru
          _
        // Predicated region
        $region17: #{tpu_custom_call.1} parent=11 // pred_check
          %p890 = pneg %p112
        $region18: #{tpu_custom_call.1} parent=11 // pred_check_branch
          %892 = sbr.rel (%p890) target = $region20
        $region19: #{tpu_custom_call.1} parent=11 // pred_region
          _
        $region20: #{tpu_custom_call.1} parent=11 // pred_fallthru
          _
        // Predicated region
        $region21: #{tpu_custom_call.1} parent=11 // pred_check
          %p893 = pneg %p133
        $region22: #{tpu_custom_call.1} parent=11 // pred_check_branch
          %895 = sbr.rel (%p893) target = $region24
        $region23: #{tpu_custom_call.1} parent=11 // pred_region
          _
        $region24: #{tpu_custom_call.1} parent=11 // pred_fallthru
          _
        // Predicated region
        $region25: #{tpu_custom_call.1} parent=11 // pred_check
          %p896 = pneg %p830
        $region26: #{tpu_custom_call.1} parent=11 // pred_check_branch
          %898 = sbr.rel (%p896) target = $region28
        $region27: #{tpu_custom_call.1} parent=11 // pred_region
          _
        $region28: #{tpu_custom_call.1} parent=11 // pred_fallthru
          _
        // Predicated region
        $region29: #{tpu_custom_call.1} parent=11 // pred_check
          %p899 = pneg %p851
        $region30: #{tpu_custom_call.1} parent=11 // pred_check_branch
          %901 = sbr.rel (%p899) target = $region32
        $region31: #{tpu_custom_call.1} parent=11 // pred_region
          _
        $region32: #{tpu_custom_call.1} parent=11 // pred_fallthru
          _
      $region12: #{tpu_custom_call.1} parent=5 // pred_fallthru
        _
      %p902 = scmp.lt.s32.totalorder %s70, 2
      // Predicated region
      $region33: #{tpu_custom_call.1} parent=5 // pred_check
        %p903 = pneg %p902
      $region34: #{tpu_custom_call.1} parent=5 // pred_check_branch
        %905 = sbr.rel (%p903) target = $region36
      $region35: #{tpu_custom_call.1} parent=5 // pred_region
        // Predicated region
        $region37: #{tpu_custom_call.1} parent=35 // pred_check
          %p906 = pneg %p153
        $region38: #{tpu_custom_call.1} parent=35 // pred_check_branch
          %908 = sbr.rel (%p906) target = $region40
        $region39: #{tpu_custom_call.1} parent=35 // pred_region
          %p909 = scmp.lt.s32.totalorder %s70, 1
          %s910 = scalar_select %p909, %s70, 1
          %s911 = scalar_lea.vmem %s7, %s910
        $region40: #{tpu_custom_call.1} parent=35 // pred_fallthru
          _
        // Predicated region
        $region41: #{tpu_custom_call.1} parent=35 // pred_check
          %p912 = pneg %p179
        $region42: #{tpu_custom_call.1} parent=35 // pred_check_branch
          %914 = sbr.rel (%p912) target = $region44
        $region43: #{tpu_custom_call.1} parent=35 // pred_region
          %p915 = scmp.lt.s32.totalorder %s70, 1
          %s916 = scalar_select %p915, %s70, 1
          %s917 = scalar_lea.vmem %s9, %s916
        $region44: #{tpu_custom_call.1} parent=35 // pred_fallthru
          _
        // Predicated region
        $region45: #{tpu_custom_call.1} parent=35 // pred_check
          %p918 = pneg %p205
        $region46: #{tpu_custom_call.1} parent=35 // pred_check_branch
          %920 = sbr.rel (%p918) target = $region48
        $region47: #{tpu_custom_call.1} parent=35 // pred_region
          %p921 = scmp.lt.s32.totalorder %s70, 1
          %s922 = scalar_select %p921, %s70, 1
          %s923 = smul.addr %s922, 16
          %s924 = smul.addr %s923, 4
          %s925 = scalar_lea.vmem %s11, %s924
        $region48: #{tpu_custom_call.1} parent=35 // pred_fallthru
          _
        // Predicated region
        $region49: #{tpu_custom_call.1} parent=35 // pred_check
          %p926 = pneg %p231
        $region50: #{tpu_custom_call.1} parent=35 // pred_check_branch
          %928 = sbr.rel (%p926) target = $region52
        $region51: #{tpu_custom_call.1} parent=35 // pred_region
          %p929 = scmp.lt.s32.totalorder %s70, 1
          %s930 = scalar_select %p929, %s70, 1
          %s931 = smul.addr %s930, 4
          %s932 = scalar_lea.vmem %s13, %s931
        $region52: #{tpu_custom_call.1} parent=35 // pred_fallthru
          _
        // Predicated region
        $region53: #{tpu_custom_call.1} parent=35 // pred_check
          %p933 = pneg %p257
        $region54: #{tpu_custom_call.1} parent=35 // pred_check_branch
          %935 = sbr.rel (%p933) target = $region56
        $region55: #{tpu_custom_call.1} parent=35 // pred_region
          %p936 = scmp.lt.s32.totalorder %s70, 1
          %s937 = scalar_select %p936, %s70, 1
          %s938 = smul.addr %s937, 16
          %s939 = smul.addr %s938, 4
          %s940 = scalar_lea.vmem %s15, %s939
        $region56: #{tpu_custom_call.1} parent=35 // pred_fallthru
          _
        // Predicated region
        $region57: #{tpu_custom_call.1} parent=35 // pred_check
          %p941 = pneg %p283
        $region58: #{tpu_custom_call.1} parent=35 // pred_check_branch
          %943 = sbr.rel (%p941) target = $region60
        $region59: #{tpu_custom_call.1} parent=35 // pred_region
          %p944 = scmp.lt.s32.totalorder %s70, 1
          %s945 = scalar_select %p944, %s70, 1
          %s946 = smul.addr %s945, 4
          %s947 = scalar_lea.vmem %s17, %s946
        $region60: #{tpu_custom_call.1} parent=35 // pred_fallthru
          _
        // Predicated region
        $region61: #{tpu_custom_call.1} parent=35 // pred_check
          %p948 = pneg %p309
        $region62: #{tpu_custom_call.1} parent=35 // pred_check_branch
          %950 = sbr.rel (%p948) target = $region64
        $region63: #{tpu_custom_call.1} parent=35 // pred_region
          %p951 = scmp.lt.s32.totalorder %s70, 1
          %s952 = scalar_select %p951, %s70, 1
          %s953 = smul.addr %s952, 16
          %s954 = smul.addr %s953, 4
          %s955 = scalar_lea.vmem %s19, %s954
        $region64: #{tpu_custom_call.1} parent=35 // pred_fallthru
          _
        // Predicated region
        $region65: #{tpu_custom_call.1} parent=35 // pred_check
          %p956 = pneg %p335
        $region66: #{tpu_custom_call.1} parent=35 // pred_check_branch
          %958 = sbr.rel (%p956) target = $region68
        $region67: #{tpu_custom_call.1} parent=35 // pred_region
          %p959 = scmp.lt.s32.totalorder %s70, 1
          %s960 = scalar_select %p959, %s70, 1
          %s961 = smul.addr %s960, 4
          %s962 = scalar_lea.vmem %s21, %s961
        $region68: #{tpu_custom_call.1} parent=35 // pred_fallthru
          _
        // Predicated region
        $region69: #{tpu_custom_call.1} parent=35 // pred_check
          %p963 = pneg %p361
        $region70: #{tpu_custom_call.1} parent=35 // pred_check_branch
          %965 = sbr.rel (%p963) target = $region72
        $region71: #{tpu_custom_call.1} parent=35 // pred_region
          %p966 = scmp.lt.s32.totalorder %s70, 1
          %s967 = scalar_select %p966, %s70, 1
          %s968 = smul.addr %s967, 4
          %s969 = smul.addr %s968, 4
          %s970 = scalar_lea.vmem %s23, %s969
        $region72: #{tpu_custom_call.1} parent=35 // pred_fallthru
          _
        // Predicated region
        $region73: #{tpu_custom_call.1} parent=35 // pred_check
          %p971 = pneg %p387
        $region74: #{tpu_custom_call.1} parent=35 // pred_check_branch
          %973 = sbr.rel (%p971) target = $region76
        $region75: #{tpu_custom_call.1} parent=35 // pred_region
          %p974 = scmp.lt.s32.totalorder %s70, 1
          %s975 = scalar_select %p974, %s70, 1
          %s976 = scalar_lea.vmem %s25, %s975
        $region76: #{tpu_custom_call.1} parent=35 // pred_fallthru
          _
        // Predicated region
        $region77: #{tpu_custom_call.1} parent=35 // pred_check
          %p977 = pneg %p413
        $region78: #{tpu_custom_call.1} parent=35 // pred_check_branch
          %979 = sbr.rel (%p977) target = $region80
        $region79: #{tpu_custom_call.1} parent=35 // pred_region
          %p980 = scmp.lt.s32.totalorder %s70, 1
          %s981 = scalar_select %p980, %s70, 1
          %s982 = scalar_lea.vmem %s27, %s981
        $region80: #{tpu_custom_call.1} parent=35 // pred_fallthru
          _
        // Predicated region
        $region81: #{tpu_custom_call.1} parent=35 // pred_check
          %p983 = pneg %p439
        $region82: #{tpu_custom_call.1} parent=35 // pred_check_branch
          %985 = sbr.rel (%p983) target = $region84
        $region83: #{tpu_custom_call.1} parent=35 // pred_region
          %p986 = scmp.lt.s32.totalorder %s70, 1
          %s987 = scalar_select %p986, %s70, 1
          %s988 = scalar_lea.vmem %s29, %s987
        $region84: #{tpu_custom_call.1} parent=35 // pred_fallthru
          _
        // Predicated region
        $region85: #{tpu_custom_call.1} parent=35 // pred_check
          %p989 = pneg %p465
        $region86: #{tpu_custom_call.1} parent=35 // pred_check_branch
          %991 = sbr.rel (%p989) target = $region88
        $region87: #{tpu_custom_call.1} parent=35 // pred_region
          %p992 = scmp.lt.s32.totalorder %s70, 1
          %s993 = scalar_select %p992, %s70, 1
          %s994 = smul.addr %s993, 16
          %s995 = smul.addr %s994, 4
          %s996 = scalar_lea.vmem %s31, %s995
        $region88: #{tpu_custom_call.1} parent=35 // pred_fallthru
          _
        // Predicated region
        $region89: #{tpu_custom_call.1} parent=35 // pred_check
          %p997 = pneg %p491
        $region90: #{tpu_custom_call.1} parent=35 // pred_check_branch
          %999 = sbr.rel (%p997) target = $region92
        $region91: #{tpu_custom_call.1} parent=35 // pred_region
          %p1000 = scmp.lt.s32.totalorder %s70, 1
          %s1001 = scalar_select %p1000, %s70, 1
          %s1002 = smul.addr %s1001, 4
          %s1003 = scalar_lea.vmem %s33, %s1002
        $region92: #{tpu_custom_call.1} parent=35 // pred_fallthru
          _
        // Predicated region
        $region93: #{tpu_custom_call.1} parent=35 // pred_check
          %p1004 = pneg %p517
        $region94: #{tpu_custom_call.1} parent=35 // pred_check_branch
          %1006 = sbr.rel (%p1004) target = $region96
        $region95: #{tpu_custom_call.1} parent=35 // pred_region
          %p1007 = scmp.lt.s32.totalorder %s70, 1
          %s1008 = scalar_select %p1007, %s70, 1
          %s1009 = smul.addr %s1008, 16
          %s1010 = smul.addr %s1009, 4
          %s1011 = scalar_lea.vmem %s35, %s1010
        $region96: #{tpu_custom_call.1} parent=35 // pred_fallthru
          _
        // Predicated region
        $region97: #{tpu_custom_call.1} parent=35 // pred_check
          %p1012 = pneg %p543
        $region98: #{tpu_custom_call.1} parent=35 // pred_check_branch
          %1014 = sbr.rel (%p1012) target = $region100
        $region99: #{tpu_custom_call.1} parent=35 // pred_region
          %p1015 = scmp.lt.s32.totalorder %s70, 1
          %s1016 = scalar_select %p1015, %s70, 1
          %s1017 = smul.addr %s1016, 4
          %s1018 = scalar_lea.vmem %s37, %s1017
        $region100: #{tpu_custom_call.1} parent=35 // pred_fallthru
          _
        // Predicated region
        $region101: #{tpu_custom_call.1} parent=35 // pred_check
          %p1019 = pneg %p569
        $region102: #{tpu_custom_call.1} parent=35 // pred_check_branch
          %1021 = sbr.rel (%p1019) target = $region104
        $region103: #{tpu_custom_call.1} parent=35 // pred_region
          %p1022 = scmp.lt.s32.totalorder %s70, 1
          %s1023 = scalar_select %p1022, %s70, 1
          %s1024 = smul.addr %s1023, 16
          %s1025 = smul.addr %s1024, 4
          %s1026 = scalar_lea.vmem %s39, %s1025
        $region104: #{tpu_custom_call.1} parent=35 // pred_fallthru
          _
        // Predicated region
        $region105: #{tpu_custom_call.1} parent=35 // pred_check
          %p1027 = pneg %p595
        $region106: #{tpu_custom_call.1} parent=35 // pred_check_branch
          %1029 = sbr.rel (%p1027) target = $region108
        $region107: #{tpu_custom_call.1} parent=35 // pred_region
          %p1030 = scmp.lt.s32.totalorder %s70, 1
          %s1031 = scalar_select %p1030, %s70, 1
          %s1032 = smul.addr %s1031, 4
          %s1033 = scalar_lea.vmem %s41, %s1032
        $region108: #{tpu_custom_call.1} parent=35 // pred_fallthru
          _
        // Predicated region
        $region109: #{tpu_custom_call.1} parent=35 // pred_check
          %p1034 = pneg %p621
        $region110: #{tpu_custom_call.1} parent=35 // pred_check_branch
          %1036 = sbr.rel (%p1034) target = $region112
        $region111: #{tpu_custom_call.1} parent=35 // pred_region
          %p1037 = scmp.lt.s32.totalorder %s70, 1
          %s1038 = scalar_select %p1037, %s70, 1
          %s1039 = smul.addr %s1038, 4
          %s1040 = smul.addr %s1039, 4
          %s1041 = scalar_lea.vmem %s43, %s1040
        $region112: #{tpu_custom_call.1} parent=35 // pred_fallthru
          _
        // Predicated region
        $region113: #{tpu_custom_call.1} parent=35 // pred_check
          %p1042 = pneg %p647
        $region114: #{tpu_custom_call.1} parent=35 // pred_check_branch
          %1044 = sbr.rel (%p1042) target = $region116
        $region115: #{tpu_custom_call.1} parent=35 // pred_region
          %p1045 = scmp.lt.s32.totalorder %s70, 1
          %s1046 = scalar_select %p1045, %s70, 1
          %s1047 = scalar_lea.vmem %s45, %s1046
        $region116: #{tpu_custom_call.1} parent=35 // pred_fallthru
          _
        // Predicated region
        $region117: #{tpu_custom_call.1} parent=35 // pred_check
          %p1048 = pneg %p673
        $region118: #{tpu_custom_call.1} parent=35 // pred_check_branch
          %1050 = sbr.rel (%p1048) target = $region120
        $region119: #{tpu_custom_call.1} parent=35 // pred_region
          %p1051 = scmp.lt.s32.totalorder %s70, 1
          %s1052 = scalar_select %p1051, %s70, 1
          %s1053 = scalar_lea.vmem %s47, %s1052
        $region120: #{tpu_custom_call.1} parent=35 // pred_fallthru
          _
        // Predicated region
        $region121: #{tpu_custom_call.1} parent=35 // pred_check
          %p1054 = pneg %p699
        $region122: #{tpu_custom_call.1} parent=35 // pred_check_branch
          %1056 = sbr.rel (%p1054) target = $region124
        $region123: #{tpu_custom_call.1} parent=35 // pred_region
          %p1057 = scmp.lt.s32.totalorder %s70, 1
          %s1058 = scalar_select %p1057, %s70, 1
          %s1059 = scalar_lea.vmem %s49, %s1058
        $region124: #{tpu_custom_call.1} parent=35 // pred_fallthru
          _
        // Predicated region
        $region125: #{tpu_custom_call.1} parent=35 // pred_check
          %p1060 = pneg %p725
        $region126: #{tpu_custom_call.1} parent=35 // pred_check_branch
          %1062 = sbr.rel (%p1060) target = $region128
        $region127: #{tpu_custom_call.1} parent=35 // pred_region
          %p1063 = scmp.lt.s32.totalorder %s70, 1
          %s1064 = scalar_select %p1063, %s70, 1
          %s1065 = smul.addr %s1064, 4
          %s1066 = smul.addr %s1065, 4
          %s1067 = scalar_lea.vmem %s51, %s1066
        $region128: #{tpu_custom_call.1} parent=35 // pred_fallthru
          _
        // Predicated region
        $region129: #{tpu_custom_call.1} parent=35 // pred_check
          %p1068 = pneg %p751
        $region130: #{tpu_custom_call.1} parent=35 // pred_check_branch
          %1070 = sbr.rel (%p1068) target = $region132
        $region131: #{tpu_custom_call.1} parent=35 // pred_region
          %p1071 = scmp.lt.s32.totalorder %s70, 1
          %s1072 = scalar_select %p1071, %s70, 1
          %s1073 = scalar_lea.vmem %s53, %s1072
        $region132: #{tpu_custom_call.1} parent=35 // pred_fallthru
          _
        // Predicated region
        $region133: #{tpu_custom_call.1} parent=35 // pred_check
          %p1074 = pneg %p777
        $region134: #{tpu_custom_call.1} parent=35 // pred_check_branch
          %1076 = sbr.rel (%p1074) target = $region136
        $region135: #{tpu_custom_call.1} parent=35 // pred_region
          %p1077 = scmp.lt.s32.totalorder %s70, 1
          %s1078 = scalar_select %p1077, %s70, 1
          %s1079 = smul.addr %s1078, 16
          %s1080 = smul.addr %s1079, 4
          %s1081 = scalar_lea.vmem %s55, %s1080
        $region136: #{tpu_custom_call.1} parent=35 // pred_fallthru
          _
        // Predicated region
        $region137: #{tpu_custom_call.1} parent=35 // pred_check
          %p1082 = pneg %p803
        $region138: #{tpu_custom_call.1} parent=35 // pred_check_branch
          %1084 = sbr.rel (%p1082) target = $region140
        $region139: #{tpu_custom_call.1} parent=35 // pred_region
          %p1085 = scmp.lt.s32.totalorder %s70, 1
          %s1086 = scalar_select %p1085, %s70, 1
          %s1087 = scalar_lea.vmem %s57, %s1086
        $region140: #{tpu_custom_call.1} parent=35 // pred_fallthru
          _
      $region36: #{tpu_custom_call.1} parent=5 // pred_fallthru
        _
      %p1088 = scmp.le.s32.totalorder 1, %s70
      %p1089 = scmp.lt.s32.totalorder %s70, 3
      %p1090 = pnand %p1088, %p1089
      %p1091 = pneg %p1090
      // Predicated region
      $region141: #{tpu_custom_call.1} parent=5 // pred_check
        _
      $region142: #{tpu_custom_call.1} parent=5 // pred_check_branch
        %1093 = sbr.rel (%p1090) target = $region144
      $region143: #{tpu_custom_call.1} parent=5 // pred_region
        %s1094 = ssub.s32 %s70, 1
        %p1095 = pneg %p91
        %p1096 = pneg %p88
        %p1097 = pneg %p112
        %p1098 = pneg %p109
        %p1099 = pneg %p133
        %p1100 = pneg %p130
        %p1101 = scmp.lt.s32.totalorder %s75, 1
        %s1102 = scalar_select %p1101, %s75, 1
        %s1103 = scalar_lea.vmem %s7, %s1102
        %p1104 = pneg %p159
        %p1105 = pneg %p156
        %p1106 = scmp.lt.s32.totalorder %s75, 1
        %s1107 = scalar_select %p1106, %s75, 1
        %s1108 = scalar_lea.vmem %s9, %s1107
        %p1109 = pneg %p185
        %p1110 = pneg %p182
        %p1111 = scmp.lt.s32.totalorder %s75, 1
        %s1112 = scalar_select %p1111, %s75, 1
        %s1113 = smul.addr %s1112, 16
        %s1114 = smul.addr %s1113, 4
        %s1115 = scalar_lea.vmem %s11, %s1114
        %p1116 = pneg %p211
        %p1117 = pneg %p208
        %p1118 = scmp.lt.s32.totalorder %s75, 1
        %s1119 = scalar_select %p1118, %s75, 1
        %s1120 = smul.addr %s1119, 4
        %s1121 = scalar_lea.vmem %s13, %s1120
        %p1122 = pneg %p237
        %p1123 = pneg %p234
        %p1124 = scmp.lt.s32.totalorder %s75, 1
        %s1125 = scalar_select %p1124, %s75, 1
        %s1126 = smul.addr %s1125, 16
        %s1127 = smul.addr %s1126, 4
        %s1128 = scalar_lea.vmem %s15, %s1127
        %p1129 = pneg %p263
        %p1130 = pneg %p260
        %p1131 = scmp.lt.s32.totalorder %s75, 1
        %s1132 = scalar_select %p1131, %s75, 1
        %s1133 = smul.addr %s1132, 4
        %s1134 = scalar_lea.vmem %s17, %s1133
        %p1135 = pneg %p289
        %p1136 = pneg %p286
        %p1137 = scmp.lt.s32.totalorder %s75, 1
        %s1138 = scalar_select %p1137, %s75, 1
        %s1139 = smul.addr %s1138, 16
        %s1140 = smul.addr %s1139, 4
        %s1141 = scalar_lea.vmem %s19, %s1140
        %p1142 = pneg %p315
        %p1143 = pneg %p312
        %p1144 = scmp.lt.s32.totalorder %s75, 1
        %s1145 = scalar_select %p1144, %s75, 1
        %s1146 = smul.addr %s1145, 4
        %s1147 = scalar_lea.vmem %s21, %s1146
        %p1148 = pneg %p341
        %p1149 = pneg %p338
        %p1150 = scmp.lt.s32.totalorder %s75, 1
        %s1151 = scalar_select %p1150, %s75, 1
        %s1152 = smul.addr %s1151, 4
        %s1153 = smul.addr %s1152, 4
        %s1154 = scalar_lea.vmem %s23, %s1153
        %p1155 = pneg %p367
        %p1156 = pneg %p364
        %p1157 = scmp.lt.s32.totalorder %s75, 1
        %s1158 = scalar_select %p1157, %s75, 1
        %s1159 = scalar_lea.vmem %s25, %s1158
        %p1160 = pneg %p393
        %p1161 = pneg %p390
        %p1162 = scmp.lt.s32.totalorder %s75, 1
        %s1163 = scalar_select %p1162, %s75, 1
        %s1164 = scalar_lea.vmem %s27, %s1163
        %p1165 = pneg %p419
        %p1166 = pneg %p416
        %p1167 = scmp.lt.s32.totalorder %s75, 1
        %s1168 = scalar_select %p1167, %s75, 1
        %s1169 = scalar_lea.vmem %s29, %s1168
        %p1170 = pneg %p445
        %p1171 = pneg %p442
        %p1172 = scmp.lt.s32.totalorder %s75, 1
        %s1173 = scalar_select %p1172, %s75, 1
        %s1174 = smul.addr %s1173, 16
        %s1175 = smul.addr %s1174, 4
        %s1176 = scalar_lea.vmem %s31, %s1175
        %p1177 = pneg %p471
        %p1178 = pneg %p468
        %p1179 = scmp.lt.s32.totalorder %s75, 1
        %s1180 = scalar_select %p1179, %s75, 1
        %s1181 = smul.addr %s1180, 4
        %s1182 = scalar_lea.vmem %s33, %s1181
        %p1183 = pneg %p497
        %p1184 = pneg %p494
        %p1185 = scmp.lt.s32.totalorder %s75, 1
        %s1186 = scalar_select %p1185, %s75, 1
        %s1187 = smul.addr %s1186, 16
        %s1188 = smul.addr %s1187, 4
        %s1189 = scalar_lea.vmem %s35, %s1188
        %p1190 = pneg %p523
        %p1191 = pneg %p520
        %p1192 = scmp.lt.s32.totalorder %s75, 1
        %s1193 = scalar_select %p1192, %s75, 1
        %s1194 = smul.addr %s1193, 4
        %s1195 = scalar_lea.vmem %s37, %s1194
        %p1196 = pneg %p549
        %p1197 = pneg %p546
        %p1198 = scmp.lt.s32.totalorder %s75, 1
        %s1199 = scalar_select %p1198, %s75, 1
        %s1200 = smul.addr %s1199, 16
        %s1201 = smul.addr %s1200, 4
        %s1202 = scalar_lea.vmem %s39, %s1201
        %p1203 = pneg %p575
        %p1204 = pneg %p572
        %p1205 = scmp.lt.s32.totalorder %s75, 1
        %s1206 = scalar_select %p1205, %s75, 1
        %s1207 = smul.addr %s1206, 4
        %s1208 = scalar_lea.vmem %s41, %s1207
        %p1209 = pneg %p601
        %p1210 = pneg %p598
        %p1211 = scmp.lt.s32.totalorder %s75, 1
        %s1212 = scalar_select %p1211, %s75, 1
        %s1213 = smul.addr %s1212, 4
        %s1214 = smul.addr %s1213, 4
        %s1215 = scalar_lea.vmem %s43, %s1214
        %p1216 = pneg %p627
        %p1217 = pneg %p624
        %p1218 = scmp.lt.s32.totalorder %s75, 1
        %s1219 = scalar_select %p1218, %s75, 1
        %s1220 = scalar_lea.vmem %s45, %s1219
        %p1221 = pneg %p653
        %p1222 = pneg %p650
        %p1223 = scmp.lt.s32.totalorder %s75, 1
        %s1224 = scalar_select %p1223, %s75, 1
        %s1225 = scalar_lea.vmem %s47, %s1224
        %p1226 = pneg %p679
        %p1227 = pneg %p676
        %p1228 = scmp.lt.s32.totalorder %s75, 1
        %s1229 = scalar_select %p1228, %s75, 1
        %s1230 = scalar_lea.vmem %s49, %s1229
        %p1231 = pneg %p705
        %p1232 = pneg %p702
        %p1233 = scmp.lt.s32.totalorder %s75, 1
        %s1234 = scalar_select %p1233, %s75, 1
        %s1235 = smul.addr %s1234, 4
        %s1236 = smul.addr %s1235, 4
        %s1237 = scalar_lea.vmem %s51, %s1236
        %p1238 = pneg %p731
        %p1239 = pneg %p728
        %p1240 = scmp.lt.s32.totalorder %s75, 1
        %s1241 = scalar_select %p1240, %s75, 1
        %s1242 = scalar_lea.vmem %s53, %s1241
        %p1243 = pneg %p757
        %p1244 = pneg %p754
        %p1245 = scmp.lt.s32.totalorder %s75, 1
        %s1246 = scalar_select %p1245, %s75, 1
        %s1247 = smul.addr %s1246, 16
        %s1248 = smul.addr %s1247, 4
        %s1249 = scalar_lea.vmem %s55, %s1248
        %p1250 = pneg %p783
        %p1251 = pneg %p780
        %p1252 = scmp.lt.s32.totalorder %s75, 1
        %s1253 = scalar_select %p1252, %s75, 1
        %s1254 = scalar_lea.vmem %s57, %s1253
        %p1255 = pneg %p809
        %p1256 = pneg %p806
        %p1257 = pneg %p830
        %p1258 = pneg %p827
        %p1259 = pneg %p851
        %p1260 = pneg %p848
        %p1261 = pneg %p872
        %p1262 = pneg %p869
        %p1263 = scmp.lt.s32.totalorder %s75, 1
        %s1264 = scalar_select %p1263, %s75, 1
        %s1265 = scalar_lea.vmem %s7, %s1264
        %p1266 = scmp.lt.s32.totalorder %s75, 1
        %s1267 = scalar_select %p1266, %s75, 1
        %s1268 = scalar_lea.vmem %s9, %s1267
        %p1269 = scmp.lt.s32.totalorder %s75, 1
        %s1270 = scalar_select %p1269, %s75, 1
        %s1271 = smul.addr %s1270, 16
        %s1272 = smul.addr %s1271, 4
        %s1273 = scalar_lea.vmem %s11, %s1272
        %p1274 = scmp.lt.s32.totalorder %s75, 1
        %s1275 = scalar_select %p1274, %s75, 1
        %s1276 = smul.addr %s1275, 4
        %s1277 = scalar_lea.vmem %s13, %s1276
        %p1278 = scmp.lt.s32.totalorder %s75, 1
        %s1279 = scalar_select %p1278, %s75, 1
        %s1280 = smul.addr %s1279, 16
        %s1281 = smul.addr %s1280, 4
        %s1282 = scalar_lea.vmem %s15, %s1281
        %p1283 = scmp.lt.s32.totalorder %s75, 1
        %s1284 = scalar_select %p1283, %s75, 1
        %s1285 = smul.addr %s1284, 4
        %s1286 = scalar_lea.vmem %s17, %s1285
        %p1287 = scmp.lt.s32.totalorder %s75, 1
        %s1288 = scalar_select %p1287, %s75, 1
        %s1289 = smul.addr %s1288, 16
        %s1290 = smul.addr %s1289, 4
        %s1291 = scalar_lea.vmem %s19, %s1290
        %p1292 = scmp.lt.s32.totalorder %s75, 1
        %s1293 = scalar_select %p1292, %s75, 1
        %s1294 = smul.addr %s1293, 4
        %s1295 = scalar_lea.vmem %s21, %s1294
        %p1296 = scmp.lt.s32.totalorder %s75, 1
        %s1297 = scalar_select %p1296, %s75, 1
        %s1298 = smul.addr %s1297, 4
        %s1299 = smul.addr %s1298, 4
        %s1300 = scalar_lea.vmem %s23, %s1299
        %p1301 = scmp.lt.s32.totalorder %s75, 1
        %s1302 = scalar_select %p1301, %s75, 1
        %s1303 = scalar_lea.vmem %s25, %s1302
        %p1304 = scmp.lt.s32.totalorder %s75, 1
        %s1305 = scalar_select %p1304, %s75, 1
        %s1306 = scalar_lea.vmem %s27, %s1305
        %p1307 = scmp.lt.s32.totalorder %s75, 1
        %s1308 = scalar_select %p1307, %s75, 1
        %s1309 = scalar_lea.vmem %s29, %s1308
        %p1310 = scmp.lt.s32.totalorder %s75, 1
        %s1311 = scalar_select %p1310, %s75, 1
        %s1312 = smul.addr %s1311, 16
        %s1313 = smul.addr %s1312, 4
        %s1314 = scalar_lea.vmem %s31, %s1313
        %p1315 = scmp.lt.s32.totalorder %s75, 1
        %s1316 = scalar_select %p1315, %s75, 1
        %s1317 = smul.addr %s1316, 4
        %s1318 = scalar_lea.vmem %s33, %s1317
        %p1319 = scmp.lt.s32.totalorder %s75, 1
        %s1320 = scalar_select %p1319, %s75, 1
        %s1321 = smul.addr %s1320, 16
        %s1322 = smul.addr %s1321, 4
        %s1323 = scalar_lea.vmem %s35, %s1322
        %p1324 = scmp.lt.s32.totalorder %s75, 1
        %s1325 = scalar_select %p1324, %s75, 1
        %s1326 = smul.addr %s1325, 4
        %s1327 = scalar_lea.vmem %s37, %s1326
        %p1328 = scmp.lt.s32.totalorder %s75, 1
        %s1329 = scalar_select %p1328, %s75, 1
        %s1330 = smul.addr %s1329, 16
        %s1331 = smul.addr %s1330, 4
        %s1332 = scalar_lea.vmem %s39, %s1331
        %p1333 = scmp.lt.s32.totalorder %s75, 1
        %s1334 = scalar_select %p1333, %s75, 1
        %s1335 = smul.addr %s1334, 4
        %s1336 = scalar_lea.vmem %s41, %s1335
        %p1337 = scmp.lt.s32.totalorder %s75, 1
        %s1338 = scalar_select %p1337, %s75, 1
        %s1339 = smul.addr %s1338, 4
        %s1340 = smul.addr %s1339, 4
        %s1341 = scalar_lea.vmem %s43, %s1340
        %p1342 = scmp.lt.s32.totalorder %s75, 1
        %s1343 = scalar_select %p1342, %s75, 1
        %s1344 = scalar_lea.vmem %s45, %s1343
        %p1345 = scmp.lt.s32.totalorder %s75, 1
        %s1346 = scalar_select %p1345, %s75, 1
        %s1347 = scalar_lea.vmem %s47, %s1346
        %p1348 = scmp.lt.s32.totalorder %s75, 1
        %s1349 = scalar_select %p1348, %s75, 1
        %s1350 = scalar_lea.vmem %s49, %s1349
        %p1351 = scmp.lt.s32.totalorder %s75, 1
        %s1352 = scalar_select %p1351, %s75, 1
        %s1353 = smul.addr %s1352, 4
        %s1354 = smul.addr %s1353, 4
        %s1355 = scalar_lea.vmem %s51, %s1354
        %p1356 = scmp.lt.s32.totalorder %s75, 1
        %s1357 = scalar_select %p1356, %s75, 1
        %s1358 = scalar_lea.vmem %s53, %s1357
        %p1359 = scmp.lt.s32.totalorder %s75, 1
        %s1360 = scalar_select %p1359, %s75, 1
        %s1361 = smul.addr %s1360, 16
        %s1362 = smul.addr %s1361, 4
        %s1363 = scalar_lea.vmem %s55, %s1362
        %p1364 = scmp.lt.s32.totalorder %s75, 1
        %s1365 = scalar_select %p1364, %s75, 1
        %s1366 = scalar_lea.vmem %s57, %s1365
        %p1368 = scmp.eq.s32.totalorder %s75, 0
        // Predicated region
        $region145: #{tpu_custom_call.1} parent=143 // pred_check
          %p1369 = pneg %p1368
        $region146: #{tpu_custom_call.1} parent=143 // pred_check_branch
          %1371 = sbr.rel (%p1369) target = $region148
        $region147: #{tpu_custom_call.1} parent=143 // pred_region
          %v1372 = vld [vmem:[%s1] sm:$0xff]
          %v1373 = vld [vmem:[%s1 + $0x8] sm:$0xff]
          %vm1374 = vcmask 261120
          %1375 = vst.msk [vmem:[#allocation2] sm:$0xff] %vm1374, %v1372
          %1376 = vst.msk [vmem:[#allocation2 + $0x8] sm:$0xff] %vm1374, %v1373
        $region148: #{tpu_custom_call.1} parent=143 // pred_fallthru
          _
        %v1377 = vlaneseq
        %v1378 = vshrl.u32 %v1377, 7
        %v1379 = vlaneseq
        %v1380 = vand.u32 %v1379, 127
        %vm1381 = vcmp.ge.s32.totalorder %v1378, %v1380
        %v1382 = vsel %vm1381, 0.0, -1e+30
        %v1383 = vld [vmem:[%s5] sm:$0x3]
        %vm1384 = vcmp.gt.f32.partialorder %v1383, 0.5
        %v1385 = vsel %vm1384, 0.0, -1e+30
        %v1388 = vunpack.c.l.s4 1966171168
        %v1389 = vunpack.c.0.s8 %v1388
        %v1390 = vlaneseq
        %v1391 = vshrl.u32 %v1390, 7
        %v1392 = vsub.s32 %v1389, %v1391
        %v1393 = vrot.slane %v1385, %v1392
        %v1394 = vcombine.high %v1393, %v1393
        %v1396 = vunpack.c.l.s4 1966171168
        %v1397 = vunpack.c.0.s8 %v1396
        %v1398 = vlaneseq
        %v1399 = vshrl.u32 %v1398, 7
        %v1400 = vsub.s32 %v1397, %v1399
        %v1401 = vrot.slane %v1393, %v1400
        %v1403 = vunpack.c.l.s4 1966171168
        %v1404 = vunpack.c.0.s8 %v1403
        %v1405 = vlaneseq
        %v1406 = vshrl.u32 %v1405, 7
        %v1407 = vsub.s32 %v1404, %v1406
        %v1408 = vrot.slane %v1394, %v1407
        %v1409 = vlaneseq
        %v1410 = vshrl.u32 %v1409, 7
        %v1411 = vsub.s32 0, %v1410
        %v1412 = vrot.slane %v1401, %v1411
        %v1413 = vlaneseq
        %v1414 = vshrl.u32 %v1413, 7
        %v1415 = vsub.s32 0, %v1414
        %v1416 = vrot.slane %v1408, %v1415
        %v1419 = vadd.f32 %v1382, %v1412
        %v1420 = vadd.f32 %v1382, %v1416
        %v1421 = vld [vmem:[#allocation2] sm:$0xff]
        %v1422 = vld [vmem:[#allocation2 + $0x8] sm:$0xff]
        %v1423 = vld [vmem:[%s3] sm:$0xff]
        %v1424 = vld [vmem:[%s3 + $0x8] sm:$0xff]
        %v1425 = vld [vmem:[%s1265] sm:$0x1]
        %v1426 = vld [vmem:[%s1268] sm:$0x1]
        %vm1427 = vcmask 261120
        %v1428 = vsel %vm1427, %v1421, 0.0
        %1429 = vadd.xlane.f32.xlu0 %v1428
        %v1430 = vpop.xlane.xlu0 %1429
        %v1431 = vsel %vm1427, %v1422, 0.0
        %1432 = vadd.xlane.f32.xlu0 %v1431
        %v1433 = vpop.xlane.xlu0 %1432
        %v1434 = vrcp.pop 32.0
        %v1435 = vmul.f32 %v1430, %v1434
        %v1436 = vmul.f32 %v1433, %v1434
        %v1437 = vmul.f32 %v1421, %v1421
        %v1438 = vmul.f32 %v1422, %v1422
        %v1439 = vsel %vm1427, %v1437, 0.0
        %1440 = vadd.xlane.f32.xlu0 %v1439
        %v1441 = vpop.xlane.xlu0 %1440
        %v1442 = vsel %vm1427, %v1438, 0.0
        %1443 = vadd.xlane.f32.xlu0 %v1442
        %v1444 = vpop.xlane.xlu0 %1443
        %v1445 = vmul.f32 %v1441, %v1434
        %v1446 = vmul.f32 %v1444, %v1434
        %v1447 = vmul.f32 %v1435, %v1435
        %v1448 = vmul.f32 %v1436, %v1436
        %v1449 = vsub.f32 %v1445, %v1447
        %v1450 = vsub.f32 %v1446, %v1448
        %v1451 = vsub.f32 %v1421, %v1435
        %v1452 = vsub.f32 %v1422, %v1436
        %v1453 = vadd.f32 %v1449, 1e-05
        %v1454 = vadd.f32 %v1450, 1e-05
        %v1455 = vrsqrt.pop %v1453
        %v1456 = vrsqrt.pop %v1454
        %v1457 = vmul.f32 %v1451, %v1455
        %v1458 = vmul.f32 %v1452, %v1456
        %v1460 = vlaneseq
        %v1461 = vshrl.u32 %v1460, 7
        %v1462 = vsub.s32 0, %v1461
        %v1463 = vrot.slane %v1425, %v1462
        %v1465 = vmul.f32 %v1457, %v1463
        %v1466 = vmul.f32 %v1458, %v1463
        %v1468 = vlaneseq
        %v1469 = vshrl.u32 %v1468, 7
        %v1470 = vsub.s32 0, %v1469
        %v1471 = vrot.slane %v1426, %v1470
        %v1473 = vadd.f32 %v1465, %v1471
        %v1474 = vadd.f32 %v1466, %v1471
        %v1475 = vpack.c.bf16 %v1474, %v1473
        %v1476 = vld [vmem:[%s1273] sm:$0xf]
        %v1477 = vld [vmem:[%s1273 + $0x4] sm:$0xf]
        %v1478 = vld [vmem:[%s1273 + $0x8] sm:$0xf]
        %v1479 = vld [vmem:[%s1273 + $0xc] sm:$0xf]
        %v1480 = vld [vmem:[%s1277] sm:$0x1]
        %v1482 = vlaneseq
        %v1483 = vshrl.u32 %v1482, 7
        %v1484 = vsub.s32 0, %v1483
        %v1485 = vrot.slane %v1480, %v1484
        %v1491 = vunpack.c.l.b16 %v1476
        %v1492 = vunpack.c.l.b16 %v1477
        %v1493 = vunpack.c.l.b16 %v1478
        %v1494 = vunpack.c.l.b16 %v1479
        %v1495 = vpack.c.b16 %v1492, %v1491
        %v1496 = vpack.c.b16 %v1494, %v1493
        %v1500 = vsel %vm1427, %v1475, 0
        %1502 = vmatprep.subr.bf16.mxu0 0
        %1503 = vmatpush1.bf16.msra.mxu0 %v1495
        %1504 = vmatprep.subr.bf16.mxu0 0
        %1505 = vmatpush1.bf16.msra.mxu0 %v1496
        %1506 = vmatprep.subr.bf16.mxu0 0
        %1507 = vmatpush1.bf16.msra.mxu0 0
        %1508 = vmatprep.subr.bf16.mxu0 0
        %1509 = vmatpush1.bf16.msra.mxu0 0
        %1510 = vmatprep.subr.bf16.mxu0 0
        %1511 = vmatpush1.bf16.msra.mxu0 0
        %1512 = vmatprep.subr.bf16.mxu0 0
        %1513 = vmatpush1.bf16.msra.mxu0 0
        %1514 = vmatprep.subr.bf16.mxu0 0
        %1515 = vmatpush1.bf16.msra.mxu0 0
        %1516 = vmatprep.subr.bf16.mxu0 0
        %1517 = vmatpush1.bf16.msra.mxu0 0
        %1518 = vmatprep.subr.bf16.mxu0 0
        %1519 = vmatpush1.bf16.msra.mxu0 0
        %1520 = vmatprep.subr.bf16.mxu0 0
        %1521 = vmatpush1.bf16.msra.mxu0 0
        %1522 = vmatprep.subr.bf16.mxu0 0
        %1523 = vmatpush1.bf16.msra.mxu0 0
        %1524 = vmatprep.subr.bf16.mxu0 0
        %1525 = vmatpush1.bf16.msra.mxu0 0
        %1526 = vmatprep.subr.bf16.mxu0 0
        %1527 = vmatpush1.bf16.msra.mxu0 0
        %1528 = vmatprep.subr.bf16.mxu0 0
        %1529 = vmatpush1.bf16.msra.mxu0 0
        %1530 = vmatprep.subr.bf16.mxu0 0
        %1531 = vmatpush1.bf16.msra.mxu0 0
        %1532 = vmatprep.subr.bf16.mxu0 0
        %1533 = vmatpush1.bf16.msra.mxu0 0
        %1534 = vmatprep.mubr.bf16.mxu0 0
        %1535 = vmatmul.mubr.bf16.gmra.mrb[0].mxu0 %v1500
        %v1536 = vpop.f32.mrb[0].mxu0
        %v1537 = vadd.f32 %v1485, %v1536
        %v1538 = vpop.f32.mrb[0].mxu0
        %v1539 = vpop.f32.mrb[0].mxu0
        %v1540 = vadd.f32 %v1485, %v1539
        %v1541 = vpop.f32.mrb[0].mxu0
        %1542 = vdwg.mxu0
        %v1543 = vld [vmem:[%s1282] sm:$0xf]
        %v1544 = vld [vmem:[%s1282 + $0x4] sm:$0xf]
        %v1545 = vld [vmem:[%s1282 + $0x8] sm:$0xf]
        %v1546 = vld [vmem:[%s1282 + $0xc] sm:$0xf]
        %v1547 = vld [vmem:[%s1286] sm:$0x1]
        %v1549 = vlaneseq
        %v1550 = vshrl.u32 %v1549, 7
        %v1551 = vsub.s32 0, %v1550
        %v1552 = vrot.slane %v1547, %v1551
        %v1558 = vunpack.c.l.b16 %v1543
        %v1559 = vunpack.c.l.b16 %v1544
        %v1560 = vunpack.c.l.b16 %v1545
        %v1561 = vunpack.c.l.b16 %v1546
        %v1562 = vpack.c.b16 %v1559, %v1558
        %v1563 = vpack.c.b16 %v1561, %v1560
        %1566 = vmatprep.subr.bf16.mxu0 0
        %1567 = vmatpush1.bf16.msra.mxu0 %v1562
        %1568 = vmatprep.subr.bf16.mxu0 0
        %1569 = vmatpush1.bf16.msra.mxu0 %v1563
        %1570 = vmatprep.subr.bf16.mxu0 0
        %1571 = vmatpush1.bf16.msra.mxu0 0
        %1572 = vmatprep.subr.bf16.mxu0 0
        %1573 = vmatpush1.bf16.msra.mxu0 0
        %1574 = vmatprep.subr.bf16.mxu0 0
        %1575 = vmatpush1.bf16.msra.mxu0 0
        %1576 = vmatprep.subr.bf16.mxu0 0
        %1577 = vmatpush1.bf16.msra.mxu0 0
        %1578 = vmatprep.subr.bf16.mxu0 0
        %1579 = vmatpush1.bf16.msra.mxu0 0
        %1580 = vmatprep.subr.bf16.mxu0 0
        %1581 = vmatpush1.bf16.msra.mxu0 0
        %1582 = vmatprep.subr.bf16.mxu0 0
        %1583 = vmatpush1.bf16.msra.mxu0 0
        %1584 = vmatprep.subr.bf16.mxu0 0
        %1585 = vmatpush1.bf16.msra.mxu0 0
        %1586 = vmatprep.subr.bf16.mxu0 0
        %1587 = vmatpush1.bf16.msra.mxu0 0
        %1588 = vmatprep.subr.bf16.mxu0 0
        %1589 = vmatpush1.bf16.msra.mxu0 0
        %1590 = vmatprep.subr.bf16.mxu0 0
        %1591 = vmatpush1.bf16.msra.mxu0 0
        %1592 = vmatprep.subr.bf16.mxu0 0
        %1593 = vmatpush1.bf16.msra.mxu0 0
        %1594 = vmatprep.subr.bf16.mxu0 0
        %1595 = vmatpush1.bf16.msra.mxu0 0
        %1596 = vmatprep.subr.bf16.mxu0 0
        %1597 = vmatpush1.bf16.msra.mxu0 0
        %1598 = vmatprep.mubr.bf16.mxu0 0
        %1599 = vmatmul.mubr.bf16.gmra.mrb[0].mxu0 %v1500
        %v1600 = vpop.f32.mrb[0].mxu0
        %v1601 = vadd.f32 %v1552, %v1600
        %v1602 = vpop.f32.mrb[0].mxu0
        %v1603 = vpop.f32.mrb[0].mxu0
        %v1604 = vadd.f32 %v1552, %v1603
        %v1605 = vpop.f32.mrb[0].mxu0
        %1606 = vdwg.mxu0
        %v1607 = vld [vmem:[%s1291] sm:$0xf]
        %v1608 = vld [vmem:[%s1291 + $0x4] sm:$0xf]
        %v1609 = vld [vmem:[%s1291 + $0x8] sm:$0xf]
        %v1610 = vld [vmem:[%s1291 + $0xc] sm:$0xf]
        %v1611 = vld [vmem:[%s1295] sm:$0x1]
        %v1613 = vlaneseq
        %v1614 = vshrl.u32 %v1613, 7
        %v1615 = vsub.s32 0, %v1614
        %v1616 = vrot.slane %v1611, %v1615
        %v1622 = vunpack.c.l.b16 %v1607
        %v1623 = vunpack.c.l.b16 %v1608
        %v1624 = vunpack.c.l.b16 %v1609
        %v1625 = vunpack.c.l.b16 %v1610
        %v1626 = vpack.c.b16 %v1623, %v1622
        %v1627 = vpack.c.b16 %v1625, %v1624
        %1630 = vmatprep.subr.bf16.mxu0 0
        %1631 = vmatpush1.bf16.msra.mxu0 %v1626
        %1632 = vmatprep.subr.bf16.mxu0 0
        %1633 = vmatpush1.bf16.msra.mxu0 %v1627
        %1634 = vmatprep.subr.bf16.mxu0 0
        %1635 = vmatpush1.bf16.msra.mxu0 0
        %1636 = vmatprep.subr.bf16.mxu0 0
        %1637 = vmatpush1.bf16.msra.mxu0 0
        %1638 = vmatprep.subr.bf16.mxu0 0
        %1639 = vmatpush1.bf16.msra.mxu0 0
        %1640 = vmatprep.subr.bf16.mxu0 0
        %1641 = vmatpush1.bf16.msra.mxu0 0
        %1642 = vmatprep.subr.bf16.mxu0 0
        %1643 = vmatpush1.bf16.msra.mxu0 0
        %1644 = vmatprep.subr.bf16.mxu0 0
        %1645 = vmatpush1.bf16.msra.mxu0 0
        %1646 = vmatprep.subr.bf16.mxu0 0
        %1647 = vmatpush1.bf16.msra.mxu0 0
        %1648 = vmatprep.subr.bf16.mxu0 0
        %1649 = vmatpush1.bf16.msra.mxu0 0
        %1650 = vmatprep.subr.bf16.mxu0 0
        %1651 = vmatpush1.bf16.msra.mxu0 0
        %1652 = vmatprep.subr.bf16.mxu0 0
        %1653 = vmatpush1.bf16.msra.mxu0 0
        %1654 = vmatprep.subr.bf16.mxu0 0
        %1655 = vmatpush1.bf16.msra.mxu0 0
        %1656 = vmatprep.subr.bf16.mxu0 0
        %1657 = vmatpush1.bf16.msra.mxu0 0
        %1658 = vmatprep.subr.bf16.mxu0 0
        %1659 = vmatpush1.bf16.msra.mxu0 0
        %1660 = vmatprep.subr.bf16.mxu0 0
        %1661 = vmatpush1.bf16.msra.mxu0 0
        %1662 = vmatprep.mubr.bf16.mxu0 0
        %1663 = vmatmul.mubr.bf16.gmra.mrb[0].mxu0 %v1500
        %v1664 = vpop.f32.mrb[0].mxu0
        %v1665 = vadd.f32 %v1616, %v1664
        %v1666 = vpop.f32.mrb[0].mxu0
        %v1667 = vpop.f32.mrb[0].mxu0
        %v1668 = vadd.f32 %v1616, %v1667
        %v1669 = vpop.f32.mrb[0].mxu0
        %1670 = vdwg.mxu0
        %v1671 = vpack.c.bf16 %v1537, %v1537
        %v1672 = vpack.c.bf16 %v1540, %v1540
        %v1673 = vpack.c.bf16 %v1601, %v1601
        %v1674 = vpack.c.bf16 %v1604, %v1604
        %vm1675 = vcmask 64512
        %v1677 = vsel %vm1675, %v1671, 0
        %v1680 = vsel %vm1675, %v1673, 0
        %1682 = vmatprep.subr.bf16.mxu0 0
        %1683 = vmatpush1.bf16.xpose.msra.mxu0 %v1680
        %1684 = vmatprep.subr.bf16.mxu0 0
        %1685 = vmatpush1.bf16.xpose.msra.mxu0 0
        %1686 = vmatprep.subr.bf16.mxu0 0
        %1687 = vmatpush1.bf16.xpose.msra.mxu0 0
        %1688 = vmatprep.subr.bf16.mxu0 0
        %1689 = vmatpush1.bf16.xpose.msra.mxu0 0
        %1690 = vmatprep.subr.bf16.mxu0 0
        %1691 = vmatpush1.bf16.xpose.msra.mxu0 0
        %1692 = vmatprep.subr.bf16.mxu0 0
        %1693 = vmatpush1.bf16.xpose.msra.mxu0 0
        %1694 = vmatprep.subr.bf16.mxu0 0
        %1695 = vmatpush1.bf16.xpose.msra.mxu0 0
        %1696 = vmatprep.subr.bf16.mxu0 0
        %1697 = vmatpush1.bf16.xpose.msra.mxu0 0
        %1698 = vmatprep.subr.bf16.mxu0 0
        %1699 = vmatpush1.bf16.xpose.msra.mxu0 0
        %1700 = vmatprep.subr.bf16.mxu0 0
        %1701 = vmatpush1.bf16.xpose.msra.mxu0 0
        %1702 = vmatprep.subr.bf16.mxu0 0
        %1703 = vmatpush1.bf16.xpose.msra.mxu0 0
        %1704 = vmatprep.subr.bf16.mxu0 0
        %1705 = vmatpush1.bf16.xpose.msra.mxu0 0
        %1706 = vmatprep.subr.bf16.mxu0 0
        %1707 = vmatpush1.bf16.xpose.msra.mxu0 0
        %1708 = vmatprep.subr.bf16.mxu0 0
        %1709 = vmatpush1.bf16.xpose.msra.mxu0 0
        %1710 = vmatprep.subr.bf16.mxu0 0
        %1711 = vmatpush1.bf16.xpose.msra.mxu0 0
        %1712 = vmatprep.subr.bf16.mxu0 0
        %1713 = vmatpush1.bf16.xpose.msra.mxu0 0
        %1714 = vmatprep.mubr.bf16.mxu0 0
        %1715 = vmatmul.mubr.bf16.gmra.mrb[0].mxu0 %v1677
        %v1716 = vpop.f32.mrb[0].mxu0
        %v1717 = vadd.f32 %v1419, %v1716
        %v1718 = vpop.f32.mrb[0].mxu0
        %v1719 = vpop.f32.mrb[0].mxu0
        %v1720 = vpop.f32.mrb[0].mxu0
        %1721 = vdwg.mxu0
        %v1723 = vsel %vm1675, %v1672, 0
        %v1726 = vsel %vm1675, %v1674, 0
        %1728 = vmatprep.subr.bf16.mxu0 0
        %1729 = vmatpush1.bf16.xpose.msra.mxu0 %v1726
        %1730 = vmatprep.subr.bf16.mxu0 0
        %1731 = vmatpush1.bf16.xpose.msra.mxu0 0
        %1732 = vmatprep.subr.bf16.mxu0 0
        %1733 = vmatpush1.bf16.xpose.msra.mxu0 0
        %1734 = vmatprep.subr.bf16.mxu0 0
        %1735 = vmatpush1.bf16.xpose.msra.mxu0 0
        %1736 = vmatprep.subr.bf16.mxu0 0
        %1737 = vmatpush1.bf16.xpose.msra.mxu0 0
        %1738 = vmatprep.subr.bf16.mxu0 0
        %1739 = vmatpush1.bf16.xpose.msra.mxu0 0
        %1740 = vmatprep.subr.bf16.mxu0 0
        %1741 = vmatpush1.bf16.xpose.msra.mxu0 0
        %1742 = vmatprep.subr.bf16.mxu0 0
        %1743 = vmatpush1.bf16.xpose.msra.mxu0 0
        %1744 = vmatprep.subr.bf16.mxu0 0
        %1745 = vmatpush1.bf16.xpose.msra.mxu0 0
        %1746 = vmatprep.subr.bf16.mxu0 0
        %1747 = vmatpush1.bf16.xpose.msra.mxu0 0
        %1748 = vmatprep.subr.bf16.mxu0 0
        %1749 = vmatpush1.bf16.xpose.msra.mxu0 0
        %1750 = vmatprep.subr.bf16.mxu0 0
        %1751 = vmatpush1.bf16.xpose.msra.mxu0 0
        %1752 = vmatprep.subr.bf16.mxu0 0
        %1753 = vmatpush1.bf16.xpose.msra.mxu0 0
        %1754 = vmatprep.subr.bf16.mxu0 0
        %1755 = vmatpush1.bf16.xpose.msra.mxu0 0
        %1756 = vmatprep.subr.bf16.mxu0 0
        %1757 = vmatpush1.bf16.xpose.msra.mxu0 0
        %1758 = vmatprep.subr.bf16.mxu0 0
        %1759 = vmatpush1.bf16.xpose.msra.mxu0 0
        %1760 = vmatprep.mubr.bf16.mxu0 0
        %1761 = vmatmul.mubr.bf16.gmra.mrb[0].mxu0 %v1723
        %v1762 = vpop.f32.mrb[0].mxu0
        %v1763 = vadd.f32 %v1420, %v1762
        %v1764 = vpop.f32.mrb[0].mxu0
        %v1765 = vpop.f32.mrb[0].mxu0
        %v1766 = vpop.f32.mrb[0].mxu0
        %1767 = vdwg.mxu0
        %v1768 = vsel %vm1675, %v1717, -inf
        %1769 = vmax.xlane.f32.xlu0 %v1768
        %v1770 = vpop.xlane.xlu0 %1769
        %v1771 = vsel %vm1675, %v1763, -inf
        %1772 = vmax.xlane.f32.xlu0 %v1771
        %v1773 = vpop.xlane.xlu0 %1772
        %v1774 = vsub.f32 %v1717, %v1770
        %v1775 = vsub.f32 %v1763, %v1773
        %v1776 = vmul.f32 %v1774, 1.442695
        %v1777 = vpow.pop %v1776
        %v1778 = vmul.f32 %v1775, 1.442695
        %v1779 = vpow.pop %v1778
        %v1780 = vsel %vm1675, %v1777, 0.0
        %1781 = vadd.xlane.f32.xlu0 %v1780
        %v1782 = vpop.xlane.xlu0 %1781
        %v1783 = vsel %vm1675, %v1779, 0.0
        %1784 = vadd.xlane.f32.xlu0 %v1783
        %v1785 = vpop.xlane.xlu0 %1784
        %v1786 = vrcp.pop %v1782
        %v1787 = vrcp.pop %v1785
        %v1788 = vmul.f32 %v1777, %v1786
        %v1789 = vmul.f32 %v1779, %v1787
        %v1790 = vpack.c.bf16 %v1788, %v1788
        %v1791 = vpack.c.bf16 %v1789, %v1789
        %v1792 = vpack.c.bf16 %v1665, %v1665
        %v1793 = vpack.c.bf16 %v1668, %v1668
        %v1795 = vsel %vm1675, %v1790, 0
        %vm1797 = vcmask 1043456
        %v1799 = vsel %vm1797, %v1792, 0
        %1801 = vmatprep.subr.bf16.mxu0 0
        %1802 = vmatpush1.bf16.msra.mxu0 %v1799
        %1803 = vmatprep.subr.bf16.mxu0 0
        %1804 = vmatpush1.bf16.msra.mxu0 0
        %1805 = vmatprep.subr.bf16.mxu0 0
        %1806 = vmatpush1.bf16.msra.mxu0 0
        %1807 = vmatprep.subr.bf16.mxu0 0
        %1808 = vmatpush1.bf16.msra.mxu0 0
        %1809 = vmatprep.subr.bf16.mxu0 0
        %1810 = vmatpush1.bf16.msra.mxu0 0
        %1811 = vmatprep.subr.bf16.mxu0 0
        %1812 = vmatpush1.bf16.msra.mxu0 0
        %1813 = vmatprep.subr.bf16.mxu0 0
        %1814 = vmatpush1.bf16.msra.mxu0 0
        %1815 = vmatprep.subr.bf16.mxu0 0
        %1816 = vmatpush1.bf16.msra.mxu0 0
        %1817 = vmatprep.subr.bf16.mxu0 0
        %1818 = vmatpush1.bf16.msra.mxu0 0
        %1819 = vmatprep.subr.bf16.mxu0 0
        %1820 = vmatpush1.bf16.msra.mxu0 0
        %1821 = vmatprep.subr.bf16.mxu0 0
        %1822 = vmatpush1.bf16.msra.mxu0 0
        %1823 = vmatprep.subr.bf16.mxu0 0
        %1824 = vmatpush1.bf16.msra.mxu0 0
        %1825 = vmatprep.subr.bf16.mxu0 0
        %1826 = vmatpush1.bf16.msra.mxu0 0
        %1827 = vmatprep.subr.bf16.mxu0 0
        %1828 = vmatpush1.bf16.msra.mxu0 0
        %1829 = vmatprep.subr.bf16.mxu0 0
        %1830 = vmatpush1.bf16.msra.mxu0 0
        %1831 = vmatprep.subr.bf16.mxu0 0
        %1832 = vmatpush1.bf16.msra.mxu0 0
        %1833 = vmatprep.mubr.bf16.mxu0 0
        %1834 = vmatmul.mubr.bf16.gmra.mrb[0].mxu0 %v1795
        %v1835 = vpop.f32.mrb[0].mxu0
        %v1836 = vadd.f32 0.0, %v1835
        %v1837 = vpop.f32.mrb[0].mxu0
        %v1838 = vpop.f32.mrb[0].mxu0
        %v1839 = vpop.f32.mrb[0].mxu0
        %1840 = vdwg.mxu0
        %v1842 = vsel %vm1675, %v1791, 0
        %v1845 = vsel %vm1797, %v1793, 0
        %1847 = vmatprep.subr.bf16.mxu0 0
        %1848 = vmatpush1.bf16.msra.mxu0 %v1845
        %1849 = vmatprep.subr.bf16.mxu0 0
        %1850 = vmatpush1.bf16.msra.mxu0 0
        %1851 = vmatprep.subr.bf16.mxu0 0
        %1852 = vmatpush1.bf16.msra.mxu0 0
        %1853 = vmatprep.subr.bf16.mxu0 0
        %1854 = vmatpush1.bf16.msra.mxu0 0
        %1855 = vmatprep.subr.bf16.mxu0 0
        %1856 = vmatpush1.bf16.msra.mxu0 0
        %1857 = vmatprep.subr.bf16.mxu0 0
        %1858 = vmatpush1.bf16.msra.mxu0 0
        %1859 = vmatprep.subr.bf16.mxu0 0
        %1860 = vmatpush1.bf16.msra.mxu0 0
        %1861 = vmatprep.subr.bf16.mxu0 0
        %1862 = vmatpush1.bf16.msra.mxu0 0
        %1863 = vmatprep.subr.bf16.mxu0 0
        %1864 = vmatpush1.bf16.msra.mxu0 0
        %1865 = vmatprep.subr.bf16.mxu0 0
        %1866 = vmatpush1.bf16.msra.mxu0 0
        %1867 = vmatprep.subr.bf16.mxu0 0
        %1868 = vmatpush1.bf16.msra.mxu0 0
        %1869 = vmatprep.subr.bf16.mxu0 0
        %1870 = vmatpush1.bf16.msra.mxu0 0
        %1871 = vmatprep.subr.bf16.mxu0 0
        %1872 = vmatpush1.bf16.msra.mxu0 0
        %1873 = vmatprep.subr.bf16.mxu0 0
        %1874 = vmatpush1.bf16.msra.mxu0 0
        %1875 = vmatprep.subr.bf16.mxu0 0
        %1876 = vmatpush1.bf16.msra.mxu0 0
        %1877 = vmatprep.subr.bf16.mxu0 0
        %1878 = vmatpush1.bf16.msra.mxu0 0
        %1879 = vmatprep.mubr.bf16.mxu0 0
        %1880 = vmatmul.mubr.bf16.gmra.mrb[0].mxu0 %v1842
        %v1881 = vpop.f32.mrb[0].mxu0
        %v1882 = vadd.f32 0.0, %v1881
        %v1883 = vpop.f32.mrb[0].mxu0
        %v1884 = vpop.f32.mrb[0].mxu0
        %v1885 = vpop.f32.mrb[0].mxu0
        %1886 = vdwg.mxu0
        %v1887 = vpack.c.bf16 %v1882, %v1836
        %v1888 = vld [vmem:[%s1300] sm:$0xf]
        %s1889 = scalar_lea.vmem %s1273, 16
        %v1890 = vld [vmem:[%s1889] sm:$0xf]
        %v1891 = vld [vmem:[%s1889 + $0x4] sm:$0xf]
        %v1892 = vld [vmem:[%s1889 + $0x8] sm:$0xf]
        %v1893 = vld [vmem:[%s1889 + $0xc] sm:$0xf]
        %s1894 = scalar_lea.vmem %s1277, 1
        %v1895 = vld [vmem:[%s1894] sm:$0x1]
        %v1897 = vlaneseq
        %v1898 = vshrl.u32 %v1897, 7
        %v1899 = vsub.s32 0, %v1898
        %v1900 = vrot.slane %v1895, %v1899
        %v1906 = vunpack.c.l.b16 %v1890
        %v1907 = vunpack.c.l.b16 %v1891
        %v1908 = vunpack.c.l.b16 %v1892
        %v1909 = vunpack.c.l.b16 %v1893
        %v1910 = vpack.c.b16 %v1907, %v1906
        %v1911 = vpack.c.b16 %v1909, %v1908
        %1914 = vmatprep.subr.bf16.mxu0 0
        %1915 = vmatpush1.bf16.msra.mxu0 %v1910
        %1916 = vmatprep.subr.bf16.mxu0 0
        %1917 = vmatpush1.bf16.msra.mxu0 %v1911
        %1918 = vmatprep.subr.bf16.mxu0 0
        %1919 = vmatpush1.bf16.msra.mxu0 0
        %1920 = vmatprep.subr.bf16.mxu0 0
        %1921 = vmatpush1.bf16.msra.mxu0 0
        %1922 = vmatprep.subr.bf16.mxu0 0
        %1923 = vmatpush1.bf16.msra.mxu0 0
        %1924 = vmatprep.subr.bf16.mxu0 0
        %1925 = vmatpush1.bf16.msra.mxu0 0
        %1926 = vmatprep.subr.bf16.mxu0 0
        %1927 = vmatpush1.bf16.msra.mxu0 0
        %1928 = vmatprep.subr.bf16.mxu0 0
        %1929 = vmatpush1.bf16.msra.mxu0 0
        %1930 = vmatprep.subr.bf16.mxu0 0
        %1931 = vmatpush1.bf16.msra.mxu0 0
        %1932 = vmatprep.subr.bf16.mxu0 0
        %1933 = vmatpush1.bf16.msra.mxu0 0
        %1934 = vmatprep.subr.bf16.mxu0 0
        %1935 = vmatpush1.bf16.msra.mxu0 0
        %1936 = vmatprep.subr.bf16.mxu0 0
        %1937 = vmatpush1.bf16.msra.mxu0 0
        %1938 = vmatprep.subr.bf16.mxu0 0
        %1939 = vmatpush1.bf16.msra.mxu0 0
        %1940 = vmatprep.subr.bf16.mxu0 0
        %1941 = vmatpush1.bf16.msra.mxu0 0
        %1942 = vmatprep.subr.bf16.mxu0 0
        %1943 = vmatpush1.bf16.msra.mxu0 0
        %1944 = vmatprep.subr.bf16.mxu0 0
        %1945 = vmatpush1.bf16.msra.mxu0 0
        %1946 = vmatprep.mubr.bf16.mxu0 0
        %1947 = vmatmul.mubr.bf16.gmra.mrb[0].mxu0 %v1500
        %v1948 = vpop.f32.mrb[0].mxu0
        %v1949 = vadd.f32 %v1900, %v1948
        %v1950 = vpop.f32.mrb[0].mxu0
        %v1951 = vpop.f32.mrb[0].mxu0
        %v1952 = vadd.f32 %v1900, %v1951
        %v1953 = vpop.f32.mrb[0].mxu0
        %1954 = vdwg.mxu0
        %s1955 = scalar_lea.vmem %s1282, 16
        %v1956 = vld [vmem:[%s1955] sm:$0xf]
        %v1957 = vld [vmem:[%s1955 + $0x4] sm:$0xf]
        %v1958 = vld [vmem:[%s1955 + $0x8] sm:$0xf]
        %v1959 = vld [vmem:[%s1955 + $0xc] sm:$0xf]
        %s1960 = scalar_lea.vmem %s1286, 1
        %v1961 = vld [vmem:[%s1960] sm:$0x1]
        %v1963 = vlaneseq
        %v1964 = vshrl.u32 %v1963, 7
        %v1965 = vsub.s32 0, %v1964
        %v1966 = vrot.slane %v1961, %v1965
        %v1972 = vunpack.c.l.b16 %v1956
        %v1973 = vunpack.c.l.b16 %v1957
        %v1974 = vunpack.c.l.b16 %v1958
        %v1975 = vunpack.c.l.b16 %v1959
        %v1976 = vpack.c.b16 %v1973, %v1972
        %v1977 = vpack.c.b16 %v1975, %v1974
        %1980 = vmatprep.subr.bf16.mxu0 0
        %1981 = vmatpush1.bf16.msra.mxu0 %v1976
        %1982 = vmatprep.subr.bf16.mxu0 0
        %1983 = vmatpush1.bf16.msra.mxu0 %v1977
        %1984 = vmatprep.subr.bf16.mxu0 0
        %1985 = vmatpush1.bf16.msra.mxu0 0
        %1986 = vmatprep.subr.bf16.mxu0 0
        %1987 = vmatpush1.bf16.msra.mxu0 0
        %1988 = vmatprep.subr.bf16.mxu0 0
        %1989 = vmatpush1.bf16.msra.mxu0 0
        %1990 = vmatprep.subr.bf16.mxu0 0
        %1991 = vmatpush1.bf16.msra.mxu0 0
        %1992 = vmatprep.subr.bf16.mxu0 0
        %1993 = vmatpush1.bf16.msra.mxu0 0
        %1994 = vmatprep.subr.bf16.mxu0 0
        %1995 = vmatpush1.bf16.msra.mxu0 0
        %1996 = vmatprep.subr.bf16.mxu0 0
        %1997 = vmatpush1.bf16.msra.mxu0 0
        %1998 = vmatprep.subr.bf16.mxu0 0
        %1999 = vmatpush1.bf16.msra.mxu0 0
        %2000 = vmatprep.subr.bf16.mxu0 0
        %2001 = vmatpush1.bf16.msra.mxu0 0
        %2002 = vmatprep.subr.bf16.mxu0 0
        %2003 = vmatpush1.bf16.msra.mxu0 0
        %2004 = vmatprep.subr.bf16.mxu0 0
        %2005 = vmatpush1.bf16.msra.mxu0 0
        %2006 = vmatprep.subr.bf16.mxu0 0
        %2007 = vmatpush1.bf16.msra.mxu0 0
        %2008 = vmatprep.subr.bf16.mxu0 0
        %2009 = vmatpush1.bf16.msra.mxu0 0
        %2010 = vmatprep.subr.bf16.mxu0 0
        %2011 = vmatpush1.bf16.msra.mxu0 0
        %2012 = vmatprep.mubr.bf16.mxu0 0
        %2013 = vmatmul.mubr.bf16.gmra.mrb[0].mxu0 %v1500
        %v2014 = vpop.f32.mrb[0].mxu0
        %v2015 = vadd.f32 %v1966, %v2014
        %v2016 = vpop.f32.mrb[0].mxu0
        %v2017 = vpop.f32.mrb[0].mxu0
        %v2018 = vadd.f32 %v1966, %v2017
        %v2019 = vpop.f32.mrb[0].mxu0
        %2020 = vdwg.mxu0
        %s2021 = scalar_lea.vmem %s1291, 16
        %v2022 = vld [vmem:[%s2021] sm:$0xf]
        %v2023 = vld [vmem:[%s2021 + $0x4] sm:$0xf]
        %v2024 = vld [vmem:[%s2021 + $0x8] sm:$0xf]
        %v2025 = vld [vmem:[%s2021 + $0xc] sm:$0xf]
        %s2026 = scalar_lea.vmem %s1295, 1
        %v2027 = vld [vmem:[%s2026] sm:$0x1]
        %v2029 = vlaneseq
        %v2030 = vshrl.u32 %v2029, 7
        %v2031 = vsub.s32 0, %v2030
        %v2032 = vrot.slane %v2027, %v2031
        %v2038 = vunpack.c.l.b16 %v2022
        %v2039 = vunpack.c.l.b16 %v2023
        %v2040 = vunpack.c.l.b16 %v2024
        %v2041 = vunpack.c.l.b16 %v2025
        %v2042 = vpack.c.b16 %v2039, %v2038
        %v2043 = vpack.c.b16 %v2041, %v2040
        %2046 = vmatprep.subr.bf16.mxu0 0
        %2047 = vmatpush1.bf16.msra.mxu0 %v2042
        %2048 = vmatprep.subr.bf16.mxu0 0
        %2049 = vmatpush1.bf16.msra.mxu0 %v2043
        %2050 = vmatprep.subr.bf16.mxu0 0
        %2051 = vmatpush1.bf16.msra.mxu0 0
        %2052 = vmatprep.subr.bf16.mxu0 0
        %2053 = vmatpush1.bf16.msra.mxu0 0
        %2054 = vmatprep.subr.bf16.mxu0 0
        %2055 = vmatpush1.bf16.msra.mxu0 0
        %2056 = vmatprep.subr.bf16.mxu0 0
        %2057 = vmatpush1.bf16.msra.mxu0 0
        %2058 = vmatprep.subr.bf16.mxu0 0
        %2059 = vmatpush1.bf16.msra.mxu0 0
        %2060 = vmatprep.subr.bf16.mxu0 0
        %2061 = vmatpush1.bf16.msra.mxu0 0
        %2062 = vmatprep.subr.bf16.mxu0 0
        %2063 = vmatpush1.bf16.msra.mxu0 0
        %2064 = vmatprep.subr.bf16.mxu0 0
        %2065 = vmatpush1.bf16.msra.mxu0 0
        %2066 = vmatprep.subr.bf16.mxu0 0
        %2067 = vmatpush1.bf16.msra.mxu0 0
        %2068 = vmatprep.subr.bf16.mxu0 0
        %2069 = vmatpush1.bf16.msra.mxu0 0
        %2070 = vmatprep.subr.bf16.mxu0 0
        %2071 = vmatpush1.bf16.msra.mxu0 0
        %2072 = vmatprep.subr.bf16.mxu0 0
        %2073 = vmatpush1.bf16.msra.mxu0 0
        %2074 = vmatprep.subr.bf16.mxu0 0
        %2075 = vmatpush1.bf16.msra.mxu0 0
        %2076 = vmatprep.subr.bf16.mxu0 0
        %2077 = vmatpush1.bf16.msra.mxu0 0
        %2078 = vmatprep.mubr.bf16.mxu0 0
        %2079 = vmatmul.mubr.bf16.gmra.mrb[0].mxu0 %v1500
        %v2080 = vpop.f32.mrb[0].mxu0
        %v2081 = vadd.f32 %v2032, %v2080
        %v2082 = vpop.f32.mrb[0].mxu0
        %v2083 = vpop.f32.mrb[0].mxu0
        %v2084 = vadd.f32 %v2032, %v2083
        %v2085 = vpop.f32.mrb[0].mxu0
        %2086 = vdwg.mxu0
        %v2087 = vpack.c.bf16 %v1949, %v1949
        %v2088 = vpack.c.bf16 %v1952, %v1952
        %v2089 = vpack.c.bf16 %v2015, %v2015
        %v2090 = vpack.c.bf16 %v2018, %v2018
        %v2092 = vsel %vm1675, %v2087, 0
        %v2095 = vsel %vm1675, %v2089, 0
        %2097 = vmatprep.subr.bf16.mxu0 0
        %2098 = vmatpush1.bf16.xpose.msra.mxu0 %v2095
        %2099 = vmatprep.subr.bf16.mxu0 0
        %2100 = vmatpush1.bf16.xpose.msra.mxu0 0
        %2101 = vmatprep.subr.bf16.mxu0 0
        %2102 = vmatpush1.bf16.xpose.msra.mxu0 0
        %2103 = vmatprep.subr.bf16.mxu0 0
        %2104 = vmatpush1.bf16.xpose.msra.mxu0 0
        %2105 = vmatprep.subr.bf16.mxu0 0
        %2106 = vmatpush1.bf16.xpose.msra.mxu0 0
        %2107 = vmatprep.subr.bf16.mxu0 0
        %2108 = vmatpush1.bf16.xpose.msra.mxu0 0
        %2109 = vmatprep.subr.bf16.mxu0 0
        %2110 = vmatpush1.bf16.xpose.msra.mxu0 0
        %2111 = vmatprep.subr.bf16.mxu0 0
        %2112 = vmatpush1.bf16.xpose.msra.mxu0 0
        %2113 = vmatprep.subr.bf16.mxu0 0
        %2114 = vmatpush1.bf16.xpose.msra.mxu0 0
        %2115 = vmatprep.subr.bf16.mxu0 0
        %2116 = vmatpush1.bf16.xpose.msra.mxu0 0
        %2117 = vmatprep.subr.bf16.mxu0 0
        %2118 = vmatpush1.bf16.xpose.msra.mxu0 0
        %2119 = vmatprep.subr.bf16.mxu0 0
        %2120 = vmatpush1.bf16.xpose.msra.mxu0 0
        %2121 = vmatprep.subr.bf16.mxu0 0
        %2122 = vmatpush1.bf16.xpose.msra.mxu0 0
        %2123 = vmatprep.subr.bf16.mxu0 0
        %2124 = vmatpush1.bf16.xpose.msra.mxu0 0
        %2125 = vmatprep.subr.bf16.mxu0 0
        %2126 = vmatpush1.bf16.xpose.msra.mxu0 0
        %2127 = vmatprep.subr.bf16.mxu0 0
        %2128 = vmatpush1.bf16.xpose.msra.mxu0 0
        %2129 = vmatprep.mubr.bf16.mxu0 0
        %2130 = vmatmul.mubr.bf16.gmra.mrb[0].mxu0 %v2092
        %v2131 = vpop.f32.mrb[0].mxu0
        %v2132 = vadd.f32 %v1419, %v2131
        %v2133 = vpop.f32.mrb[0].mxu0
        %v2134 = vpop.f32.mrb[0].mxu0
        %v2135 = vpop.f32.mrb[0].mxu0
        %2136 = vdwg.mxu0
        %v2138 = vsel %vm1675, %v2088, 0
        %v2141 = vsel %vm1675, %v2090, 0
        %2143 = vmatprep.subr.bf16.mxu0 0
        %2144 = vmatpush1.bf16.xpose.msra.mxu0 %v2141
        %2145 = vmatprep.subr.bf16.mxu0 0
        %2146 = vmatpush1.bf16.xpose.msra.mxu0 0
        %2147 = vmatprep.subr.bf16.mxu0 0
        %2148 = vmatpush1.bf16.xpose.msra.mxu0 0
        %2149 = vmatprep.subr.bf16.mxu0 0
        %2150 = vmatpush1.bf16.xpose.msra.mxu0 0
        %2151 = vmatprep.subr.bf16.mxu0 0
        %2152 = vmatpush1.bf16.xpose.msra.mxu0 0
        %2153 = vmatprep.subr.bf16.mxu0 0
        %2154 = vmatpush1.bf16.xpose.msra.mxu0 0
        %2155 = vmatprep.subr.bf16.mxu0 0
        %2156 = vmatpush1.bf16.xpose.msra.mxu0 0
        %2157 = vmatprep.subr.bf16.mxu0 0
        %2158 = vmatpush1.bf16.xpose.msra.mxu0 0
        %2159 = vmatprep.subr.bf16.mxu0 0
        %2160 = vmatpush1.bf16.xpose.msra.mxu0 0
        %2161 = vmatprep.subr.bf16.mxu0 0
        %2162 = vmatpush1.bf16.xpose.msra.mxu0 0
        %2163 = vmatprep.subr.bf16.mxu0 0
        %2164 = vmatpush1.bf16.xpose.msra.mxu0 0
        %2165 = vmatprep.subr.bf16.mxu0 0
        %2166 = vmatpush1.bf16.xpose.msra.mxu0 0
        %2167 = vmatprep.subr.bf16.mxu0 0
        %2168 = vmatpush1.bf16.xpose.msra.mxu0 0
        %2169 = vmatprep.subr.bf16.mxu0 0
        %2170 = vmatpush1.bf16.xpose.msra.mxu0 0
        %2171 = vmatprep.subr.bf16.mxu0 0
        %2172 = vmatpush1.bf16.xpose.msra.mxu0 0
        %2173 = vmatprep.subr.bf16.mxu0 0
        %2174 = vmatpush1.bf16.xpose.msra.mxu0 0
        %2175 = vmatprep.mubr.bf16.mxu0 0
        %2176 = vmatmul.mubr.bf16.gmra.mrb[0].mxu0 %v2138
        %v2177 = vpop.f32.mrb[0].mxu0
        %v2178 = vadd.f32 %v1420, %v2177
        %v2179 = vpop.f32.mrb[0].mxu0
        %v2180 = vpop.f32.mrb[0].mxu0
        %v2181 = vpop.f32.mrb[0].mxu0
        %2182 = vdwg.mxu0
        %v2183 = vsel %vm1675, %v2132, -inf
        %2184 = vmax.xlane.f32.xlu0 %v2183
        %v2185 = vpop.xlane.xlu0 %2184
        %v2186 = vsel %vm1675, %v2178, -inf
        %2187 = vmax.xlane.f32.xlu0 %v2186
        %v2188 = vpop.xlane.xlu0 %2187
        %v2189 = vsub.f32 %v2132, %v2185
        %v2190 = vsub.f32 %v2178, %v2188
        %v2191 = vmul.f32 %v2189, 1.442695
        %v2192 = vpow.pop %v2191
        %v2193 = vmul.f32 %v2190, 1.442695
        %v2194 = vpow.pop %v2193
        %v2195 = vsel %vm1675, %v2192, 0.0
        %2196 = vadd.xlane.f32.xlu0 %v2195
        %v2197 = vpop.xlane.xlu0 %2196
        %v2198 = vsel %vm1675, %v2194, 0.0
        %2199 = vadd.xlane.f32.xlu0 %v2198
        %v2200 = vpop.xlane.xlu0 %2199
        %v2201 = vrcp.pop %v2197
        %v2202 = vrcp.pop %v2200
        %v2203 = vmul.f32 %v2192, %v2201
        %v2204 = vmul.f32 %v2194, %v2202
        %v2205 = vpack.c.bf16 %v2203, %v2203
        %v2206 = vpack.c.bf16 %v2204, %v2204
        %v2207 = vpack.c.bf16 %v2081, %v2081
        %v2208 = vpack.c.bf16 %v2084, %v2084
        %v2210 = vsel %vm1675, %v2205, 0
        %v2213 = vsel %vm1797, %v2207, 0
        %2215 = vmatprep.subr.bf16.mxu0 0
        %2216 = vmatpush1.bf16.msra.mxu0 %v2213
        %2217 = vmatprep.subr.bf16.mxu0 0
        %2218 = vmatpush1.bf16.msra.mxu0 0
        %2219 = vmatprep.subr.bf16.mxu0 0
        %2220 = vmatpush1.bf16.msra.mxu0 0
        %2221 = vmatprep.subr.bf16.mxu0 0
        %2222 = vmatpush1.bf16.msra.mxu0 0
        %2223 = vmatprep.subr.bf16.mxu0 0
        %2224 = vmatpush1.bf16.msra.mxu0 0
        %2225 = vmatprep.subr.bf16.mxu0 0
        %2226 = vmatpush1.bf16.msra.mxu0 0
        %2227 = vmatprep.subr.bf16.mxu0 0
        %2228 = vmatpush1.bf16.msra.mxu0 0
        %2229 = vmatprep.subr.bf16.mxu0 0
        %2230 = vmatpush1.bf16.msra.mxu0 0
        %2231 = vmatprep.subr.bf16.mxu0 0
        %2232 = vmatpush1.bf16.msra.mxu0 0
        %2233 = vmatprep.subr.bf16.mxu0 0
        %2234 = vmatpush1.bf16.msra.mxu0 0
        %2235 = vmatprep.subr.bf16.mxu0 0
        %2236 = vmatpush1.bf16.msra.mxu0 0
        %2237 = vmatprep.subr.bf16.mxu0 0
        %2238 = vmatpush1.bf16.msra.mxu0 0
        %2239 = vmatprep.subr.bf16.mxu0 0
        %2240 = vmatpush1.bf16.msra.mxu0 0
        %2241 = vmatprep.subr.bf16.mxu0 0
        %2242 = vmatpush1.bf16.msra.mxu0 0
        %2243 = vmatprep.subr.bf16.mxu0 0
        %2244 = vmatpush1.bf16.msra.mxu0 0
        %2245 = vmatprep.subr.bf16.mxu0 0
        %2246 = vmatpush1.bf16.msra.mxu0 0
        %2247 = vmatprep.mubr.bf16.mxu0 0
        %2248 = vmatmul.mubr.bf16.gmra.mrb[0].mxu0 %v2210
        %v2249 = vpop.f32.mrb[0].mxu0
        %v2250 = vadd.f32 0.0, %v2249
        %v2251 = vpop.f32.mrb[0].mxu0
        %v2252 = vpop.f32.mrb[0].mxu0
        %v2253 = vpop.f32.mrb[0].mxu0
        %2254 = vdwg.mxu0
        %v2256 = vsel %vm1675, %v2206, 0
        %v2259 = vsel %vm1797, %v2208, 0
        %2261 = vmatprep.subr.bf16.mxu0 0
        %2262 = vmatpush1.bf16.msra.mxu0 %v2259
        %2263 = vmatprep.subr.bf16.mxu0 0
        %2264 = vmatpush1.bf16.msra.mxu0 0
        %2265 = vmatprep.subr.bf16.mxu0 0
        %2266 = vmatpush1.bf16.msra.mxu0 0
        %2267 = vmatprep.subr.bf16.mxu0 0
        %2268 = vmatpush1.bf16.msra.mxu0 0
        %2269 = vmatprep.subr.bf16.mxu0 0
        %2270 = vmatpush1.bf16.msra.mxu0 0
        %2271 = vmatprep.subr.bf16.mxu0 0
        %2272 = vmatpush1.bf16.msra.mxu0 0
        %2273 = vmatprep.subr.bf16.mxu0 0
        %2274 = vmatpush1.bf16.msra.mxu0 0
        %2275 = vmatprep.subr.bf16.mxu0 0
        %2276 = vmatpush1.bf16.msra.mxu0 0
        %2277 = vmatprep.subr.bf16.mxu0 0
        %2278 = vmatpush1.bf16.msra.mxu0 0
        %2279 = vmatprep.subr.bf16.mxu0 0
        %2280 = vmatpush1.bf16.msra.mxu0 0
        %2281 = vmatprep.subr.bf16.mxu0 0
        %2282 = vmatpush1.bf16.msra.mxu0 0
        %2283 = vmatprep.subr.bf16.mxu0 0
        %2284 = vmatpush1.bf16.msra.mxu0 0
        %2285 = vmatprep.subr.bf16.mxu0 0
        %2286 = vmatpush1.bf16.msra.mxu0 0
        %2287 = vmatprep.subr.bf16.mxu0 0
        %2288 = vmatpush1.bf16.msra.mxu0 0
        %2289 = vmatprep.subr.bf16.mxu0 0
        %2290 = vmatpush1.bf16.msra.mxu0 0
        %2291 = vmatprep.subr.bf16.mxu0 0
        %2292 = vmatpush1.bf16.msra.mxu0 0
        %2293 = vmatprep.mubr.bf16.mxu0 0
        %2294 = vmatmul.mubr.bf16.gmra.mrb[0].mxu0 %v2256
        %v2295 = vpop.f32.mrb[0].mxu0
        %v2296 = vadd.f32 0.0, %v2295
        %v2297 = vpop.f32.mrb[0].mxu0
        %v2298 = vpop.f32.mrb[0].mxu0
        %v2299 = vpop.f32.mrb[0].mxu0
        %2300 = vdwg.mxu0
        %v2301 = vpack.c.bf16 %v2296, %v2250
        %s2302 = scalar_lea.vmem %s1300, 4
        %v2303 = vld [vmem:[%s2302] sm:$0xf]
        %v2305 = vsel %vm1675, %v2301, 0
        %v2308 = vsel %vm1797, %v2303, 0
        %2310 = vmatprep.subr.bf16.mxu0 0
        %2311 = vmatpush1.bf16.msra.mxu0 %v2308
        %2312 = vmatprep.subr.bf16.mxu0 0
        %2313 = vmatpush1.bf16.msra.mxu0 0
        %2314 = vmatprep.subr.bf16.mxu0 0
        %2315 = vmatpush1.bf16.msra.mxu0 0
        %2316 = vmatprep.subr.bf16.mxu0 0
        %2317 = vmatpush1.bf16.msra.mxu0 0
        %2318 = vmatprep.subr.bf16.mxu0 0
        %2319 = vmatpush1.bf16.msra.mxu0 0
        %2320 = vmatprep.subr.bf16.mxu0 0
        %2321 = vmatpush1.bf16.msra.mxu0 0
        %2322 = vmatprep.subr.bf16.mxu0 0
        %2323 = vmatpush1.bf16.msra.mxu0 0
        %2324 = vmatprep.subr.bf16.mxu0 0
        %2325 = vmatpush1.bf16.msra.mxu0 0
        %2326 = vmatprep.subr.bf16.mxu0 0
        %2327 = vmatpush1.bf16.msra.mxu0 0
        %2328 = vmatprep.subr.bf16.mxu0 0
        %2329 = vmatpush1.bf16.msra.mxu0 0
        %2330 = vmatprep.subr.bf16.mxu0 0
        %2331 = vmatpush1.bf16.msra.mxu0 0
        %2332 = vmatprep.subr.bf16.mxu0 0
        %2333 = vmatpush1.bf16.msra.mxu0 0
        %2334 = vmatprep.subr.bf16.mxu0 0
        %2335 = vmatpush1.bf16.msra.mxu0 0
        %2336 = vmatprep.subr.bf16.mxu0 0
        %2337 = vmatpush1.bf16.msra.mxu0 0
        %2338 = vmatprep.subr.bf16.mxu0 0
        %2339 = vmatpush1.bf16.msra.mxu0 0
        %2340 = vmatprep.subr.bf16.mxu0 0
        %2341 = vmatpush1.bf16.msra.mxu0 0
        %2342 = vmatprep.mubr.bf16.mxu0 0
        %2343 = vmatmul.mubr.bf16.gmra.mrb[0].mxu0 %v2305
        %v2344 = vpop.f32.mrb[0].mxu0
        %v2345 = vadd.f32 0.0, %v2344
        %v2346 = vpop.f32.mrb[0].mxu0
        %v2347 = vpop.f32.mrb[0].mxu0
        %v2348 = vadd.f32 0.0, %v2347
        %v2349 = vpop.f32.mrb[0].mxu0
        %2350 = vdwg.mxu0
        %v2352 = vsel %vm1675, %v1887, 0
        %v2355 = vsel %vm1797, %v1888, 0
        %2357 = vmatprep.subr.bf16.mxu0 0
        %2358 = vmatpush1.bf16.msra.mxu0 %v2355
        %2359 = vmatprep.subr.bf16.mxu0 0
        %2360 = vmatpush1.bf16.msra.mxu0 0
        %2361 = vmatprep.subr.bf16.mxu0 0
        %2362 = vmatpush1.bf16.msra.mxu0 0
        %2363 = vmatprep.subr.bf16.mxu0 0
        %2364 = vmatpush1.bf16.msra.mxu0 0
        %2365 = vmatprep.subr.bf16.mxu0 0
        %2366 = vmatpush1.bf16.msra.mxu0 0
        %2367 = vmatprep.subr.bf16.mxu0 0
        %2368 = vmatpush1.bf16.msra.mxu0 0
        %2369 = vmatprep.subr.bf16.mxu0 0
        %2370 = vmatpush1.bf16.msra.mxu0 0
        %2371 = vmatprep.subr.bf16.mxu0 0
        %2372 = vmatpush1.bf16.msra.mxu0 0
        %2373 = vmatprep.subr.bf16.mxu0 0
        %2374 = vmatpush1.bf16.msra.mxu0 0
        %2375 = vmatprep.subr.bf16.mxu0 0
        %2376 = vmatpush1.bf16.msra.mxu0 0
        %2377 = vmatprep.subr.bf16.mxu0 0
        %2378 = vmatpush1.bf16.msra.mxu0 0
        %2379 = vmatprep.subr.bf16.mxu0 0
        %2380 = vmatpush1.bf16.msra.mxu0 0
        %2381 = vmatprep.subr.bf16.mxu0 0
        %2382 = vmatpush1.bf16.msra.mxu0 0
        %2383 = vmatprep.subr.bf16.mxu0 0
        %2384 = vmatpush1.bf16.msra.mxu0 0
        %2385 = vmatprep.subr.bf16.mxu0 0
        %2386 = vmatpush1.bf16.msra.mxu0 0
        %2387 = vmatprep.subr.bf16.mxu0 0
        %2388 = vmatpush1.bf16.msra.mxu0 0
        %2389 = vmatprep.mubr.bf16.mxu0 0
        %2390 = vmatmul.mubr.bf16.gmra.mrb[0].mxu0 %v2352
        %v2391 = vpop.f32.mrb[0].mxu0
        %v2392 = vadd.f32 %v2345, %v2391
        %v2393 = vpop.f32.mrb[0].mxu0
        %v2394 = vpop.f32.mrb[0].mxu0
        %v2395 = vadd.f32 %v2348, %v2394
        %v2396 = vpop.f32.mrb[0].mxu0
        %2397 = vdwg.mxu0
        %s2398 = scalar_lea.vmem %s1273, 32
        %v2399 = vld [vmem:[%s2398] sm:$0xf]
        %v2400 = vld [vmem:[%s2398 + $0x4] sm:$0xf]
        %v2401 = vld [vmem:[%s2398 + $0x8] sm:$0xf]
        %v2402 = vld [vmem:[%s2398 + $0xc] sm:$0xf]
        %s2403 = scalar_lea.vmem %s1277, 2
        %v2404 = vld [vmem:[%s2403] sm:$0x1]
        %v2406 = vlaneseq
        %v2407 = vshrl.u32 %v2406, 7
        %v2408 = vsub.s32 0, %v2407
        %v2409 = vrot.slane %v2404, %v2408
        %v2415 = vunpack.c.l.b16 %v2399
        %v2416 = vunpack.c.l.b16 %v2400
        %v2417 = vunpack.c.l.b16 %v2401
        %v2418 = vunpack.c.l.b16 %v2402
        %v2419 = vpack.c.b16 %v2416, %v2415
        %v2420 = vpack.c.b16 %v2418, %v2417
        %2423 = vmatprep.subr.bf16.mxu0 0
        %2424 = vmatpush1.bf16.msra.mxu0 %v2419
        %2425 = vmatprep.subr.bf16.mxu0 0
        %2426 = vmatpush1.bf16.msra.mxu0 %v2420
        %2427 = vmatprep.subr.bf16.mxu0 0
        %2428 = vmatpush1.bf16.msra.mxu0 0
        %2429 = vmatprep.subr.bf16.mxu0 0
        %2430 = vmatpush1.bf16.msra.mxu0 0
        %2431 = vmatprep.subr.bf16.mxu0 0
        %2432 = vmatpush1.bf16.msra.mxu0 0
        %2433 = vmatprep.subr.bf16.mxu0 0
        %2434 = vmatpush1.bf16.msra.mxu0 0
        %2435 = vmatprep.subr.bf16.mxu0 0
        %2436 = vmatpush1.bf16.msra.mxu0 0
        %2437 = vmatprep.subr.bf16.mxu0 0
        %2438 = vmatpush1.bf16.msra.mxu0 0
        %2439 = vmatprep.subr.bf16.mxu0 0
        %2440 = vmatpush1.bf16.msra.mxu0 0
        %2441 = vmatprep.subr.bf16.mxu0 0
        %2442 = vmatpush1.bf16.msra.mxu0 0
        %2443 = vmatprep.subr.bf16.mxu0 0
        %2444 = vmatpush1.bf16.msra.mxu0 0
        %2445 = vmatprep.subr.bf16.mxu0 0
        %2446 = vmatpush1.bf16.msra.mxu0 0
        %2447 = vmatprep.subr.bf16.mxu0 0
        %2448 = vmatpush1.bf16.msra.mxu0 0
        %2449 = vmatprep.subr.bf16.mxu0 0
        %2450 = vmatpush1.bf16.msra.mxu0 0
        %2451 = vmatprep.subr.bf16.mxu0 0
        %2452 = vmatpush1.bf16.msra.mxu0 0
        %2453 = vmatprep.subr.bf16.mxu0 0
        %2454 = vmatpush1.bf16.msra.mxu0 0
        %2455 = vmatprep.mubr.bf16.mxu0 0
        %2456 = vmatmul.mubr.bf16.gmra.mrb[0].mxu0 %v1500
        %v2457 = vpop.f32.mrb[0].mxu0
        %v2458 = vadd.f32 %v2409, %v2457
        %v2459 = vpop.f32.mrb[0].mxu0
        %v2460 = vpop.f32.mrb[0].mxu0
        %v2461 = vadd.f32 %v2409, %v2460
        %v2462 = vpop.f32.mrb[0].mxu0
        %2463 = vdwg.mxu0
        %s2464 = scalar_lea.vmem %s1282, 32
        %v2465 = vld [vmem:[%s2464] sm:$0xf]
        %v2466 = vld [vmem:[%s2464 + $0x4] sm:$0xf]
        %v2467 = vld [vmem:[%s2464 + $0x8] sm:$0xf]
        %v2468 = vld [vmem:[%s2464 + $0xc] sm:$0xf]
        %s2469 = scalar_lea.vmem %s1286, 2
        %v2470 = vld [vmem:[%s2469] sm:$0x1]
        %v2472 = vlaneseq
        %v2473 = vshrl.u32 %v2472, 7
        %v2474 = vsub.s32 0, %v2473
        %v2475 = vrot.slane %v2470, %v2474
        %v2481 = vunpack.c.l.b16 %v2465
        %v2482 = vunpack.c.l.b16 %v2466
        %v2483 = vunpack.c.l.b16 %v2467
        %v2484 = vunpack.c.l.b16 %v2468
        %v2485 = vpack.c.b16 %v2482, %v2481
        %v2486 = vpack.c.b16 %v2484, %v2483
        %2489 = vmatprep.subr.bf16.mxu0 0
        %2490 = vmatpush1.bf16.msra.mxu0 %v2485
        %2491 = vmatprep.subr.bf16.mxu0 0
        %2492 = vmatpush1.bf16.msra.mxu0 %v2486
        %2493 = vmatprep.subr.bf16.mxu0 0
        %2494 = vmatpush1.bf16.msra.mxu0 0
        %2495 = vmatprep.subr.bf16.mxu0 0
        %2496 = vmatpush1.bf16.msra.mxu0 0
        %2497 = vmatprep.subr.bf16.mxu0 0
        %2498 = vmatpush1.bf16.msra.mxu0 0
        %2499 = vmatprep.subr.bf16.mxu0 0
        %2500 = vmatpush1.bf16.msra.mxu0 0
        %2501 = vmatprep.subr.bf16.mxu0 0
        %2502 = vmatpush1.bf16.msra.mxu0 0
        %2503 = vmatprep.subr.bf16.mxu0 0
        %2504 = vmatpush1.bf16.msra.mxu0 0
        %2505 = vmatprep.subr.bf16.mxu0 0
        %2506 = vmatpush1.bf16.msra.mxu0 0
        %2507 = vmatprep.subr.bf16.mxu0 0
        %2508 = vmatpush1.bf16.msra.mxu0 0
        %2509 = vmatprep.subr.bf16.mxu0 0
        %2510 = vmatpush1.bf16.msra.mxu0 0
        %2511 = vmatprep.subr.bf16.mxu0 0
        %2512 = vmatpush1.bf16.msra.mxu0 0
        %2513 = vmatprep.subr.bf16.mxu0 0
        %2514 = vmatpush1.bf16.msra.mxu0 0
        %2515 = vmatprep.subr.bf16.mxu0 0
        %2516 = vmatpush1.bf16.msra.mxu0 0
        %2517 = vmatprep.subr.bf16.mxu0 0
        %2518 = vmatpush1.bf16.msra.mxu0 0
        %2519 = vmatprep.subr.bf16.mxu0 0
        %2520 = vmatpush1.bf16.msra.mxu0 0
        %2521 = vmatprep.mubr.bf16.mxu0 0
        %2522 = vmatmul.mubr.bf16.gmra.mrb[0].mxu0 %v1500
        %v2523 = vpop.f32.mrb[0].mxu0
        %v2524 = vadd.f32 %v2475, %v2523
        %v2525 = vpop.f32.mrb[0].mxu0
        %v2526 = vpop.f32.mrb[0].mxu0
        %v2527 = vadd.f32 %v2475, %v2526
        %v2528 = vpop.f32.mrb[0].mxu0
        %2529 = vdwg.mxu0
        %s2530 = scalar_lea.vmem %s1291, 32
        %v2531 = vld [vmem:[%s2530] sm:$0xf]
        %v2532 = vld [vmem:[%s2530 + $0x4] sm:$0xf]
        %v2533 = vld [vmem:[%s2530 + $0x8] sm:$0xf]
        %v2534 = vld [vmem:[%s2530 + $0xc] sm:$0xf]
        %s2535 = scalar_lea.vmem %s1295, 2
        %v2536 = vld [vmem:[%s2535] sm:$0x1]
        %v2538 = vlaneseq
        %v2539 = vshrl.u32 %v2538, 7
        %v2540 = vsub.s32 0, %v2539
        %v2541 = vrot.slane %v2536, %v2540
        %v2547 = vunpack.c.l.b16 %v2531
        %v2548 = vunpack.c.l.b16 %v2532
        %v2549 = vunpack.c.l.b16 %v2533
        %v2550 = vunpack.c.l.b16 %v2534
        %v2551 = vpack.c.b16 %v2548, %v2547
        %v2552 = vpack.c.b16 %v2550, %v2549
        %2555 = vmatprep.subr.bf16.mxu0 0
        %2556 = vmatpush1.bf16.msra.mxu0 %v2551
        %2557 = vmatprep.subr.bf16.mxu0 0
        %2558 = vmatpush1.bf16.msra.mxu0 %v2552
        %2559 = vmatprep.subr.bf16.mxu0 0
        %2560 = vmatpush1.bf16.msra.mxu0 0
        %2561 = vmatprep.subr.bf16.mxu0 0
        %2562 = vmatpush1.bf16.msra.mxu0 0
        %2563 = vmatprep.subr.bf16.mxu0 0
        %2564 = vmatpush1.bf16.msra.mxu0 0
        %2565 = vmatprep.subr.bf16.mxu0 0
        %2566 = vmatpush1.bf16.msra.mxu0 0
        %2567 = vmatprep.subr.bf16.mxu0 0
        %2568 = vmatpush1.bf16.msra.mxu0 0
        %2569 = vmatprep.subr.bf16.mxu0 0
        %2570 = vmatpush1.bf16.msra.mxu0 0
        %2571 = vmatprep.subr.bf16.mxu0 0
        %2572 = vmatpush1.bf16.msra.mxu0 0
        %2573 = vmatprep.subr.bf16.mxu0 0
        %2574 = vmatpush1.bf16.msra.mxu0 0
        %2575 = vmatprep.subr.bf16.mxu0 0
        %2576 = vmatpush1.bf16.msra.mxu0 0
        %2577 = vmatprep.subr.bf16.mxu0 0
        %2578 = vmatpush1.bf16.msra.mxu0 0
        %2579 = vmatprep.subr.bf16.mxu0 0
        %2580 = vmatpush1.bf16.msra.mxu0 0
        %2581 = vmatprep.subr.bf16.mxu0 0
        %2582 = vmatpush1.bf16.msra.mxu0 0
        %2583 = vmatprep.subr.bf16.mxu0 0
        %2584 = vmatpush1.bf16.msra.mxu0 0
        %2585 = vmatprep.subr.bf16.mxu0 0
        %2586 = vmatpush1.bf16.msra.mxu0 0
        %2587 = vmatprep.mubr.bf16.mxu0 0
        %2588 = vmatmul.mubr.bf16.gmra.mrb[0].mxu0 %v1500
        %v2589 = vpop.f32.mrb[0].mxu0
        %v2590 = vadd.f32 %v2541, %v2589
        %v2591 = vpop.f32.mrb[0].mxu0
        %v2592 = vpop.f32.mrb[0].mxu0
        %v2593 = vadd.f32 %v2541, %v2592
        %v2594 = vpop.f32.mrb[0].mxu0
        %2595 = vdwg.mxu0
        %v2596 = vpack.c.bf16 %v2458, %v2458
        %v2597 = vpack.c.bf16 %v2461, %v2461
        %v2598 = vpack.c.bf16 %v2524, %v2524
        %v2599 = vpack.c.bf16 %v2527, %v2527
        %v2601 = vsel %vm1675, %v2596, 0
        %v2604 = vsel %vm1675, %v2598, 0
        %2606 = vmatprep.subr.bf16.mxu0 0
        %2607 = vmatpush1.bf16.xpose.msra.mxu0 %v2604
        %2608 = vmatprep.subr.bf16.mxu0 0
        %2609 = vmatpush1.bf16.xpose.msra.mxu0 0
        %2610 = vmatprep.subr.bf16.mxu0 0
        %2611 = vmatpush1.bf16.xpose.msra.mxu0 0
        %2612 = vmatprep.subr.bf16.mxu0 0
        %2613 = vmatpush1.bf16.xpose.msra.mxu0 0
        %2614 = vmatprep.subr.bf16.mxu0 0
        %2615 = vmatpush1.bf16.xpose.msra.mxu0 0
        %2616 = vmatprep.subr.bf16.mxu0 0
        %2617 = vmatpush1.bf16.xpose.msra.mxu0 0
        %2618 = vmatprep.subr.bf16.mxu0 0
        %2619 = vmatpush1.bf16.xpose.msra.mxu0 0
        %2620 = vmatprep.subr.bf16.mxu0 0
        %2621 = vmatpush1.bf16.xpose.msra.mxu0 0
        %2622 = vmatprep.subr.bf16.mxu0 0
        %2623 = vmatpush1.bf16.xpose.msra.mxu0 0
        %2624 = vmatprep.subr.bf16.mxu0 0
        %2625 = vmatpush1.bf16.xpose.msra.mxu0 0
        %2626 = vmatprep.subr.bf16.mxu0 0
        %2627 = vmatpush1.bf16.xpose.msra.mxu0 0
        %2628 = vmatprep.subr.bf16.mxu0 0
        %2629 = vmatpush1.bf16.xpose.msra.mxu0 0
        %2630 = vmatprep.subr.bf16.mxu0 0
        %2631 = vmatpush1.bf16.xpose.msra.mxu0 0
        %2632 = vmatprep.subr.bf16.mxu0 0
        %2633 = vmatpush1.bf16.xpose.msra.mxu0 0
        %2634 = vmatprep.subr.bf16.mxu0 0
        %2635 = vmatpush1.bf16.xpose.msra.mxu0 0
        %2636 = vmatprep.subr.bf16.mxu0 0
        %2637 = vmatpush1.bf16.xpose.msra.mxu0 0
        %2638 = vmatprep.mubr.bf16.mxu0 0
        %2639 = vmatmul.mubr.bf16.gmra.mrb[0].mxu0 %v2601
        %v2640 = vpop.f32.mrb[0].mxu0
        %v2641 = vadd.f32 %v1419, %v2640
        %v2642 = vpop.f32.mrb[0].mxu0
        %v2643 = vpop.f32.mrb[0].mxu0
        %v2644 = vpop.f32.mrb[0].mxu0
        %2645 = vdwg.mxu0
        %v2647 = vsel %vm1675, %v2597, 0
        %v2650 = vsel %vm1675, %v2599, 0
        %2652 = vmatprep.subr.bf16.mxu0 0
        %2653 = vmatpush1.bf16.xpose.msra.mxu0 %v2650
        %2654 = vmatprep.subr.bf16.mxu0 0
        %2655 = vmatpush1.bf16.xpose.msra.mxu0 0
        %2656 = vmatprep.subr.bf16.mxu0 0
        %2657 = vmatpush1.bf16.xpose.msra.mxu0 0
        %2658 = vmatprep.subr.bf16.mxu0 0
        %2659 = vmatpush1.bf16.xpose.msra.mxu0 0
        %2660 = vmatprep.subr.bf16.mxu0 0
        %2661 = vmatpush1.bf16.xpose.msra.mxu0 0
        %2662 = vmatprep.subr.bf16.mxu0 0
        %2663 = vmatpush1.bf16.xpose.msra.mxu0 0
        %2664 = vmatprep.subr.bf16.mxu0 0
        %2665 = vmatpush1.bf16.xpose.msra.mxu0 0
        %2666 = vmatprep.subr.bf16.mxu0 0
        %2667 = vmatpush1.bf16.xpose.msra.mxu0 0
        %2668 = vmatprep.subr.bf16.mxu0 0
        %2669 = vmatpush1.bf16.xpose.msra.mxu0 0
        %2670 = vmatprep.subr.bf16.mxu0 0
        %2671 = vmatpush1.bf16.xpose.msra.mxu0 0
        %2672 = vmatprep.subr.bf16.mxu0 0
        %2673 = vmatpush1.bf16.xpose.msra.mxu0 0
        %2674 = vmatprep.subr.bf16.mxu0 0
        %2675 = vmatpush1.bf16.xpose.msra.mxu0 0
        %2676 = vmatprep.subr.bf16.mxu0 0
        %2677 = vmatpush1.bf16.xpose.msra.mxu0 0
        %2678 = vmatprep.subr.bf16.mxu0 0
        %2679 = vmatpush1.bf16.xpose.msra.mxu0 0
        %2680 = vmatprep.subr.bf16.mxu0 0
        %2681 = vmatpush1.bf16.xpose.msra.mxu0 0
        %2682 = vmatprep.subr.bf16.mxu0 0
        %2683 = vmatpush1.bf16.xpose.msra.mxu0 0
        %2684 = vmatprep.mubr.bf16.mxu0 0
        %2685 = vmatmul.mubr.bf16.gmra.mrb[0].mxu0 %v2647
        %v2686 = vpop.f32.mrb[0].mxu0
        %v2687 = vadd.f32 %v1420, %v2686
        %v2688 = vpop.f32.mrb[0].mxu0
        %v2689 = vpop.f32.mrb[0].mxu0
        %v2690 = vpop.f32.mrb[0].mxu0
        %2691 = vdwg.mxu0
        %v2692 = vsel %vm1675, %v2641, -inf
        %2693 = vmax.xlane.f32.xlu0 %v2692
        %v2694 = vpop.xlane.xlu0 %2693
        %v2695 = vsel %vm1675, %v2687, -inf
        %2696 = vmax.xlane.f32.xlu0 %v2695
        %v2697 = vpop.xlane.xlu0 %2696
        %v2698 = vsub.f32 %v2641, %v2694
        %v2699 = vsub.f32 %v2687, %v2697
        %v2700 = vmul.f32 %v2698, 1.442695
        %v2701 = vpow.pop %v2700
        %v2702 = vmul.f32 %v2699, 1.442695
        %v2703 = vpow.pop %v2702
        %v2704 = vsel %vm1675, %v2701, 0.0
        %2705 = vadd.xlane.f32.xlu0 %v2704
        %v2706 = vpop.xlane.xlu0 %2705
        %v2707 = vsel %vm1675, %v2703, 0.0
        %2708 = vadd.xlane.f32.xlu0 %v2707
        %v2709 = vpop.xlane.xlu0 %2708
        %v2710 = vrcp.pop %v2706
        %v2711 = vrcp.pop %v2709
        %v2712 = vmul.f32 %v2701, %v2710
        %v2713 = vmul.f32 %v2703, %v2711
        %v2714 = vpack.c.bf16 %v2712, %v2712
        %v2715 = vpack.c.bf16 %v2713, %v2713
        %v2716 = vpack.c.bf16 %v2590, %v2590
        %v2717 = vpack.c.bf16 %v2593, %v2593
        %v2719 = vsel %vm1675, %v2714, 0
        %v2722 = vsel %vm1797, %v2716, 0
        %2724 = vmatprep.subr.bf16.mxu0 0
        %2725 = vmatpush1.bf16.msra.mxu0 %v2722
        %2726 = vmatprep.subr.bf16.mxu0 0
        %2727 = vmatpush1.bf16.msra.mxu0 0
        %2728 = vmatprep.subr.bf16.mxu0 0
        %2729 = vmatpush1.bf16.msra.mxu0 0
        %2730 = vmatprep.subr.bf16.mxu0 0
        %2731 = vmatpush1.bf16.msra.mxu0 0
        %2732 = vmatprep.subr.bf16.mxu0 0
        %2733 = vmatpush1.bf16.msra.mxu0 0
        %2734 = vmatprep.subr.bf16.mxu0 0
        %2735 = vmatpush1.bf16.msra.mxu0 0
        %2736 = vmatprep.subr.bf16.mxu0 0
        %2737 = vmatpush1.bf16.msra.mxu0 0
        %2738 = vmatprep.subr.bf16.mxu0 0
        %2739 = vmatpush1.bf16.msra.mxu0 0
        %2740 = vmatprep.subr.bf16.mxu0 0
        %2741 = vmatpush1.bf16.msra.mxu0 0
        %2742 = vmatprep.subr.bf16.mxu0 0
        %2743 = vmatpush1.bf16.msra.mxu0 0
        %2744 = vmatprep.subr.bf16.mxu0 0
        %2745 = vmatpush1.bf16.msra.mxu0 0
        %2746 = vmatprep.subr.bf16.mxu0 0
        %2747 = vmatpush1.bf16.msra.mxu0 0
        %2748 = vmatprep.subr.bf16.mxu0 0
        %2749 = vmatpush1.bf16.msra.mxu0 0
        %2750 = vmatprep.subr.bf16.mxu0 0
        %2751 = vmatpush1.bf16.msra.mxu0 0
        %2752 = vmatprep.subr.bf16.mxu0 0
        %2753 = vmatpush1.bf16.msra.mxu0 0
        %2754 = vmatprep.subr.bf16.mxu0 0
        %2755 = vmatpush1.bf16.msra.mxu0 0
        %2756 = vmatprep.mubr.bf16.mxu0 0
        %2757 = vmatmul.mubr.bf16.gmra.mrb[0].mxu0 %v2719
        %v2758 = vpop.f32.mrb[0].mxu0
        %v2759 = vadd.f32 0.0, %v2758
        %v2760 = vpop.f32.mrb[0].mxu0
        %v2761 = vpop.f32.mrb[0].mxu0
        %v2762 = vpop.f32.mrb[0].mxu0
        %2763 = vdwg.mxu0
        %v2765 = vsel %vm1675, %v2715, 0
        %v2768 = vsel %vm1797, %v2717, 0
        %2770 = vmatprep.subr.bf16.mxu0 0
        %2771 = vmatpush1.bf16.msra.mxu0 %v2768
        %2772 = vmatprep.subr.bf16.mxu0 0
        %2773 = vmatpush1.bf16.msra.mxu0 0
        %2774 = vmatprep.subr.bf16.mxu0 0
        %2775 = vmatpush1.bf16.msra.mxu0 0
        %2776 = vmatprep.subr.bf16.mxu0 0
        %2777 = vmatpush1.bf16.msra.mxu0 0
        %2778 = vmatprep.subr.bf16.mxu0 0
        %2779 = vmatpush1.bf16.msra.mxu0 0
        %2780 = vmatprep.subr.bf16.mxu0 0
        %2781 = vmatpush1.bf16.msra.mxu0 0
        %2782 = vmatprep.subr.bf16.mxu0 0
        %2783 = vmatpush1.bf16.msra.mxu0 0
        %2784 = vmatprep.subr.bf16.mxu0 0
        %2785 = vmatpush1.bf16.msra.mxu0 0
        %2786 = vmatprep.subr.bf16.mxu0 0
        %2787 = vmatpush1.bf16.msra.mxu0 0
        %2788 = vmatprep.subr.bf16.mxu0 0
        %2789 = vmatpush1.bf16.msra.mxu0 0
        %2790 = vmatprep.subr.bf16.mxu0 0
        %2791 = vmatpush1.bf16.msra.mxu0 0
        %2792 = vmatprep.subr.bf16.mxu0 0
        %2793 = vmatpush1.bf16.msra.mxu0 0
        %2794 = vmatprep.subr.bf16.mxu0 0
        %2795 = vmatpush1.bf16.msra.mxu0 0
        %2796 = vmatprep.subr.bf16.mxu0 0
        %2797 = vmatpush1.bf16.msra.mxu0 0
        %2798 = vmatprep.subr.bf16.mxu0 0
        %2799 = vmatpush1.bf16.msra.mxu0 0
        %2800 = vmatprep.subr.bf16.mxu0 0
        %2801 = vmatpush1.bf16.msra.mxu0 0
        %2802 = vmatprep.mubr.bf16.mxu0 0
        %2803 = vmatmul.mubr.bf16.gmra.mrb[0].mxu0 %v2765
        %v2804 = vpop.f32.mrb[0].mxu0
        %v2805 = vadd.f32 0.0, %v2804
        %v2806 = vpop.f32.mrb[0].mxu0
        %v2807 = vpop.f32.mrb[0].mxu0
        %v2808 = vpop.f32.mrb[0].mxu0
        %2809 = vdwg.mxu0
        %v2810 = vpack.c.bf16 %v2805, %v2759
        %s2811 = scalar_lea.vmem %s1300, 8
        %v2812 = vld [vmem:[%s2811] sm:$0xf]
        %v2814 = vsel %vm1675, %v2810, 0
        %v2817 = vsel %vm1797, %v2812, 0
        %2819 = vmatprep.subr.bf16.mxu0 0
        %2820 = vmatpush1.bf16.msra.mxu0 %v2817
        %2821 = vmatprep.subr.bf16.mxu0 0
        %2822 = vmatpush1.bf16.msra.mxu0 0
        %2823 = vmatprep.subr.bf16.mxu0 0
        %2824 = vmatpush1.bf16.msra.mxu0 0
        %2825 = vmatprep.subr.bf16.mxu0 0
        %2826 = vmatpush1.bf16.msra.mxu0 0
        %2827 = vmatprep.subr.bf16.mxu0 0
        %2828 = vmatpush1.bf16.msra.mxu0 0
        %2829 = vmatprep.subr.bf16.mxu0 0
        %2830 = vmatpush1.bf16.msra.mxu0 0
        %2831 = vmatprep.subr.bf16.mxu0 0
        %2832 = vmatpush1.bf16.msra.mxu0 0
        %2833 = vmatprep.subr.bf16.mxu0 0
        %2834 = vmatpush1.bf16.msra.mxu0 0
        %2835 = vmatprep.subr.bf16.mxu0 0
        %2836 = vmatpush1.bf16.msra.mxu0 0
        %2837 = vmatprep.subr.bf16.mxu0 0
        %2838 = vmatpush1.bf16.msra.mxu0 0
        %2839 = vmatprep.subr.bf16.mxu0 0
        %2840 = vmatpush1.bf16.msra.mxu0 0
        %2841 = vmatprep.subr.bf16.mxu0 0
        %2842 = vmatpush1.bf16.msra.mxu0 0
        %2843 = vmatprep.subr.bf16.mxu0 0
        %2844 = vmatpush1.bf16.msra.mxu0 0
        %2845 = vmatprep.subr.bf16.mxu0 0
        %2846 = vmatpush1.bf16.msra.mxu0 0
        %2847 = vmatprep.subr.bf16.mxu0 0
        %2848 = vmatpush1.bf16.msra.mxu0 0
        %2849 = vmatprep.subr.bf16.mxu0 0
        %2850 = vmatpush1.bf16.msra.mxu0 0
        %2851 = vmatprep.mubr.bf16.mxu0 0
        %2852 = vmatmul.mubr.bf16.gmra.mrb[0].mxu0 %v2814
        %v2853 = vpop.f32.mrb[0].mxu0
        %v2854 = vadd.f32 0.0, %v2853
        %v2855 = vpop.f32.mrb[0].mxu0
        %v2856 = vpop.f32.mrb[0].mxu0
        %v2857 = vadd.f32 0.0, %v2856
        %v2858 = vpop.f32.mrb[0].mxu0
        %2859 = vdwg.mxu0
        %v2860 = vadd.f32 %v2392, %v2854
        %v2861 = vadd.f32 %v2395, %v2857
        %s2862 = scalar_lea.vmem %s1273, 48
        %v2863 = vld [vmem:[%s2862] sm:$0xf]
        %v2864 = vld [vmem:[%s2862 + $0x4] sm:$0xf]
        %v2865 = vld [vmem:[%s2862 + $0x8] sm:$0xf]
        %v2866 = vld [vmem:[%s2862 + $0xc] sm:$0xf]
        %s2867 = scalar_lea.vmem %s1277, 3
        %v2868 = vld [vmem:[%s2867] sm:$0x1]
        %v2870 = vlaneseq
        %v2871 = vshrl.u32 %v2870, 7
        %v2872 = vsub.s32 0, %v2871
        %v2873 = vrot.slane %v2868, %v2872
        %v2879 = vunpack.c.l.b16 %v2863
        %v2880 = vunpack.c.l.b16 %v2864
        %v2881 = vunpack.c.l.b16 %v2865
        %v2882 = vunpack.c.l.b16 %v2866
        %v2883 = vpack.c.b16 %v2880, %v2879
        %v2884 = vpack.c.b16 %v2882, %v2881
        %2887 = vmatprep.subr.bf16.mxu0 0
        %2888 = vmatpush1.bf16.msra.mxu0 %v2883
        %2889 = vmatprep.subr.bf16.mxu0 0
        %2890 = vmatpush1.bf16.msra.mxu0 %v2884
        %2891 = vmatprep.subr.bf16.mxu0 0
        %2892 = vmatpush1.bf16.msra.mxu0 0
        %2893 = vmatprep.subr.bf16.mxu0 0
        %2894 = vmatpush1.bf16.msra.mxu0 0
        %2895 = vmatprep.subr.bf16.mxu0 0
        %2896 = vmatpush1.bf16.msra.mxu0 0
        %2897 = vmatprep.subr.bf16.mxu0 0
        %2898 = vmatpush1.bf16.msra.mxu0 0
        %2899 = vmatprep.subr.bf16.mxu0 0
        %2900 = vmatpush1.bf16.msra.mxu0 0
        %2901 = vmatprep.subr.bf16.mxu0 0
        %2902 = vmatpush1.bf16.msra.mxu0 0
        %2903 = vmatprep.subr.bf16.mxu0 0
        %2904 = vmatpush1.bf16.msra.mxu0 0
        %2905 = vmatprep.subr.bf16.mxu0 0
        %2906 = vmatpush1.bf16.msra.mxu0 0
        %2907 = vmatprep.subr.bf16.mxu0 0
        %2908 = vmatpush1.bf16.msra.mxu0 0
        %2909 = vmatprep.subr.bf16.mxu0 0
        %2910 = vmatpush1.bf16.msra.mxu0 0
        %2911 = vmatprep.subr.bf16.mxu0 0
        %2912 = vmatpush1.bf16.msra.mxu0 0
        %2913 = vmatprep.subr.bf16.mxu0 0
        %2914 = vmatpush1.bf16.msra.mxu0 0
        %2915 = vmatprep.subr.bf16.mxu0 0
        %2916 = vmatpush1.bf16.msra.mxu0 0
        %2917 = vmatprep.subr.bf16.mxu0 0
        %2918 = vmatpush1.bf16.msra.mxu0 0
        %2919 = vmatprep.mubr.bf16.mxu0 0
        %2920 = vmatmul.mubr.bf16.gmra.mrb[0].mxu0 %v1500
        %v2921 = vpop.f32.mrb[0].mxu0
        %v2922 = vadd.f32 %v2873, %v2921
        %v2923 = vpop.f32.mrb[0].mxu0
        %v2924 = vpop.f32.mrb[0].mxu0
        %v2925 = vadd.f32 %v2873, %v2924
        %v2926 = vpop.f32.mrb[0].mxu0
        %2927 = vdwg.mxu0
        %s2928 = scalar_lea.vmem %s1282, 48
        %v2929 = vld [vmem:[%s2928] sm:$0xf]
        %v2930 = vld [vmem:[%s2928 + $0x4] sm:$0xf]
        %v2931 = vld [vmem:[%s2928 + $0x8] sm:$0xf]
        %v2932 = vld [vmem:[%s2928 + $0xc] sm:$0xf]
        %s2933 = scalar_lea.vmem %s1286, 3
        %v2934 = vld [vmem:[%s2933] sm:$0x1]
        %v2936 = vlaneseq
        %v2937 = vshrl.u32 %v2936, 7
        %v2938 = vsub.s32 0, %v2937
        %v2939 = vrot.slane %v2934, %v2938
        %v2945 = vunpack.c.l.b16 %v2929
        %v2946 = vunpack.c.l.b16 %v2930
        %v2947 = vunpack.c.l.b16 %v2931
        %v2948 = vunpack.c.l.b16 %v2932
        %v2949 = vpack.c.b16 %v2946, %v2945
        %v2950 = vpack.c.b16 %v2948, %v2947
        %2953 = vmatprep.subr.bf16.mxu0 0
        %2954 = vmatpush1.bf16.msra.mxu0 %v2949
        %2955 = vmatprep.subr.bf16.mxu0 0
        %2956 = vmatpush1.bf16.msra.mxu0 %v2950
        %2957 = vmatprep.subr.bf16.mxu0 0
        %2958 = vmatpush1.bf16.msra.mxu0 0
        %2959 = vmatprep.subr.bf16.mxu0 0
        %2960 = vmatpush1.bf16.msra.mxu0 0
        %2961 = vmatprep.subr.bf16.mxu0 0
        %2962 = vmatpush1.bf16.msra.mxu0 0
        %2963 = vmatprep.subr.bf16.mxu0 0
        %2964 = vmatpush1.bf16.msra.mxu0 0
        %2965 = vmatprep.subr.bf16.mxu0 0
        %2966 = vmatpush1.bf16.msra.mxu0 0
        %2967 = vmatprep.subr.bf16.mxu0 0
        %2968 = vmatpush1.bf16.msra.mxu0 0
        %2969 = vmatprep.subr.bf16.mxu0 0
        %2970 = vmatpush1.bf16.msra.mxu0 0
        %2971 = vmatprep.subr.bf16.mxu0 0
        %2972 = vmatpush1.bf16.msra.mxu0 0
        %2973 = vmatprep.subr.bf16.mxu0 0
        %2974 = vmatpush1.bf16.msra.mxu0 0
        %2975 = vmatprep.subr.bf16.mxu0 0
        %2976 = vmatpush1.bf16.msra.mxu0 0
        %2977 = vmatprep.subr.bf16.mxu0 0
        %2978 = vmatpush1.bf16.msra.mxu0 0
        %2979 = vmatprep.subr.bf16.mxu0 0
        %2980 = vmatpush1.bf16.msra.mxu0 0
        %2981 = vmatprep.subr.bf16.mxu0 0
        %2982 = vmatpush1.bf16.msra.mxu0 0
        %2983 = vmatprep.subr.bf16.mxu0 0
        %2984 = vmatpush1.bf16.msra.mxu0 0
        %2985 = vmatprep.mubr.bf16.mxu0 0
        %2986 = vmatmul.mubr.bf16.gmra.mrb[0].mxu0 %v1500
        %v2987 = vpop.f32.mrb[0].mxu0
        %v2988 = vadd.f32 %v2939, %v2987
        %v2989 = vpop.f32.mrb[0].mxu0
        %v2990 = vpop.f32.mrb[0].mxu0
        %v2991 = vadd.f32 %v2939, %v2990
        %v2992 = vpop.f32.mrb[0].mxu0
        %2993 = vdwg.mxu0
        %s2994 = scalar_lea.vmem %s1291, 48
        %v2995 = vld [vmem:[%s2994] sm:$0xf]
        %v2996 = vld [vmem:[%s2994 + $0x4] sm:$0xf]
        %v2997 = vld [vmem:[%s2994 + $0x8] sm:$0xf]
        %v2998 = vld [vmem:[%s2994 + $0xc] sm:$0xf]
        %s2999 = scalar_lea.vmem %s1295, 3
        %v3000 = vld [vmem:[%s2999] sm:$0x1]
        %v3002 = vlaneseq
        %v3003 = vshrl.u32 %v3002, 7
        %v3004 = vsub.s32 0, %v3003
        %v3005 = vrot.slane %v3000, %v3004
        %v3011 = vunpack.c.l.b16 %v2995
        %v3012 = vunpack.c.l.b16 %v2996
        %v3013 = vunpack.c.l.b16 %v2997
        %v3014 = vunpack.c.l.b16 %v2998
        %v3015 = vpack.c.b16 %v3012, %v3011
        %v3016 = vpack.c.b16 %v3014, %v3013
        %3019 = vmatprep.subr.bf16.mxu0 0
        %3020 = vmatpush1.bf16.msra.mxu0 %v3015
        %3021 = vmatprep.subr.bf16.mxu0 0
        %3022 = vmatpush1.bf16.msra.mxu0 %v3016
        %3023 = vmatprep.subr.bf16.mxu0 0
        %3024 = vmatpush1.bf16.msra.mxu0 0
        %3025 = vmatprep.subr.bf16.mxu0 0
        %3026 = vmatpush1.bf16.msra.mxu0 0
        %3027 = vmatprep.subr.bf16.mxu0 0
        %3028 = vmatpush1.bf16.msra.mxu0 0
        %3029 = vmatprep.subr.bf16.mxu0 0
        %3030 = vmatpush1.bf16.msra.mxu0 0
        %3031 = vmatprep.subr.bf16.mxu0 0
        %3032 = vmatpush1.bf16.msra.mxu0 0
        %3033 = vmatprep.subr.bf16.mxu0 0
        %3034 = vmatpush1.bf16.msra.mxu0 0
        %3035 = vmatprep.subr.bf16.mxu0 0
        %3036 = vmatpush1.bf16.msra.mxu0 0
        %3037 = vmatprep.subr.bf16.mxu0 0
        %3038 = vmatpush1.bf16.msra.mxu0 0
        %3039 = vmatprep.subr.bf16.mxu0 0
        %3040 = vmatpush1.bf16.msra.mxu0 0
        %3041 = vmatprep.subr.bf16.mxu0 0
        %3042 = vmatpush1.bf16.msra.mxu0 0
        %3043 = vmatprep.subr.bf16.mxu0 0
        %3044 = vmatpush1.bf16.msra.mxu0 0
        %3045 = vmatprep.subr.bf16.mxu0 0
        %3046 = vmatpush1.bf16.msra.mxu0 0
        %3047 = vmatprep.subr.bf16.mxu0 0
        %3048 = vmatpush1.bf16.msra.mxu0 0
        %3049 = vmatprep.subr.bf16.mxu0 0
        %3050 = vmatpush1.bf16.msra.mxu0 0
        %3051 = vmatprep.mubr.bf16.mxu0 0
        %3052 = vmatmul.mubr.bf16.gmra.mrb[0].mxu0 %v1500
        %v3053 = vpop.f32.mrb[0].mxu0
        %v3054 = vadd.f32 %v3005, %v3053
        %v3055 = vpop.f32.mrb[0].mxu0
        %v3056 = vpop.f32.mrb[0].mxu0
        %v3057 = vadd.f32 %v3005, %v3056
        %v3058 = vpop.f32.mrb[0].mxu0
        %3059 = vdwg.mxu0
        %v3060 = vpack.c.bf16 %v2922, %v2922
        %v3061 = vpack.c.bf16 %v2925, %v2925
        %v3062 = vpack.c.bf16 %v2988, %v2988
        %v3063 = vpack.c.bf16 %v2991, %v2991
        %v3065 = vsel %vm1675, %v3060, 0
        %v3068 = vsel %vm1675, %v3062, 0
        %3070 = vmatprep.subr.bf16.mxu0 0
        %3071 = vmatpush1.bf16.xpose.msra.mxu0 %v3068
        %3072 = vmatprep.subr.bf16.mxu0 0
        %3073 = vmatpush1.bf16.xpose.msra.mxu0 0
        %3074 = vmatprep.subr.bf16.mxu0 0
        %3075 = vmatpush1.bf16.xpose.msra.mxu0 0
        %3076 = vmatprep.subr.bf16.mxu0 0
        %3077 = vmatpush1.bf16.xpose.msra.mxu0 0
        %3078 = vmatprep.subr.bf16.mxu0 0
        %3079 = vmatpush1.bf16.xpose.msra.mxu0 0
        %3080 = vmatprep.subr.bf16.mxu0 0
        %3081 = vmatpush1.bf16.xpose.msra.mxu0 0
        %3082 = vmatprep.subr.bf16.mxu0 0
        %3083 = vmatpush1.bf16.xpose.msra.mxu0 0
        %3084 = vmatprep.subr.bf16.mxu0 0
        %3085 = vmatpush1.bf16.xpose.msra.mxu0 0
        %3086 = vmatprep.subr.bf16.mxu0 0
        %3087 = vmatpush1.bf16.xpose.msra.mxu0 0
        %3088 = vmatprep.subr.bf16.mxu0 0
        %3089 = vmatpush1.bf16.xpose.msra.mxu0 0
        %3090 = vmatprep.subr.bf16.mxu0 0
        %3091 = vmatpush1.bf16.xpose.msra.mxu0 0
        %3092 = vmatprep.subr.bf16.mxu0 0
        %3093 = vmatpush1.bf16.xpose.msra.mxu0 0
        %3094 = vmatprep.subr.bf16.mxu0 0
        %3095 = vmatpush1.bf16.xpose.msra.mxu0 0
        %3096 = vmatprep.subr.bf16.mxu0 0
        %3097 = vmatpush1.bf16.xpose.msra.mxu0 0
        %3098 = vmatprep.subr.bf16.mxu0 0
        %3099 = vmatpush1.bf16.xpose.msra.mxu0 0
        %3100 = vmatprep.subr.bf16.mxu0 0
        %3101 = vmatpush1.bf16.xpose.msra.mxu0 0
        %3102 = vmatprep.mubr.bf16.mxu0 0
        %3103 = vmatmul.mubr.bf16.gmra.mrb[0].mxu0 %v3065
        %v3104 = vpop.f32.mrb[0].mxu0
        %v3105 = vadd.f32 %v1419, %v3104
        %v3106 = vpop.f32.mrb[0].mxu0
        %v3107 = vpop.f32.mrb[0].mxu0
        %v3108 = vpop.f32.mrb[0].mxu0
        %3109 = vdwg.mxu0
        %v3111 = vsel %vm1675, %v3061, 0
        %v3114 = vsel %vm1675, %v3063, 0
        %3116 = vmatprep.subr.bf16.mxu0 0
        %3117 = vmatpush1.bf16.xpose.msra.mxu0 %v3114
        %3118 = vmatprep.subr.bf16.mxu0 0
        %3119 = vmatpush1.bf16.xpose.msra.mxu0 0
        %3120 = vmatprep.subr.bf16.mxu0 0
        %3121 = vmatpush1.bf16.xpose.msra.mxu0 0
        %3122 = vmatprep.subr.bf16.mxu0 0
        %3123 = vmatpush1.bf16.xpose.msra.mxu0 0
        %3124 = vmatprep.subr.bf16.mxu0 0
        %3125 = vmatpush1.bf16.xpose.msra.mxu0 0
        %3126 = vmatprep.subr.bf16.mxu0 0
        %3127 = vmatpush1.bf16.xpose.msra.mxu0 0
        %3128 = vmatprep.subr.bf16.mxu0 0
        %3129 = vmatpush1.bf16.xpose.msra.mxu0 0
        %3130 = vmatprep.subr.bf16.mxu0 0
        %3131 = vmatpush1.bf16.xpose.msra.mxu0 0
        %3132 = vmatprep.subr.bf16.mxu0 0
        %3133 = vmatpush1.bf16.xpose.msra.mxu0 0
        %3134 = vmatprep.subr.bf16.mxu0 0
        %3135 = vmatpush1.bf16.xpose.msra.mxu0 0
        %3136 = vmatprep.subr.bf16.mxu0 0
        %3137 = vmatpush1.bf16.xpose.msra.mxu0 0
        %3138 = vmatprep.subr.bf16.mxu0 0
        %3139 = vmatpush1.bf16.xpose.msra.mxu0 0
        %3140 = vmatprep.subr.bf16.mxu0 0
        %3141 = vmatpush1.bf16.xpose.msra.mxu0 0
        %3142 = vmatprep.subr.bf16.mxu0 0
        %3143 = vmatpush1.bf16.xpose.msra.mxu0 0
        %3144 = vmatprep.subr.bf16.mxu0 0
        %3145 = vmatpush1.bf16.xpose.msra.mxu0 0
        %3146 = vmatprep.subr.bf16.mxu0 0
        %3147 = vmatpush1.bf16.xpose.msra.mxu0 0
        %3148 = vmatprep.mubr.bf16.mxu0 0
        %3149 = vmatmul.mubr.bf16.gmra.mrb[0].mxu0 %v3111
        %v3150 = vpop.f32.mrb[0].mxu0
        %v3151 = vadd.f32 %v1420, %v3150
        %v3152 = vpop.f32.mrb[0].mxu0
        %v3153 = vpop.f32.mrb[0].mxu0
        %v3154 = vpop.f32.mrb[0].mxu0
        %3155 = vdwg.mxu0
        %v3156 = vsel %vm1675, %v3105, -inf
        %3157 = vmax.xlane.f32.xlu0 %v3156
        %v3158 = vpop.xlane.xlu0 %3157
        %v3159 = vsel %vm1675, %v3151, -inf
        %3160 = vmax.xlane.f32.xlu0 %v3159
        %v3161 = vpop.xlane.xlu0 %3160
        %v3162 = vsub.f32 %v3105, %v3158
        %v3163 = vsub.f32 %v3151, %v3161
        %v3164 = vmul.f32 %v3162, 1.442695
        %v3165 = vpow.pop %v3164
        %v3166 = vmul.f32 %v3163, 1.442695
        %v3167 = vpow.pop %v3166
        %v3168 = vsel %vm1675, %v3165, 0.0
        %3169 = vadd.xlane.f32.xlu0 %v3168
        %v3170 = vpop.xlane.xlu0 %3169
        %v3171 = vsel %vm1675, %v3167, 0.0
        %3172 = vadd.xlane.f32.xlu0 %v3171
        %v3173 = vpop.xlane.xlu0 %3172
        %v3174 = vrcp.pop %v3170
        %v3175 = vrcp.pop %v3173
        %v3176 = vmul.f32 %v3165, %v3174
        %v3177 = vmul.f32 %v3167, %v3175
        %v3178 = vpack.c.bf16 %v3176, %v3176
        %v3179 = vpack.c.bf16 %v3177, %v3177
        %v3180 = vpack.c.bf16 %v3054, %v3054
        %v3181 = vpack.c.bf16 %v3057, %v3057
        %v3183 = vsel %vm1675, %v3178, 0
        %v3186 = vsel %vm1797, %v3180, 0
        %3188 = vmatprep.subr.bf16.mxu0 0
        %3189 = vmatpush1.bf16.msra.mxu0 %v3186
        %3190 = vmatprep.subr.bf16.mxu0 0
        %3191 = vmatpush1.bf16.msra.mxu0 0
        %3192 = vmatprep.subr.bf16.mxu0 0
        %3193 = vmatpush1.bf16.msra.mxu0 0
        %3194 = vmatprep.subr.bf16.mxu0 0
        %3195 = vmatpush1.bf16.msra.mxu0 0
        %3196 = vmatprep.subr.bf16.mxu0 0
        %3197 = vmatpush1.bf16.msra.mxu0 0
        %3198 = vmatprep.subr.bf16.mxu0 0
        %3199 = vmatpush1.bf16.msra.mxu0 0
        %3200 = vmatprep.subr.bf16.mxu0 0
        %3201 = vmatpush1.bf16.msra.mxu0 0
        %3202 = vmatprep.subr.bf16.mxu0 0
        %3203 = vmatpush1.bf16.msra.mxu0 0
        %3204 = vmatprep.subr.bf16.mxu0 0
        %3205 = vmatpush1.bf16.msra.mxu0 0
        %3206 = vmatprep.subr.bf16.mxu0 0
        %3207 = vmatpush1.bf16.msra.mxu0 0
        %3208 = vmatprep.subr.bf16.mxu0 0
        %3209 = vmatpush1.bf16.msra.mxu0 0
        %3210 = vmatprep.subr.bf16.mxu0 0
        %3211 = vmatpush1.bf16.msra.mxu0 0
        %3212 = vmatprep.subr.bf16.mxu0 0
        %3213 = vmatpush1.bf16.msra.mxu0 0
        %3214 = vmatprep.subr.bf16.mxu0 0
        %3215 = vmatpush1.bf16.msra.mxu0 0
        %3216 = vmatprep.subr.bf16.mxu0 0
        %3217 = vmatpush1.bf16.msra.mxu0 0
        %3218 = vmatprep.subr.bf16.mxu0 0
        %3219 = vmatpush1.bf16.msra.mxu0 0
        %3220 = vmatprep.mubr.bf16.mxu0 0
        %3221 = vmatmul.mubr.bf16.gmra.mrb[0].mxu0 %v3183
        %v3222 = vpop.f32.mrb[0].mxu0
        %v3223 = vadd.f32 0.0, %v3222
        %v3224 = vpop.f32.mrb[0].mxu0
        %v3225 = vpop.f32.mrb[0].mxu0
        %v3226 = vpop.f32.mrb[0].mxu0
        %3227 = vdwg.mxu0
        %v3229 = vsel %vm1675, %v3179, 0
        %v3232 = vsel %vm1797, %v3181, 0
        %3234 = vmatprep.subr.bf16.mxu0 0
        %3235 = vmatpush1.bf16.msra.mxu0 %v3232
        %3236 = vmatprep.subr.bf16.mxu0 0
        %3237 = vmatpush1.bf16.msra.mxu0 0
        %3238 = vmatprep.subr.bf16.mxu0 0
        %3239 = vmatpush1.bf16.msra.mxu0 0
        %3240 = vmatprep.subr.bf16.mxu0 0
        %3241 = vmatpush1.bf16.msra.mxu0 0
        %3242 = vmatprep.subr.bf16.mxu0 0
        %3243 = vmatpush1.bf16.msra.mxu0 0
        %3244 = vmatprep.subr.bf16.mxu0 0
        %3245 = vmatpush1.bf16.msra.mxu0 0
        %3246 = vmatprep.subr.bf16.mxu0 0
        %3247 = vmatpush1.bf16.msra.mxu0 0
        %3248 = vmatprep.subr.bf16.mxu0 0
        %3249 = vmatpush1.bf16.msra.mxu0 0
        %3250 = vmatprep.subr.bf16.mxu0 0
        %3251 = vmatpush1.bf16.msra.mxu0 0
        %3252 = vmatprep.subr.bf16.mxu0 0
        %3253 = vmatpush1.bf16.msra.mxu0 0
        %3254 = vmatprep.subr.bf16.mxu0 0
        %3255 = vmatpush1.bf16.msra.mxu0 0
        %3256 = vmatprep.subr.bf16.mxu0 0
        %3257 = vmatpush1.bf16.msra.mxu0 0
        %3258 = vmatprep.subr.bf16.mxu0 0
        %3259 = vmatpush1.bf16.msra.mxu0 0
        %3260 = vmatprep.subr.bf16.mxu0 0
        %3261 = vmatpush1.bf16.msra.mxu0 0
        %3262 = vmatprep.subr.bf16.mxu0 0
        %3263 = vmatpush1.bf16.msra.mxu0 0
        %3264 = vmatprep.subr.bf16.mxu0 0
        %3265 = vmatpush1.bf16.msra.mxu0 0
        %3266 = vmatprep.mubr.bf16.mxu0 0
        %3267 = vmatmul.mubr.bf16.gmra.mrb[0].mxu0 %v3229
        %v3268 = vpop.f32.mrb[0].mxu0
        %v3269 = vadd.f32 0.0, %v3268
        %v3270 = vpop.f32.mrb[0].mxu0
        %v3271 = vpop.f32.mrb[0].mxu0
        %v3272 = vpop.f32.mrb[0].mxu0
        %3273 = vdwg.mxu0
        %v3274 = vpack.c.bf16 %v3269, %v3223
        %s3275 = scalar_lea.vmem %s1300, 12
        %v3276 = vld [vmem:[%s3275] sm:$0xf]
        %v3278 = vsel %vm1675, %v3274, 0
        %v3281 = vsel %vm1797, %v3276, 0
        %3283 = vmatprep.subr.bf16.mxu0 0
        %3284 = vmatpush1.bf16.msra.mxu0 %v3281
        %3285 = vmatprep.subr.bf16.mxu0 0
        %3286 = vmatpush1.bf16.msra.mxu0 0
        %3287 = vmatprep.subr.bf16.mxu0 0
        %3288 = vmatpush1.bf16.msra.mxu0 0
        %3289 = vmatprep.subr.bf16.mxu0 0
        %3290 = vmatpush1.bf16.msra.mxu0 0
        %3291 = vmatprep.subr.bf16.mxu0 0
        %3292 = vmatpush1.bf16.msra.mxu0 0
        %3293 = vmatprep.subr.bf16.mxu0 0
        %3294 = vmatpush1.bf16.msra.mxu0 0
        %3295 = vmatprep.subr.bf16.mxu0 0
        %3296 = vmatpush1.bf16.msra.mxu0 0
        %3297 = vmatprep.subr.bf16.mxu0 0
        %3298 = vmatpush1.bf16.msra.mxu0 0
        %3299 = vmatprep.subr.bf16.mxu0 0
        %3300 = vmatpush1.bf16.msra.mxu0 0
        %3301 = vmatprep.subr.bf16.mxu0 0
        %3302 = vmatpush1.bf16.msra.mxu0 0
        %3303 = vmatprep.subr.bf16.mxu0 0
        %3304 = vmatpush1.bf16.msra.mxu0 0
        %3305 = vmatprep.subr.bf16.mxu0 0
        %3306 = vmatpush1.bf16.msra.mxu0 0
        %3307 = vmatprep.subr.bf16.mxu0 0
        %3308 = vmatpush1.bf16.msra.mxu0 0
        %3309 = vmatprep.subr.bf16.mxu0 0
        %3310 = vmatpush1.bf16.msra.mxu0 0
        %3311 = vmatprep.subr.bf16.mxu0 0
        %3312 = vmatpush1.bf16.msra.mxu0 0
        %3313 = vmatprep.subr.bf16.mxu0 0
        %3314 = vmatpush1.bf16.msra.mxu0 0
        %3315 = vmatprep.mubr.bf16.mxu0 0
        %3316 = vmatmul.mubr.bf16.gmra.mrb[0].mxu0 %v3278
        %v3317 = vpop.f32.mrb[0].mxu0
        %v3318 = vadd.f32 0.0, %v3317
        %v3319 = vpop.f32.mrb[0].mxu0
        %v3320 = vpop.f32.mrb[0].mxu0
        %v3321 = vadd.f32 0.0, %v3320
        %v3322 = vpop.f32.mrb[0].mxu0
        %3323 = vdwg.mxu0
        %v3324 = vadd.f32 %v2860, %v3318
        %v3325 = vadd.f32 %v2861, %v3321
        %v3326 = vld [vmem:[%s1303] sm:$0x1]
        %v3328 = vlaneseq
        %v3329 = vshrl.u32 %v3328, 7
        %v3330 = vsub.s32 0, %v3329
        %v3331 = vrot.slane %v3326, %v3330
        %v3333 = vadd.f32 %v3324, %v3331
        %v3334 = vadd.f32 %v3325, %v3331
        %v3335 = vadd.f32 %v1421, %v3333
        %v3336 = vadd.f32 %v1422, %v3334
        %v3337 = vld [vmem:[%s1306] sm:$0x1]
        %v3338 = vld [vmem:[%s1309] sm:$0x1]
        %v3339 = vsel %vm1427, %v3335, 0.0
        %3340 = vadd.xlane.f32.xlu0 %v3339
        %v3341 = vpop.xlane.xlu0 %3340
        %v3342 = vsel %vm1427, %v3336, 0.0
        %3343 = vadd.xlane.f32.xlu0 %v3342
        %v3344 = vpop.xlane.xlu0 %3343
        %v3345 = vmul.f32 %v3341, %v1434
        %v3346 = vmul.f32 %v3344, %v1434
        %v3347 = vmul.f32 %v3335, %v3335
        %v3348 = vmul.f32 %v3336, %v3336
        %v3349 = vsel %vm1427, %v3347, 0.0
        %3350 = vadd.xlane.f32.xlu0 %v3349
        %v3351 = vpop.xlane.xlu0 %3350
        %v3352 = vsel %vm1427, %v3348, 0.0
        %3353 = vadd.xlane.f32.xlu0 %v3352
        %v3354 = vpop.xlane.xlu0 %3353
        %v3355 = vmul.f32 %v3351, %v1434
        %v3356 = vmul.f32 %v3354, %v1434
        %v3357 = vmul.f32 %v3345, %v3345
        %v3358 = vmul.f32 %v3346, %v3346
        %v3359 = vsub.f32 %v3355, %v3357
        %v3360 = vsub.f32 %v3356, %v3358
        %v3361 = vsub.f32 %v3335, %v3345
        %v3362 = vsub.f32 %v3336, %v3346
        %v3363 = vadd.f32 %v3359, 1e-05
        %v3364 = vadd.f32 %v3360, 1e-05
        %v3365 = vrsqrt.pop %v3363
        %v3366 = vrsqrt.pop %v3364
        %v3367 = vmul.f32 %v3361, %v3365
        %v3368 = vmul.f32 %v3362, %v3366
        %v3370 = vlaneseq
        %v3371 = vshrl.u32 %v3370, 7
        %v3372 = vsub.s32 0, %v3371
        %v3373 = vrot.slane %v3337, %v3372
        %v3375 = vmul.f32 %v3367, %v3373
        %v3376 = vmul.f32 %v3368, %v3373
        %v3378 = vlaneseq
        %v3379 = vshrl.u32 %v3378, 7
        %v3380 = vsub.s32 0, %v3379
        %v3381 = vrot.slane %v3338, %v3380
        %v3383 = vadd.f32 %v3375, %v3381
        %v3384 = vadd.f32 %v3376, %v3381
        %v3385 = vpack.c.bf16 %v3384, %v3383
        %v3386 = vpack.c.bf16 %v1424, %v1423
        %v3387 = vld [vmem:[%s1314] sm:$0xf]
        %v3388 = vld [vmem:[%s1314 + $0x4] sm:$0xf]
        %v3389 = vld [vmem:[%s1314 + $0x8] sm:$0xf]
        %v3390 = vld [vmem:[%s1314 + $0xc] sm:$0xf]
        %v3391 = vld [vmem:[%s1318] sm:$0x1]
        %v3393 = vlaneseq
        %v3394 = vshrl.u32 %v3393, 7
        %v3395 = vsub.s32 0, %v3394
        %v3396 = vrot.slane %v3391, %v3395
        %v3402 = vunpack.c.l.b16 %v3387
        %v3403 = vunpack.c.l.b16 %v3388
        %v3404 = vunpack.c.l.b16 %v3389
        %v3405 = vunpack.c.l.b16 %v3390
        %v3406 = vpack.c.b16 %v3403, %v3402
        %v3407 = vpack.c.b16 %v3405, %v3404
        %v3411 = vsel %vm1427, %v3385, 0
        %3413 = vmatprep.subr.bf16.mxu0 0
        %3414 = vmatpush1.bf16.msra.mxu0 %v3406
        %3415 = vmatprep.subr.bf16.mxu0 0
        %3416 = vmatpush1.bf16.msra.mxu0 %v3407
        %3417 = vmatprep.subr.bf16.mxu0 0
        %3418 = vmatpush1.bf16.msra.mxu0 0
        %3419 = vmatprep.subr.bf16.mxu0 0
        %3420 = vmatpush1.bf16.msra.mxu0 0
        %3421 = vmatprep.subr.bf16.mxu0 0
        %3422 = vmatpush1.bf16.msra.mxu0 0
        %3423 = vmatprep.subr.bf16.mxu0 0
        %3424 = vmatpush1.bf16.msra.mxu0 0
        %3425 = vmatprep.subr.bf16.mxu0 0
        %3426 = vmatpush1.bf16.msra.mxu0 0
        %3427 = vmatprep.subr.bf16.mxu0 0
        %3428 = vmatpush1.bf16.msra.mxu0 0
        %3429 = vmatprep.subr.bf16.mxu0 0
        %3430 = vmatpush1.bf16.msra.mxu0 0
        %3431 = vmatprep.subr.bf16.mxu0 0
        %3432 = vmatpush1.bf16.msra.mxu0 0
        %3433 = vmatprep.subr.bf16.mxu0 0
        %3434 = vmatpush1.bf16.msra.mxu0 0
        %3435 = vmatprep.subr.bf16.mxu0 0
        %3436 = vmatpush1.bf16.msra.mxu0 0
        %3437 = vmatprep.subr.bf16.mxu0 0
        %3438 = vmatpush1.bf16.msra.mxu0 0
        %3439 = vmatprep.subr.bf16.mxu0 0
        %3440 = vmatpush1.bf16.msra.mxu0 0
        %3441 = vmatprep.subr.bf16.mxu0 0
        %3442 = vmatpush1.bf16.msra.mxu0 0
        %3443 = vmatprep.subr.bf16.mxu0 0
        %3444 = vmatpush1.bf16.msra.mxu0 0
        %3445 = vmatprep.mubr.bf16.mxu0 0
        %3446 = vmatmul.mubr.bf16.gmra.mrb[0].mxu0 %v3411
        %v3447 = vpop.f32.mrb[0].mxu0
        %v3448 = vadd.f32 %v3396, %v3447
        %v3449 = vpop.f32.mrb[0].mxu0
        %v3450 = vpop.f32.mrb[0].mxu0
        %v3451 = vadd.f32 %v3396, %v3450
        %v3452 = vpop.f32.mrb[0].mxu0
        %3453 = vdwg.mxu0
        %v3454 = vld [vmem:[%s1323] sm:$0xf]
        %v3455 = vld [vmem:[%s1323 + $0x4] sm:$0xf]
        %v3456 = vld [vmem:[%s1323 + $0x8] sm:$0xf]
        %v3457 = vld [vmem:[%s1323 + $0xc] sm:$0xf]
        %v3458 = vld [vmem:[%s1327] sm:$0x1]
        %v3460 = vlaneseq
        %v3461 = vshrl.u32 %v3460, 7
        %v3462 = vsub.s32 0, %v3461
        %v3463 = vrot.slane %v3458, %v3462
        %v3469 = vunpack.c.l.b16 %v3454
        %v3470 = vunpack.c.l.b16 %v3455
        %v3471 = vunpack.c.l.b16 %v3456
        %v3472 = vunpack.c.l.b16 %v3457
        %v3473 = vpack.c.b16 %v3470, %v3469
        %v3474 = vpack.c.b16 %v3472, %v3471
        %v3478 = vsel %vm1427, %v3386, 0
        %3480 = vmatprep.subr.bf16.mxu0 0
        %3481 = vmatpush1.bf16.msra.mxu0 %v3473
        %3482 = vmatprep.subr.bf16.mxu0 0
        %3483 = vmatpush1.bf16.msra.mxu0 %v3474
        %3484 = vmatprep.subr.bf16.mxu0 0
        %3485 = vmatpush1.bf16.msra.mxu0 0
        %3486 = vmatprep.subr.bf16.mxu0 0
        %3487 = vmatpush1.bf16.msra.mxu0 0
        %3488 = vmatprep.subr.bf16.mxu0 0
        %3489 = vmatpush1.bf16.msra.mxu0 0
        %3490 = vmatprep.subr.bf16.mxu0 0
        %3491 = vmatpush1.bf16.msra.mxu0 0
        %3492 = vmatprep.subr.bf16.mxu0 0
        %3493 = vmatpush1.bf16.msra.mxu0 0
        %3494 = vmatprep.subr.bf16.mxu0 0
        %3495 = vmatpush1.bf16.msra.mxu0 0
        %3496 = vmatprep.subr.bf16.mxu0 0
        %3497 = vmatpush1.bf16.msra.mxu0 0
        %3498 = vmatprep.subr.bf16.mxu0 0
        %3499 = vmatpush1.bf16.msra.mxu0 0
        %3500 = vmatprep.subr.bf16.mxu0 0
        %3501 = vmatpush1.bf16.msra.mxu0 0
        %3502 = vmatprep.subr.bf16.mxu0 0
        %3503 = vmatpush1.bf16.msra.mxu0 0
        %3504 = vmatprep.subr.bf16.mxu0 0
        %3505 = vmatpush1.bf16.msra.mxu0 0
        %3506 = vmatprep.subr.bf16.mxu0 0
        %3507 = vmatpush1.bf16.msra.mxu0 0
        %3508 = vmatprep.subr.bf16.mxu0 0
        %3509 = vmatpush1.bf16.msra.mxu0 0
        %3510 = vmatprep.subr.bf16.mxu0 0
        %3511 = vmatpush1.bf16.msra.mxu0 0
        %3512 = vmatprep.mubr.bf16.mxu0 0
        %3513 = vmatmul.mubr.bf16.gmra.mrb[0].mxu0 %v3478
        %v3514 = vpop.f32.mrb[0].mxu0
        %v3515 = vadd.f32 %v3463, %v3514
        %v3516 = vpop.f32.mrb[0].mxu0
        %v3517 = vpop.f32.mrb[0].mxu0
        %v3518 = vadd.f32 %v3463, %v3517
        %v3519 = vpop.f32.mrb[0].mxu0
        %3520 = vdwg.mxu0
        %v3521 = vld [vmem:[%s1332] sm:$0xf]
        %v3522 = vld [vmem:[%s1332 + $0x4] sm:$0xf]
        %v3523 = vld [vmem:[%s1332 + $0x8] sm:$0xf]
        %v3524 = vld [vmem:[%s1332 + $0xc] sm:$0xf]
        %v3525 = vld [vmem:[%s1336] sm:$0x1]
        %v3527 = vlaneseq
        %v3528 = vshrl.u32 %v3527, 7
        %v3529 = vsub.s32 0, %v3528
        %v3530 = vrot.slane %v3525, %v3529
        %v3536 = vunpack.c.l.b16 %v3521
        %v3537 = vunpack.c.l.b16 %v3522
        %v3538 = vunpack.c.l.b16 %v3523
        %v3539 = vunpack.c.l.b16 %v3524
        %v3540 = vpack.c.b16 %v3537, %v3536
        %v3541 = vpack.c.b16 %v3539, %v3538
        %3544 = vmatprep.subr.bf16.mxu0 0
        %3545 = vmatpush1.bf16.msra.mxu0 %v3540
        %3546 = vmatprep.subr.bf16.mxu0 0
        %3547 = vmatpush1.bf16.msra.mxu0 %v3541
        %3548 = vmatprep.subr.bf16.mxu0 0
        %3549 = vmatpush1.bf16.msra.mxu0 0
        %3550 = vmatprep.subr.bf16.mxu0 0
        %3551 = vmatpush1.bf16.msra.mxu0 0
        %3552 = vmatprep.subr.bf16.mxu0 0
        %3553 = vmatpush1.bf16.msra.mxu0 0
        %3554 = vmatprep.subr.bf16.mxu0 0
        %3555 = vmatpush1.bf16.msra.mxu0 0
        %3556 = vmatprep.subr.bf16.mxu0 0
        %3557 = vmatpush1.bf16.msra.mxu0 0
        %3558 = vmatprep.subr.bf16.mxu0 0
        %3559 = vmatpush1.bf16.msra.mxu0 0
        %3560 = vmatprep.subr.bf16.mxu0 0
        %3561 = vmatpush1.bf16.msra.mxu0 0
        %3562 = vmatprep.subr.bf16.mxu0 0
        %3563 = vmatpush1.bf16.msra.mxu0 0
        %3564 = vmatprep.subr.bf16.mxu0 0
        %3565 = vmatpush1.bf16.msra.mxu0 0
        %3566 = vmatprep.subr.bf16.mxu0 0
        %3567 = vmatpush1.bf16.msra.mxu0 0
        %3568 = vmatprep.subr.bf16.mxu0 0
        %3569 = vmatpush1.bf16.msra.mxu0 0
        %3570 = vmatprep.subr.bf16.mxu0 0
        %3571 = vmatpush1.bf16.msra.mxu0 0
        %3572 = vmatprep.subr.bf16.mxu0 0
        %3573 = vmatpush1.bf16.msra.mxu0 0
        %3574 = vmatprep.subr.bf16.mxu0 0
        %3575 = vmatpush1.bf16.msra.mxu0 0
        %3576 = vmatprep.mubr.bf16.mxu0 0
        %3577 = vmatmul.mubr.bf16.gmra.mrb[0].mxu0 %v3478
        %v3578 = vpop.f32.mrb[0].mxu0
        %v3579 = vadd.f32 %v3530, %v3578
        %v3580 = vpop.f32.mrb[0].mxu0
        %v3581 = vpop.f32.mrb[0].mxu0
        %v3582 = vadd.f32 %v3530, %v3581
        %v3583 = vpop.f32.mrb[0].mxu0
        %3584 = vdwg.mxu0
        %v3585 = vpack.c.bf16 %v3448, %v3448
        %v3586 = vpack.c.bf16 %v3451, %v3451
        %v3587 = vpack.c.bf16 %v3515, %v3515
        %v3588 = vpack.c.bf16 %v3518, %v3518
        %v3590 = vsel %vm1675, %v3585, 0
        %v3593 = vsel %vm1675, %v3587, 0
        %3595 = vmatprep.subr.bf16.mxu0 0
        %3596 = vmatpush1.bf16.xpose.msra.mxu0 %v3593
        %3597 = vmatprep.subr.bf16.mxu0 0
        %3598 = vmatpush1.bf16.xpose.msra.mxu0 0
        %3599 = vmatprep.subr.bf16.mxu0 0
        %3600 = vmatpush1.bf16.xpose.msra.mxu0 0
        %3601 = vmatprep.subr.bf16.mxu0 0
        %3602 = vmatpush1.bf16.xpose.msra.mxu0 0
        %3603 = vmatprep.subr.bf16.mxu0 0
        %3604 = vmatpush1.bf16.xpose.msra.mxu0 0
        %3605 = vmatprep.subr.bf16.mxu0 0
        %3606 = vmatpush1.bf16.xpose.msra.mxu0 0
        %3607 = vmatprep.subr.bf16.mxu0 0
        %3608 = vmatpush1.bf16.xpose.msra.mxu0 0
        %3609 = vmatprep.subr.bf16.mxu0 0
        %3610 = vmatpush1.bf16.xpose.msra.mxu0 0
        %3611 = vmatprep.subr.bf16.mxu0 0
        %3612 = vmatpush1.bf16.xpose.msra.mxu0 0
        %3613 = vmatprep.subr.bf16.mxu0 0
        %3614 = vmatpush1.bf16.xpose.msra.mxu0 0
        %3615 = vmatprep.subr.bf16.mxu0 0
        %3616 = vmatpush1.bf16.xpose.msra.mxu0 0
        %3617 = vmatprep.subr.bf16.mxu0 0
        %3618 = vmatpush1.bf16.xpose.msra.mxu0 0
        %3619 = vmatprep.subr.bf16.mxu0 0
        %3620 = vmatpush1.bf16.xpose.msra.mxu0 0
        %3621 = vmatprep.subr.bf16.mxu0 0
        %3622 = vmatpush1.bf16.xpose.msra.mxu0 0
        %3623 = vmatprep.subr.bf16.mxu0 0
        %3624 = vmatpush1.bf16.xpose.msra.mxu0 0
        %3625 = vmatprep.subr.bf16.mxu0 0
        %3626 = vmatpush1.bf16.xpose.msra.mxu0 0
        %3627 = vmatprep.mubr.bf16.mxu0 0
        %3628 = vmatmul.mubr.bf16.gmra.mrb[0].mxu0 %v3590
        %v3629 = vpop.f32.mrb[0].mxu0
        %v3630 = vadd.f32 %v1419, %v3629
        %v3631 = vpop.f32.mrb[0].mxu0
        %v3632 = vpop.f32.mrb[0].mxu0
        %v3633 = vpop.f32.mrb[0].mxu0
        %3634 = vdwg.mxu0
        %v3636 = vsel %vm1675, %v3586, 0
        %v3639 = vsel %vm1675, %v3588, 0
        %3641 = vmatprep.subr.bf16.mxu0 0
        %3642 = vmatpush1.bf16.xpose.msra.mxu0 %v3639
        %3643 = vmatprep.subr.bf16.mxu0 0
        %3644 = vmatpush1.bf16.xpose.msra.mxu0 0
        %3645 = vmatprep.subr.bf16.mxu0 0
        %3646 = vmatpush1.bf16.xpose.msra.mxu0 0
        %3647 = vmatprep.subr.bf16.mxu0 0
        %3648 = vmatpush1.bf16.xpose.msra.mxu0 0
        %3649 = vmatprep.subr.bf16.mxu0 0
        %3650 = vmatpush1.bf16.xpose.msra.mxu0 0
        %3651 = vmatprep.subr.bf16.mxu0 0
        %3652 = vmatpush1.bf16.xpose.msra.mxu0 0
        %3653 = vmatprep.subr.bf16.mxu0 0
        %3654 = vmatpush1.bf16.xpose.msra.mxu0 0
        %3655 = vmatprep.subr.bf16.mxu0 0
        %3656 = vmatpush1.bf16.xpose.msra.mxu0 0
        %3657 = vmatprep.subr.bf16.mxu0 0
        %3658 = vmatpush1.bf16.xpose.msra.mxu0 0
        %3659 = vmatprep.subr.bf16.mxu0 0
        %3660 = vmatpush1.bf16.xpose.msra.mxu0 0
        %3661 = vmatprep.subr.bf16.mxu0 0
        %3662 = vmatpush1.bf16.xpose.msra.mxu0 0
        %3663 = vmatprep.subr.bf16.mxu0 0
        %3664 = vmatpush1.bf16.xpose.msra.mxu0 0
        %3665 = vmatprep.subr.bf16.mxu0 0
        %3666 = vmatpush1.bf16.xpose.msra.mxu0 0
        %3667 = vmatprep.subr.bf16.mxu0 0
        %3668 = vmatpush1.bf16.xpose.msra.mxu0 0
        %3669 = vmatprep.subr.bf16.mxu0 0
        %3670 = vmatpush1.bf16.xpose.msra.mxu0 0
        %3671 = vmatprep.subr.bf16.mxu0 0
        %3672 = vmatpush1.bf16.xpose.msra.mxu0 0
        %3673 = vmatprep.mubr.bf16.mxu0 0
        %3674 = vmatmul.mubr.bf16.gmra.mrb[0].mxu0 %v3636
        %v3675 = vpop.f32.mrb[0].mxu0
        %v3676 = vadd.f32 %v1420, %v3675
        %v3677 = vpop.f32.mrb[0].mxu0
        %v3678 = vpop.f32.mrb[0].mxu0
        %v3679 = vpop.f32.mrb[0].mxu0
        %3680 = vdwg.mxu0
        %v3681 = vsel %vm1675, %v3630, -inf
        %3682 = vmax.xlane.f32.xlu0 %v3681
        %v3683 = vpop.xlane.xlu0 %3682
        %v3684 = vsel %vm1675, %v3676, -inf
        %3685 = vmax.xlane.f32.xlu0 %v3684
        %v3686 = vpop.xlane.xlu0 %3685
        %v3687 = vsub.f32 %v3630, %v3683
        %v3688 = vsub.f32 %v3676, %v3686
        %v3689 = vmul.f32 %v3687, 1.442695
        %v3690 = vpow.pop %v3689
        %v3691 = vmul.f32 %v3688, 1.442695
        %v3692 = vpow.pop %v3691
        %v3693 = vsel %vm1675, %v3690, 0.0
        %3694 = vadd.xlane.f32.xlu0 %v3693
        %v3695 = vpop.xlane.xlu0 %3694
        %v3696 = vsel %vm1675, %v3692, 0.0
        %3697 = vadd.xlane.f32.xlu0 %v3696
        %v3698 = vpop.xlane.xlu0 %3697
        %v3699 = vrcp.pop %v3695
        %v3700 = vrcp.pop %v3698
        %v3701 = vmul.f32 %v3690, %v3699
        %v3702 = vmul.f32 %v3692, %v3700
        %v3703 = vpack.c.bf16 %v3701, %v3701
        %v3704 = vpack.c.bf16 %v3702, %v3702
        %v3705 = vpack.c.bf16 %v3579, %v3579
        %v3706 = vpack.c.bf16 %v3582, %v3582
        %v3708 = vsel %vm1675, %v3703, 0
        %v3711 = vsel %vm1797, %v3705, 0
        %3713 = vmatprep.subr.bf16.mxu0 0
        %3714 = vmatpush1.bf16.msra.mxu0 %v3711
        %3715 = vmatprep.subr.bf16.mxu0 0
        %3716 = vmatpush1.bf16.msra.mxu0 0
        %3717 = vmatprep.subr.bf16.mxu0 0
        %3718 = vmatpush1.bf16.msra.mxu0 0
        %3719 = vmatprep.subr.bf16.mxu0 0
        %3720 = vmatpush1.bf16.msra.mxu0 0
        %3721 = vmatprep.subr.bf16.mxu0 0
        %3722 = vmatpush1.bf16.msra.mxu0 0
        %3723 = vmatprep.subr.bf16.mxu0 0
        %3724 = vmatpush1.bf16.msra.mxu0 0
        %3725 = vmatprep.subr.bf16.mxu0 0
        %3726 = vmatpush1.bf16.msra.mxu0 0
        %3727 = vmatprep.subr.bf16.mxu0 0
        %3728 = vmatpush1.bf16.msra.mxu0 0
        %3729 = vmatprep.subr.bf16.mxu0 0
        %3730 = vmatpush1.bf16.msra.mxu0 0
        %3731 = vmatprep.subr.bf16.mxu0 0
        %3732 = vmatpush1.bf16.msra.mxu0 0
        %3733 = vmatprep.subr.bf16.mxu0 0
        %3734 = vmatpush1.bf16.msra.mxu0 0
        %3735 = vmatprep.subr.bf16.mxu0 0
        %3736 = vmatpush1.bf16.msra.mxu0 0
        %3737 = vmatprep.subr.bf16.mxu0 0
        %3738 = vmatpush1.bf16.msra.mxu0 0
        %3739 = vmatprep.subr.bf16.mxu0 0
        %3740 = vmatpush1.bf16.msra.mxu0 0
        %3741 = vmatprep.subr.bf16.mxu0 0
        %3742 = vmatpush1.bf16.msra.mxu0 0
        %3743 = vmatprep.subr.bf16.mxu0 0
        %3744 = vmatpush1.bf16.msra.mxu0 0
        %3745 = vmatprep.mubr.bf16.mxu0 0
        %3746 = vmatmul.mubr.bf16.gmra.mrb[0].mxu0 %v3708
        %v3747 = vpop.f32.mrb[0].mxu0
        %v3748 = vadd.f32 0.0, %v3747
        %v3749 = vpop.f32.mrb[0].mxu0
        %v3750 = vpop.f32.mrb[0].mxu0
        %v3751 = vpop.f32.mrb[0].mxu0
        %3752 = vdwg.mxu0
        %v3754 = vsel %vm1675, %v3704, 0
        %v3757 = vsel %vm1797, %v3706, 0
        %3759 = vmatprep.subr.bf16.mxu0 0
        %3760 = vmatpush1.bf16.msra.mxu0 %v3757
        %3761 = vmatprep.subr.bf16.mxu0 0
        %3762 = vmatpush1.bf16.msra.mxu0 0
        %3763 = vmatprep.subr.bf16.mxu0 0
        %3764 = vmatpush1.bf16.msra.mxu0 0
        %3765 = vmatprep.subr.bf16.mxu0 0
        %3766 = vmatpush1.bf16.msra.mxu0 0
        %3767 = vmatprep.subr.bf16.mxu0 0
        %3768 = vmatpush1.bf16.msra.mxu0 0
        %3769 = vmatprep.subr.bf16.mxu0 0
        %3770 = vmatpush1.bf16.msra.mxu0 0
        %3771 = vmatprep.subr.bf16.mxu0 0
        %3772 = vmatpush1.bf16.msra.mxu0 0
        %3773 = vmatprep.subr.bf16.mxu0 0
        %3774 = vmatpush1.bf16.msra.mxu0 0
        %3775 = vmatprep.subr.bf16.mxu0 0
        %3776 = vmatpush1.bf16.msra.mxu0 0
        %3777 = vmatprep.subr.bf16.mxu0 0
        %3778 = vmatpush1.bf16.msra.mxu0 0
        %3779 = vmatprep.subr.bf16.mxu0 0
        %3780 = vmatpush1.bf16.msra.mxu0 0
        %3781 = vmatprep.subr.bf16.mxu0 0
        %3782 = vmatpush1.bf16.msra.mxu0 0
        %3783 = vmatprep.subr.bf16.mxu0 0
        %3784 = vmatpush1.bf16.msra.mxu0 0
        %3785 = vmatprep.subr.bf16.mxu0 0
        %3786 = vmatpush1.bf16.msra.mxu0 0
        %3787 = vmatprep.subr.bf16.mxu0 0
        %3788 = vmatpush1.bf16.msra.mxu0 0
        %3789 = vmatprep.subr.bf16.mxu0 0
        %3790 = vmatpush1.bf16.msra.mxu0 0
        %3791 = vmatprep.mubr.bf16.mxu0 0
        %3792 = vmatmul.mubr.bf16.gmra.mrb[0].mxu0 %v3754
        %v3793 = vpop.f32.mrb[0].mxu0
        %v3794 = vadd.f32 0.0, %v3793
        %v3795 = vpop.f32.mrb[0].mxu0
        %v3796 = vpop.f32.mrb[0].mxu0
        %v3797 = vpop.f32.mrb[0].mxu0
        %3798 = vdwg.mxu0
        %v3799 = vpack.c.bf16 %v3794, %v3748
        %v3800 = vld [vmem:[%s1341] sm:$0xf]
        %s3801 = scalar_lea.vmem %s1314, 16
        %v3802 = vld [vmem:[%s3801] sm:$0xf]
        %v3803 = vld [vmem:[%s3801 + $0x4] sm:$0xf]
        %v3804 = vld [vmem:[%s3801 + $0x8] sm:$0xf]
        %v3805 = vld [vmem:[%s3801 + $0xc] sm:$0xf]
        %s3806 = scalar_lea.vmem %s1318, 1
        %v3807 = vld [vmem:[%s3806] sm:$0x1]
        %v3809 = vlaneseq
        %v3810 = vshrl.u32 %v3809, 7
        %v3811 = vsub.s32 0, %v3810
        %v3812 = vrot.slane %v3807, %v3811
        %v3818 = vunpack.c.l.b16 %v3802
        %v3819 = vunpack.c.l.b16 %v3803
        %v3820 = vunpack.c.l.b16 %v3804
        %v3821 = vunpack.c.l.b16 %v3805
        %v3822 = vpack.c.b16 %v3819, %v3818
        %v3823 = vpack.c.b16 %v3821, %v3820
        %3826 = vmatprep.subr.bf16.mxu0 0
        %3827 = vmatpush1.bf16.msra.mxu0 %v3822
        %3828 = vmatprep.subr.bf16.mxu0 0
        %3829 = vmatpush1.bf16.msra.mxu0 %v3823
        %3830 = vmatprep.subr.bf16.mxu0 0
        %3831 = vmatpush1.bf16.msra.mxu0 0
        %3832 = vmatprep.subr.bf16.mxu0 0
        %3833 = vmatpush1.bf16.msra.mxu0 0
        %3834 = vmatprep.subr.bf16.mxu0 0
        %3835 = vmatpush1.bf16.msra.mxu0 0
        %3836 = vmatprep.subr.bf16.mxu0 0
        %3837 = vmatpush1.bf16.msra.mxu0 0
        %3838 = vmatprep.subr.bf16.mxu0 0
        %3839 = vmatpush1.bf16.msra.mxu0 0
        %3840 = vmatprep.subr.bf16.mxu0 0
        %3841 = vmatpush1.bf16.msra.mxu0 0
        %3842 = vmatprep.subr.bf16.mxu0 0
        %3843 = vmatpush1.bf16.msra.mxu0 0
        %3844 = vmatprep.subr.bf16.mxu0 0
        %3845 = vmatpush1.bf16.msra.mxu0 0
        %3846 = vmatprep.subr.bf16.mxu0 0
        %3847 = vmatpush1.bf16.msra.mxu0 0
        %3848 = vmatprep.subr.bf16.mxu0 0
        %3849 = vmatpush1.bf16.msra.mxu0 0
        %3850 = vmatprep.subr.bf16.mxu0 0
        %3851 = vmatpush1.bf16.msra.mxu0 0
        %3852 = vmatprep.subr.bf16.mxu0 0
        %3853 = vmatpush1.bf16.msra.mxu0 0
        %3854 = vmatprep.subr.bf16.mxu0 0
        %3855 = vmatpush1.bf16.msra.mxu0 0
        %3856 = vmatprep.subr.bf16.mxu0 0
        %3857 = vmatpush1.bf16.msra.mxu0 0
        %3858 = vmatprep.mubr.bf16.mxu0 0
        %3859 = vmatmul.mubr.bf16.gmra.mrb[0].mxu0 %v3411
        %v3860 = vpop.f32.mrb[0].mxu0
        %v3861 = vadd.f32 %v3812, %v3860
        %v3862 = vpop.f32.mrb[0].mxu0
        %v3863 = vpop.f32.mrb[0].mxu0
        %v3864 = vadd.f32 %v3812, %v3863
        %v3865 = vpop.f32.mrb[0].mxu0
        %3866 = vdwg.mxu0
        %s3867 = scalar_lea.vmem %s1323, 16
        %v3868 = vld [vmem:[%s3867] sm:$0xf]
        %v3869 = vld [vmem:[%s3867 + $0x4] sm:$0xf]
        %v3870 = vld [vmem:[%s3867 + $0x8] sm:$0xf]
        %v3871 = vld [vmem:[%s3867 + $0xc] sm:$0xf]
        %s3872 = scalar_lea.vmem %s1327, 1
        %v3873 = vld [vmem:[%s3872] sm:$0x1]
        %v3875 = vlaneseq
        %v3876 = vshrl.u32 %v3875, 7
        %v3877 = vsub.s32 0, %v3876
        %v3878 = vrot.slane %v3873, %v3877
        %v3884 = vunpack.c.l.b16 %v3868
        %v3885 = vunpack.c.l.b16 %v3869
        %v3886 = vunpack.c.l.b16 %v3870
        %v3887 = vunpack.c.l.b16 %v3871
        %v3888 = vpack.c.b16 %v3885, %v3884
        %v3889 = vpack.c.b16 %v3887, %v3886
        %3892 = vmatprep.subr.bf16.mxu0 0
        %3893 = vmatpush1.bf16.msra.mxu0 %v3888
        %3894 = vmatprep.subr.bf16.mxu0 0
        %3895 = vmatpush1.bf16.msra.mxu0 %v3889
        %3896 = vmatprep.subr.bf16.mxu0 0
        %3897 = vmatpush1.bf16.msra.mxu0 0
        %3898 = vmatprep.subr.bf16.mxu0 0
        %3899 = vmatpush1.bf16.msra.mxu0 0
        %3900 = vmatprep.subr.bf16.mxu0 0
        %3901 = vmatpush1.bf16.msra.mxu0 0
        %3902 = vmatprep.subr.bf16.mxu0 0
        %3903 = vmatpush1.bf16.msra.mxu0 0
        %3904 = vmatprep.subr.bf16.mxu0 0
        %3905 = vmatpush1.bf16.msra.mxu0 0
        %3906 = vmatprep.subr.bf16.mxu0 0
        %3907 = vmatpush1.bf16.msra.mxu0 0
        %3908 = vmatprep.subr.bf16.mxu0 0
        %3909 = vmatpush1.bf16.msra.mxu0 0
        %3910 = vmatprep.subr.bf16.mxu0 0
        %3911 = vmatpush1.bf16.msra.mxu0 0
        %3912 = vmatprep.subr.bf16.mxu0 0
        %3913 = vmatpush1.bf16.msra.mxu0 0
        %3914 = vmatprep.subr.bf16.mxu0 0
        %3915 = vmatpush1.bf16.msra.mxu0 0
        %3916 = vmatprep.subr.bf16.mxu0 0
        %3917 = vmatpush1.bf16.msra.mxu0 0
        %3918 = vmatprep.subr.bf16.mxu0 0
        %3919 = vmatpush1.bf16.msra.mxu0 0
        %3920 = vmatprep.subr.bf16.mxu0 0
        %3921 = vmatpush1.bf16.msra.mxu0 0
        %3922 = vmatprep.subr.bf16.mxu0 0
        %3923 = vmatpush1.bf16.msra.mxu0 0
        %3924 = vmatprep.mubr.bf16.mxu0 0
        %3925 = vmatmul.mubr.bf16.gmra.mrb[0].mxu0 %v3478
        %v3926 = vpop.f32.mrb[0].mxu0
        %v3927 = vadd.f32 %v3878, %v3926
        %v3928 = vpop.f32.mrb[0].mxu0
        %v3929 = vpop.f32.mrb[0].mxu0
        %v3930 = vadd.f32 %v3878, %v3929
        %v3931 = vpop.f32.mrb[0].mxu0
        %3932 = vdwg.mxu0
        %s3933 = scalar_lea.vmem %s1332, 16
        %v3934 = vld [vmem:[%s3933] sm:$0xf]
        %v3935 = vld [vmem:[%s3933 + $0x4] sm:$0xf]
        %v3936 = vld [vmem:[%s3933 + $0x8] sm:$0xf]
        %v3937 = vld [vmem:[%s3933 + $0xc] sm:$0xf]
        %s3938 = scalar_lea.vmem %s1336, 1
        %v3939 = vld [vmem:[%s3938] sm:$0x1]
        %v3941 = vlaneseq
        %v3942 = vshrl.u32 %v3941, 7
        %v3943 = vsub.s32 0, %v3942
        %v3944 = vrot.slane %v3939, %v3943
        %v3950 = vunpack.c.l.b16 %v3934
        %v3951 = vunpack.c.l.b16 %v3935
        %v3952 = vunpack.c.l.b16 %v3936
        %v3953 = vunpack.c.l.b16 %v3937
        %v3954 = vpack.c.b16 %v3951, %v3950
        %v3955 = vpack.c.b16 %v3953, %v3952
        %3958 = vmatprep.subr.bf16.mxu0 0
        %3959 = vmatpush1.bf16.msra.mxu0 %v3954
        %3960 = vmatprep.subr.bf16.mxu0 0
        %3961 = vmatpush1.bf16.msra.mxu0 %v3955
        %3962 = vmatprep.subr.bf16.mxu0 0
        %3963 = vmatpush1.bf16.msra.mxu0 0
        %3964 = vmatprep.subr.bf16.mxu0 0
        %3965 = vmatpush1.bf16.msra.mxu0 0
        %3966 = vmatprep.subr.bf16.mxu0 0
        %3967 = vmatpush1.bf16.msra.mxu0 0
        %3968 = vmatprep.subr.bf16.mxu0 0
        %3969 = vmatpush1.bf16.msra.mxu0 0
        %3970 = vmatprep.subr.bf16.mxu0 0
        %3971 = vmatpush1.bf16.msra.mxu0 0
        %3972 = vmatprep.subr.bf16.mxu0 0
        %3973 = vmatpush1.bf16.msra.mxu0 0
        %3974 = vmatprep.subr.bf16.mxu0 0
        %3975 = vmatpush1.bf16.msra.mxu0 0
        %3976 = vmatprep.subr.bf16.mxu0 0
        %3977 = vmatpush1.bf16.msra.mxu0 0
        %3978 = vmatprep.subr.bf16.mxu0 0
        %3979 = vmatpush1.bf16.msra.mxu0 0
        %3980 = vmatprep.subr.bf16.mxu0 0
        %3981 = vmatpush1.bf16.msra.mxu0 0
        %3982 = vmatprep.subr.bf16.mxu0 0
        %3983 = vmatpush1.bf16.msra.mxu0 0
        %3984 = vmatprep.subr.bf16.mxu0 0
        %3985 = vmatpush1.bf16.msra.mxu0 0
        %3986 = vmatprep.subr.bf16.mxu0 0
        %3987 = vmatpush1.bf16.msra.mxu0 0
        %3988 = vmatprep.subr.bf16.mxu0 0
        %3989 = vmatpush1.bf16.msra.mxu0 0
        %3990 = vmatprep.mubr.bf16.mxu0 0
        %3991 = vmatmul.mubr.bf16.gmra.mrb[0].mxu0 %v3478
        %v3992 = vpop.f32.mrb[0].mxu0
        %v3993 = vadd.f32 %v3944, %v3992
        %v3994 = vpop.f32.mrb[0].mxu0
        %v3995 = vpop.f32.mrb[0].mxu0
        %v3996 = vadd.f32 %v3944, %v3995
        %v3997 = vpop.f32.mrb[0].mxu0
        %3998 = vdwg.mxu0
        %v3999 = vpack.c.bf16 %v3861, %v3861
        %v4000 = vpack.c.bf16 %v3864, %v3864
        %v4001 = vpack.c.bf16 %v3927, %v3927
        %v4002 = vpack.c.bf16 %v3930, %v3930
        %v4004 = vsel %vm1675, %v3999, 0
        %v4007 = vsel %vm1675, %v4001, 0
        %4009 = vmatprep.subr.bf16.mxu0 0
        %4010 = vmatpush1.bf16.xpose.msra.mxu0 %v4007
        %4011 = vmatprep.subr.bf16.mxu0 0
        %4012 = vmatpush1.bf16.xpose.msra.mxu0 0
        %4013 = vmatprep.subr.bf16.mxu0 0
        %4014 = vmatpush1.bf16.xpose.msra.mxu0 0
        %4015 = vmatprep.subr.bf16.mxu0 0
        %4016 = vmatpush1.bf16.xpose.msra.mxu0 0
        %4017 = vmatprep.subr.bf16.mxu0 0
        %4018 = vmatpush1.bf16.xpose.msra.mxu0 0
        %4019 = vmatprep.subr.bf16.mxu0 0
        %4020 = vmatpush1.bf16.xpose.msra.mxu0 0
        %4021 = vmatprep.subr.bf16.mxu0 0
        %4022 = vmatpush1.bf16.xpose.msra.mxu0 0
        %4023 = vmatprep.subr.bf16.mxu0 0
        %4024 = vmatpush1.bf16.xpose.msra.mxu0 0
        %4025 = vmatprep.subr.bf16.mxu0 0
        %4026 = vmatpush1.bf16.xpose.msra.mxu0 0
        %4027 = vmatprep.subr.bf16.mxu0 0
        %4028 = vmatpush1.bf16.xpose.msra.mxu0 0
        %4029 = vmatprep.subr.bf16.mxu0 0
        %4030 = vmatpush1.bf16.xpose.msra.mxu0 0
        %4031 = vmatprep.subr.bf16.mxu0 0
        %4032 = vmatpush1.bf16.xpose.msra.mxu0 0
        %4033 = vmatprep.subr.bf16.mxu0 0
        %4034 = vmatpush1.bf16.xpose.msra.mxu0 0
        %4035 = vmatprep.subr.bf16.mxu0 0
        %4036 = vmatpush1.bf16.xpose.msra.mxu0 0
        %4037 = vmatprep.subr.bf16.mxu0 0
        %4038 = vmatpush1.bf16.xpose.msra.mxu0 0
        %4039 = vmatprep.subr.bf16.mxu0 0
        %4040 = vmatpush1.bf16.xpose.msra.mxu0 0
        %4041 = vmatprep.mubr.bf16.mxu0 0
        %4042 = vmatmul.mubr.bf16.gmra.mrb[0].mxu0 %v4004
        %v4043 = vpop.f32.mrb[0].mxu0
        %v4044 = vadd.f32 %v1419, %v4043
        %v4045 = vpop.f32.mrb[0].mxu0
        %v4046 = vpop.f32.mrb[0].mxu0
        %v4047 = vpop.f32.mrb[0].mxu0
        %4048 = vdwg.mxu0
        %v4050 = vsel %vm1675, %v4000, 0
        %v4053 = vsel %vm1675, %v4002, 0
        %4055 = vmatprep.subr.bf16.mxu0 0
        %4056 = vmatpush1.bf16.xpose.msra.mxu0 %v4053
        %4057 = vmatprep.subr.bf16.mxu0 0
        %4058 = vmatpush1.bf16.xpose.msra.mxu0 0
        %4059 = vmatprep.subr.bf16.mxu0 0
        %4060 = vmatpush1.bf16.xpose.msra.mxu0 0
        %4061 = vmatprep.subr.bf16.mxu0 0
        %4062 = vmatpush1.bf16.xpose.msra.mxu0 0
        %4063 = vmatprep.subr.bf16.mxu0 0
        %4064 = vmatpush1.bf16.xpose.msra.mxu0 0
        %4065 = vmatprep.subr.bf16.mxu0 0
        %4066 = vmatpush1.bf16.xpose.msra.mxu0 0
        %4067 = vmatprep.subr.bf16.mxu0 0
        %4068 = vmatpush1.bf16.xpose.msra.mxu0 0
        %4069 = vmatprep.subr.bf16.mxu0 0
        %4070 = vmatpush1.bf16.xpose.msra.mxu0 0
        %4071 = vmatprep.subr.bf16.mxu0 0
        %4072 = vmatpush1.bf16.xpose.msra.mxu0 0
        %4073 = vmatprep.subr.bf16.mxu0 0
        %4074 = vmatpush1.bf16.xpose.msra.mxu0 0
        %4075 = vmatprep.subr.bf16.mxu0 0
        %4076 = vmatpush1.bf16.xpose.msra.mxu0 0
        %4077 = vmatprep.subr.bf16.mxu0 0
        %4078 = vmatpush1.bf16.xpose.msra.mxu0 0
        %4079 = vmatprep.subr.bf16.mxu0 0
        %4080 = vmatpush1.bf16.xpose.msra.mxu0 0
        %4081 = vmatprep.subr.bf16.mxu0 0
        %4082 = vmatpush1.bf16.xpose.msra.mxu0 0
        %4083 = vmatprep.subr.bf16.mxu0 0
        %4084 = vmatpush1.bf16.xpose.msra.mxu0 0
        %4085 = vmatprep.subr.bf16.mxu0 0
        %4086 = vmatpush1.bf16.xpose.msra.mxu0 0
        %4087 = vmatprep.mubr.bf16.mxu0 0
        %4088 = vmatmul.mubr.bf16.gmra.mrb[0].mxu0 %v4050
        %v4089 = vpop.f32.mrb[0].mxu0
        %v4090 = vadd.f32 %v1420, %v4089
        %v4091 = vpop.f32.mrb[0].mxu0
        %v4092 = vpop.f32.mrb[0].mxu0
        %v4093 = vpop.f32.mrb[0].mxu0
        %4094 = vdwg.mxu0
        %v4095 = vsel %vm1675, %v4044, -inf
        %4096 = vmax.xlane.f32.xlu0 %v4095
        %v4097 = vpop.xlane.xlu0 %4096
        %v4098 = vsel %vm1675, %v4090, -inf
        %4099 = vmax.xlane.f32.xlu0 %v4098
        %v4100 = vpop.xlane.xlu0 %4099
        %v4101 = vsub.f32 %v4044, %v4097
        %v4102 = vsub.f32 %v4090, %v4100
        %v4103 = vmul.f32 %v4101, 1.442695
        %v4104 = vpow.pop %v4103
        %v4105 = vmul.f32 %v4102, 1.442695
        %v4106 = vpow.pop %v4105
        %v4107 = vsel %vm1675, %v4104, 0.0
        %4108 = vadd.xlane.f32.xlu0 %v4107
        %v4109 = vpop.xlane.xlu0 %4108
        %v4110 = vsel %vm1675, %v4106, 0.0
        %4111 = vadd.xlane.f32.xlu0 %v4110
        %v4112 = vpop.xlane.xlu0 %4111
        %v4113 = vrcp.pop %v4109
        %v4114 = vrcp.pop %v4112
        %v4115 = vmul.f32 %v4104, %v4113
        %v4116 = vmul.f32 %v4106, %v4114
        %v4117 = vpack.c.bf16 %v4115, %v4115
        %v4118 = vpack.c.bf16 %v4116, %v4116
        %v4119 = vpack.c.bf16 %v3993, %v3993
        %v4120 = vpack.c.bf16 %v3996, %v3996
        %v4122 = vsel %vm1675, %v4117, 0
        %v4125 = vsel %vm1797, %v4119, 0
        %4127 = vmatprep.subr.bf16.mxu0 0
        %4128 = vmatpush1.bf16.msra.mxu0 %v4125
        %4129 = vmatprep.subr.bf16.mxu0 0
        %4130 = vmatpush1.bf16.msra.mxu0 0
        %4131 = vmatprep.subr.bf16.mxu0 0
        %4132 = vmatpush1.bf16.msra.mxu0 0
        %4133 = vmatprep.subr.bf16.mxu0 0
        %4134 = vmatpush1.bf16.msra.mxu0 0
        %4135 = vmatprep.subr.bf16.mxu0 0
        %4136 = vmatpush1.bf16.msra.mxu0 0
        %4137 = vmatprep.subr.bf16.mxu0 0
        %4138 = vmatpush1.bf16.msra.mxu0 0
        %4139 = vmatprep.subr.bf16.mxu0 0
        %4140 = vmatpush1.bf16.msra.mxu0 0
        %4141 = vmatprep.subr.bf16.mxu0 0
        %4142 = vmatpush1.bf16.msra.mxu0 0
        %4143 = vmatprep.subr.bf16.mxu0 0
        %4144 = vmatpush1.bf16.msra.mxu0 0
        %4145 = vmatprep.subr.bf16.mxu0 0
        %4146 = vmatpush1.bf16.msra.mxu0 0
        %4147 = vmatprep.subr.bf16.mxu0 0
        %4148 = vmatpush1.bf16.msra.mxu0 0
        %4149 = vmatprep.subr.bf16.mxu0 0
        %4150 = vmatpush1.bf16.msra.mxu0 0
        %4151 = vmatprep.subr.bf16.mxu0 0
        %4152 = vmatpush1.bf16.msra.mxu0 0
        %4153 = vmatprep.subr.bf16.mxu0 0
        %4154 = vmatpush1.bf16.msra.mxu0 0
        %4155 = vmatprep.subr.bf16.mxu0 0
        %4156 = vmatpush1.bf16.msra.mxu0 0
        %4157 = vmatprep.subr.bf16.mxu0 0
        %4158 = vmatpush1.bf16.msra.mxu0 0
        %4159 = vmatprep.mubr.bf16.mxu0 0
        %4160 = vmatmul.mubr.bf16.gmra.mrb[0].mxu0 %v4122
        %v4161 = vpop.f32.mrb[0].mxu0
        %v4162 = vadd.f32 0.0, %v4161
        %v4163 = vpop.f32.mrb[0].mxu0
        %v4164 = vpop.f32.mrb[0].mxu0
        %v4165 = vpop.f32.mrb[0].mxu0
        %4166 = vdwg.mxu0
        %v4168 = vsel %vm1675, %v4118, 0
        %v4171 = vsel %vm1797, %v4120, 0
        %4173 = vmatprep.subr.bf16.mxu0 0
        %4174 = vmatpush1.bf16.msra.mxu0 %v4171
        %4175 = vmatprep.subr.bf16.mxu0 0
        %4176 = vmatpush1.bf16.msra.mxu0 0
        %4177 = vmatprep.subr.bf16.mxu0 0
        %4178 = vmatpush1.bf16.msra.mxu0 0
        %4179 = vmatprep.subr.bf16.mxu0 0
        %4180 = vmatpush1.bf16.msra.mxu0 0
        %4181 = vmatprep.subr.bf16.mxu0 0
        %4182 = vmatpush1.bf16.msra.mxu0 0
        %4183 = vmatprep.subr.bf16.mxu0 0
        %4184 = vmatpush1.bf16.msra.mxu0 0
        %4185 = vmatprep.subr.bf16.mxu0 0
        %4186 = vmatpush1.bf16.msra.mxu0 0
        %4187 = vmatprep.subr.bf16.mxu0 0
        %4188 = vmatpush1.bf16.msra.mxu0 0
        %4189 = vmatprep.subr.bf16.mxu0 0
        %4190 = vmatpush1.bf16.msra.mxu0 0
        %4191 = vmatprep.subr.bf16.mxu0 0
        %4192 = vmatpush1.bf16.msra.mxu0 0
        %4193 = vmatprep.subr.bf16.mxu0 0
        %4194 = vmatpush1.bf16.msra.mxu0 0
        %4195 = vmatprep.subr.bf16.mxu0 0
        %4196 = vmatpush1.bf16.msra.mxu0 0
        %4197 = vmatprep.subr.bf16.mxu0 0
        %4198 = vmatpush1.bf16.msra.mxu0 0
        %4199 = vmatprep.subr.bf16.mxu0 0
        %4200 = vmatpush1.bf16.msra.mxu0 0
        %4201 = vmatprep.subr.bf16.mxu0 0
        %4202 = vmatpush1.bf16.msra.mxu0 0
        %4203 = vmatprep.subr.bf16.mxu0 0
        %4204 = vmatpush1.bf16.msra.mxu0 0
        %4205 = vmatprep.mubr.bf16.mxu0 0
        %4206 = vmatmul.mubr.bf16.gmra.mrb[0].mxu0 %v4168
        %v4207 = vpop.f32.mrb[0].mxu0
        %v4208 = vadd.f32 0.0, %v4207
        %v4209 = vpop.f32.mrb[0].mxu0
        %v4210 = vpop.f32.mrb[0].mxu0
        %v4211 = vpop.f32.mrb[0].mxu0
        %4212 = vdwg.mxu0
        %v4213 = vpack.c.bf16 %v4208, %v4162
        %s4214 = scalar_lea.vmem %s1341, 4
        %v4215 = vld [vmem:[%s4214] sm:$0xf]
        %v4217 = vsel %vm1675, %v4213, 0
        %v4220 = vsel %vm1797, %v4215, 0
        %4222 = vmatprep.subr.bf16.mxu0 0
        %4223 = vmatpush1.bf16.msra.mxu0 %v4220
        %4224 = vmatprep.subr.bf16.mxu0 0
        %4225 = vmatpush1.bf16.msra.mxu0 0
        %4226 = vmatprep.subr.bf16.mxu0 0
        %4227 = vmatpush1.bf16.msra.mxu0 0
        %4228 = vmatprep.subr.bf16.mxu0 0
        %4229 = vmatpush1.bf16.msra.mxu0 0
        %4230 = vmatprep.subr.bf16.mxu0 0
        %4231 = vmatpush1.bf16.msra.mxu0 0
        %4232 = vmatprep.subr.bf16.mxu0 0
        %4233 = vmatpush1.bf16.msra.mxu0 0
        %4234 = vmatprep.subr.bf16.mxu0 0
        %4235 = vmatpush1.bf16.msra.mxu0 0
        %4236 = vmatprep.subr.bf16.mxu0 0
        %4237 = vmatpush1.bf16.msra.mxu0 0
        %4238 = vmatprep.subr.bf16.mxu0 0
        %4239 = vmatpush1.bf16.msra.mxu0 0
        %4240 = vmatprep.subr.bf16.mxu0 0
        %4241 = vmatpush1.bf16.msra.mxu0 0
        %4242 = vmatprep.subr.bf16.mxu0 0
        %4243 = vmatpush1.bf16.msra.mxu0 0
        %4244 = vmatprep.subr.bf16.mxu0 0
        %4245 = vmatpush1.bf16.msra.mxu0 0
        %4246 = vmatprep.subr.bf16.mxu0 0
        %4247 = vmatpush1.bf16.msra.mxu0 0
        %4248 = vmatprep.subr.bf16.mxu0 0
        %4249 = vmatpush1.bf16.msra.mxu0 0
        %4250 = vmatprep.subr.bf16.mxu0 0
        %4251 = vmatpush1.bf16.msra.mxu0 0
        %4252 = vmatprep.subr.bf16.mxu0 0
        %4253 = vmatpush1.bf16.msra.mxu0 0
        %4254 = vmatprep.mubr.bf16.mxu0 0
        %4255 = vmatmul.mubr.bf16.gmra.mrb[0].mxu0 %v4217
        %v4256 = vpop.f32.mrb[0].mxu0
        %v4257 = vadd.f32 0.0, %v4256
        %v4258 = vpop.f32.mrb[0].mxu0
        %v4259 = vpop.f32.mrb[0].mxu0
        %v4260 = vadd.f32 0.0, %v4259
        %v4261 = vpop.f32.mrb[0].mxu0
        %4262 = vdwg.mxu0
        %v4264 = vsel %vm1675, %v3799, 0
        %v4267 = vsel %vm1797, %v3800, 0
        %4269 = vmatprep.subr.bf16.mxu0 0
        %4270 = vmatpush1.bf16.msra.mxu0 %v4267
        %4271 = vmatprep.subr.bf16.mxu0 0
        %4272 = vmatpush1.bf16.msra.mxu0 0
        %4273 = vmatprep.subr.bf16.mxu0 0
        %4274 = vmatpush1.bf16.msra.mxu0 0
        %4275 = vmatprep.subr.bf16.mxu0 0
        %4276 = vmatpush1.bf16.msra.mxu0 0
        %4277 = vmatprep.subr.bf16.mxu0 0
        %4278 = vmatpush1.bf16.msra.mxu0 0
        %4279 = vmatprep.subr.bf16.mxu0 0
        %4280 = vmatpush1.bf16.msra.mxu0 0
        %4281 = vmatprep.subr.bf16.mxu0 0
        %4282 = vmatpush1.bf16.msra.mxu0 0
        %4283 = vmatprep.subr.bf16.mxu0 0
        %4284 = vmatpush1.bf16.msra.mxu0 0
        %4285 = vmatprep.subr.bf16.mxu0 0
        %4286 = vmatpush1.bf16.msra.mxu0 0
        %4287 = vmatprep.subr.bf16.mxu0 0
        %4288 = vmatpush1.bf16.msra.mxu0 0
        %4289 = vmatprep.subr.bf16.mxu0 0
        %4290 = vmatpush1.bf16.msra.mxu0 0
        %4291 = vmatprep.subr.bf16.mxu0 0
        %4292 = vmatpush1.bf16.msra.mxu0 0
        %4293 = vmatprep.subr.bf16.mxu0 0
        %4294 = vmatpush1.bf16.msra.mxu0 0
        %4295 = vmatprep.subr.bf16.mxu0 0
        %4296 = vmatpush1.bf16.msra.mxu0 0
        %4297 = vmatprep.subr.bf16.mxu0 0
        %4298 = vmatpush1.bf16.msra.mxu0 0
        %4299 = vmatprep.subr.bf16.mxu0 0
        %4300 = vmatpush1.bf16.msra.mxu0 0
        %4301 = vmatprep.mubr.bf16.mxu0 0
        %4302 = vmatmul.mubr.bf16.gmra.mrb[0].mxu0 %v4264
        %v4303 = vpop.f32.mrb[0].mxu0
        %v4304 = vadd.f32 %v4257, %v4303
        %v4305 = vpop.f32.mrb[0].mxu0
        %v4306 = vpop.f32.mrb[0].mxu0
        %v4307 = vadd.f32 %v4260, %v4306
        %v4308 = vpop.f32.mrb[0].mxu0
        %4309 = vdwg.mxu0
        %s4310 = scalar_lea.vmem %s1314, 32
        %v4311 = vld [vmem:[%s4310] sm:$0xf]
        %v4312 = vld [vmem:[%s4310 + $0x4] sm:$0xf]
        %v4313 = vld [vmem:[%s4310 + $0x8] sm:$0xf]
        %v4314 = vld [vmem:[%s4310 + $0xc] sm:$0xf]
        %s4315 = scalar_lea.vmem %s1318, 2
        %v4316 = vld [vmem:[%s4315] sm:$0x1]
        %v4318 = vlaneseq
        %v4319 = vshrl.u32 %v4318, 7
        %v4320 = vsub.s32 0, %v4319
        %v4321 = vrot.slane %v4316, %v4320
        %v4327 = vunpack.c.l.b16 %v4311
        %v4328 = vunpack.c.l.b16 %v4312
        %v4329 = vunpack.c.l.b16 %v4313
        %v4330 = vunpack.c.l.b16 %v4314
        %v4331 = vpack.c.b16 %v4328, %v4327
        %v4332 = vpack.c.b16 %v4330, %v4329
        %4335 = vmatprep.subr.bf16.mxu0 0
        %4336 = vmatpush1.bf16.msra.mxu0 %v4331
        %4337 = vmatprep.subr.bf16.mxu0 0
        %4338 = vmatpush1.bf16.msra.mxu0 %v4332
        %4339 = vmatprep.subr.bf16.mxu0 0
        %4340 = vmatpush1.bf16.msra.mxu0 0
        %4341 = vmatprep.subr.bf16.mxu0 0
        %4342 = vmatpush1.bf16.msra.mxu0 0
        %4343 = vmatprep.subr.bf16.mxu0 0
        %4344 = vmatpush1.bf16.msra.mxu0 0
        %4345 = vmatprep.subr.bf16.mxu0 0
        %4346 = vmatpush1.bf16.msra.mxu0 0
        %4347 = vmatprep.subr.bf16.mxu0 0
        %4348 = vmatpush1.bf16.msra.mxu0 0
        %4349 = vmatprep.subr.bf16.mxu0 0
        %4350 = vmatpush1.bf16.msra.mxu0 0
        %4351 = vmatprep.subr.bf16.mxu0 0
        %4352 = vmatpush1.bf16.msra.mxu0 0
        %4353 = vmatprep.subr.bf16.mxu0 0
        %4354 = vmatpush1.bf16.msra.mxu0 0
        %4355 = vmatprep.subr.bf16.mxu0 0
        %4356 = vmatpush1.bf16.msra.mxu0 0
        %4357 = vmatprep.subr.bf16.mxu0 0
        %4358 = vmatpush1.bf16.msra.mxu0 0
        %4359 = vmatprep.subr.bf16.mxu0 0
        %4360 = vmatpush1.bf16.msra.mxu0 0
        %4361 = vmatprep.subr.bf16.mxu0 0
        %4362 = vmatpush1.bf16.msra.mxu0 0
        %4363 = vmatprep.subr.bf16.mxu0 0
        %4364 = vmatpush1.bf16.msra.mxu0 0
        %4365 = vmatprep.subr.bf16.mxu0 0
        %4366 = vmatpush1.bf16.msra.mxu0 0
        %4367 = vmatprep.mubr.bf16.mxu0 0
        %4368 = vmatmul.mubr.bf16.gmra.mrb[0].mxu0 %v3411
        %v4369 = vpop.f32.mrb[0].mxu0
        %v4370 = vadd.f32 %v4321, %v4369
        %v4371 = vpop.f32.mrb[0].mxu0
        %v4372 = vpop.f32.mrb[0].mxu0
        %v4373 = vadd.f32 %v4321, %v4372
        %v4374 = vpop.f32.mrb[0].mxu0
        %4375 = vdwg.mxu0
        %s4376 = scalar_lea.vmem %s1323, 32
        %v4377 = vld [vmem:[%s4376] sm:$0xf]
        %v4378 = vld [vmem:[%s4376 + $0x4] sm:$0xf]
        %v4379 = vld [vmem:[%s4376 + $0x8] sm:$0xf]
        %v4380 = vld [vmem:[%s4376 + $0xc] sm:$0xf]
        %s4381 = scalar_lea.vmem %s1327, 2
        %v4382 = vld [vmem:[%s4381] sm:$0x1]
        %v4384 = vlaneseq
        %v4385 = vshrl.u32 %v4384, 7
        %v4386 = vsub.s32 0, %v4385
        %v4387 = vrot.slane %v4382, %v4386
        %v4393 = vunpack.c.l.b16 %v4377
        %v4394 = vunpack.c.l.b16 %v4378
        %v4395 = vunpack.c.l.b16 %v4379
        %v4396 = vunpack.c.l.b16 %v4380
        %v4397 = vpack.c.b16 %v4394, %v4393
        %v4398 = vpack.c.b16 %v4396, %v4395
        %4401 = vmatprep.subr.bf16.mxu0 0
        %4402 = vmatpush1.bf16.msra.mxu0 %v4397
        %4403 = vmatprep.subr.bf16.mxu0 0
        %4404 = vmatpush1.bf16.msra.mxu0 %v4398
        %4405 = vmatprep.subr.bf16.mxu0 0
        %4406 = vmatpush1.bf16.msra.mxu0 0
        %4407 = vmatprep.subr.bf16.mxu0 0
        %4408 = vmatpush1.bf16.msra.mxu0 0
        %4409 = vmatprep.subr.bf16.mxu0 0
        %4410 = vmatpush1.bf16.msra.mxu0 0
        %4411 = vmatprep.subr.bf16.mxu0 0
        %4412 = vmatpush1.bf16.msra.mxu0 0
        %4413 = vmatprep.subr.bf16.mxu0 0
        %4414 = vmatpush1.bf16.msra.mxu0 0
        %4415 = vmatprep.subr.bf16.mxu0 0
        %4416 = vmatpush1.bf16.msra.mxu0 0
        %4417 = vmatprep.subr.bf16.mxu0 0
        %4418 = vmatpush1.bf16.msra.mxu0 0
        %4419 = vmatprep.subr.bf16.mxu0 0
        %4420 = vmatpush1.bf16.msra.mxu0 0
        %4421 = vmatprep.subr.bf16.mxu0 0
        %4422 = vmatpush1.bf16.msra.mxu0 0
        %4423 = vmatprep.subr.bf16.mxu0 0
        %4424 = vmatpush1.bf16.msra.mxu0 0
        %4425 = vmatprep.subr.bf16.mxu0 0
        %4426 = vmatpush1.bf16.msra.mxu0 0
        %4427 = vmatprep.subr.bf16.mxu0 0
        %4428 = vmatpush1.bf16.msra.mxu0 0
        %4429 = vmatprep.subr.bf16.mxu0 0
        %4430 = vmatpush1.bf16.msra.mxu0 0
        %4431 = vmatprep.subr.bf16.mxu0 0
        %4432 = vmatpush1.bf16.msra.mxu0 0
        %4433 = vmatprep.mubr.bf16.mxu0 0
        %4434 = vmatmul.mubr.bf16.gmra.mrb[0].mxu0 %v3478
        %v4435 = vpop.f32.mrb[0].mxu0
        %v4436 = vadd.f32 %v4387, %v4435
        %v4437 = vpop.f32.mrb[0].mxu0
        %v4438 = vpop.f32.mrb[0].mxu0
        %v4439 = vadd.f32 %v4387, %v4438
        %v4440 = vpop.f32.mrb[0].mxu0
        %4441 = vdwg.mxu0
        %s4442 = scalar_lea.vmem %s1332, 32
        %v4443 = vld [vmem:[%s4442] sm:$0xf]
        %v4444 = vld [vmem:[%s4442 + $0x4] sm:$0xf]
        %v4445 = vld [vmem:[%s4442 + $0x8] sm:$0xf]
        %v4446 = vld [vmem:[%s4442 + $0xc] sm:$0xf]
        %s4447 = scalar_lea.vmem %s1336, 2
        %v4448 = vld [vmem:[%s4447] sm:$0x1]
        %v4450 = vlaneseq
        %v4451 = vshrl.u32 %v4450, 7
        %v4452 = vsub.s32 0, %v4451
        %v4453 = vrot.slane %v4448, %v4452
        %v4459 = vunpack.c.l.b16 %v4443
        %v4460 = vunpack.c.l.b16 %v4444
        %v4461 = vunpack.c.l.b16 %v4445
        %v4462 = vunpack.c.l.b16 %v4446
        %v4463 = vpack.c.b16 %v4460, %v4459
        %v4464 = vpack.c.b16 %v4462, %v4461
        %4467 = vmatprep.subr.bf16.mxu0 0
        %4468 = vmatpush1.bf16.msra.mxu0 %v4463
        %4469 = vmatprep.subr.bf16.mxu0 0
        %4470 = vmatpush1.bf16.msra.mxu0 %v4464
        %4471 = vmatprep.subr.bf16.mxu0 0
        %4472 = vmatpush1.bf16.msra.mxu0 0
        %4473 = vmatprep.subr.bf16.mxu0 0
        %4474 = vmatpush1.bf16.msra.mxu0 0
        %4475 = vmatprep.subr.bf16.mxu0 0
        %4476 = vmatpush1.bf16.msra.mxu0 0
        %4477 = vmatprep.subr.bf16.mxu0 0
        %4478 = vmatpush1.bf16.msra.mxu0 0
        %4479 = vmatprep.subr.bf16.mxu0 0
        %4480 = vmatpush1.bf16.msra.mxu0 0
        %4481 = vmatprep.subr.bf16.mxu0 0
        %4482 = vmatpush1.bf16.msra.mxu0 0
        %4483 = vmatprep.subr.bf16.mxu0 0
        %4484 = vmatpush1.bf16.msra.mxu0 0
        %4485 = vmatprep.subr.bf16.mxu0 0
        %4486 = vmatpush1.bf16.msra.mxu0 0
        %4487 = vmatprep.subr.bf16.mxu0 0
        %4488 = vmatpush1.bf16.msra.mxu0 0
        %4489 = vmatprep.subr.bf16.mxu0 0
        %4490 = vmatpush1.bf16.msra.mxu0 0
        %4491 = vmatprep.subr.bf16.mxu0 0
        %4492 = vmatpush1.bf16.msra.mxu0 0
        %4493 = vmatprep.subr.bf16.mxu0 0
        %4494 = vmatpush1.bf16.msra.mxu0 0
        %4495 = vmatprep.subr.bf16.mxu0 0
        %4496 = vmatpush1.bf16.msra.mxu0 0
        %4497 = vmatprep.subr.bf16.mxu0 0
        %4498 = vmatpush1.bf16.msra.mxu0 0
        %4499 = vmatprep.mubr.bf16.mxu0 0
        %4500 = vmatmul.mubr.bf16.gmra.mrb[0].mxu0 %v3478
        %v4501 = vpop.f32.mrb[0].mxu0
        %v4502 = vadd.f32 %v4453, %v4501
        %v4503 = vpop.f32.mrb[0].mxu0
        %v4504 = vpop.f32.mrb[0].mxu0
        %v4505 = vadd.f32 %v4453, %v4504
        %v4506 = vpop.f32.mrb[0].mxu0
        %4507 = vdwg.mxu0
        %v4508 = vpack.c.bf16 %v4370, %v4370
        %v4509 = vpack.c.bf16 %v4373, %v4373
        %v4510 = vpack.c.bf16 %v4436, %v4436
        %v4511 = vpack.c.bf16 %v4439, %v4439
        %v4513 = vsel %vm1675, %v4508, 0
        %v4516 = vsel %vm1675, %v4510, 0
        %4518 = vmatprep.subr.bf16.mxu0 0
        %4519 = vmatpush1.bf16.xpose.msra.mxu0 %v4516
        %4520 = vmatprep.subr.bf16.mxu0 0
        %4521 = vmatpush1.bf16.xpose.msra.mxu0 0
        %4522 = vmatprep.subr.bf16.mxu0 0
        %4523 = vmatpush1.bf16.xpose.msra.mxu0 0
        %4524 = vmatprep.subr.bf16.mxu0 0
        %4525 = vmatpush1.bf16.xpose.msra.mxu0 0
        %4526 = vmatprep.subr.bf16.mxu0 0
        %4527 = vmatpush1.bf16.xpose.msra.mxu0 0
        %4528 = vmatprep.subr.bf16.mxu0 0
        %4529 = vmatpush1.bf16.xpose.msra.mxu0 0
        %4530 = vmatprep.subr.bf16.mxu0 0
        %4531 = vmatpush1.bf16.xpose.msra.mxu0 0
        %4532 = vmatprep.subr.bf16.mxu0 0
        %4533 = vmatpush1.bf16.xpose.msra.mxu0 0
        %4534 = vmatprep.subr.bf16.mxu0 0
        %4535 = vmatpush1.bf16.xpose.msra.mxu0 0
        %4536 = vmatprep.subr.bf16.mxu0 0
        %4537 = vmatpush1.bf16.xpose.msra.mxu0 0
        %4538 = vmatprep.subr.bf16.mxu0 0
        %4539 = vmatpush1.bf16.xpose.msra.mxu0 0
        %4540 = vmatprep.subr.bf16.mxu0 0
        %4541 = vmatpush1.bf16.xpose.msra.mxu0 0
        %4542 = vmatprep.subr.bf16.mxu0 0
        %4543 = vmatpush1.bf16.xpose.msra.mxu0 0
        %4544 = vmatprep.subr.bf16.mxu0 0
        %4545 = vmatpush1.bf16.xpose.msra.mxu0 0
        %4546 = vmatprep.subr.bf16.mxu0 0
        %4547 = vmatpush1.bf16.xpose.msra.mxu0 0
        %4548 = vmatprep.subr.bf16.mxu0 0
        %4549 = vmatpush1.bf16.xpose.msra.mxu0 0
        %4550 = vmatprep.mubr.bf16.mxu0 0
        %4551 = vmatmul.mubr.bf16.gmra.mrb[0].mxu0 %v4513
        %v4552 = vpop.f32.mrb[0].mxu0
        %v4553 = vadd.f32 %v1419, %v4552
        %v4554 = vpop.f32.mrb[0].mxu0
        %v4555 = vpop.f32.mrb[0].mxu0
        %v4556 = vpop.f32.mrb[0].mxu0
        %4557 = vdwg.mxu0
        %v4559 = vsel %vm1675, %v4509, 0
        %v4562 = vsel %vm1675, %v4511, 0
        %4564 = vmatprep.subr.bf16.mxu0 0
        %4565 = vmatpush1.bf16.xpose.msra.mxu0 %v4562
        %4566 = vmatprep.subr.bf16.mxu0 0
        %4567 = vmatpush1.bf16.xpose.msra.mxu0 0
        %4568 = vmatprep.subr.bf16.mxu0 0
        %4569 = vmatpush1.bf16.xpose.msra.mxu0 0
        %4570 = vmatprep.subr.bf16.mxu0 0
        %4571 = vmatpush1.bf16.xpose.msra.mxu0 0
        %4572 = vmatprep.subr.bf16.mxu0 0
        %4573 = vmatpush1.bf16.xpose.msra.mxu0 0
        %4574 = vmatprep.subr.bf16.mxu0 0
        %4575 = vmatpush1.bf16.xpose.msra.mxu0 0
        %4576 = vmatprep.subr.bf16.mxu0 0
        %4577 = vmatpush1.bf16.xpose.msra.mxu0 0
        %4578 = vmatprep.subr.bf16.mxu0 0
        %4579 = vmatpush1.bf16.xpose.msra.mxu0 0
        %4580 = vmatprep.subr.bf16.mxu0 0
        %4581 = vmatpush1.bf16.xpose.msra.mxu0 0
        %4582 = vmatprep.subr.bf16.mxu0 0
        %4583 = vmatpush1.bf16.xpose.msra.mxu0 0
        %4584 = vmatprep.subr.bf16.mxu0 0
        %4585 = vmatpush1.bf16.xpose.msra.mxu0 0
        %4586 = vmatprep.subr.bf16.mxu0 0
        %4587 = vmatpush1.bf16.xpose.msra.mxu0 0
        %4588 = vmatprep.subr.bf16.mxu0 0
        %4589 = vmatpush1.bf16.xpose.msra.mxu0 0
        %4590 = vmatprep.subr.bf16.mxu0 0
        %4591 = vmatpush1.bf16.xpose.msra.mxu0 0
        %4592 = vmatprep.subr.bf16.mxu0 0
        %4593 = vmatpush1.bf16.xpose.msra.mxu0 0
        %4594 = vmatprep.subr.bf16.mxu0 0
        %4595 = vmatpush1.bf16.xpose.msra.mxu0 0
        %4596 = vmatprep.mubr.bf16.mxu0 0
        %4597 = vmatmul.mubr.bf16.gmra.mrb[0].mxu0 %v4559
        %v4598 = vpop.f32.mrb[0].mxu0
        %v4599 = vadd.f32 %v1420, %v4598
        %v4600 = vpop.f32.mrb[0].mxu0
        %v4601 = vpop.f32.mrb[0].mxu0
        %v4602 = vpop.f32.mrb[0].mxu0
        %4603 = vdwg.mxu0
        %v4604 = vsel %vm1675, %v4553, -inf
        %4605 = vmax.xlane.f32.xlu0 %v4604
        %v4606 = vpop.xlane.xlu0 %4605
        %v4607 = vsel %vm1675, %v4599, -inf
        %4608 = vmax.xlane.f32.xlu0 %v4607
        %v4609 = vpop.xlane.xlu0 %4608
        %v4610 = vsub.f32 %v4553, %v4606
        %v4611 = vsub.f32 %v4599, %v4609
        %v4612 = vmul.f32 %v4610, 1.442695
        %v4613 = vpow.pop %v4612
        %v4614 = vmul.f32 %v4611, 1.442695
        %v4615 = vpow.pop %v4614
        %v4616 = vsel %vm1675, %v4613, 0.0
        %4617 = vadd.xlane.f32.xlu0 %v4616
        %v4618 = vpop.xlane.xlu0 %4617
        %v4619 = vsel %vm1675, %v4615, 0.0
        %4620 = vadd.xlane.f32.xlu0 %v4619
        %v4621 = vpop.xlane.xlu0 %4620
        %v4622 = vrcp.pop %v4618
        %v4623 = vrcp.pop %v4621
        %v4624 = vmul.f32 %v4613, %v4622
        %v4625 = vmul.f32 %v4615, %v4623
        %v4626 = vpack.c.bf16 %v4624, %v4624
        %v4627 = vpack.c.bf16 %v4625, %v4625
        %v4628 = vpack.c.bf16 %v4502, %v4502
        %v4629 = vpack.c.bf16 %v4505, %v4505
        %v4631 = vsel %vm1675, %v4626, 0
        %v4634 = vsel %vm1797, %v4628, 0
        %4636 = vmatprep.subr.bf16.mxu0 0
        %4637 = vmatpush1.bf16.msra.mxu0 %v4634
        %4638 = vmatprep.subr.bf16.mxu0 0
        %4639 = vmatpush1.bf16.msra.mxu0 0
        %4640 = vmatprep.subr.bf16.mxu0 0
        %4641 = vmatpush1.bf16.msra.mxu0 0
        %4642 = vmatprep.subr.bf16.mxu0 0
        %4643 = vmatpush1.bf16.msra.mxu0 0
        %4644 = vmatprep.subr.bf16.mxu0 0
        %4645 = vmatpush1.bf16.msra.mxu0 0
        %4646 = vmatprep.subr.bf16.mxu0 0
        %4647 = vmatpush1.bf16.msra.mxu0 0
        %4648 = vmatprep.subr.bf16.mxu0 0
        %4649 = vmatpush1.bf16.msra.mxu0 0
        %4650 = vmatprep.subr.bf16.mxu0 0
        %4651 = vmatpush1.bf16.msra.mxu0 0
        %4652 = vmatprep.subr.bf16.mxu0 0
        %4653 = vmatpush1.bf16.msra.mxu0 0
        %4654 = vmatprep.subr.bf16.mxu0 0
        %4655 = vmatpush1.bf16.msra.mxu0 0
        %4656 = vmatprep.subr.bf16.mxu0 0
        %4657 = vmatpush1.bf16.msra.mxu0 0
        %4658 = vmatprep.subr.bf16.mxu0 0
        %4659 = vmatpush1.bf16.msra.mxu0 0
        %4660 = vmatprep.subr.bf16.mxu0 0
        %4661 = vmatpush1.bf16.msra.mxu0 0
        %4662 = vmatprep.subr.bf16.mxu0 0
        %4663 = vmatpush1.bf16.msra.mxu0 0
        %4664 = vmatprep.subr.bf16.mxu0 0
        %4665 = vmatpush1.bf16.msra.mxu0 0
        %4666 = vmatprep.subr.bf16.mxu0 0
        %4667 = vmatpush1.bf16.msra.mxu0 0
        %4668 = vmatprep.mubr.bf16.mxu0 0
        %4669 = vmatmul.mubr.bf16.gmra.mrb[0].mxu0 %v4631
        %v4670 = vpop.f32.mrb[0].mxu0
        %v4671 = vadd.f32 0.0, %v4670
        %v4672 = vpop.f32.mrb[0].mxu0
        %v4673 = vpop.f32.mrb[0].mxu0
        %v4674 = vpop.f32.mrb[0].mxu0
        %4675 = vdwg.mxu0
        %v4677 = vsel %vm1675, %v4627, 0
        %v4680 = vsel %vm1797, %v4629, 0
        %4682 = vmatprep.subr.bf16.mxu0 0
        %4683 = vmatpush1.bf16.msra.mxu0 %v4680
        %4684 = vmatprep.subr.bf16.mxu0 0
        %4685 = vmatpush1.bf16.msra.mxu0 0
        %4686 = vmatprep.subr.bf16.mxu0 0
        %4687 = vmatpush1.bf16.msra.mxu0 0
        %4688 = vmatprep.subr.bf16.mxu0 0
        %4689 = vmatpush1.bf16.msra.mxu0 0
        %4690 = vmatprep.subr.bf16.mxu0 0
        %4691 = vmatpush1.bf16.msra.mxu0 0
        %4692 = vmatprep.subr.bf16.mxu0 0
        %4693 = vmatpush1.bf16.msra.mxu0 0
        %4694 = vmatprep.subr.bf16.mxu0 0
        %4695 = vmatpush1.bf16.msra.mxu0 0
        %4696 = vmatprep.subr.bf16.mxu0 0
        %4697 = vmatpush1.bf16.msra.mxu0 0
        %4698 = vmatprep.subr.bf16.mxu0 0
        %4699 = vmatpush1.bf16.msra.mxu0 0
        %4700 = vmatprep.subr.bf16.mxu0 0
        %4701 = vmatpush1.bf16.msra.mxu0 0
        %4702 = vmatprep.subr.bf16.mxu0 0
        %4703 = vmatpush1.bf16.msra.mxu0 0
        %4704 = vmatprep.subr.bf16.mxu0 0
        %4705 = vmatpush1.bf16.msra.mxu0 0
        %4706 = vmatprep.subr.bf16.mxu0 0
        %4707 = vmatpush1.bf16.msra.mxu0 0
        %4708 = vmatprep.subr.bf16.mxu0 0
        %4709 = vmatpush1.bf16.msra.mxu0 0
        %4710 = vmatprep.subr.bf16.mxu0 0
        %4711 = vmatpush1.bf16.msra.mxu0 0
        %4712 = vmatprep.subr.bf16.mxu0 0
        %4713 = vmatpush1.bf16.msra.mxu0 0
        %4714 = vmatprep.mubr.bf16.mxu0 0
        %4715 = vmatmul.mubr.bf16.gmra.mrb[0].mxu0 %v4677
        %v4716 = vpop.f32.mrb[0].mxu0
        %v4717 = vadd.f32 0.0, %v4716
        %v4718 = vpop.f32.mrb[0].mxu0
        %v4719 = vpop.f32.mrb[0].mxu0
        %v4720 = vpop.f32.mrb[0].mxu0
        %4721 = vdwg.mxu0
        %v4722 = vpack.c.bf16 %v4717, %v4671
        %s4723 = scalar_lea.vmem %s1341, 8
        %v4724 = vld [vmem:[%s4723] sm:$0xf]
        %v4726 = vsel %vm1675, %v4722, 0
        %v4729 = vsel %vm1797, %v4724, 0
        %4731 = vmatprep.subr.bf16.mxu0 0
        %4732 = vmatpush1.bf16.msra.mxu0 %v4729
        %4733 = vmatprep.subr.bf16.mxu0 0
        %4734 = vmatpush1.bf16.msra.mxu0 0
        %4735 = vmatprep.subr.bf16.mxu0 0
        %4736 = vmatpush1.bf16.msra.mxu0 0
        %4737 = vmatprep.subr.bf16.mxu0 0
        %4738 = vmatpush1.bf16.msra.mxu0 0
        %4739 = vmatprep.subr.bf16.mxu0 0
        %4740 = vmatpush1.bf16.msra.mxu0 0
        %4741 = vmatprep.subr.bf16.mxu0 0
        %4742 = vmatpush1.bf16.msra.mxu0 0
        %4743 = vmatprep.subr.bf16.mxu0 0
        %4744 = vmatpush1.bf16.msra.mxu0 0
        %4745 = vmatprep.subr.bf16.mxu0 0
        %4746 = vmatpush1.bf16.msra.mxu0 0
        %4747 = vmatprep.subr.bf16.mxu0 0
        %4748 = vmatpush1.bf16.msra.mxu0 0
        %4749 = vmatprep.subr.bf16.mxu0 0
        %4750 = vmatpush1.bf16.msra.mxu0 0
        %4751 = vmatprep.subr.bf16.mxu0 0
        %4752 = vmatpush1.bf16.msra.mxu0 0
        %4753 = vmatprep.subr.bf16.mxu0 0
        %4754 = vmatpush1.bf16.msra.mxu0 0
        %4755 = vmatprep.subr.bf16.mxu0 0
        %4756 = vmatpush1.bf16.msra.mxu0 0
        %4757 = vmatprep.subr.bf16.mxu0 0
        %4758 = vmatpush1.bf16.msra.mxu0 0
        %4759 = vmatprep.subr.bf16.mxu0 0
        %4760 = vmatpush1.bf16.msra.mxu0 0
        %4761 = vmatprep.subr.bf16.mxu0 0
        %4762 = vmatpush1.bf16.msra.mxu0 0
        %4763 = vmatprep.mubr.bf16.mxu0 0
        %4764 = vmatmul.mubr.bf16.gmra.mrb[0].mxu0 %v4726
        %v4765 = vpop.f32.mrb[0].mxu0
        %v4766 = vadd.f32 0.0, %v4765
        %v4767 = vpop.f32.mrb[0].mxu0
        %v4768 = vpop.f32.mrb[0].mxu0
        %v4769 = vadd.f32 0.0, %v4768
        %v4770 = vpop.f32.mrb[0].mxu0
        %4771 = vdwg.mxu0
        %v4772 = vadd.f32 %v4304, %v4766
        %v4773 = vadd.f32 %v4307, %v4769
        %s4774 = scalar_lea.vmem %s1314, 48
        %v4775 = vld [vmem:[%s4774] sm:$0xf]
        %v4776 = vld [vmem:[%s4774 + $0x4] sm:$0xf]
        %v4777 = vld [vmem:[%s4774 + $0x8] sm:$0xf]
        %v4778 = vld [vmem:[%s4774 + $0xc] sm:$0xf]
        %s4779 = scalar_lea.vmem %s1318, 3
        %v4780 = vld [vmem:[%s4779] sm:$0x1]
        %v4782 = vlaneseq
        %v4783 = vshrl.u32 %v4782, 7
        %v4784 = vsub.s32 0, %v4783
        %v4785 = vrot.slane %v4780, %v4784
        %v4791 = vunpack.c.l.b16 %v4775
        %v4792 = vunpack.c.l.b16 %v4776
        %v4793 = vunpack.c.l.b16 %v4777
        %v4794 = vunpack.c.l.b16 %v4778
        %v4795 = vpack.c.b16 %v4792, %v4791
        %v4796 = vpack.c.b16 %v4794, %v4793
        %4799 = vmatprep.subr.bf16.mxu0 0
        %4800 = vmatpush1.bf16.msra.mxu0 %v4795
        %4801 = vmatprep.subr.bf16.mxu0 0
        %4802 = vmatpush1.bf16.msra.mxu0 %v4796
        %4803 = vmatprep.subr.bf16.mxu0 0
        %4804 = vmatpush1.bf16.msra.mxu0 0
        %4805 = vmatprep.subr.bf16.mxu0 0
        %4806 = vmatpush1.bf16.msra.mxu0 0
        %4807 = vmatprep.subr.bf16.mxu0 0
        %4808 = vmatpush1.bf16.msra.mxu0 0
        %4809 = vmatprep.subr.bf16.mxu0 0
        %4810 = vmatpush1.bf16.msra.mxu0 0
        %4811 = vmatprep.subr.bf16.mxu0 0
        %4812 = vmatpush1.bf16.msra.mxu0 0
        %4813 = vmatprep.subr.bf16.mxu0 0
        %4814 = vmatpush1.bf16.msra.mxu0 0
        %4815 = vmatprep.subr.bf16.mxu0 0
        %4816 = vmatpush1.bf16.msra.mxu0 0
        %4817 = vmatprep.subr.bf16.mxu0 0
        %4818 = vmatpush1.bf16.msra.mxu0 0
        %4819 = vmatprep.subr.bf16.mxu0 0
        %4820 = vmatpush1.bf16.msra.mxu0 0
        %4821 = vmatprep.subr.bf16.mxu0 0
        %4822 = vmatpush1.bf16.msra.mxu0 0
        %4823 = vmatprep.subr.bf16.mxu0 0
        %4824 = vmatpush1.bf16.msra.mxu0 0
        %4825 = vmatprep.subr.bf16.mxu0 0
        %4826 = vmatpush1.bf16.msra.mxu0 0
        %4827 = vmatprep.subr.bf16.mxu0 0
        %4828 = vmatpush1.bf16.msra.mxu0 0
        %4829 = vmatprep.subr.bf16.mxu0 0
        %4830 = vmatpush1.bf16.msra.mxu0 0
        %4831 = vmatprep.mubr.bf16.mxu0 0
        %4832 = vmatmul.mubr.bf16.gmra.mrb[0].mxu0 %v3411
        %v4833 = vpop.f32.mrb[0].mxu0
        %v4834 = vadd.f32 %v4785, %v4833
        %v4835 = vpop.f32.mrb[0].mxu0
        %v4836 = vpop.f32.mrb[0].mxu0
        %v4837 = vadd.f32 %v4785, %v4836
        %v4838 = vpop.f32.mrb[0].mxu0
        %4839 = vdwg.mxu0
        %s4840 = scalar_lea.vmem %s1323, 48
        %v4841 = vld [vmem:[%s4840] sm:$0xf]
        %v4842 = vld [vmem:[%s4840 + $0x4] sm:$0xf]
        %v4843 = vld [vmem:[%s4840 + $0x8] sm:$0xf]
        %v4844 = vld [vmem:[%s4840 + $0xc] sm:$0xf]
        %s4845 = scalar_lea.vmem %s1327, 3
        %v4846 = vld [vmem:[%s4845] sm:$0x1]
        %v4848 = vlaneseq
        %v4849 = vshrl.u32 %v4848, 7
        %v4850 = vsub.s32 0, %v4849
        %v4851 = vrot.slane %v4846, %v4850
        %v4857 = vunpack.c.l.b16 %v4841
        %v4858 = vunpack.c.l.b16 %v4842
        %v4859 = vunpack.c.l.b16 %v4843
        %v4860 = vunpack.c.l.b16 %v4844
        %v4861 = vpack.c.b16 %v4858, %v4857
        %v4862 = vpack.c.b16 %v4860, %v4859
        %4865 = vmatprep.subr.bf16.mxu0 0
        %4866 = vmatpush1.bf16.msra.mxu0 %v4861
        %4867 = vmatprep.subr.bf16.mxu0 0
        %4868 = vmatpush1.bf16.msra.mxu0 %v4862
        %4869 = vmatprep.subr.bf16.mxu0 0
        %4870 = vmatpush1.bf16.msra.mxu0 0
        %4871 = vmatprep.subr.bf16.mxu0 0
        %4872 = vmatpush1.bf16.msra.mxu0 0
        %4873 = vmatprep.subr.bf16.mxu0 0
        %4874 = vmatpush1.bf16.msra.mxu0 0
        %4875 = vmatprep.subr.bf16.mxu0 0
        %4876 = vmatpush1.bf16.msra.mxu0 0
        %4877 = vmatprep.subr.bf16.mxu0 0
        %4878 = vmatpush1.bf16.msra.mxu0 0
        %4879 = vmatprep.subr.bf16.mxu0 0
        %4880 = vmatpush1.bf16.msra.mxu0 0
        %4881 = vmatprep.subr.bf16.mxu0 0
        %4882 = vmatpush1.bf16.msra.mxu0 0
        %4883 = vmatprep.subr.bf16.mxu0 0
        %4884 = vmatpush1.bf16.msra.mxu0 0
        %4885 = vmatprep.subr.bf16.mxu0 0
        %4886 = vmatpush1.bf16.msra.mxu0 0
        %4887 = vmatprep.subr.bf16.mxu0 0
        %4888 = vmatpush1.bf16.msra.mxu0 0
        %4889 = vmatprep.subr.bf16.mxu0 0
        %4890 = vmatpush1.bf16.msra.mxu0 0
        %4891 = vmatprep.subr.bf16.mxu0 0
        %4892 = vmatpush1.bf16.msra.mxu0 0
        %4893 = vmatprep.subr.bf16.mxu0 0
        %4894 = vmatpush1.bf16.msra.mxu0 0
        %4895 = vmatprep.subr.bf16.mxu0 0
        %4896 = vmatpush1.bf16.msra.mxu0 0
        %4897 = vmatprep.mubr.bf16.mxu0 0
        %4898 = vmatmul.mubr.bf16.gmra.mrb[0].mxu0 %v3478
        %v4899 = vpop.f32.mrb[0].mxu0
        %v4900 = vadd.f32 %v4851, %v4899
        %v4901 = vpop.f32.mrb[0].mxu0
        %v4902 = vpop.f32.mrb[0].mxu0
        %v4903 = vadd.f32 %v4851, %v4902
        %v4904 = vpop.f32.mrb[0].mxu0
        %4905 = vdwg.mxu0
        %s4906 = scalar_lea.vmem %s1332, 48
        %v4907 = vld [vmem:[%s4906] sm:$0xf]
        %v4908 = vld [vmem:[%s4906 + $0x4] sm:$0xf]
        %v4909 = vld [vmem:[%s4906 + $0x8] sm:$0xf]
        %v4910 = vld [vmem:[%s4906 + $0xc] sm:$0xf]
        %s4911 = scalar_lea.vmem %s1336, 3
        %v4912 = vld [vmem:[%s4911] sm:$0x1]
        %v4914 = vlaneseq
        %v4915 = vshrl.u32 %v4914, 7
        %v4916 = vsub.s32 0, %v4915
        %v4917 = vrot.slane %v4912, %v4916
        %v4923 = vunpack.c.l.b16 %v4907
        %v4924 = vunpack.c.l.b16 %v4908
        %v4925 = vunpack.c.l.b16 %v4909
        %v4926 = vunpack.c.l.b16 %v4910
        %v4927 = vpack.c.b16 %v4924, %v4923
        %v4928 = vpack.c.b16 %v4926, %v4925
        %4931 = vmatprep.subr.bf16.mxu0 0
        %4932 = vmatpush1.bf16.msra.mxu0 %v4927
        %4933 = vmatprep.subr.bf16.mxu0 0
        %4934 = vmatpush1.bf16.msra.mxu0 %v4928
        %4935 = vmatprep.subr.bf16.mxu0 0
        %4936 = vmatpush1.bf16.msra.mxu0 0
        %4937 = vmatprep.subr.bf16.mxu0 0
        %4938 = vmatpush1.bf16.msra.mxu0 0
        %4939 = vmatprep.subr.bf16.mxu0 0
        %4940 = vmatpush1.bf16.msra.mxu0 0
        %4941 = vmatprep.subr.bf16.mxu0 0
        %4942 = vmatpush1.bf16.msra.mxu0 0
        %4943 = vmatprep.subr.bf16.mxu0 0
        %4944 = vmatpush1.bf16.msra.mxu0 0
        %4945 = vmatprep.subr.bf16.mxu0 0
        %4946 = vmatpush1.bf16.msra.mxu0 0
        %4947 = vmatprep.subr.bf16.mxu0 0
        %4948 = vmatpush1.bf16.msra.mxu0 0
        %4949 = vmatprep.subr.bf16.mxu0 0
        %4950 = vmatpush1.bf16.msra.mxu0 0
        %4951 = vmatprep.subr.bf16.mxu0 0
        %4952 = vmatpush1.bf16.msra.mxu0 0
        %4953 = vmatprep.subr.bf16.mxu0 0
        %4954 = vmatpush1.bf16.msra.mxu0 0
        %4955 = vmatprep.subr.bf16.mxu0 0
        %4956 = vmatpush1.bf16.msra.mxu0 0
        %4957 = vmatprep.subr.bf16.mxu0 0
        %4958 = vmatpush1.bf16.msra.mxu0 0
        %4959 = vmatprep.subr.bf16.mxu0 0
        %4960 = vmatpush1.bf16.msra.mxu0 0
        %4961 = vmatprep.subr.bf16.mxu0 0
        %4962 = vmatpush1.bf16.msra.mxu0 0
        %4963 = vmatprep.mubr.bf16.mxu0 0
        %4964 = vmatmul.mubr.bf16.gmra.mrb[0].mxu0 %v3478
        %v4965 = vpop.f32.mrb[0].mxu0
        %v4966 = vadd.f32 %v4917, %v4965
        %v4967 = vpop.f32.mrb[0].mxu0
        %v4968 = vpop.f32.mrb[0].mxu0
        %v4969 = vadd.f32 %v4917, %v4968
        %v4970 = vpop.f32.mrb[0].mxu0
        %4971 = vdwg.mxu0
        %v4972 = vpack.c.bf16 %v4834, %v4834
        %v4973 = vpack.c.bf16 %v4837, %v4837
        %v4974 = vpack.c.bf16 %v4900, %v4900
        %v4975 = vpack.c.bf16 %v4903, %v4903
        %v4977 = vsel %vm1675, %v4972, 0
        %v4980 = vsel %vm1675, %v4974, 0
        %4982 = vmatprep.subr.bf16.mxu0 0
        %4983 = vmatpush1.bf16.xpose.msra.mxu0 %v4980
        %4984 = vmatprep.subr.bf16.mxu0 0
        %4985 = vmatpush1.bf16.xpose.msra.mxu0 0
        %4986 = vmatprep.subr.bf16.mxu0 0
        %4987 = vmatpush1.bf16.xpose.msra.mxu0 0
        %4988 = vmatprep.subr.bf16.mxu0 0
        %4989 = vmatpush1.bf16.xpose.msra.mxu0 0
        %4990 = vmatprep.subr.bf16.mxu0 0
        %4991 = vmatpush1.bf16.xpose.msra.mxu0 0
        %4992 = vmatprep.subr.bf16.mxu0 0
        %4993 = vmatpush1.bf16.xpose.msra.mxu0 0
        %4994 = vmatprep.subr.bf16.mxu0 0
        %4995 = vmatpush1.bf16.xpose.msra.mxu0 0
        %4996 = vmatprep.subr.bf16.mxu0 0
        %4997 = vmatpush1.bf16.xpose.msra.mxu0 0
        %4998 = vmatprep.subr.bf16.mxu0 0
        %4999 = vmatpush1.bf16.xpose.msra.mxu0 0
        %5000 = vmatprep.subr.bf16.mxu0 0
        %5001 = vmatpush1.bf16.xpose.msra.mxu0 0
        %5002 = vmatprep.subr.bf16.mxu0 0
        %5003 = vmatpush1.bf16.xpose.msra.mxu0 0
        %5004 = vmatprep.subr.bf16.mxu0 0
        %5005 = vmatpush1.bf16.xpose.msra.mxu0 0
        %5006 = vmatprep.subr.bf16.mxu0 0
        %5007 = vmatpush1.bf16.xpose.msra.mxu0 0
        %5008 = vmatprep.subr.bf16.mxu0 0
        %5009 = vmatpush1.bf16.xpose.msra.mxu0 0
        %5010 = vmatprep.subr.bf16.mxu0 0
        %5011 = vmatpush1.bf16.xpose.msra.mxu0 0
        %5012 = vmatprep.subr.bf16.mxu0 0
        %5013 = vmatpush1.bf16.xpose.msra.mxu0 0
        %5014 = vmatprep.mubr.bf16.mxu0 0
        %5015 = vmatmul.mubr.bf16.gmra.mrb[0].mxu0 %v4977
        %v5016 = vpop.f32.mrb[0].mxu0
        %v5017 = vadd.f32 %v1419, %v5016
        %v5018 = vpop.f32.mrb[0].mxu0
        %v5019 = vpop.f32.mrb[0].mxu0
        %v5020 = vpop.f32.mrb[0].mxu0
        %5021 = vdwg.mxu0
        %v5023 = vsel %vm1675, %v4973, 0
        %v5026 = vsel %vm1675, %v4975, 0
        %5028 = vmatprep.subr.bf16.mxu0 0
        %5029 = vmatpush1.bf16.xpose.msra.mxu0 %v5026
        %5030 = vmatprep.subr.bf16.mxu0 0
        %5031 = vmatpush1.bf16.xpose.msra.mxu0 0
        %5032 = vmatprep.subr.bf16.mxu0 0
        %5033 = vmatpush1.bf16.xpose.msra.mxu0 0
        %5034 = vmatprep.subr.bf16.mxu0 0
        %5035 = vmatpush1.bf16.xpose.msra.mxu0 0
        %5036 = vmatprep.subr.bf16.mxu0 0
        %5037 = vmatpush1.bf16.xpose.msra.mxu0 0
        %5038 = vmatprep.subr.bf16.mxu0 0
        %5039 = vmatpush1.bf16.xpose.msra.mxu0 0
        %5040 = vmatprep.subr.bf16.mxu0 0
        %5041 = vmatpush1.bf16.xpose.msra.mxu0 0
        %5042 = vmatprep.subr.bf16.mxu0 0
        %5043 = vmatpush1.bf16.xpose.msra.mxu0 0
        %5044 = vmatprep.subr.bf16.mxu0 0
        %5045 = vmatpush1.bf16.xpose.msra.mxu0 0
        %5046 = vmatprep.subr.bf16.mxu0 0
        %5047 = vmatpush1.bf16.xpose.msra.mxu0 0
        %5048 = vmatprep.subr.bf16.mxu0 0
        %5049 = vmatpush1.bf16.xpose.msra.mxu0 0
        %5050 = vmatprep.subr.bf16.mxu0 0
        %5051 = vmatpush1.bf16.xpose.msra.mxu0 0
        %5052 = vmatprep.subr.bf16.mxu0 0
        %5053 = vmatpush1.bf16.xpose.msra.mxu0 0
        %5054 = vmatprep.subr.bf16.mxu0 0
        %5055 = vmatpush1.bf16.xpose.msra.mxu0 0
        %5056 = vmatprep.subr.bf16.mxu0 0
        %5057 = vmatpush1.bf16.xpose.msra.mxu0 0
        %5058 = vmatprep.subr.bf16.mxu0 0
        %5059 = vmatpush1.bf16.xpose.msra.mxu0 0
        %5060 = vmatprep.mubr.bf16.mxu0 0
        %5061 = vmatmul.mubr.bf16.gmra.mrb[0].mxu0 %v5023
        %v5062 = vpop.f32.mrb[0].mxu0
        %v5063 = vadd.f32 %v1420, %v5062
        %v5064 = vpop.f32.mrb[0].mxu0
        %v5065 = vpop.f32.mrb[0].mxu0
        %v5066 = vpop.f32.mrb[0].mxu0
        %5067 = vdwg.mxu0
        %v5068 = vsel %vm1675, %v5017, -inf
        %5069 = vmax.xlane.f32.xlu0 %v5068
        %v5070 = vpop.xlane.xlu0 %5069
        %v5071 = vsel %vm1675, %v5063, -inf
        %5072 = vmax.xlane.f32.xlu0 %v5071
        %v5073 = vpop.xlane.xlu0 %5072
        %v5074 = vsub.f32 %v5017, %v5070
        %v5075 = vsub.f32 %v5063, %v5073
        %v5076 = vmul.f32 %v5074, 1.442695
        %v5077 = vpow.pop %v5076
        %v5078 = vmul.f32 %v5075, 1.442695
        %v5079 = vpow.pop %v5078
        %v5080 = vsel %vm1675, %v5077, 0.0
        %5081 = vadd.xlane.f32.xlu0 %v5080
        %v5082 = vpop.xlane.xlu0 %5081
        %v5083 = vsel %vm1675, %v5079, 0.0
        %5084 = vadd.xlane.f32.xlu0 %v5083
        %v5085 = vpop.xlane.xlu0 %5084
        %v5086 = vrcp.pop %v5082
        %v5087 = vrcp.pop %v5085
        %v5088 = vmul.f32 %v5077, %v5086
        %v5089 = vmul.f32 %v5079, %v5087
        %v5090 = vpack.c.bf16 %v5088, %v5088
        %v5091 = vpack.c.bf16 %v5089, %v5089
        %v5092 = vpack.c.bf16 %v4966, %v4966
        %v5093 = vpack.c.bf16 %v4969, %v4969
        %v5095 = vsel %vm1675, %v5090, 0
        %v5098 = vsel %vm1797, %v5092, 0
        %5100 = vmatprep.subr.bf16.mxu0 0
        %5101 = vmatpush1.bf16.msra.mxu0 %v5098
        %5102 = vmatprep.subr.bf16.mxu0 0
        %5103 = vmatpush1.bf16.msra.mxu0 0
        %5104 = vmatprep.subr.bf16.mxu0 0
        %5105 = vmatpush1.bf16.msra.mxu0 0
        %5106 = vmatprep.subr.bf16.mxu0 0
        %5107 = vmatpush1.bf16.msra.mxu0 0
        %5108 = vmatprep.subr.bf16.mxu0 0
        %5109 = vmatpush1.bf16.msra.mxu0 0
        %5110 = vmatprep.subr.bf16.mxu0 0
        %5111 = vmatpush1.bf16.msra.mxu0 0
        %5112 = vmatprep.subr.bf16.mxu0 0
        %5113 = vmatpush1.bf16.msra.mxu0 0
        %5114 = vmatprep.subr.bf16.mxu0 0
        %5115 = vmatpush1.bf16.msra.mxu0 0
        %5116 = vmatprep.subr.bf16.mxu0 0
        %5117 = vmatpush1.bf16.msra.mxu0 0
        %5118 = vmatprep.subr.bf16.mxu0 0
        %5119 = vmatpush1.bf16.msra.mxu0 0
        %5120 = vmatprep.subr.bf16.mxu0 0
        %5121 = vmatpush1.bf16.msra.mxu0 0
        %5122 = vmatprep.subr.bf16.mxu0 0
        %5123 = vmatpush1.bf16.msra.mxu0 0
        %5124 = vmatprep.subr.bf16.mxu0 0
        %5125 = vmatpush1.bf16.msra.mxu0 0
        %5126 = vmatprep.subr.bf16.mxu0 0
        %5127 = vmatpush1.bf16.msra.mxu0 0
        %5128 = vmatprep.subr.bf16.mxu0 0
        %5129 = vmatpush1.bf16.msra.mxu0 0
        %5130 = vmatprep.subr.bf16.mxu0 0
        %5131 = vmatpush1.bf16.msra.mxu0 0
        %5132 = vmatprep.mubr.bf16.mxu0 0
        %5133 = vmatmul.mubr.bf16.gmra.mrb[0].mxu0 %v5095
        %v5134 = vpop.f32.mrb[0].mxu0
        %v5135 = vadd.f32 0.0, %v5134
        %v5136 = vpop.f32.mrb[0].mxu0
        %v5137 = vpop.f32.mrb[0].mxu0
        %v5138 = vpop.f32.mrb[0].mxu0
        %5139 = vdwg.mxu0
        %v5141 = vsel %vm1675, %v5091, 0
        %v5144 = vsel %vm1797, %v5093, 0
        %5146 = vmatprep.subr.bf16.mxu0 0
        %5147 = vmatpush1.bf16.msra.mxu0 %v5144
        %5148 = vmatprep.subr.bf16.mxu0 0
        %5149 = vmatpush1.bf16.msra.mxu0 0
        %5150 = vmatprep.subr.bf16.mxu0 0
        %5151 = vmatpush1.bf16.msra.mxu0 0
        %5152 = vmatprep.subr.bf16.mxu0 0
        %5153 = vmatpush1.bf16.msra.mxu0 0
        %5154 = vmatprep.subr.bf16.mxu0 0
        %5155 = vmatpush1.bf16.msra.mxu0 0
        %5156 = vmatprep.subr.bf16.mxu0 0
        %5157 = vmatpush1.bf16.msra.mxu0 0
        %5158 = vmatprep.subr.bf16.mxu0 0
        %5159 = vmatpush1.bf16.msra.mxu0 0
        %5160 = vmatprep.subr.bf16.mxu0 0
        %5161 = vmatpush1.bf16.msra.mxu0 0
        %5162 = vmatprep.subr.bf16.mxu0 0
        %5163 = vmatpush1.bf16.msra.mxu0 0
        %5164 = vmatprep.subr.bf16.mxu0 0
        %5165 = vmatpush1.bf16.msra.mxu0 0
        %5166 = vmatprep.subr.bf16.mxu0 0
        %5167 = vmatpush1.bf16.msra.mxu0 0
        %5168 = vmatprep.subr.bf16.mxu0 0
        %5169 = vmatpush1.bf16.msra.mxu0 0
        %5170 = vmatprep.subr.bf16.mxu0 0
        %5171 = vmatpush1.bf16.msra.mxu0 0
        %5172 = vmatprep.subr.bf16.mxu0 0
        %5173 = vmatpush1.bf16.msra.mxu0 0
        %5174 = vmatprep.subr.bf16.mxu0 0
        %5175 = vmatpush1.bf16.msra.mxu0 0
        %5176 = vmatprep.subr.bf16.mxu0 0
        %5177 = vmatpush1.bf16.msra.mxu0 0
        %5178 = vmatprep.mubr.bf16.mxu0 0
        %5179 = vmatmul.mubr.bf16.gmra.mrb[0].mxu0 %v5141
        %v5180 = vpop.f32.mrb[0].mxu0
        %v5181 = vadd.f32 0.0, %v5180
        %v5182 = vpop.f32.mrb[0].mxu0
        %v5183 = vpop.f32.mrb[0].mxu0
        %v5184 = vpop.f32.mrb[0].mxu0
        %5185 = vdwg.mxu0
        %v5186 = vpack.c.bf16 %v5181, %v5135
        %s5187 = scalar_lea.vmem %s1341, 12
        %v5188 = vld [vmem:[%s5187] sm:$0xf]
        %v5190 = vsel %vm1675, %v5186, 0
        %v5193 = vsel %vm1797, %v5188, 0
        %5195 = vmatprep.subr.bf16.mxu0 0
        %5196 = vmatpush1.bf16.msra.mxu0 %v5193
        %5197 = vmatprep.subr.bf16.mxu0 0
        %5198 = vmatpush1.bf16.msra.mxu0 0
        %5199 = vmatprep.subr.bf16.mxu0 0
        %5200 = vmatpush1.bf16.msra.mxu0 0
        %5201 = vmatprep.subr.bf16.mxu0 0
        %5202 = vmatpush1.bf16.msra.mxu0 0
        %5203 = vmatprep.subr.bf16.mxu0 0
        %5204 = vmatpush1.bf16.msra.mxu0 0
        %5205 = vmatprep.subr.bf16.mxu0 0
        %5206 = vmatpush1.bf16.msra.mxu0 0
        %5207 = vmatprep.subr.bf16.mxu0 0
        %5208 = vmatpush1.bf16.msra.mxu0 0
        %5209 = vmatprep.subr.bf16.mxu0 0
        %5210 = vmatpush1.bf16.msra.mxu0 0
        %5211 = vmatprep.subr.bf16.mxu0 0
        %5212 = vmatpush1.bf16.msra.mxu0 0
        %5213 = vmatprep.subr.bf16.mxu0 0
        %5214 = vmatpush1.bf16.msra.mxu0 0
        %5215 = vmatprep.subr.bf16.mxu0 0
        %5216 = vmatpush1.bf16.msra.mxu0 0
        %5217 = vmatprep.subr.bf16.mxu0 0
        %5218 = vmatpush1.bf16.msra.mxu0 0
        %5219 = vmatprep.subr.bf16.mxu0 0
        %5220 = vmatpush1.bf16.msra.mxu0 0
        %5221 = vmatprep.subr.bf16.mxu0 0
        %5222 = vmatpush1.bf16.msra.mxu0 0
        %5223 = vmatprep.subr.bf16.mxu0 0
        %5224 = vmatpush1.bf16.msra.mxu0 0
        %5225 = vmatprep.subr.bf16.mxu0 0
        %5226 = vmatpush1.bf16.msra.mxu0 0
        %5227 = vmatprep.mubr.bf16.mxu0 0
        %5228 = vmatmul.mubr.bf16.gmra.mrb[0].mxu0 %v5190
        %v5229 = vpop.f32.mrb[0].mxu0
        %v5230 = vadd.f32 0.0, %v5229
        %v5231 = vpop.f32.mrb[0].mxu0
        %v5232 = vpop.f32.mrb[0].mxu0
        %v5233 = vadd.f32 0.0, %v5232
        %v5234 = vpop.f32.mrb[0].mxu0
        %5235 = vdwg.mxu0
        %v5236 = vadd.f32 %v4772, %v5230
        %v5237 = vadd.f32 %v4773, %v5233
        %v5238 = vld [vmem:[%s1344] sm:$0x1]
        %v5240 = vlaneseq
        %v5241 = vshrl.u32 %v5240, 7
        %v5242 = vsub.s32 0, %v5241
        %v5243 = vrot.slane %v5238, %v5242
        %v5245 = vadd.f32 %v5236, %v5243
        %v5246 = vadd.f32 %v5237, %v5243
        %v5247 = vadd.f32 %v3335, %v5245
        %v5248 = vadd.f32 %v3336, %v5246
        %v5249 = vld [vmem:[%s1347] sm:$0x1]
        %v5250 = vld [vmem:[%s1350] sm:$0x1]
        %v5251 = vsel %vm1427, %v5247, 0.0
        %5252 = vadd.xlane.f32.xlu0 %v5251
        %v5253 = vpop.xlane.xlu0 %5252
        %v5254 = vsel %vm1427, %v5248, 0.0
        %5255 = vadd.xlane.f32.xlu0 %v5254
        %v5256 = vpop.xlane.xlu0 %5255
        %v5257 = vmul.f32 %v5253, %v1434
        %v5258 = vmul.f32 %v5256, %v1434
        %v5259 = vmul.f32 %v5247, %v5247
        %v5260 = vmul.f32 %v5248, %v5248
        %v5261 = vsel %vm1427, %v5259, 0.0
        %5262 = vadd.xlane.f32.xlu0 %v5261
        %v5263 = vpop.xlane.xlu0 %5262
        %v5264 = vsel %vm1427, %v5260, 0.0
        %5265 = vadd.xlane.f32.xlu0 %v5264
        %v5266 = vpop.xlane.xlu0 %5265
        %v5267 = vmul.f32 %v5263, %v1434
        %v5268 = vmul.f32 %v5266, %v1434
        %v5269 = vmul.f32 %v5257, %v5257
        %v5270 = vmul.f32 %v5258, %v5258
        %v5271 = vsub.f32 %v5267, %v5269
        %v5272 = vsub.f32 %v5268, %v5270
        %v5273 = vsub.f32 %v5247, %v5257
        %v5274 = vsub.f32 %v5248, %v5258
        %v5275 = vadd.f32 %v5271, 1e-05
        %v5276 = vadd.f32 %v5272, 1e-05
        %v5277 = vrsqrt.pop %v5275
        %v5278 = vrsqrt.pop %v5276
        %v5279 = vmul.f32 %v5273, %v5277
        %v5280 = vmul.f32 %v5274, %v5278
        %v5282 = vlaneseq
        %v5283 = vshrl.u32 %v5282, 7
        %v5284 = vsub.s32 0, %v5283
        %v5285 = vrot.slane %v5249, %v5284
        %v5287 = vmul.f32 %v5279, %v5285
        %v5288 = vmul.f32 %v5280, %v5285
        %v5290 = vlaneseq
        %v5291 = vshrl.u32 %v5290, 7
        %v5292 = vsub.s32 0, %v5291
        %v5293 = vrot.slane %v5250, %v5292
        %v5295 = vadd.f32 %v5287, %v5293
        %v5296 = vadd.f32 %v5288, %v5293
        %v5297 = vpack.c.bf16 %v5296, %v5295
        %v5298 = vld [vmem:[%s1355] sm:$0xf]
        %v5299 = vld [vmem:[%s1355 + $0x4] sm:$0xf]
        %v5300 = vld [vmem:[%s1355 + $0x8] sm:$0xf]
        %v5301 = vld [vmem:[%s1355 + $0xc] sm:$0xf]
        %v5302 = vld [vmem:[%s1358] sm:$0x1]
        %v5304 = vlaneseq
        %v5305 = vshrl.u32 %v5304, 7
        %v5306 = vsub.s32 0, %v5305
        %v5307 = vrot.slane %v5302, %v5306
        %v5313 = vunpack.c.l.b16 %v5298
        %v5314 = vunpack.c.l.b16 %v5299
        %v5315 = vunpack.c.l.b16 %v5300
        %v5316 = vunpack.c.l.b16 %v5301
        %v5317 = vpack.c.b16 %v5314, %v5313
        %v5318 = vpack.c.b16 %v5316, %v5315
        %v5322 = vsel %vm1427, %v5297, 0
        %5324 = vmatprep.subr.bf16.mxu0 0
        %5325 = vmatpush1.bf16.msra.mxu0 %v5317
        %5326 = vmatprep.subr.bf16.mxu0 0
        %5327 = vmatpush1.bf16.msra.mxu0 %v5318
        %5328 = vmatprep.subr.bf16.mxu0 0
        %5329 = vmatpush1.bf16.msra.mxu0 0
        %5330 = vmatprep.subr.bf16.mxu0 0
        %5331 = vmatpush1.bf16.msra.mxu0 0
        %5332 = vmatprep.subr.bf16.mxu0 0
        %5333 = vmatpush1.bf16.msra.mxu0 0
        %5334 = vmatprep.subr.bf16.mxu0 0
        %5335 = vmatpush1.bf16.msra.mxu0 0
        %5336 = vmatprep.subr.bf16.mxu0 0
        %5337 = vmatpush1.bf16.msra.mxu0 0
        %5338 = vmatprep.subr.bf16.mxu0 0
        %5339 = vmatpush1.bf16.msra.mxu0 0
        %5340 = vmatprep.subr.bf16.mxu0 0
        %5341 = vmatpush1.bf16.msra.mxu0 0
        %5342 = vmatprep.subr.bf16.mxu0 0
        %5343 = vmatpush1.bf16.msra.mxu0 0
        %5344 = vmatprep.subr.bf16.mxu0 0
        %5345 = vmatpush1.bf16.msra.mxu0 0
        %5346 = vmatprep.subr.bf16.mxu0 0
        %5347 = vmatpush1.bf16.msra.mxu0 0
        %5348 = vmatprep.subr.bf16.mxu0 0
        %5349 = vmatpush1.bf16.msra.mxu0 0
        %5350 = vmatprep.subr.bf16.mxu0 0
        %5351 = vmatpush1.bf16.msra.mxu0 0
        %5352 = vmatprep.subr.bf16.mxu0 0
        %5353 = vmatpush1.bf16.msra.mxu0 0
        %5354 = vmatprep.subr.bf16.mxu0 0
        %5355 = vmatpush1.bf16.msra.mxu0 0
        %5356 = vmatprep.mubr.bf16.mxu0 0
        %5357 = vmatmul.mubr.bf16.gmra.mrb[0].mxu0 %v5322
        %v5358 = vpop.f32.mrb[0].mxu0
        %v5359 = vadd.f32 %v5307, %v5358
        %v5360 = vpop.f32.mrb[0].mxu0
        %v5361 = vpop.f32.mrb[0].mxu0
        %v5362 = vadd.f32 %v5307, %v5361
        %v5363 = vpop.f32.mrb[0].mxu0
        %5364 = vdwg.mxu0
        %v5365 = vmax.f32 %v5359, 0.0
        %v5366 = vmax.f32 %v5362, 0.0
        %v5367 = vpack.c.bf16 %v5366, %v5365
        %v5368 = vld [vmem:[%s1363] sm:$0xf]
        %v5369 = vld [vmem:[%s1363 + $0x4] sm:$0xf]
        %v5370 = vld [vmem:[%s1363 + $0x8] sm:$0xf]
        %v5371 = vld [vmem:[%s1363 + $0xc] sm:$0xf]
        %v5372 = vld [vmem:[%s1363 + $0x10] sm:$0xf]
        %v5373 = vld [vmem:[%s1363 + $0x14] sm:$0xf]
        %v5374 = vld [vmem:[%s1363 + $0x18] sm:$0xf]
        %v5375 = vld [vmem:[%s1363 + $0x1c] sm:$0xf]
        %v5376 = vld [vmem:[%s1363 + $0x20] sm:$0xf]
        %v5377 = vld [vmem:[%s1363 + $0x24] sm:$0xf]
        %v5378 = vld [vmem:[%s1363 + $0x28] sm:$0xf]
        %v5379 = vld [vmem:[%s1363 + $0x2c] sm:$0xf]
        %v5380 = vld [vmem:[%s1363 + $0x30] sm:$0xf]
        %v5381 = vld [vmem:[%s1363 + $0x34] sm:$0xf]
        %v5382 = vld [vmem:[%s1363 + $0x38] sm:$0xf]
        %v5383 = vld [vmem:[%s1363 + $0x3c] sm:$0xf]
        %v5400 = vunpack.c.l.b16 %v5368
        %v5401 = vunpack.c.l.b16 %v5369
        %v5402 = vunpack.c.l.b16 %v5370
        %v5403 = vunpack.c.l.b16 %v5371
        %v5404 = vunpack.c.l.b16 %v5372
        %v5405 = vunpack.c.l.b16 %v5373
        %v5406 = vunpack.c.l.b16 %v5374
        %v5407 = vunpack.c.l.b16 %v5375
        %v5408 = vunpack.c.l.b16 %v5376
        %v5409 = vunpack.c.l.b16 %v5377
        %v5410 = vunpack.c.l.b16 %v5378
        %v5411 = vunpack.c.l.b16 %v5379
        %v5412 = vunpack.c.l.b16 %v5380
        %v5413 = vunpack.c.l.b16 %v5381
        %v5414 = vunpack.c.l.b16 %v5382
        %v5415 = vunpack.c.l.b16 %v5383
        %v5416 = vpack.c.b16 %v5401, %v5400
        %v5417 = vpack.c.b16 %v5403, %v5402
        %v5418 = vpack.c.b16 %v5405, %v5404
        %v5419 = vpack.c.b16 %v5407, %v5406
        %v5420 = vpack.c.b16 %v5409, %v5408
        %v5421 = vpack.c.b16 %v5411, %v5410
        %v5422 = vpack.c.b16 %v5413, %v5412
        %v5423 = vpack.c.b16 %v5415, %v5414
        %5432 = vmatprep.subr.bf16.mxu0 0
        %5433 = vmatpush1.bf16.msra.mxu0 %v5416
        %5434 = vmatprep.subr.bf16.mxu0 0
        %5435 = vmatpush1.bf16.msra.mxu0 %v5417
        %5436 = vmatprep.subr.bf16.mxu0 0
        %5437 = vmatpush1.bf16.msra.mxu0 %v5418
        %5438 = vmatprep.subr.bf16.mxu0 0
        %5439 = vmatpush1.bf16.msra.mxu0 %v5419
        %5440 = vmatprep.subr.bf16.mxu0 0
        %5441 = vmatpush1.bf16.msra.mxu0 %v5420
        %5442 = vmatprep.subr.bf16.mxu0 0
        %5443 = vmatpush1.bf16.msra.mxu0 %v5421
        %5444 = vmatprep.subr.bf16.mxu0 0
        %5445 = vmatpush1.bf16.msra.mxu0 %v5422
        %5446 = vmatprep.subr.bf16.mxu0 0
        %5447 = vmatpush1.bf16.msra.mxu0 %v5423
        %5448 = vmatprep.subr.bf16.mxu0 0
        %5449 = vmatpush1.bf16.msra.mxu0 0
        %5450 = vmatprep.subr.bf16.mxu0 0
        %5451 = vmatpush1.bf16.msra.mxu0 0
        %5452 = vmatprep.subr.bf16.mxu0 0
        %5453 = vmatpush1.bf16.msra.mxu0 0
        %5454 = vmatprep.subr.bf16.mxu0 0
        %5455 = vmatpush1.bf16.msra.mxu0 0
        %5456 = vmatprep.subr.bf16.mxu0 0
        %5457 = vmatpush1.bf16.msra.mxu0 0
        %5458 = vmatprep.subr.bf16.mxu0 0
        %5459 = vmatpush1.bf16.msra.mxu0 0
        %5460 = vmatprep.subr.bf16.mxu0 0
        %5461 = vmatpush1.bf16.msra.mxu0 0
        %5462 = vmatprep.subr.bf16.mxu0 0
        %5463 = vmatpush1.bf16.msra.mxu0 0
        %5464 = vmatprep.mubr.bf16.mxu0 0
        %5465 = vmatmul.mubr.bf16.gmra.mrb[0].mxu0 %v5367
        %v5466 = vpop.f32.mrb[0].mxu0
        %v5467 = vadd.f32 0.0, %v5466
        %v5468 = vpop.f32.mrb[0].mxu0
        %v5469 = vpop.f32.mrb[0].mxu0
        %v5470 = vadd.f32 0.0, %v5469
        %v5471 = vpop.f32.mrb[0].mxu0
        %5472 = vdwg.mxu0
        %v5473 = vadd.f32 %v5247, %v5467
        %v5474 = vadd.f32 %v5248, %v5470
        %v5475 = vld [vmem:[%s1366] sm:$0x1]
        %v5477 = vlaneseq
        %v5478 = vshrl.u32 %v5477, 7
        %v5479 = vsub.s32 0, %v5478
        %v5480 = vrot.slane %v5475, %v5479
        %v5482 = vadd.f32 %v5473, %v5480
        %v5483 = vadd.f32 %v5474, %v5480
        %5484 = vst.msk [vmem:[#allocation2] sm:$0xff] %vm1427, %v5482
        %5485 = vst.msk [vmem:[#allocation2 + $0x8] sm:$0xff] %vm1427, %v5483
        %p5486 = scmp.eq.s32.totalorder %s75, 1
        // Predicated region
        $region149: #{tpu_custom_call.1} parent=143 // pred_check
          %p5487 = pneg %p5486
        $region150: #{tpu_custom_call.1} parent=143 // pred_check_branch
          %5489 = sbr.rel (%p5487) target = $region152
        $region151: #{tpu_custom_call.1} parent=143 // pred_region
          %v5490 = vld [vmem:[%s59] sm:$0x1]
          %v5491 = vld [vmem:[%s61] sm:$0x1]
          %v5492 = vsel %vm1427, %v5482, 0.0
          %5493 = vadd.xlane.f32.xlu0 %v5492
          %v5494 = vpop.xlane.xlu0 %5493
          %v5495 = vsel %vm1427, %v5483, 0.0
          %5496 = vadd.xlane.f32.xlu0 %v5495
          %v5497 = vpop.xlane.xlu0 %5496
          %v5498 = vmul.f32 %v5494, %v1434
          %v5499 = vmul.f32 %v5497, %v1434
          %v5500 = vmul.f32 %v5482, %v5482
          %v5501 = vmul.f32 %v5483, %v5483
          %v5502 = vsel %vm1427, %v5500, 0.0
          %5503 = vadd.xlane.f32.xlu0 %v5502
          %v5504 = vpop.xlane.xlu0 %5503
          %v5505 = vsel %vm1427, %v5501, 0.0
          %5506 = vadd.xlane.f32.xlu0 %v5505
          %v5507 = vpop.xlane.xlu0 %5506
          %v5508 = vmul.f32 %v5504, %v1434
          %v5509 = vmul.f32 %v5507, %v1434
          %v5510 = vmul.f32 %v5498, %v5498
          %v5511 = vmul.f32 %v5499, %v5499
          %v5512 = vsub.f32 %v5508, %v5510
          %v5513 = vsub.f32 %v5509, %v5511
          %v5514 = vsub.f32 %v5482, %v5498
          %v5515 = vsub.f32 %v5483, %v5499
          %v5516 = vadd.f32 %v5512, 1e-05
          %v5517 = vadd.f32 %v5513, 1e-05
          %v5518 = vrsqrt.pop %v5516
          %v5519 = vrsqrt.pop %v5517
          %v5520 = vmul.f32 %v5514, %v5518
          %v5521 = vmul.f32 %v5515, %v5519
          %v5523 = vlaneseq
          %v5524 = vshrl.u32 %v5523, 7
          %v5525 = vsub.s32 0, %v5524
          %v5526 = vrot.slane %v5490, %v5525
          %v5528 = vmul.f32 %v5520, %v5526
          %v5529 = vmul.f32 %v5521, %v5526
          %v5531 = vlaneseq
          %v5532 = vshrl.u32 %v5531, 7
          %v5533 = vsub.s32 0, %v5532
          %v5534 = vrot.slane %v5491, %v5533
          %v5536 = vadd.f32 %v5528, %v5534
          %v5537 = vadd.f32 %v5529, %v5534
          %5538 = vst.msk [vmem:[#allocation3] sm:$0xff] %vm1427, %v5536
          %5539 = vst.msk [vmem:[#allocation3 + $0x8] sm:$0xff] %vm1427, %v5537
        $region152: #{tpu_custom_call.1} parent=143 // pred_fallthru
          _
        // Predicated region
        $region153: #{tpu_custom_call.1} parent=143 // pred_check
          %p5540 = pneg %p869
        $region154: #{tpu_custom_call.1} parent=143 // pred_check_branch
          %5542 = sbr.rel (%p5540) target = $region156
        $region155: #{tpu_custom_call.1} parent=143 // pred_region
          %s5544 = ssub.s32 256, 256
          %5545 = vsyncadd [#allocation4], %s5544
          %s5546 = sshll.u32 [#allocation3], 4
          %s5547 = int_to_ptr.vmem [resolvable:$true] %s5546
          %5552 = dma.vmem_to_hbm [thread:$0]  %s5547, 256, %s63, [#allocation4], 128, 128, 8
        $region156: #{tpu_custom_call.1} parent=143 // pred_fallthru
          _
        // Predicated region
        $region157: #{tpu_custom_call.1} parent=143 // pred_check
          %p5553 = pneg %p869
        $region158: #{tpu_custom_call.1} parent=143 // pred_check_branch
          %5555 = sbr.rel (%p5553) target = $region160
        $region159: #{tpu_custom_call.1} parent=143 // pred_region
          %5556 = dma.done [#allocation4], 256
        $region160: #{tpu_custom_call.1} parent=143 // pred_fallthru
          _
      $region144: #{tpu_custom_call.1} parent=5 // pred_fallthru
        _
      %p5557 = scmp.le.s32.totalorder 2, %s70
      // Predicated region
      $region161: #{tpu_custom_call.1} parent=5 // pred_check
        %p5558 = pneg %p5557
      $region162: #{tpu_custom_call.1} parent=5 // pred_check_branch
        %5560 = sbr.rel (%p5558) target = $region164
      $region163: #{tpu_custom_call.1} parent=5 // pred_region
        %s5561 = ssub.s32 %s70, 2
      $region164: #{tpu_custom_call.1} parent=5 // pred_fallthru
        _
    $region6: #{tpu_custom_call.1} parent=1 // loop_footer
      %s74 = sadd.s32 1, %s70
    $region7: #{tpu_custom_call.1} parent=1 // loop_footer_branch
      %69 = sbr.rel target = $region3
    $region8: #{tpu_custom_call.1} parent=1 // loop_exit
      _
    %5562 = vsyncpa [#allocation4], 1
    %s5563 = scalar_lea.sflag [#allocation4], 1
    %5564 = vsyncpa %s5563, 1

</llo_original>
